<compile_context>
chip_gen: v6e
topology: v6e:2x2x1
jax: 0.10.0
libtpu: 0.0.40
codegen_flags: <defaults>
</compile_context>

<pallas_src>
import jax
import jax.numpy as jnp
from jax.experimental import pallas as pl
from jax.experimental.pallas import tpu as pltpu


def _lstm_fc_kernel(x_ref, wih0_ref, whh0_ref, b0_ref,
                    wfused_ref, bfused_ref, wfc_ref, bfc_ref,
                    out_ref,
                    gin_ref, hall_ref, call_ref):
    """One batch block.

    x_ref:      (1, T*Bb, I)  time-major-flat f32 input for this batch block.
    wih0_ref:   (I, 4H)  bf16     whh0_ref: (H, 4H) bf16     b0_ref: (1, 4H) f32
    wfused_ref: (L-1, 2H, 4H) bf16 = [W_ih_l^T ; W_hh_l^T]   bfused_ref: (L-1, 1, 4H) f32
    wfc_ref:    (H, C_pad) bf16   bfc_ref: (1, C_pad) f32
    out_ref:    (Bb, C_pad) f32 (lane-dense padded FC output)
    gin_ref:    (T*Bb, 4H) f32 scratch — layer-0 precomputed gate pre-activations
    hall_ref:   (Bb, L*H) f32 scratch — layer l's h in columns [l*H:(l+1)*H]
    call_ref:   (Bb, L*H) f32 scratch — layer l's c in columns [l*H:(l+1)*H]
    Gate order in the 4H axis is [i, f, o, g] (pre-permuted host-side).
    """
    Bb = hall_ref.shape[0]
    H = whh0_ref.shape[0]
    L = wfused_ref.shape[0] + 1
    T = gin_ref.shape[0] // Bb
    H3 = 3 * H

    # Zero initial state.
    hall_ref[...] = jnp.zeros_like(hall_ref)
    call_ref[...] = jnp.zeros_like(call_ref)

    # Layer-0 input projection, hoisted off the serial chain: one batched bf16 MXU
    # matmul with the (b_ih + b_hh) bias folded in.
    gin_ref[...] = (
        jnp.dot(x_ref[0].astype(jnp.bfloat16), wih0_ref[...],
                preferred_element_type=jnp.float32)
        + b0_ref[...])

    def cell_update(l, gates):
        # Gate order [i, f, o, g]: one contiguous 3H sigmoid slab + one tanh slab
        # (one fewer dependent EUP dispatch on the latency-critical chain).
        s = jax.nn.sigmoid(gates[:, :H3])           # i | f | o
        g = jnp.tanh(gates[:, H3:])                 # g
        c_new = s[:, H:2 * H] * call_ref[:, l * H:(l + 1) * H] + s[:, :H] * g
        h_new = s[:, 2 * H:H3] * jnp.tanh(c_new)
        call_ref[:, l * H:(l + 1) * H] = c_new
        hall_ref[:, l * H:(l + 1) * H] = h_new

    # Wavefront: at wave w, layer l advances to timestep t = w - l.  Layers are
    # processed top-down so layer l reads layer l-1's *pre-update* (step w-l) hidden
    # state; the per-wave updates are mutually independent and overlap on the MXU/EUP.
    # TODO(synk): for long T, switch the interior waves to a partially unrolled
    #             lax.fori_loop and hold W_hh weight-stationary in the MXU.
    for w in range(T + L - 1):
        for l in reversed(range(L)):
            t = w - l
            if 0 <= t < T:
                if l == 0:
                    # Only h @ W_hh remains on the serial chain for layer 0.
                    gates = (gin_ref[t * Bb:(t + 1) * Bb, :]
                             + jnp.dot(hall_ref[:, :H].astype(jnp.bfloat16),
                                       whh0_ref[...],
                                       preferred_element_type=jnp.float32))
                else:
                    # Fused input+recurrent matmul: contiguous [h_below, h_own]
                    # (Bb, 2H) column slice @ (2H, 4H) — K=256 fills the MXU once.
                    hin = hall_ref[:, (l - 1) * H:(l + 1) * H].astype(jnp.bfloat16)
                    gates = (jnp.dot(hin, wfused_ref[l - 1],
                                     preferred_element_type=jnp.float32)
                             + bfused_ref[l - 1])
                cell_update(l, gates)

    # FC head on the last layer's final hidden state; lane-dense padded width.
    out_ref[...] = (
        jnp.dot(hall_ref[:, (L - 1) * H:].astype(jnp.bfloat16), wfc_ref[...],
                preferred_element_type=jnp.float32)
        + bfc_ref[...])


def _permute_gates(a):
    """Reorder the last (4H) axis from PyTorch's [i, f, g, o] to [i, f, o, g]."""
    H = a.shape[-1] // 4
    i, f, g, o = a[..., :H], a[..., H:2 * H], a[..., 2 * H:3 * H], a[..., 3 * H:]
    return jnp.concatenate([i, f, o, g], axis=-1)


def _resident(shape):
    """Whole-array VMEM block that stays resident across the batch grid axis."""
    nd = len(shape)
    return pl.BlockSpec(shape, lambda b, _nd=nd: (0,) * _nd)


def init_params(key, input_size, hidden_size, num_layers, num_classes):
    """Deterministic params in PyTorch layout, transposed for x @ W style matmuls.

    Kept in canonical torch gate order [i,f,g,o] and f32; the wrapper does the gate
    permutation / layer fusion / bf16 cast / padding.
    """
    assert num_layers >= 2, "this packing assumes a multi-layer LSTM"
    k = 1.0 / jnp.sqrt(jnp.float32(hidden_size))
    keys = jax.random.split(key, 4 * num_layers + 2)

    def u(kk, shape):
        return jax.random.uniform(kk, shape, jnp.float32, minval=-k, maxval=k)

    params = {}
    # layer 0
    w_ih0 = u(keys[0], (4 * hidden_size, input_size))     # torch weight_ih_l0
    w_hh0 = u(keys[1], (4 * hidden_size, hidden_size))    # torch weight_hh_l0
    b_ih0 = u(keys[2], (4 * hidden_size,))
    b_hh0 = u(keys[3], (4 * hidden_size,))
    params["wih0"] = jnp.transpose(w_ih0)                  # (I, 4H)
    params["whh0"] = jnp.transpose(w_hh0)                  # (H, 4H)
    params["b0"] = (b_ih0 + b_hh0).reshape(1, 4 * hidden_size)

    # layers 1..L-1
    wihr, whhr, br = [], [], []
    for l in range(1, num_layers):
        base = 4 * l
        w_ih = u(keys[base + 0], (4 * hidden_size, hidden_size))
        w_hh = u(keys[base + 1], (4 * hidden_size, hidden_size))
        b_ih = u(keys[base + 2], (4 * hidden_size,))
        b_hh = u(keys[base + 3], (4 * hidden_size,))
        wihr.append(jnp.transpose(w_ih))
        whhr.append(jnp.transpose(w_hh))
        br.append((b_ih + b_hh).reshape(1, 4 * hidden_size))
    params["wihr"] = jnp.stack(wihr)                       # (L-1, H, 4H)
    params["whhr"] = jnp.stack(whhr)                       # (L-1, H, 4H)
    params["br"] = jnp.stack(br)                           # (L-1, 1, 4H)

    # fc: Linear(128, num_classes)
    kf = 1.0 / jnp.sqrt(jnp.float32(128))
    w_fc = jax.random.uniform(keys[-2], (num_classes, 128), jnp.float32, -kf, kf)
    b_fc = jax.random.uniform(keys[-1], (num_classes,), jnp.float32, -kf, kf)
    params["wfc"] = jnp.transpose(w_fc)                    # (128, C)
    params["bfc"] = b_fc.reshape(1, num_classes)
    return params


@jax.jit
def rnn_model_gen_forward(x, wih0, whh0, b0, wihr, whhr, br, wfc, bfc):
    """x: (B, T, I) batch_first, like the PyTorch module input. Returns (B, C)."""
    B, T, I = x.shape
    H = whh0.shape[0]
    L = wihr.shape[0] + 1
    C = wfc.shape[1]
    C_pad = ((C + 127) // 128) * 128

    # One batch block per TensorCore when the batch is big enough to split (v7x has
    # 2 TCs); the grid axis is "parallel" so megacore shards it.  1 block at B=8.
    nb = 2 if (B % 16 == 0) else 1
    Bb = B // nb

    # ---- parameter prep (gate permutation [i,f,g,o] -> [i,f,o,g], layer fusion,
    #      bf16 weight storage, lane-dense FC padding) ----
    wih0_p = _permute_gates(wih0).astype(jnp.bfloat16)                 # (I, 4H)
    whh0_p = _permute_gates(whh0).astype(jnp.bfloat16)                 # (H, 4H)
    b0_p = _permute_gates(b0).astype(jnp.float32)                      # (1, 4H)
    wfused = jnp.concatenate(
        [_permute_gates(wihr), _permute_gates(whhr)], axis=1
    ).astype(jnp.bfloat16)                                             # (L-1, 2H, 4H)
    bfused = _permute_gates(br).astype(jnp.float32)                    # (L-1, 1, 4H)
    wfc_p = jnp.pad(wfc, ((0, 0), (0, C_pad - C))).astype(jnp.bfloat16)
    bfc_p = jnp.pad(bfc, ((0, 0), (0, C_pad - C))).astype(jnp.float32)

    # Time-major, batch-blocked input: block b row (t*Bb + j) is batch row b*Bb + j at
    # timestep t, so each timestep's gate slab is a contiguous sublane-aligned tile.
    x_tm = jnp.transpose(x, (1, 0, 2)).astype(jnp.float32)             # (T, B, I)
    x_blk = (x_tm.reshape(T, nb, Bb, I)
                 .transpose(1, 0, 2, 3)
                 .reshape(nb, T * Bb, I))                              # (nb, T*Bb, I)

    flops = (2 * T * B * I * 4 * H                 # layer-0 input projection
             + 2 * T * B * H * 4 * H               # layer-0 recurrence
             + 2 * T * B * (L - 1) * 2 * H * 4 * H # fused upper layers
             + 2 * B * H * C_pad)                  # fc head
    cost = pl.CostEstimate(
        flops=flops,
        transcendentals=T * L * B * 5 * H,
        bytes_accessed=int(x.size * 4 + B * C_pad * 4
                           + 2 * (wih0.size + whh0.size + wihr.size
                                  + whhr.size + wfc.size)
                           + 4 * (b0.size + br.size + bfc.size)))

    out_padded = pl.pallas_call(
        _lstm_fc_kernel,
        out_shape=jax.ShapeDtypeStruct((B, C_pad), jnp.float32),
        grid=(nb,),
        in_specs=[
            pl.BlockSpec((1, T * Bb, I), lambda b: (b, 0, 0)),   # x batch block
            _resident(wih0_p.shape),
            _resident(whh0_p.shape),
            _resident(b0_p.shape),
            _resident(wfused.shape),
            _resident(bfused.shape),
            _resident(wfc_p.shape),
            _resident(bfc_p.shape),
        ],
        out_specs=pl.BlockSpec((Bb, C_pad), lambda b: (b, 0)),
        scratch_shapes=[
            pltpu.VMEM((T * Bb, 4 * H), jnp.float32),   # layer-0 gate pre-activations
            pltpu.VMEM((Bb, L * H), jnp.float32),       # all layers' h (contiguous cols)
            pltpu.VMEM((Bb, L * H), jnp.float32),       # all layers' c
        ],
        compiler_params=pltpu.CompilerParams(
            dimension_semantics=("parallel",)),
        # Total VMEM residency here is well under 1 MiB; set vmem_limit_bytes /
        # chunk gin_ref if T*B or H grow (v7x scoped default is 32 MiB).
        cost_estimate=cost,
    )(x_blk, wih0_p, whh0_p, b0_p, wfused, bfused, wfc_p, bfc_p)

    # x.view(1, B, 128) -> fc -> squeeze() collapses back to (B, C) for B > 1.
    return out_padded[:, :C]


def _reference_forward(x, p):
    """Pure-JAX f32 reference of the same semantics (for correctness check)."""
    B, T, _ = x.shape
    H = p["whh0"].shape[0]

    def run_layer(inp, wih, whh, b):
        h = jnp.zeros((B, H), jnp.float32)
        c = jnp.zeros((B, H), jnp.float32)
        outs = []
        for t in range(T):
            gates = inp[:, t, :] @ wih + h @ whh + b
            i_g = jax.nn.sigmoid(gates[:, 0:H])
            f_g = jax.nn.sigmoid(gates[:, H:2 * H])
            g_g = jnp.tanh(gates[:, 2 * H:3 * H])
            o_g = jax.nn.sigmoid(gates[:, 3 * H:4 * H])
            c = f_g * c + i_g * g_g
            h = o_g * jnp.tanh(c)
            outs.append(h)
        return jnp.stack(outs, axis=1), h

    seq, h = run_layer(x, p["wih0"], p["whh0"], p["b0"])
    for l in range(p["wihr"].shape[0]):
        seq, h = run_layer(seq, p["wihr"][l], p["whhr"][l], p["br"][l])
    return h @ p["wfc"] + p["bfc"]


if __name__ == "__main__":
    # fc input must be 128 -> hidden_size = 128; small B/T consistent with the module.
    B, T, INPUT_SIZE, HIDDEN, LAYERS, NUM_CLASSES = 8, 8, 32, 128, 2, 10

    root = jax.random.PRNGKey(0)
    kx, kp = jax.random.split(root)
    x = jax.random.normal(kx, (B, T, INPUT_SIZE), jnp.float32)
    p = init_params(kp, INPUT_SIZE, HIDDEN, LAYERS, NUM_CLASSES)

    out = rnn_model_gen_forward(
        x, p["wih0"], p["whh0"], p["b0"],
        p["wihr"], p["whhr"], p["br"], p["wfc"], p["bfc"])
    out = jax.block_until_ready(out)

    ref = _reference_forward(x, p)
    assert out.shape == (B, NUM_CLASSES)
    # Tolerance relaxed for bf16 matmul operands (f32 state/accumulate throughout).
    assert jnp.max(jnp.abs(out - ref)) < 2.5e-2

    print("KERNEL_OK")
</pallas_src>

<mosaic_0001>
module attributes {stable_mosaic.version = 11 : i64} {
  func.func @_lstm_fc_kernel(%arg0: i32, %arg1: memref<1x64x32xf32, #tpu.memory_space<vmem>>, %arg2: memref<32x512xbf16, #tpu.memory_space<vmem>>, %arg3: memref<128x512xbf16, #tpu.memory_space<vmem>>, %arg4: memref<1x512xf32, #tpu.memory_space<vmem>>, %arg5: memref<1x256x512xbf16, #tpu.memory_space<vmem>>, %arg6: memref<1x1x512xf32, #tpu.memory_space<vmem>>, %arg7: memref<128x128xbf16, #tpu.memory_space<vmem>>, %arg8: memref<1x128xf32, #tpu.memory_space<vmem>>, %arg9: memref<8x128xf32, #tpu.memory_space<vmem>>, %arg10: memref<64x512xf32, #tpu.memory_space<vmem>>, %arg11: memref<8x256xf32, #tpu.memory_space<vmem>>, %arg12: memref<8x256xf32, #tpu.memory_space<vmem>>) attributes {dimension_semantics = [#tpu.dimension_semantics<parallel>], iteration_bounds = array<i64: 1>, scalar_prefetch = 0 : i64, scratch_operands = 3 : i64, tpu.core_type = #tpu.core_type<tc>, window_params = [{transform_indices = @transform_0, window_bounds = array<i64: 1, 64, 32>}, {pipeline_mode = #tpu.pipeline_mode<synchronous>, transform_indices = @transform_1, window_bounds = array<i64: 32, 512>}, {pipeline_mode = #tpu.pipeline_mode<synchronous>, transform_indices = @transform_2, window_bounds = array<i64: 128, 512>}, {pipeline_mode = #tpu.pipeline_mode<synchronous>, transform_indices = @transform_3, window_bounds = array<i64: 1, 512>}, {pipeline_mode = #tpu.pipeline_mode<synchronous>, transform_indices = @transform_4, window_bounds = array<i64: 1, 256, 512>}, {pipeline_mode = #tpu.pipeline_mode<synchronous>, transform_indices = @transform_5, window_bounds = array<i64: 1, 1, 512>}, {pipeline_mode = #tpu.pipeline_mode<synchronous>, transform_indices = @transform_6, window_bounds = array<i64: 128, 128>}, {pipeline_mode = #tpu.pipeline_mode<synchronous>, transform_indices = @transform_7, window_bounds = array<i64: 1, 128>}, {transform_indices = @transform_8, window_bounds = array<i64: 8, 128>}]} {
    %cst = arith.constant 0.000000e+00 : f32
    %0 = vector.broadcast %cst : f32 to vector<8x256xf32>
    %c0 = arith.constant 0 : index
    %c0_0 = arith.constant 0 : index
    %1 = vector.load %arg11[%c0, %c0_0] : memref<8x256xf32, #tpu.memory_space<vmem>>, vector<8x256xf32>
    tpu.vector_store %arg11[%c0, %c0_0], %0 {strides = array<i32>} : memref<8x256xf32, #tpu.memory_space<vmem>>, vector<8x256xf32>,
    %cst_1 = arith.constant 0.000000e+00 : f32
    %2 = vector.broadcast %cst_1 : f32 to vector<8x256xf32>
    %c0_2 = arith.constant 0 : index
    %c0_3 = arith.constant 0 : index
    %3 = vector.load %arg12[%c0_2, %c0_3] : memref<8x256xf32, #tpu.memory_space<vmem>>, vector<8x256xf32>
    tpu.vector_store %arg12[%c0_2, %c0_3], %2 {strides = array<i32>} : memref<8x256xf32, #tpu.memory_space<vmem>>, vector<8x256xf32>,
    %c0_4 = arith.constant 0 : index
    %c0_5 = arith.constant 0 : index
    %c0_6 = arith.constant 0 : index
    %4 = vector.load %arg1[%c0_4, %c0_5, %c0_6] : memref<1x64x32xf32, #tpu.memory_space<vmem>>, vector<1x64x32xf32>
    %5 = vector.shape_cast %4 : vector<1x64x32xf32> to vector<64x32xf32>
    %6 = arith.truncf %5 : vector<64x32xf32> to vector<64x32xbf16>
    %c0_7 = arith.constant 0 : index
    %c0_8 = arith.constant 0 : index
    %7 = vector.load %arg2[%c0_7, %c0_8] : memref<32x512xbf16, #tpu.memory_space<vmem>>, vector<32x512xbf16>
    %cst_9 = arith.constant dense<0.000000e+00> : vector<64x512xf32>
    %8 = tpu.matmul %6, %7, %cst_9 {dimension_numbers = #tpu.dot_dimension_numbers<[1], [0], [0], [1], [0, 0, 1, 1], [], []>} : vector<64x32xbf16>, vector<32x512xbf16>, vector<64x512xf32> -> vector<64x512xf32>
    %c0_10 = arith.constant 0 : index
    %c0_11 = arith.constant 0 : index
    %9 = vector.load %arg4[%c0_10, %c0_11] : memref<1x512xf32, #tpu.memory_space<vmem>>, vector<1x512xf32>
    %10 = vector.broadcast %9 : vector<1x512xf32> to vector<64x512xf32>
    %11 = arith.addf %8, %10 : vector<64x512xf32>
    %c0_12 = arith.constant 0 : index
    %c0_13 = arith.constant 0 : index
    %12 = vector.load %arg10[%c0_12, %c0_13] : memref<64x512xf32, #tpu.memory_space<vmem>>, vector<64x512xf32>
    tpu.vector_store %arg10[%c0_12, %c0_13], %11 {strides = array<i32>} : memref<64x512xf32, #tpu.memory_space<vmem>>, vector<64x512xf32>,
    %c0_14 = arith.constant 0 : index
    %c0_15 = arith.constant 0 : index
    %13 = vector.load %arg10[%c0_14, %c0_15] : memref<64x512xf32, #tpu.memory_space<vmem>>, vector<8x512xf32>
    %c0_16 = arith.constant 0 : index
    %c0_17 = arith.constant 0 : index
    %14 = vector.load %arg11[%c0_16, %c0_17] : memref<8x256xf32, #tpu.memory_space<vmem>>, vector<8x128xf32>
    %15 = arith.truncf %14 : vector<8x128xf32> to vector<8x128xbf16>
    %c0_18 = arith.constant 0 : index
    %c0_19 = arith.constant 0 : index
    %16 = vector.load %arg3[%c0_18, %c0_19] : memref<128x512xbf16, #tpu.memory_space<vmem>>, vector<128x512xbf16>
    %cst_20 = arith.constant dense<0.000000e+00> : vector<8x512xf32>
    %17 = tpu.matmul %15, %16, %cst_20 {dimension_numbers = #tpu.dot_dimension_numbers<[1], [0], [0], [1], [0, 0, 1, 1], [], []>} : vector<8x128xbf16>, vector<128x512xbf16>, vector<8x512xf32> -> vector<8x512xf32>
    %18 = arith.addf %13, %17 : vector<8x512xf32>
    %19 = vector.extract_strided_slice %18 {offsets = [0, 0], sizes = [8, 384], strides = [1, 1]} : vector<8x512xf32> to vector<8x384xf32>
    %20 = arith.negf %19 : vector<8x384xf32>
    %21 = math.exp %20 : vector<8x384xf32>
    %cst_21 = arith.constant 1.000000e+00 : f32
    %22 = vector.broadcast %cst_21 : f32 to vector<8x384xf32>
    %23 = arith.addf %22, %21 : vector<8x384xf32>
    %24 = arith.divf %22, %23 : vector<8x384xf32>
    %25 = vector.extract_strided_slice %18 {offsets = [0, 384], sizes = [8, 128], strides = [1, 1]} : vector<8x512xf32> to vector<8x128xf32>
    %26 = math.tanh %25 : vector<8x128xf32>
    %27 = vector.extract_strided_slice %24 {offsets = [0, 128], sizes = [8, 128], strides = [1, 1]} : vector<8x384xf32> to vector<8x128xf32>
    %c0_22 = arith.constant 0 : index
    %c0_23 = arith.constant 0 : index
    %28 = vector.load %arg12[%c0_22, %c0_23] : memref<8x256xf32, #tpu.memory_space<vmem>>, vector<8x128xf32>
    %29 = arith.mulf %27, %28 : vector<8x128xf32>
    %30 = vector.extract_strided_slice %24 {offsets = [0, 0], sizes = [8, 128], strides = [1, 1]} : vector<8x384xf32> to vector<8x128xf32>
    %31 = arith.mulf %30, %26 : vector<8x128xf32>
    %32 = arith.addf %29, %31 : vector<8x128xf32>
    %33 = vector.extract_strided_slice %24 {offsets = [0, 256], sizes = [8, 128], strides = [1, 1]} : vector<8x384xf32> to vector<8x128xf32>
    %34 = math.tanh %32 : vector<8x128xf32>
    %35 = arith.mulf %33, %34 : vector<8x128xf32>
    %c0_24 = arith.constant 0 : index
    %c0_25 = arith.constant 0 : index
    %36 = vector.load %arg12[%c0_24, %c0_25] : memref<8x256xf32, #tpu.memory_space<vmem>>, vector<8x128xf32>
    tpu.vector_store %arg12[%c0_24, %c0_25], %32 {strides = array<i32>} : memref<8x256xf32, #tpu.memory_space<vmem>>, vector<8x128xf32>,
    %c0_26 = arith.constant 0 : index
    %c0_27 = arith.constant 0 : index
    %37 = vector.load %arg11[%c0_26, %c0_27] : memref<8x256xf32, #tpu.memory_space<vmem>>, vector<8x128xf32>
    tpu.vector_store %arg11[%c0_26, %c0_27], %35 {strides = array<i32>} : memref<8x256xf32, #tpu.memory_space<vmem>>, vector<8x128xf32>,
    %c0_28 = arith.constant 0 : index
    %c0_29 = arith.constant 0 : index
    %38 = vector.load %arg11[%c0_28, %c0_29] : memref<8x256xf32, #tpu.memory_space<vmem>>, vector<8x256xf32>
    %39 = arith.truncf %38 : vector<8x256xf32> to vector<8x256xbf16>
    %c0_30 = arith.constant 0 : index
    %c0_31 = arith.constant 0 : index
    %c0_32 = arith.constant 0 : index
    %40 = vector.load %arg5[%c0_30, %c0_31, %c0_32] : memref<1x256x512xbf16, #tpu.memory_space<vmem>>, vector<1x256x512xbf16>
    %41 = vector.shape_cast %40 : vector<1x256x512xbf16> to vector<256x512xbf16>
    %cst_33 = arith.constant dense<0.000000e+00> : vector<8x512xf32>
    %42 = tpu.matmul %39, %41, %cst_33 {dimension_numbers = #tpu.dot_dimension_numbers<[1], [0], [0], [1], [0, 0, 1, 1], [], []>} : vector<8x256xbf16>, vector<256x512xbf16>, vector<8x512xf32> -> vector<8x512xf32>
    %c0_34 = arith.constant 0 : index
    %c0_35 = arith.constant 0 : index
    %c0_36 = arith.constant 0 : index
    %43 = vector.load %arg6[%c0_34, %c0_35, %c0_36] : memref<1x1x512xf32, #tpu.memory_space<vmem>>, vector<1x1x512xf32>
    %44 = vector.shape_cast %43 : vector<1x1x512xf32> to vector<1x512xf32>
    %45 = vector.broadcast %44 : vector<1x512xf32> to vector<8x512xf32>
    %46 = arith.addf %42, %45 : vector<8x512xf32>
    %47 = vector.extract_strided_slice %46 {offsets = [0, 0], sizes = [8, 384], strides = [1, 1]} : vector<8x512xf32> to vector<8x384xf32>
    %48 = arith.negf %47 : vector<8x384xf32>
    %49 = math.exp %48 : vector<8x384xf32>
    %cst_37 = arith.constant 1.000000e+00 : f32
    %50 = vector.broadcast %cst_37 : f32 to vector<8x384xf32>
    %51 = arith.addf %50, %49 : vector<8x384xf32>
    %52 = arith.divf %50, %51 : vector<8x384xf32>
    %53 = vector.extract_strided_slice %46 {offsets = [0, 384], sizes = [8, 128], strides = [1, 1]} : vector<8x512xf32> to vector<8x128xf32>
    %54 = math.tanh %53 : vector<8x128xf32>
    %55 = vector.extract_strided_slice %52 {offsets = [0, 128], sizes = [8, 128], strides = [1, 1]} : vector<8x384xf32> to vector<8x128xf32>
    %c0_38 = arith.constant 0 : index
    %c128 = arith.constant 128 : index
    %56 = vector.load %arg12[%c0_38, %c128] : memref<8x256xf32, #tpu.memory_space<vmem>>, vector<8x128xf32>
    %57 = arith.mulf %55, %56 : vector<8x128xf32>
    %58 = vector.extract_strided_slice %52 {offsets = [0, 0], sizes = [8, 128], strides = [1, 1]} : vector<8x384xf32> to vector<8x128xf32>
    %59 = arith.mulf %58, %54 : vector<8x128xf32>
    %60 = arith.addf %57, %59 : vector<8x128xf32>
    %61 = vector.extract_strided_slice %52 {offsets = [0, 256], sizes = [8, 128], strides = [1, 1]} : vector<8x384xf32> to vector<8x128xf32>
    %62 = math.tanh %60 : vector<8x128xf32>
    %63 = arith.mulf %61, %62 : vector<8x128xf32>
    %c0_39 = arith.constant 0 : index
    %c128_40 = arith.constant 128 : index
    %64 = vector.load %arg12[%c0_39, %c128_40] : memref<8x256xf32, #tpu.memory_space<vmem>>, vector<8x128xf32>
    tpu.vector_store %arg12[%c0_39, %c128_40], %60 {strides = array<i32>} : memref<8x256xf32, #tpu.memory_space<vmem>>, vector<8x128xf32>,
    %c0_41 = arith.constant 0 : index
    %c128_42 = arith.constant 128 : index
    %65 = vector.load %arg11[%c0_41, %c128_42] : memref<8x256xf32, #tpu.memory_space<vmem>>, vector<8x128xf32>
    tpu.vector_store %arg11[%c0_41, %c128_42], %63 {strides = array<i32>} : memref<8x256xf32, #tpu.memory_space<vmem>>, vector<8x128xf32>,
    %c8 = arith.constant 8 : index
    %c0_43 = arith.constant 0 : index
    %66 = vector.load %arg10[%c8, %c0_43] : memref<64x512xf32, #tpu.memory_space<vmem>>, vector<8x512xf32>
    %c0_44 = arith.constant 0 : index
    %c0_45 = arith.constant 0 : index
    %67 = vector.load %arg11[%c0_44, %c0_45] : memref<8x256xf32, #tpu.memory_space<vmem>>, vector<8x128xf32>
    %68 = arith.truncf %67 : vector<8x128xf32> to vector<8x128xbf16>
    %c0_46 = arith.constant 0 : index
    %c0_47 = arith.constant 0 : index
    %69 = vector.load %arg3[%c0_46, %c0_47] : memref<128x512xbf16, #tpu.memory_space<vmem>>, vector<128x512xbf16>
    %cst_48 = arith.constant dense<0.000000e+00> : vector<8x512xf32>
    %70 = tpu.matmul %68, %69, %cst_48 {dimension_numbers = #tpu.dot_dimension_numbers<[1], [0], [0], [1], [0, 0, 1, 1], [], []>} : vector<8x128xbf16>, vector<128x512xbf16>, vector<8x512xf32> -> vector<8x512xf32>
    %71 = arith.addf %66, %70 : vector<8x512xf32>
    %72 = vector.extract_strided_slice %71 {offsets = [0, 0], sizes = [8, 384], strides = [1, 1]} : vector<8x512xf32> to vector<8x384xf32>
    %73 = arith.negf %72 : vector<8x384xf32>
    %74 = math.exp %73 : vector<8x384xf32>
    %cst_49 = arith.constant 1.000000e+00 : f32
    %75 = vector.broadcast %cst_49 : f32 to vector<8x384xf32>
    %76 = arith.addf %75, %74 : vector<8x384xf32>
    %77 = arith.divf %75, %76 : vector<8x384xf32>
    %78 = vector.extract_strided_slice %71 {offsets = [0, 384], sizes = [8, 128], strides = [1, 1]} : vector<8x512xf32> to vector<8x128xf32>
    %79 = math.tanh %78 : vector<8x128xf32>
    %80 = vector.extract_strided_slice %77 {offsets = [0, 128], sizes = [8, 128], strides = [1, 1]} : vector<8x384xf32> to vector<8x128xf32>
    %c0_50 = arith.constant 0 : index
    %c0_51 = arith.constant 0 : index
    %81 = vector.load %arg12[%c0_50, %c0_51] : memref<8x256xf32, #tpu.memory_space<vmem>>, vector<8x128xf32>
    %82 = arith.mulf %80, %81 : vector<8x128xf32>
    %83 = vector.extract_strided_slice %77 {offsets = [0, 0], sizes = [8, 128], strides = [1, 1]} : vector<8x384xf32> to vector<8x128xf32>
    %84 = arith.mulf %83, %79 : vector<8x128xf32>
    %85 = arith.addf %82, %84 : vector<8x128xf32>
    %86 = vector.extract_strided_slice %77 {offsets = [0, 256], sizes = [8, 128], strides = [1, 1]} : vector<8x384xf32> to vector<8x128xf32>
    %87 = math.tanh %85 : vector<8x128xf32>
    %88 = arith.mulf %86, %87 : vector<8x128xf32>
    %c0_52 = arith.constant 0 : index
    %c0_53 = arith.constant 0 : index
    %89 = vector.load %arg12[%c0_52, %c0_53] : memref<8x256xf32, #tpu.memory_space<vmem>>, vector<8x128xf32>
    tpu.vector_store %arg12[%c0_52, %c0_53], %85 {strides = array<i32>} : memref<8x256xf32, #tpu.memory_space<vmem>>, vector<8x128xf32>,
    %c0_54 = arith.constant 0 : index
    %c0_55 = arith.constant 0 : index
    %90 = vector.load %arg11[%c0_54, %c0_55] : memref<8x256xf32, #tpu.memory_space<vmem>>, vector<8x128xf32>
    tpu.vector_store %arg11[%c0_54, %c0_55], %88 {strides = array<i32>} : memref<8x256xf32, #tpu.memory_space<vmem>>, vector<8x128xf32>,
    %c0_56 = arith.constant 0 : index
    %c0_57 = arith.constant 0 : index
    %91 = vector.load %arg11[%c0_56, %c0_57] : memref<8x256xf32, #tpu.memory_space<vmem>>, vector<8x256xf32>
    %92 = arith.truncf %91 : vector<8x256xf32> to vector<8x256xbf16>
    %c0_58 = arith.constant 0 : index
    %c0_59 = arith.constant 0 : index
    %c0_60 = arith.constant 0 : index
    %93 = vector.load %arg5[%c0_58, %c0_59, %c0_60] : memref<1x256x512xbf16, #tpu.memory_space<vmem>>, vector<1x256x512xbf16>
    %94 = vector.shape_cast %93 : vector<1x256x512xbf16> to vector<256x512xbf16>
    %cst_61 = arith.constant dense<0.000000e+00> : vector<8x512xf32>
    %95 = tpu.matmul %92, %94, %cst_61 {dimension_numbers = #tpu.dot_dimension_numbers<[1], [0], [0], [1], [0, 0, 1, 1], [], []>} : vector<8x256xbf16>, vector<256x512xbf16>, vector<8x512xf32> -> vector<8x512xf32>
    %c0_62 = arith.constant 0 : index
    %c0_63 = arith.constant 0 : index
    %c0_64 = arith.constant 0 : index
    %96 = vector.load %arg6[%c0_62, %c0_63, %c0_64] : memref<1x1x512xf32, #tpu.memory_space<vmem>>, vector<1x1x512xf32>
    %97 = vector.shape_cast %96 : vector<1x1x512xf32> to vector<1x512xf32>
    %98 = vector.broadcast %97 : vector<1x512xf32> to vector<8x512xf32>
    %99 = arith.addf %95, %98 : vector<8x512xf32>
    %100 = vector.extract_strided_slice %99 {offsets = [0, 0], sizes = [8, 384], strides = [1, 1]} : vector<8x512xf32> to vector<8x384xf32>
    %101 = arith.negf %100 : vector<8x384xf32>
    %102 = math.exp %101 : vector<8x384xf32>
    %cst_65 = arith.constant 1.000000e+00 : f32
    %103 = vector.broadcast %cst_65 : f32 to vector<8x384xf32>
    %104 = arith.addf %103, %102 : vector<8x384xf32>
    %105 = arith.divf %103, %104 : vector<8x384xf32>
    %106 = vector.extract_strided_slice %99 {offsets = [0, 384], sizes = [8, 128], strides = [1, 1]} : vector<8x512xf32> to vector<8x128xf32>
    %107 = math.tanh %106 : vector<8x128xf32>
    %108 = vector.extract_strided_slice %105 {offsets = [0, 128], sizes = [8, 128], strides = [1, 1]} : vector<8x384xf32> to vector<8x128xf32>
    %c0_66 = arith.constant 0 : index
    %c128_67 = arith.constant 128 : index
    %109 = vector.load %arg12[%c0_66, %c128_67] : memref<8x256xf32, #tpu.memory_space<vmem>>, vector<8x128xf32>
    %110 = arith.mulf %108, %109 : vector<8x128xf32>
    %111 = vector.extract_strided_slice %105 {offsets = [0, 0], sizes = [8, 128], strides = [1, 1]} : vector<8x384xf32> to vector<8x128xf32>
    %112 = arith.mulf %111, %107 : vector<8x128xf32>
    %113 = arith.addf %110, %112 : vector<8x128xf32>
    %114 = vector.extract_strided_slice %105 {offsets = [0, 256], sizes = [8, 128], strides = [1, 1]} : vector<8x384xf32> to vector<8x128xf32>
    %115 = math.tanh %113 : vector<8x128xf32>
    %116 = arith.mulf %114, %115 : vector<8x128xf32>
    %c0_68 = arith.constant 0 : index
    %c128_69 = arith.constant 128 : index
    %117 = vector.load %arg12[%c0_68, %c128_69] : memref<8x256xf32, #tpu.memory_space<vmem>>, vector<8x128xf32>
    tpu.vector_store %arg12[%c0_68, %c128_69], %113 {strides = array<i32>} : memref<8x256xf32, #tpu.memory_space<vmem>>, vector<8x128xf32>,
    %c0_70 = arith.constant 0 : index
    %c128_71 = arith.constant 128 : index
    %118 = vector.load %arg11[%c0_70, %c128_71] : memref<8x256xf32, #tpu.memory_space<vmem>>, vector<8x128xf32>
    tpu.vector_store %arg11[%c0_70, %c128_71], %116 {strides = array<i32>} : memref<8x256xf32, #tpu.memory_space<vmem>>, vector<8x128xf32>,
    %c16 = arith.constant 16 : index
    %c0_72 = arith.constant 0 : index
    %119 = vector.load %arg10[%c16, %c0_72] : memref<64x512xf32, #tpu.memory_space<vmem>>, vector<8x512xf32>
    %c0_73 = arith.constant 0 : index
    %c0_74 = arith.constant 0 : index
    %120 = vector.load %arg11[%c0_73, %c0_74] : memref<8x256xf32, #tpu.memory_space<vmem>>, vector<8x128xf32>
    %121 = arith.truncf %120 : vector<8x128xf32> to vector<8x128xbf16>
    %c0_75 = arith.constant 0 : index
    %c0_76 = arith.constant 0 : index
    %122 = vector.load %arg3[%c0_75, %c0_76] : memref<128x512xbf16, #tpu.memory_space<vmem>>, vector<128x512xbf16>
    %cst_77 = arith.constant dense<0.000000e+00> : vector<8x512xf32>
    %123 = tpu.matmul %121, %122, %cst_77 {dimension_numbers = #tpu.dot_dimension_numbers<[1], [0], [0], [1], [0, 0, 1, 1], [], []>} : vector<8x128xbf16>, vector<128x512xbf16>, vector<8x512xf32> -> vector<8x512xf32>
    %124 = arith.addf %119, %123 : vector<8x512xf32>
    %125 = vector.extract_strided_slice %124 {offsets = [0, 0], sizes = [8, 384], strides = [1, 1]} : vector<8x512xf32> to vector<8x384xf32>
    %126 = arith.negf %125 : vector<8x384xf32>
    %127 = math.exp %126 : vector<8x384xf32>
    %cst_78 = arith.constant 1.000000e+00 : f32
    %128 = vector.broadcast %cst_78 : f32 to vector<8x384xf32>
    %129 = arith.addf %128, %127 : vector<8x384xf32>
    %130 = arith.divf %128, %129 : vector<8x384xf32>
    %131 = vector.extract_strided_slice %124 {offsets = [0, 384], sizes = [8, 128], strides = [1, 1]} : vector<8x512xf32> to vector<8x128xf32>
    %132 = math.tanh %131 : vector<8x128xf32>
    %133 = vector.extract_strided_slice %130 {offsets = [0, 128], sizes = [8, 128], strides = [1, 1]} : vector<8x384xf32> to vector<8x128xf32>
    %c0_79 = arith.constant 0 : index
    %c0_80 = arith.constant 0 : index
    %134 = vector.load %arg12[%c0_79, %c0_80] : memref<8x256xf32, #tpu.memory_space<vmem>>, vector<8x128xf32>
    %135 = arith.mulf %133, %134 : vector<8x128xf32>
    %136 = vector.extract_strided_slice %130 {offsets = [0, 0], sizes = [8, 128], strides = [1, 1]} : vector<8x384xf32> to vector<8x128xf32>
    %137 = arith.mulf %136, %132 : vector<8x128xf32>
    %138 = arith.addf %135, %137 : vector<8x128xf32>
    %139 = vector.extract_strided_slice %130 {offsets = [0, 256], sizes = [8, 128], strides = [1, 1]} : vector<8x384xf32> to vector<8x128xf32>
    %140 = math.tanh %138 : vector<8x128xf32>
    %141 = arith.mulf %139, %140 : vector<8x128xf32>
    %c0_81 = arith.constant 0 : index
    %c0_82 = arith.constant 0 : index
    %142 = vector.load %arg12[%c0_81, %c0_82] : memref<8x256xf32, #tpu.memory_space<vmem>>, vector<8x128xf32>
    tpu.vector_store %arg12[%c0_81, %c0_82], %138 {strides = array<i32>} : memref<8x256xf32, #tpu.memory_space<vmem>>, vector<8x128xf32>,
    %c0_83 = arith.constant 0 : index
    %c0_84 = arith.constant 0 : index
    %143 = vector.load %arg11[%c0_83, %c0_84] : memref<8x256xf32, #tpu.memory_space<vmem>>, vector<8x128xf32>
    tpu.vector_store %arg11[%c0_83, %c0_84], %141 {strides = array<i32>} : memref<8x256xf32, #tpu.memory_space<vmem>>, vector<8x128xf32>,
    %c0_85 = arith.constant 0 : index
    %c0_86 = arith.constant 0 : index
    %144 = vector.load %arg11[%c0_85, %c0_86] : memref<8x256xf32, #tpu.memory_space<vmem>>, vector<8x256xf32>
    %145 = arith.truncf %144 : vector<8x256xf32> to vector<8x256xbf16>
    %c0_87 = arith.constant 0 : index
    %c0_88 = arith.constant 0 : index
    %c0_89 = arith.constant 0 : index
    %146 = vector.load %arg5[%c0_87, %c0_88, %c0_89] : memref<1x256x512xbf16, #tpu.memory_space<vmem>>, vector<1x256x512xbf16>
    %147 = vector.shape_cast %146 : vector<1x256x512xbf16> to vector<256x512xbf16>
    %cst_90 = arith.constant dense<0.000000e+00> : vector<8x512xf32>
    %148 = tpu.matmul %145, %147, %cst_90 {dimension_numbers = #tpu.dot_dimension_numbers<[1], [0], [0], [1], [0, 0, 1, 1], [], []>} : vector<8x256xbf16>, vector<256x512xbf16>, vector<8x512xf32> -> vector<8x512xf32>
    %c0_91 = arith.constant 0 : index
    %c0_92 = arith.constant 0 : index
    %c0_93 = arith.constant 0 : index
    %149 = vector.load %arg6[%c0_91, %c0_92, %c0_93] : memref<1x1x512xf32, #tpu.memory_space<vmem>>, vector<1x1x512xf32>
    %150 = vector.shape_cast %149 : vector<1x1x512xf32> to vector<1x512xf32>
    %151 = vector.broadcast %150 : vector<1x512xf32> to vector<8x512xf32>
    %152 = arith.addf %148, %151 : vector<8x512xf32>
    %153 = vector.extract_strided_slice %152 {offsets = [0, 0], sizes = [8, 384], strides = [1, 1]} : vector<8x512xf32> to vector<8x384xf32>
    %154 = arith.negf %153 : vector<8x384xf32>
    %155 = math.exp %154 : vector<8x384xf32>
    %cst_94 = arith.constant 1.000000e+00 : f32
    %156 = vector.broadcast %cst_94 : f32 to vector<8x384xf32>
    %157 = arith.addf %156, %155 : vector<8x384xf32>
    %158 = arith.divf %156, %157 : vector<8x384xf32>
    %159 = vector.extract_strided_slice %152 {offsets = [0, 384], sizes = [8, 128], strides = [1, 1]} : vector<8x512xf32> to vector<8x128xf32>
    %160 = math.tanh %159 : vector<8x128xf32>
    %161 = vector.extract_strided_slice %158 {offsets = [0, 128], sizes = [8, 128], strides = [1, 1]} : vector<8x384xf32> to vector<8x128xf32>
    %c0_95 = arith.constant 0 : index
    %c128_96 = arith.constant 128 : index
    %162 = vector.load %arg12[%c0_95, %c128_96] : memref<8x256xf32, #tpu.memory_space<vmem>>, vector<8x128xf32>
    %163 = arith.mulf %161, %162 : vector<8x128xf32>
    %164 = vector.extract_strided_slice %158 {offsets = [0, 0], sizes = [8, 128], strides = [1, 1]} : vector<8x384xf32> to vector<8x128xf32>
    %165 = arith.mulf %164, %160 : vector<8x128xf32>
    %166 = arith.addf %163, %165 : vector<8x128xf32>
    %167 = vector.extract_strided_slice %158 {offsets = [0, 256], sizes = [8, 128], strides = [1, 1]} : vector<8x384xf32> to vector<8x128xf32>
    %168 = math.tanh %166 : vector<8x128xf32>
    %169 = arith.mulf %167, %168 : vector<8x128xf32>
    %c0_97 = arith.constant 0 : index
    %c128_98 = arith.constant 128 : index
    %170 = vector.load %arg12[%c0_97, %c128_98] : memref<8x256xf32, #tpu.memory_space<vmem>>, vector<8x128xf32>
    tpu.vector_store %arg12[%c0_97, %c128_98], %166 {strides = array<i32>} : memref<8x256xf32, #tpu.memory_space<vmem>>, vector<8x128xf32>,
    %c0_99 = arith.constant 0 : index
    %c128_100 = arith.constant 128 : index
    %171 = vector.load %arg11[%c0_99, %c128_100] : memref<8x256xf32, #tpu.memory_space<vmem>>, vector<8x128xf32>
    tpu.vector_store %arg11[%c0_99, %c128_100], %169 {strides = array<i32>} : memref<8x256xf32, #tpu.memory_space<vmem>>, vector<8x128xf32>,
    %c24 = arith.constant 24 : index
    %c0_101 = arith.constant 0 : index
    %172 = vector.load %arg10[%c24, %c0_101] : memref<64x512xf32, #tpu.memory_space<vmem>>, vector<8x512xf32>
    %c0_102 = arith.constant 0 : index
    %c0_103 = arith.constant 0 : index
    %173 = vector.load %arg11[%c0_102, %c0_103] : memref<8x256xf32, #tpu.memory_space<vmem>>, vector<8x128xf32>
    %174 = arith.truncf %173 : vector<8x128xf32> to vector<8x128xbf16>
    %c0_104 = arith.constant 0 : index
    %c0_105 = arith.constant 0 : index
    %175 = vector.load %arg3[%c0_104, %c0_105] : memref<128x512xbf16, #tpu.memory_space<vmem>>, vector<128x512xbf16>
    %cst_106 = arith.constant dense<0.000000e+00> : vector<8x512xf32>
    %176 = tpu.matmul %174, %175, %cst_106 {dimension_numbers = #tpu.dot_dimension_numbers<[1], [0], [0], [1], [0, 0, 1, 1], [], []>} : vector<8x128xbf16>, vector<128x512xbf16>, vector<8x512xf32> -> vector<8x512xf32>
    %177 = arith.addf %172, %176 : vector<8x512xf32>
    %178 = vector.extract_strided_slice %177 {offsets = [0, 0], sizes = [8, 384], strides = [1, 1]} : vector<8x512xf32> to vector<8x384xf32>
    %179 = arith.negf %178 : vector<8x384xf32>
    %180 = math.exp %179 : vector<8x384xf32>
    %cst_107 = arith.constant 1.000000e+00 : f32
    %181 = vector.broadcast %cst_107 : f32 to vector<8x384xf32>
    %182 = arith.addf %181, %180 : vector<8x384xf32>
    %183 = arith.divf %181, %182 : vector<8x384xf32>
    %184 = vector.extract_strided_slice %177 {offsets = [0, 384], sizes = [8, 128], strides = [1, 1]} : vector<8x512xf32> to vector<8x128xf32>
    %185 = math.tanh %184 : vector<8x128xf32>
    %186 = vector.extract_strided_slice %183 {offsets = [0, 128], sizes = [8, 128], strides = [1, 1]} : vector<8x384xf32> to vector<8x128xf32>
    %c0_108 = arith.constant 0 : index
    %c0_109 = arith.constant 0 : index
    %187 = vector.load %arg12[%c0_108, %c0_109] : memref<8x256xf32, #tpu.memory_space<vmem>>, vector<8x128xf32>
    %188 = arith.mulf %186, %187 : vector<8x128xf32>
    %189 = vector.extract_strided_slice %183 {offsets = [0, 0], sizes = [8, 128], strides = [1, 1]} : vector<8x384xf32> to vector<8x128xf32>
    %190 = arith.mulf %189, %185 : vector<8x128xf32>
    %191 = arith.addf %188, %190 : vector<8x128xf32>
    %192 = vector.extract_strided_slice %183 {offsets = [0, 256], sizes = [8, 128], strides = [1, 1]} : vector<8x384xf32> to vector<8x128xf32>
    %193 = math.tanh %191 : vector<8x128xf32>
    %194 = arith.mulf %192, %193 : vector<8x128xf32>
    %c0_110 = arith.constant 0 : index
    %c0_111 = arith.constant 0 : index
    %195 = vector.load %arg12[%c0_110, %c0_111] : memref<8x256xf32, #tpu.memory_space<vmem>>, vector<8x128xf32>
    tpu.vector_store %arg12[%c0_110, %c0_111], %191 {strides = array<i32>} : memref<8x256xf32, #tpu.memory_space<vmem>>, vector<8x128xf32>,
    %c0_112 = arith.constant 0 : index
    %c0_113 = arith.constant 0 : index
    %196 = vector.load %arg11[%c0_112, %c0_113] : memref<8x256xf32, #tpu.memory_space<vmem>>, vector<8x128xf32>
    tpu.vector_store %arg11[%c0_112, %c0_113], %194 {strides = array<i32>} : memref<8x256xf32, #tpu.memory_space<vmem>>, vector<8x128xf32>,
    %c0_114 = arith.constant 0 : index
    %c0_115 = arith.constant 0 : index
    %197 = vector.load %arg11[%c0_114, %c0_115] : memref<8x256xf32, #tpu.memory_space<vmem>>, vector<8x256xf32>
    %198 = arith.truncf %197 : vector<8x256xf32> to vector<8x256xbf16>
    %c0_116 = arith.constant 0 : index
    %c0_117 = arith.constant 0 : index
    %c0_118 = arith.constant 0 : index
    %199 = vector.load %arg5[%c0_116, %c0_117, %c0_118] : memref<1x256x512xbf16, #tpu.memory_space<vmem>>, vector<1x256x512xbf16>
    %200 = vector.shape_cast %199 : vector<1x256x512xbf16> to vector<256x512xbf16>
    %cst_119 = arith.constant dense<0.000000e+00> : vector<8x512xf32>
    %201 = tpu.matmul %198, %200, %cst_119 {dimension_numbers = #tpu.dot_dimension_numbers<[1], [0], [0], [1], [0, 0, 1, 1], [], []>} : vector<8x256xbf16>, vector<256x512xbf16>, vector<8x512xf32> -> vector<8x512xf32>
    %c0_120 = arith.constant 0 : index
    %c0_121 = arith.constant 0 : index
    %c0_122 = arith.constant 0 : index
    %202 = vector.load %arg6[%c0_120, %c0_121, %c0_122] : memref<1x1x512xf32, #tpu.memory_space<vmem>>, vector<1x1x512xf32>
    %203 = vector.shape_cast %202 : vector<1x1x512xf32> to vector<1x512xf32>
    %204 = vector.broadcast %203 : vector<1x512xf32> to vector<8x512xf32>
    %205 = arith.addf %201, %204 : vector<8x512xf32>
    %206 = vector.extract_strided_slice %205 {offsets = [0, 0], sizes = [8, 384], strides = [1, 1]} : vector<8x512xf32> to vector<8x384xf32>
    %207 = arith.negf %206 : vector<8x384xf32>
    %208 = math.exp %207 : vector<8x384xf32>
    %cst_123 = arith.constant 1.000000e+00 : f32
    %209 = vector.broadcast %cst_123 : f32 to vector<8x384xf32>
    %210 = arith.addf %209, %208 : vector<8x384xf32>
    %211 = arith.divf %209, %210 : vector<8x384xf32>
    %212 = vector.extract_strided_slice %205 {offsets = [0, 384], sizes = [8, 128], strides = [1, 1]} : vector<8x512xf32> to vector<8x128xf32>
    %213 = math.tanh %212 : vector<8x128xf32>
    %214 = vector.extract_strided_slice %211 {offsets = [0, 128], sizes = [8, 128], strides = [1, 1]} : vector<8x384xf32> to vector<8x128xf32>
    %c0_124 = arith.constant 0 : index
    %c128_125 = arith.constant 128 : index
    %215 = vector.load %arg12[%c0_124, %c128_125] : memref<8x256xf32, #tpu.memory_space<vmem>>, vector<8x128xf32>
    %216 = arith.mulf %214, %215 : vector<8x128xf32>
    %217 = vector.extract_strided_slice %211 {offsets = [0, 0], sizes = [8, 128], strides = [1, 1]} : vector<8x384xf32> to vector<8x128xf32>
    %218 = arith.mulf %217, %213 : vector<8x128xf32>
    %219 = arith.addf %216, %218 : vector<8x128xf32>
    %220 = vector.extract_strided_slice %211 {offsets = [0, 256], sizes = [8, 128], strides = [1, 1]} : vector<8x384xf32> to vector<8x128xf32>
    %221 = math.tanh %219 : vector<8x128xf32>
    %222 = arith.mulf %220, %221 : vector<8x128xf32>
    %c0_126 = arith.constant 0 : index
    %c128_127 = arith.constant 128 : index
    %223 = vector.load %arg12[%c0_126, %c128_127] : memref<8x256xf32, #tpu.memory_space<vmem>>, vector<8x128xf32>
    tpu.vector_store %arg12[%c0_126, %c128_127], %219 {strides = array<i32>} : memref<8x256xf32, #tpu.memory_space<vmem>>, vector<8x128xf32>,
    %c0_128 = arith.constant 0 : index
    %c128_129 = arith.constant 128 : index
    %224 = vector.load %arg11[%c0_128, %c128_129] : memref<8x256xf32, #tpu.memory_space<vmem>>, vector<8x128xf32>
    tpu.vector_store %arg11[%c0_128, %c128_129], %222 {strides = array<i32>} : memref<8x256xf32, #tpu.memory_space<vmem>>, vector<8x128xf32>,
    %c32 = arith.constant 32 : index
    %c0_130 = arith.constant 0 : index
    %225 = vector.load %arg10[%c32, %c0_130] : memref<64x512xf32, #tpu.memory_space<vmem>>, vector<8x512xf32>
    %c0_131 = arith.constant 0 : index
    %c0_132 = arith.constant 0 : index
    %226 = vector.load %arg11[%c0_131, %c0_132] : memref<8x256xf32, #tpu.memory_space<vmem>>, vector<8x128xf32>
    %227 = arith.truncf %226 : vector<8x128xf32> to vector<8x128xbf16>
    %c0_133 = arith.constant 0 : index
    %c0_134 = arith.constant 0 : index
    %228 = vector.load %arg3[%c0_133, %c0_134] : memref<128x512xbf16, #tpu.memory_space<vmem>>, vector<128x512xbf16>
    %cst_135 = arith.constant dense<0.000000e+00> : vector<8x512xf32>
    %229 = tpu.matmul %227, %228, %cst_135 {dimension_numbers = #tpu.dot_dimension_numbers<[1], [0], [0], [1], [0, 0, 1, 1], [], []>} : vector<8x128xbf16>, vector<128x512xbf16>, vector<8x512xf32> -> vector<8x512xf32>
    %230 = arith.addf %225, %229 : vector<8x512xf32>
    %231 = vector.extract_strided_slice %230 {offsets = [0, 0], sizes = [8, 384], strides = [1, 1]} : vector<8x512xf32> to vector<8x384xf32>
    %232 = arith.negf %231 : vector<8x384xf32>
    %233 = math.exp %232 : vector<8x384xf32>
    %cst_136 = arith.constant 1.000000e+00 : f32
    %234 = vector.broadcast %cst_136 : f32 to vector<8x384xf32>
    %235 = arith.addf %234, %233 : vector<8x384xf32>
    %236 = arith.divf %234, %235 : vector<8x384xf32>
    %237 = vector.extract_strided_slice %230 {offsets = [0, 384], sizes = [8, 128], strides = [1, 1]} : vector<8x512xf32> to vector<8x128xf32>
    %238 = math.tanh %237 : vector<8x128xf32>
    %239 = vector.extract_strided_slice %236 {offsets = [0, 128], sizes = [8, 128], strides = [1, 1]} : vector<8x384xf32> to vector<8x128xf32>
    %c0_137 = arith.constant 0 : index
    %c0_138 = arith.constant 0 : index
    %240 = vector.load %arg12[%c0_137, %c0_138] : memref<8x256xf32, #tpu.memory_space<vmem>>, vector<8x128xf32>
    %241 = arith.mulf %239, %240 : vector<8x128xf32>
    %242 = vector.extract_strided_slice %236 {offsets = [0, 0], sizes = [8, 128], strides = [1, 1]} : vector<8x384xf32> to vector<8x128xf32>
    %243 = arith.mulf %242, %238 : vector<8x128xf32>
    %244 = arith.addf %241, %243 : vector<8x128xf32>
    %245 = vector.extract_strided_slice %236 {offsets = [0, 256], sizes = [8, 128], strides = [1, 1]} : vector<8x384xf32> to vector<8x128xf32>
    %246 = math.tanh %244 : vector<8x128xf32>
    %247 = arith.mulf %245, %246 : vector<8x128xf32>
    %c0_139 = arith.constant 0 : index
    %c0_140 = arith.constant 0 : index
    %248 = vector.load %arg12[%c0_139, %c0_140] : memref<8x256xf32, #tpu.memory_space<vmem>>, vector<8x128xf32>
    tpu.vector_store %arg12[%c0_139, %c0_140], %244 {strides = array<i32>} : memref<8x256xf32, #tpu.memory_space<vmem>>, vector<8x128xf32>,
    %c0_141 = arith.constant 0 : index
    %c0_142 = arith.constant 0 : index
    %249 = vector.load %arg11[%c0_141, %c0_142] : memref<8x256xf32, #tpu.memory_space<vmem>>, vector<8x128xf32>
    tpu.vector_store %arg11[%c0_141, %c0_142], %247 {strides = array<i32>} : memref<8x256xf32, #tpu.memory_space<vmem>>, vector<8x128xf32>,
    %c0_143 = arith.constant 0 : index
    %c0_144 = arith.constant 0 : index
    %250 = vector.load %arg11[%c0_143, %c0_144] : memref<8x256xf32, #tpu.memory_space<vmem>>, vector<8x256xf32>
    %251 = arith.truncf %250 : vector<8x256xf32> to vector<8x256xbf16>
    %c0_145 = arith.constant 0 : index
    %c0_146 = arith.constant 0 : index
    %c0_147 = arith.constant 0 : index
    %252 = vector.load %arg5[%c0_145, %c0_146, %c0_147] : memref<1x256x512xbf16, #tpu.memory_space<vmem>>, vector<1x256x512xbf16>
    %253 = vector.shape_cast %252 : vector<1x256x512xbf16> to vector<256x512xbf16>
    %cst_148 = arith.constant dense<0.000000e+00> : vector<8x512xf32>
    %254 = tpu.matmul %251, %253, %cst_148 {dimension_numbers = #tpu.dot_dimension_numbers<[1], [0], [0], [1], [0, 0, 1, 1], [], []>} : vector<8x256xbf16>, vector<256x512xbf16>, vector<8x512xf32> -> vector<8x512xf32>
    %c0_149 = arith.constant 0 : index
    %c0_150 = arith.constant 0 : index
    %c0_151 = arith.constant 0 : index
    %255 = vector.load %arg6[%c0_149, %c0_150, %c0_151] : memref<1x1x512xf32, #tpu.memory_space<vmem>>, vector<1x1x512xf32>
    %256 = vector.shape_cast %255 : vector<1x1x512xf32> to vector<1x512xf32>
    %257 = vector.broadcast %256 : vector<1x512xf32> to vector<8x512xf32>
    %258 = arith.addf %254, %257 : vector<8x512xf32>
    %259 = vector.extract_strided_slice %258 {offsets = [0, 0], sizes = [8, 384], strides = [1, 1]} : vector<8x512xf32> to vector<8x384xf32>
    %260 = arith.negf %259 : vector<8x384xf32>
    %261 = math.exp %260 : vector<8x384xf32>
    %cst_152 = arith.constant 1.000000e+00 : f32
    %262 = vector.broadcast %cst_152 : f32 to vector<8x384xf32>
    %263 = arith.addf %262, %261 : vector<8x384xf32>
    %264 = arith.divf %262, %263 : vector<8x384xf32>
    %265 = vector.extract_strided_slice %258 {offsets = [0, 384], sizes = [8, 128], strides = [1, 1]} : vector<8x512xf32> to vector<8x128xf32>
    %266 = math.tanh %265 : vector<8x128xf32>
    %267 = vector.extract_strided_slice %264 {offsets = [0, 128], sizes = [8, 128], strides = [1, 1]} : vector<8x384xf32> to vector<8x128xf32>
    %c0_153 = arith.constant 0 : index
    %c128_154 = arith.constant 128 : index
    %268 = vector.load %arg12[%c0_153, %c128_154] : memref<8x256xf32, #tpu.memory_space<vmem>>, vector<8x128xf32>
    %269 = arith.mulf %267, %268 : vector<8x128xf32>
    %270 = vector.extract_strided_slice %264 {offsets = [0, 0], sizes = [8, 128], strides = [1, 1]} : vector<8x384xf32> to vector<8x128xf32>
    %271 = arith.mulf %270, %266 : vector<8x128xf32>
    %272 = arith.addf %269, %271 : vector<8x128xf32>
    %273 = vector.extract_strided_slice %264 {offsets = [0, 256], sizes = [8, 128], strides = [1, 1]} : vector<8x384xf32> to vector<8x128xf32>
    %274 = math.tanh %272 : vector<8x128xf32>
    %275 = arith.mulf %273, %274 : vector<8x128xf32>
    %c0_155 = arith.constant 0 : index
    %c128_156 = arith.constant 128 : index
    %276 = vector.load %arg12[%c0_155, %c128_156] : memref<8x256xf32, #tpu.memory_space<vmem>>, vector<8x128xf32>
    tpu.vector_store %arg12[%c0_155, %c128_156], %272 {strides = array<i32>} : memref<8x256xf32, #tpu.memory_space<vmem>>, vector<8x128xf32>,
    %c0_157 = arith.constant 0 : index
    %c128_158 = arith.constant 128 : index
    %277 = vector.load %arg11[%c0_157, %c128_158] : memref<8x256xf32, #tpu.memory_space<vmem>>, vector<8x128xf32>
    tpu.vector_store %arg11[%c0_157, %c128_158], %275 {strides = array<i32>} : memref<8x256xf32, #tpu.memory_space<vmem>>, vector<8x128xf32>,
    %c40 = arith.constant 40 : index
    %c0_159 = arith.constant 0 : index
    %278 = vector.load %arg10[%c40, %c0_159] : memref<64x512xf32, #tpu.memory_space<vmem>>, vector<8x512xf32>
    %c0_160 = arith.constant 0 : index
    %c0_161 = arith.constant 0 : index
    %279 = vector.load %arg11[%c0_160, %c0_161] : memref<8x256xf32, #tpu.memory_space<vmem>>, vector<8x128xf32>
    %280 = arith.truncf %279 : vector<8x128xf32> to vector<8x128xbf16>
    %c0_162 = arith.constant 0 : index
    %c0_163 = arith.constant 0 : index
    %281 = vector.load %arg3[%c0_162, %c0_163] : memref<128x512xbf16, #tpu.memory_space<vmem>>, vector<128x512xbf16>
    %cst_164 = arith.constant dense<0.000000e+00> : vector<8x512xf32>
    %282 = tpu.matmul %280, %281, %cst_164 {dimension_numbers = #tpu.dot_dimension_numbers<[1], [0], [0], [1], [0, 0, 1, 1], [], []>} : vector<8x128xbf16>, vector<128x512xbf16>, vector<8x512xf32> -> vector<8x512xf32>
    %283 = arith.addf %278, %282 : vector<8x512xf32>
    %284 = vector.extract_strided_slice %283 {offsets = [0, 0], sizes = [8, 384], strides = [1, 1]} : vector<8x512xf32> to vector<8x384xf32>
    %285 = arith.negf %284 : vector<8x384xf32>
    %286 = math.exp %285 : vector<8x384xf32>
    %cst_165 = arith.constant 1.000000e+00 : f32
    %287 = vector.broadcast %cst_165 : f32 to vector<8x384xf32>
    %288 = arith.addf %287, %286 : vector<8x384xf32>
    %289 = arith.divf %287, %288 : vector<8x384xf32>
    %290 = vector.extract_strided_slice %283 {offsets = [0, 384], sizes = [8, 128], strides = [1, 1]} : vector<8x512xf32> to vector<8x128xf32>
    %291 = math.tanh %290 : vector<8x128xf32>
    %292 = vector.extract_strided_slice %289 {offsets = [0, 128], sizes = [8, 128], strides = [1, 1]} : vector<8x384xf32> to vector<8x128xf32>
    %c0_166 = arith.constant 0 : index
    %c0_167 = arith.constant 0 : index
    %293 = vector.load %arg12[%c0_166, %c0_167] : memref<8x256xf32, #tpu.memory_space<vmem>>, vector<8x128xf32>
    %294 = arith.mulf %292, %293 : vector<8x128xf32>
    %295 = vector.extract_strided_slice %289 {offsets = [0, 0], sizes = [8, 128], strides = [1, 1]} : vector<8x384xf32> to vector<8x128xf32>
    %296 = arith.mulf %295, %291 : vector<8x128xf32>
    %297 = arith.addf %294, %296 : vector<8x128xf32>
    %298 = vector.extract_strided_slice %289 {offsets = [0, 256], sizes = [8, 128], strides = [1, 1]} : vector<8x384xf32> to vector<8x128xf32>
    %299 = math.tanh %297 : vector<8x128xf32>
    %300 = arith.mulf %298, %299 : vector<8x128xf32>
    %c0_168 = arith.constant 0 : index
    %c0_169 = arith.constant 0 : index
    %301 = vector.load %arg12[%c0_168, %c0_169] : memref<8x256xf32, #tpu.memory_space<vmem>>, vector<8x128xf32>
    tpu.vector_store %arg12[%c0_168, %c0_169], %297 {strides = array<i32>} : memref<8x256xf32, #tpu.memory_space<vmem>>, vector<8x128xf32>,
    %c0_170 = arith.constant 0 : index
    %c0_171 = arith.constant 0 : index
    %302 = vector.load %arg11[%c0_170, %c0_171] : memref<8x256xf32, #tpu.memory_space<vmem>>, vector<8x128xf32>
    tpu.vector_store %arg11[%c0_170, %c0_171], %300 {strides = array<i32>} : memref<8x256xf32, #tpu.memory_space<vmem>>, vector<8x128xf32>,
    %c0_172 = arith.constant 0 : index
    %c0_173 = arith.constant 0 : index
    %303 = vector.load %arg11[%c0_172, %c0_173] : memref<8x256xf32, #tpu.memory_space<vmem>>, vector<8x256xf32>
    %304 = arith.truncf %303 : vector<8x256xf32> to vector<8x256xbf16>
    %c0_174 = arith.constant 0 : index
    %c0_175 = arith.constant 0 : index
    %c0_176 = arith.constant 0 : index
    %305 = vector.load %arg5[%c0_174, %c0_175, %c0_176] : memref<1x256x512xbf16, #tpu.memory_space<vmem>>, vector<1x256x512xbf16>
    %306 = vector.shape_cast %305 : vector<1x256x512xbf16> to vector<256x512xbf16>
    %cst_177 = arith.constant dense<0.000000e+00> : vector<8x512xf32>
    %307 = tpu.matmul %304, %306, %cst_177 {dimension_numbers = #tpu.dot_dimension_numbers<[1], [0], [0], [1], [0, 0, 1, 1], [], []>} : vector<8x256xbf16>, vector<256x512xbf16>, vector<8x512xf32> -> vector<8x512xf32>
    %c0_178 = arith.constant 0 : index
    %c0_179 = arith.constant 0 : index
    %c0_180 = arith.constant 0 : index
    %308 = vector.load %arg6[%c0_178, %c0_179, %c0_180] : memref<1x1x512xf32, #tpu.memory_space<vmem>>, vector<1x1x512xf32>
    %309 = vector.shape_cast %308 : vector<1x1x512xf32> to vector<1x512xf32>
    %310 = vector.broadcast %309 : vector<1x512xf32> to vector<8x512xf32>
    %311 = arith.addf %307, %310 : vector<8x512xf32>
    %312 = vector.extract_strided_slice %311 {offsets = [0, 0], sizes = [8, 384], strides = [1, 1]} : vector<8x512xf32> to vector<8x384xf32>
    %313 = arith.negf %312 : vector<8x384xf32>
    %314 = math.exp %313 : vector<8x384xf32>
    %cst_181 = arith.constant 1.000000e+00 : f32
    %315 = vector.broadcast %cst_181 : f32 to vector<8x384xf32>
    %316 = arith.addf %315, %314 : vector<8x384xf32>
    %317 = arith.divf %315, %316 : vector<8x384xf32>
    %318 = vector.extract_strided_slice %311 {offsets = [0, 384], sizes = [8, 128], strides = [1, 1]} : vector<8x512xf32> to vector<8x128xf32>
    %319 = math.tanh %318 : vector<8x128xf32>
    %320 = vector.extract_strided_slice %317 {offsets = [0, 128], sizes = [8, 128], strides = [1, 1]} : vector<8x384xf32> to vector<8x128xf32>
    %c0_182 = arith.constant 0 : index
    %c128_183 = arith.constant 128 : index
    %321 = vector.load %arg12[%c0_182, %c128_183] : memref<8x256xf32, #tpu.memory_space<vmem>>, vector<8x128xf32>
    %322 = arith.mulf %320, %321 : vector<8x128xf32>
    %323 = vector.extract_strided_slice %317 {offsets = [0, 0], sizes = [8, 128], strides = [1, 1]} : vector<8x384xf32> to vector<8x128xf32>
    %324 = arith.mulf %323, %319 : vector<8x128xf32>
    %325 = arith.addf %322, %324 : vector<8x128xf32>
    %326 = vector.extract_strided_slice %317 {offsets = [0, 256], sizes = [8, 128], strides = [1, 1]} : vector<8x384xf32> to vector<8x128xf32>
    %327 = math.tanh %325 : vector<8x128xf32>
    %328 = arith.mulf %326, %327 : vector<8x128xf32>
    %c0_184 = arith.constant 0 : index
    %c128_185 = arith.constant 128 : index
    %329 = vector.load %arg12[%c0_184, %c128_185] : memref<8x256xf32, #tpu.memory_space<vmem>>, vector<8x128xf32>
    tpu.vector_store %arg12[%c0_184, %c128_185], %325 {strides = array<i32>} : memref<8x256xf32, #tpu.memory_space<vmem>>, vector<8x128xf32>,
    %c0_186 = arith.constant 0 : index
    %c128_187 = arith.constant 128 : index
    %330 = vector.load %arg11[%c0_186, %c128_187] : memref<8x256xf32, #tpu.memory_space<vmem>>, vector<8x128xf32>
    tpu.vector_store %arg11[%c0_186, %c128_187], %328 {strides = array<i32>} : memref<8x256xf32, #tpu.memory_space<vmem>>, vector<8x128xf32>,
    %c48 = arith.constant 48 : index
    %c0_188 = arith.constant 0 : index
    %331 = vector.load %arg10[%c48, %c0_188] : memref<64x512xf32, #tpu.memory_space<vmem>>, vector<8x512xf32>
    %c0_189 = arith.constant 0 : index
    %c0_190 = arith.constant 0 : index
    %332 = vector.load %arg11[%c0_189, %c0_190] : memref<8x256xf32, #tpu.memory_space<vmem>>, vector<8x128xf32>
    %333 = arith.truncf %332 : vector<8x128xf32> to vector<8x128xbf16>
    %c0_191 = arith.constant 0 : index
    %c0_192 = arith.constant 0 : index
    %334 = vector.load %arg3[%c0_191, %c0_192] : memref<128x512xbf16, #tpu.memory_space<vmem>>, vector<128x512xbf16>
    %cst_193 = arith.constant dense<0.000000e+00> : vector<8x512xf32>
    %335 = tpu.matmul %333, %334, %cst_193 {dimension_numbers = #tpu.dot_dimension_numbers<[1], [0], [0], [1], [0, 0, 1, 1], [], []>} : vector<8x128xbf16>, vector<128x512xbf16>, vector<8x512xf32> -> vector<8x512xf32>
    %336 = arith.addf %331, %335 : vector<8x512xf32>
    %337 = vector.extract_strided_slice %336 {offsets = [0, 0], sizes = [8, 384], strides = [1, 1]} : vector<8x512xf32> to vector<8x384xf32>
    %338 = arith.negf %337 : vector<8x384xf32>
    %339 = math.exp %338 : vector<8x384xf32>
    %cst_194 = arith.constant 1.000000e+00 : f32
    %340 = vector.broadcast %cst_194 : f32 to vector<8x384xf32>
    %341 = arith.addf %340, %339 : vector<8x384xf32>
    %342 = arith.divf %340, %341 : vector<8x384xf32>
    %343 = vector.extract_strided_slice %336 {offsets = [0, 384], sizes = [8, 128], strides = [1, 1]} : vector<8x512xf32> to vector<8x128xf32>
    %344 = math.tanh %343 : vector<8x128xf32>
    %345 = vector.extract_strided_slice %342 {offsets = [0, 128], sizes = [8, 128], strides = [1, 1]} : vector<8x384xf32> to vector<8x128xf32>
    %c0_195 = arith.constant 0 : index
    %c0_196 = arith.constant 0 : index
    %346 = vector.load %arg12[%c0_195, %c0_196] : memref<8x256xf32, #tpu.memory_space<vmem>>, vector<8x128xf32>
    %347 = arith.mulf %345, %346 : vector<8x128xf32>
    %348 = vector.extract_strided_slice %342 {offsets = [0, 0], sizes = [8, 128], strides = [1, 1]} : vector<8x384xf32> to vector<8x128xf32>
    %349 = arith.mulf %348, %344 : vector<8x128xf32>
    %350 = arith.addf %347, %349 : vector<8x128xf32>
    %351 = vector.extract_strided_slice %342 {offsets = [0, 256], sizes = [8, 128], strides = [1, 1]} : vector<8x384xf32> to vector<8x128xf32>
    %352 = math.tanh %350 : vector<8x128xf32>
    %353 = arith.mulf %351, %352 : vector<8x128xf32>
    %c0_197 = arith.constant 0 : index
    %c0_198 = arith.constant 0 : index
    %354 = vector.load %arg12[%c0_197, %c0_198] : memref<8x256xf32, #tpu.memory_space<vmem>>, vector<8x128xf32>
    tpu.vector_store %arg12[%c0_197, %c0_198], %350 {strides = array<i32>} : memref<8x256xf32, #tpu.memory_space<vmem>>, vector<8x128xf32>,
    %c0_199 = arith.constant 0 : index
    %c0_200 = arith.constant 0 : index
    %355 = vector.load %arg11[%c0_199, %c0_200] : memref<8x256xf32, #tpu.memory_space<vmem>>, vector<8x128xf32>
    tpu.vector_store %arg11[%c0_199, %c0_200], %353 {strides = array<i32>} : memref<8x256xf32, #tpu.memory_space<vmem>>, vector<8x128xf32>,
    %c0_201 = arith.constant 0 : index
    %c0_202 = arith.constant 0 : index
    %356 = vector.load %arg11[%c0_201, %c0_202] : memref<8x256xf32, #tpu.memory_space<vmem>>, vector<8x256xf32>
    %357 = arith.truncf %356 : vector<8x256xf32> to vector<8x256xbf16>
    %c0_203 = arith.constant 0 : index
    %c0_204 = arith.constant 0 : index
    %c0_205 = arith.constant 0 : index
    %358 = vector.load %arg5[%c0_203, %c0_204, %c0_205] : memref<1x256x512xbf16, #tpu.memory_space<vmem>>, vector<1x256x512xbf16>
    %359 = vector.shape_cast %358 : vector<1x256x512xbf16> to vector<256x512xbf16>
    %cst_206 = arith.constant dense<0.000000e+00> : vector<8x512xf32>
    %360 = tpu.matmul %357, %359, %cst_206 {dimension_numbers = #tpu.dot_dimension_numbers<[1], [0], [0], [1], [0, 0, 1, 1], [], []>} : vector<8x256xbf16>, vector<256x512xbf16>, vector<8x512xf32> -> vector<8x512xf32>
    %c0_207 = arith.constant 0 : index
    %c0_208 = arith.constant 0 : index
    %c0_209 = arith.constant 0 : index
    %361 = vector.load %arg6[%c0_207, %c0_208, %c0_209] : memref<1x1x512xf32, #tpu.memory_space<vmem>>, vector<1x1x512xf32>
    %362 = vector.shape_cast %361 : vector<1x1x512xf32> to vector<1x512xf32>
    %363 = vector.broadcast %362 : vector<1x512xf32> to vector<8x512xf32>
    %364 = arith.addf %360, %363 : vector<8x512xf32>
    %365 = vector.extract_strided_slice %364 {offsets = [0, 0], sizes = [8, 384], strides = [1, 1]} : vector<8x512xf32> to vector<8x384xf32>
    %366 = arith.negf %365 : vector<8x384xf32>
    %367 = math.exp %366 : vector<8x384xf32>
    %cst_210 = arith.constant 1.000000e+00 : f32
    %368 = vector.broadcast %cst_210 : f32 to vector<8x384xf32>
    %369 = arith.addf %368, %367 : vector<8x384xf32>
    %370 = arith.divf %368, %369 : vector<8x384xf32>
    %371 = vector.extract_strided_slice %364 {offsets = [0, 384], sizes = [8, 128], strides = [1, 1]} : vector<8x512xf32> to vector<8x128xf32>
    %372 = math.tanh %371 : vector<8x128xf32>
    %373 = vector.extract_strided_slice %370 {offsets = [0, 128], sizes = [8, 128], strides = [1, 1]} : vector<8x384xf32> to vector<8x128xf32>
    %c0_211 = arith.constant 0 : index
    %c128_212 = arith.constant 128 : index
    %374 = vector.load %arg12[%c0_211, %c128_212] : memref<8x256xf32, #tpu.memory_space<vmem>>, vector<8x128xf32>
    %375 = arith.mulf %373, %374 : vector<8x128xf32>
    %376 = vector.extract_strided_slice %370 {offsets = [0, 0], sizes = [8, 128], strides = [1, 1]} : vector<8x384xf32> to vector<8x128xf32>
    %377 = arith.mulf %376, %372 : vector<8x128xf32>
    %378 = arith.addf %375, %377 : vector<8x128xf32>
    %379 = vector.extract_strided_slice %370 {offsets = [0, 256], sizes = [8, 128], strides = [1, 1]} : vector<8x384xf32> to vector<8x128xf32>
    %380 = math.tanh %378 : vector<8x128xf32>
    %381 = arith.mulf %379, %380 : vector<8x128xf32>
    %c0_213 = arith.constant 0 : index
    %c128_214 = arith.constant 128 : index
    %382 = vector.load %arg12[%c0_213, %c128_214] : memref<8x256xf32, #tpu.memory_space<vmem>>, vector<8x128xf32>
    tpu.vector_store %arg12[%c0_213, %c128_214], %378 {strides = array<i32>} : memref<8x256xf32, #tpu.memory_space<vmem>>, vector<8x128xf32>,
    %c0_215 = arith.constant 0 : index
    %c128_216 = arith.constant 128 : index
    %383 = vector.load %arg11[%c0_215, %c128_216] : memref<8x256xf32, #tpu.memory_space<vmem>>, vector<8x128xf32>
    tpu.vector_store %arg11[%c0_215, %c128_216], %381 {strides = array<i32>} : memref<8x256xf32, #tpu.memory_space<vmem>>, vector<8x128xf32>,
    %c56 = arith.constant 56 : index
    %c0_217 = arith.constant 0 : index
    %384 = vector.load %arg10[%c56, %c0_217] : memref<64x512xf32, #tpu.memory_space<vmem>>, vector<8x512xf32>
    %c0_218 = arith.constant 0 : index
    %c0_219 = arith.constant 0 : index
    %385 = vector.load %arg11[%c0_218, %c0_219] : memref<8x256xf32, #tpu.memory_space<vmem>>, vector<8x128xf32>
    %386 = arith.truncf %385 : vector<8x128xf32> to vector<8x128xbf16>
    %c0_220 = arith.constant 0 : index
    %c0_221 = arith.constant 0 : index
    %387 = vector.load %arg3[%c0_220, %c0_221] : memref<128x512xbf16, #tpu.memory_space<vmem>>, vector<128x512xbf16>
    %cst_222 = arith.constant dense<0.000000e+00> : vector<8x512xf32>
    %388 = tpu.matmul %386, %387, %cst_222 {dimension_numbers = #tpu.dot_dimension_numbers<[1], [0], [0], [1], [0, 0, 1, 1], [], []>} : vector<8x128xbf16>, vector<128x512xbf16>, vector<8x512xf32> -> vector<8x512xf32>
    %389 = arith.addf %384, %388 : vector<8x512xf32>
    %390 = vector.extract_strided_slice %389 {offsets = [0, 0], sizes = [8, 384], strides = [1, 1]} : vector<8x512xf32> to vector<8x384xf32>
    %391 = arith.negf %390 : vector<8x384xf32>
    %392 = math.exp %391 : vector<8x384xf32>
    %cst_223 = arith.constant 1.000000e+00 : f32
    %393 = vector.broadcast %cst_223 : f32 to vector<8x384xf32>
    %394 = arith.addf %393, %392 : vector<8x384xf32>
    %395 = arith.divf %393, %394 : vector<8x384xf32>
    %396 = vector.extract_strided_slice %389 {offsets = [0, 384], sizes = [8, 128], strides = [1, 1]} : vector<8x512xf32> to vector<8x128xf32>
    %397 = math.tanh %396 : vector<8x128xf32>
    %398 = vector.extract_strided_slice %395 {offsets = [0, 128], sizes = [8, 128], strides = [1, 1]} : vector<8x384xf32> to vector<8x128xf32>
    %c0_224 = arith.constant 0 : index
    %c0_225 = arith.constant 0 : index
    %399 = vector.load %arg12[%c0_224, %c0_225] : memref<8x256xf32, #tpu.memory_space<vmem>>, vector<8x128xf32>
    %400 = arith.mulf %398, %399 : vector<8x128xf32>
    %401 = vector.extract_strided_slice %395 {offsets = [0, 0], sizes = [8, 128], strides = [1, 1]} : vector<8x384xf32> to vector<8x128xf32>
    %402 = arith.mulf %401, %397 : vector<8x128xf32>
    %403 = arith.addf %400, %402 : vector<8x128xf32>
    %404 = vector.extract_strided_slice %395 {offsets = [0, 256], sizes = [8, 128], strides = [1, 1]} : vector<8x384xf32> to vector<8x128xf32>
    %405 = math.tanh %403 : vector<8x128xf32>
    %406 = arith.mulf %404, %405 : vector<8x128xf32>
    %c0_226 = arith.constant 0 : index
    %c0_227 = arith.constant 0 : index
    %407 = vector.load %arg12[%c0_226, %c0_227] : memref<8x256xf32, #tpu.memory_space<vmem>>, vector<8x128xf32>
    tpu.vector_store %arg12[%c0_226, %c0_227], %403 {strides = array<i32>} : memref<8x256xf32, #tpu.memory_space<vmem>>, vector<8x128xf32>,
    %c0_228 = arith.constant 0 : index
    %c0_229 = arith.constant 0 : index
    %408 = vector.load %arg11[%c0_228, %c0_229] : memref<8x256xf32, #tpu.memory_space<vmem>>, vector<8x128xf32>
    tpu.vector_store %arg11[%c0_228, %c0_229], %406 {strides = array<i32>} : memref<8x256xf32, #tpu.memory_space<vmem>>, vector<8x128xf32>,
    %c0_230 = arith.constant 0 : index
    %c0_231 = arith.constant 0 : index
    %409 = vector.load %arg11[%c0_230, %c0_231] : memref<8x256xf32, #tpu.memory_space<vmem>>, vector<8x256xf32>
    %410 = arith.truncf %409 : vector<8x256xf32> to vector<8x256xbf16>
    %c0_232 = arith.constant 0 : index
    %c0_233 = arith.constant 0 : index
    %c0_234 = arith.constant 0 : index
    %411 = vector.load %arg5[%c0_232, %c0_233, %c0_234] : memref<1x256x512xbf16, #tpu.memory_space<vmem>>, vector<1x256x512xbf16>
    %412 = vector.shape_cast %411 : vector<1x256x512xbf16> to vector<256x512xbf16>
    %cst_235 = arith.constant dense<0.000000e+00> : vector<8x512xf32>
    %413 = tpu.matmul %410, %412, %cst_235 {dimension_numbers = #tpu.dot_dimension_numbers<[1], [0], [0], [1], [0, 0, 1, 1], [], []>} : vector<8x256xbf16>, vector<256x512xbf16>, vector<8x512xf32> -> vector<8x512xf32>
    %c0_236 = arith.constant 0 : index
    %c0_237 = arith.constant 0 : index
    %c0_238 = arith.constant 0 : index
    %414 = vector.load %arg6[%c0_236, %c0_237, %c0_238] : memref<1x1x512xf32, #tpu.memory_space<vmem>>, vector<1x1x512xf32>
    %415 = vector.shape_cast %414 : vector<1x1x512xf32> to vector<1x512xf32>
    %416 = vector.broadcast %415 : vector<1x512xf32> to vector<8x512xf32>
    %417 = arith.addf %413, %416 : vector<8x512xf32>
    %418 = vector.extract_strided_slice %417 {offsets = [0, 0], sizes = [8, 384], strides = [1, 1]} : vector<8x512xf32> to vector<8x384xf32>
    %419 = arith.negf %418 : vector<8x384xf32>
    %420 = math.exp %419 : vector<8x384xf32>
    %cst_239 = arith.constant 1.000000e+00 : f32
    %421 = vector.broadcast %cst_239 : f32 to vector<8x384xf32>
    %422 = arith.addf %421, %420 : vector<8x384xf32>
    %423 = arith.divf %421, %422 : vector<8x384xf32>
    %424 = vector.extract_strided_slice %417 {offsets = [0, 384], sizes = [8, 128], strides = [1, 1]} : vector<8x512xf32> to vector<8x128xf32>
    %425 = math.tanh %424 : vector<8x128xf32>
    %426 = vector.extract_strided_slice %423 {offsets = [0, 128], sizes = [8, 128], strides = [1, 1]} : vector<8x384xf32> to vector<8x128xf32>
    %c0_240 = arith.constant 0 : index
    %c128_241 = arith.constant 128 : index
    %427 = vector.load %arg12[%c0_240, %c128_241] : memref<8x256xf32, #tpu.memory_space<vmem>>, vector<8x128xf32>
    %428 = arith.mulf %426, %427 : vector<8x128xf32>
    %429 = vector.extract_strided_slice %423 {offsets = [0, 0], sizes = [8, 128], strides = [1, 1]} : vector<8x384xf32> to vector<8x128xf32>
    %430 = arith.mulf %429, %425 : vector<8x128xf32>
    %431 = arith.addf %428, %430 : vector<8x128xf32>
    %432 = vector.extract_strided_slice %423 {offsets = [0, 256], sizes = [8, 128], strides = [1, 1]} : vector<8x384xf32> to vector<8x128xf32>
    %433 = math.tanh %431 : vector<8x128xf32>
    %434 = arith.mulf %432, %433 : vector<8x128xf32>
    %c0_242 = arith.constant 0 : index
    %c128_243 = arith.constant 128 : index
    %435 = vector.load %arg12[%c0_242, %c128_243] : memref<8x256xf32, #tpu.memory_space<vmem>>, vector<8x128xf32>
    tpu.vector_store %arg12[%c0_242, %c128_243], %431 {strides = array<i32>} : memref<8x256xf32, #tpu.memory_space<vmem>>, vector<8x128xf32>,
    %c0_244 = arith.constant 0 : index
    %c128_245 = arith.constant 128 : index
    %436 = vector.load %arg11[%c0_244, %c128_245] : memref<8x256xf32, #tpu.memory_space<vmem>>, vector<8x128xf32>
    tpu.vector_store %arg11[%c0_244, %c128_245], %434 {strides = array<i32>} : memref<8x256xf32, #tpu.memory_space<vmem>>, vector<8x128xf32>,
    %c0_246 = arith.constant 0 : index
    %c128_247 = arith.constant 128 : index
    %437 = vector.load %arg11[%c0_246, %c128_247] : memref<8x256xf32, #tpu.memory_space<vmem>>, vector<8x128xf32>
    %438 = arith.truncf %437 : vector<8x128xf32> to vector<8x128xbf16>
    %c0_248 = arith.constant 0 : index
    %c0_249 = arith.constant 0 : index
    %439 = vector.load %arg7[%c0_248, %c0_249] : memref<128x128xbf16, #tpu.memory_space<vmem>>, vector<128x128xbf16>
    %cst_250 = arith.constant dense<0.000000e+00> : vector<8x128xf32>
    %440 = tpu.matmul %438, %439, %cst_250 {dimension_numbers = #tpu.dot_dimension_numbers<[1], [0], [0], [1], [0, 0, 1, 1], [], []>} : vector<8x128xbf16>, vector<128x128xbf16>, vector<8x128xf32> -> vector<8x128xf32>
    %c0_251 = arith.constant 0 : index
    %c0_252 = arith.constant 0 : index
    %441 = vector.load %arg8[%c0_251, %c0_252] : memref<1x128xf32, #tpu.memory_space<vmem>>, vector<1x128xf32>
    %442 = vector.broadcast %441 : vector<1x128xf32> to vector<8x128xf32>
    %443 = arith.addf %440, %442 : vector<8x128xf32>
    %c0_253 = arith.constant 0 : index
    %c0_254 = arith.constant 0 : index
    %444 = vector.load %arg9[%c0_253, %c0_254] : memref<8x128xf32, #tpu.memory_space<vmem>>, vector<8x128xf32>
    tpu.vector_store %arg9[%c0_253, %c0_254], %443 {strides = array<i32>} : memref<8x128xf32, #tpu.memory_space<vmem>>, vector<8x128xf32>,
    return
  }
  func.func @transform_0(%arg0: i32) -> (i32, i32, i32) {
    %c0_i32 = arith.constant 0 : i32
    %c0_i32_0 = arith.constant 0 : i32
    %c0_i32_1 = arith.constant 0 : i32
    return %arg0, %c0_i32, %c0_i32_0 : i32, i32, i32
  }
  func.func @transform_1(%arg0: i32) -> (i32, i32) {
    %c0_i32 = arith.constant 0 : i32
    %c0_i32_0 = arith.constant 0 : i32
    %c0_i32_1 = arith.constant 0 : i32
    return %c0_i32, %c0_i32_0 : i32, i32
  }
  func.func @transform_2(%arg0: i32) -> (i32, i32) {
    %c0_i32 = arith.constant 0 : i32
    %c0_i32_0 = arith.constant 0 : i32
    %c0_i32_1 = arith.constant 0 : i32
    return %c0_i32, %c0_i32_0 : i32, i32
  }
  func.func @transform_3(%arg0: i32) -> (i32, i32) {
    %c0_i32 = arith.constant 0 : i32
    %c0_i32_0 = arith.constant 0 : i32
    %c0_i32_1 = arith.constant 0 : i32
    return %c0_i32, %c0_i32_0 : i32, i32
  }
  func.func @transform_4(%arg0: i32) -> (i32, i32, i32) {
    %c0_i32 = arith.constant 0 : i32
    %c0_i32_0 = arith.constant 0 : i32
    %c0_i32_1 = arith.constant 0 : i32
    %c0_i32_2 = arith.constant 0 : i32
    return %c0_i32, %c0_i32_0, %c0_i32_1 : i32, i32, i32
  }
  func.func @transform_5(%arg0: i32) -> (i32, i32, i32) {
    %c0_i32 = arith.constant 0 : i32
    %c0_i32_0 = arith.constant 0 : i32
    %c0_i32_1 = arith.constant 0 : i32
    %c0_i32_2 = arith.constant 0 : i32
    return %c0_i32, %c0_i32_0, %c0_i32_1 : i32, i32, i32
  }
  func.func @transform_6(%arg0: i32) -> (i32, i32) {
    %c0_i32 = arith.constant 0 : i32
    %c0_i32_0 = arith.constant 0 : i32
    %c0_i32_1 = arith.constant 0 : i32
    return %c0_i32, %c0_i32_0 : i32, i32
  }
  func.func @transform_7(%arg0: i32) -> (i32, i32) {
    %c0_i32 = arith.constant 0 : i32
    %c0_i32_0 = arith.constant 0 : i32
    %c0_i32_1 = arith.constant 0 : i32
    return %c0_i32, %c0_i32_0 : i32, i32
  }
  func.func @transform_8(%arg0: i32) -> (i32, i32) {
    %c0_i32 = arith.constant 0 : i32
    %c0_i32_0 = arith.constant 0 : i32
    return %arg0, %c0_i32 : i32, i32
  }
}

</mosaic_0001>

<llo_original>
// kernel: rnn_model_gen_forward.1
$region0: #{rnn_model_gen_forward.1}
  #allocation0 [shape = 'u32[]', space=smem, size = 0x4, offset = 0x4, fixed_abs, tag = 'smem constant byte address 0x4 - core index']
  #allocation1 [shape = 'u32[144,128]{1,0:T(1,128)}', space=vmem, size = 0x12000, scoped, tag = 'internal scratch']
  #allocation2 [shape = 'f32[64,512]{1,0:T(8,128)}', space=vmem, size = 0x20000, scoped, tag = 'scratch operand']
  #allocation3 [shape = 'f32[8,256]{1,0:T(8,128)}', space=vmem, size = 0x2000, scoped, tag = 'scratch operand']
  #allocation4 [shape = 'f32[8,256]{1,0:T(8,128)}', space=vmem, size = 0x2000, scoped, tag = 'scratch operand']
  %s0 = inlined_call_operand.vmem [shape: f32[1,64,32], index: 0, kind: input, shape index: {}]
  %s1 = inlined_call_operand.vmem [shape: bf16[32,512], index: 1, kind: input, shape index: {}]
  %s2 = inlined_call_operand.vmem [shape: bf16[128,512], index: 2, kind: input, shape index: {}]
  %s3 = inlined_call_operand.vmem [shape: f32[1,512], index: 3, kind: input, shape index: {}]
  %s4 = inlined_call_operand.vmem [shape: bf16[1,256,512], index: 4, kind: input, shape index: {}]
  %s5 = inlined_call_operand.vmem [shape: f32[1,1,512], index: 5, kind: input, shape index: {}]
  %s6 = inlined_call_operand.vmem [shape: bf16[128,128], index: 6, kind: input, shape index: {}]
  %s7 = inlined_call_operand.vmem [shape: f32[1,128], index: 7, kind: input, shape index: {}]
  %s8 = inlined_call_operand.hbm [shape: f32[8,128], index: 8, kind: output, shape index: {}]
  %s9 = sld [smem:[#allocation0]]
  $region42: #{rnn_model_gen_forward.1} parent=0
    _
  %s11 = ssub.s32 1, %s9
  %s12 = scalar_select 0, %s11, %s9
  $region1: #{rnn_model_gen_forward.1} parent=0
    #allocation5 [shape = 'u8[4096]{0}', space=vmem, size = 0x1000, scoped, tag = 'output window, operand 0, single buffered']
    #allocation6 [shape = 's32[1]{0}', space=sflag, size = 0x4, scoped, tag = 'scoped memory for rnn_model_gen_forward.1']
    %13 = vsyncpa [#allocation6], 0
    // Predicated region
    $region2: #{rnn_model_gen_forward.1} parent=1 // pred_check
      _
    $region3: #{rnn_model_gen_forward.1} parent=1 // pred_check_branch
      %15 = sbr.rel (0) target = $region5
    $region4: #{rnn_model_gen_forward.1} parent=1 // pred_region
      _
    $region5: #{rnn_model_gen_forward.1} parent=1 // pred_fallthru
      _
    // Predicated region
    $region6: #{rnn_model_gen_forward.1} parent=1 // pred_check
      _
    $region7: #{rnn_model_gen_forward.1} parent=1 // pred_check_branch
      %17 = sbr.rel (0) target = $region9
    $region8: #{rnn_model_gen_forward.1} parent=1 // pred_region
      _
    $region9: #{rnn_model_gen_forward.1} parent=1 // pred_fallthru
      _
    // Predicated region
    $region10: #{rnn_model_gen_forward.1} parent=1 // pred_check
      _
    $region11: #{rnn_model_gen_forward.1} parent=1 // pred_check_branch
      %19 = sbr.rel (0) target = $region13
    $region12: #{rnn_model_gen_forward.1} parent=1 // pred_region
      _
    $region13: #{rnn_model_gen_forward.1} parent=1 // pred_fallthru
      _
    // Predicated region
    $region14: #{rnn_model_gen_forward.1} parent=1 // pred_check
      _
    $region15: #{rnn_model_gen_forward.1} parent=1 // pred_check_branch
      %21 = sbr.rel (0) target = $region17
    $region16: #{rnn_model_gen_forward.1} parent=1 // pred_region
      _
    $region17: #{rnn_model_gen_forward.1} parent=1 // pred_fallthru
      _
    // Predicated region
    $region18: #{rnn_model_gen_forward.1} parent=1 // pred_check
      _
    $region19: #{rnn_model_gen_forward.1} parent=1 // pred_check_branch
      %23 = sbr.rel (0) target = $region21
    $region20: #{rnn_model_gen_forward.1} parent=1 // pred_region
      _
    $region21: #{rnn_model_gen_forward.1} parent=1 // pred_fallthru
      _
    // Predicated region
    $region22: #{rnn_model_gen_forward.1} parent=1 // pred_check
      _
    $region23: #{rnn_model_gen_forward.1} parent=1 // pred_check_branch
      %25 = sbr.rel (0) target = $region25
    $region24: #{rnn_model_gen_forward.1} parent=1 // pred_region
      _
    $region25: #{rnn_model_gen_forward.1} parent=1 // pred_fallthru
      _
    // Predicated region
    $region26: #{rnn_model_gen_forward.1} parent=1 // pred_check
      _
    $region27: #{rnn_model_gen_forward.1} parent=1 // pred_check_branch
      %27 = sbr.rel (0) target = $region29
    $region28: #{rnn_model_gen_forward.1} parent=1 // pred_region
      _
    $region29: #{rnn_model_gen_forward.1} parent=1 // pred_fallthru
      _
    // Predicated region
    $region30: #{rnn_model_gen_forward.1} parent=1 // pred_check
      _
    $region31: #{rnn_model_gen_forward.1} parent=1 // pred_check_branch
      %29 = sbr.rel (0) target = $region33
    $region32: #{rnn_model_gen_forward.1} parent=1 // pred_region
      _
    $region33: #{rnn_model_gen_forward.1} parent=1 // pred_fallthru
      _
    %31 = vst [vmem:[#allocation3] sm:$0xff] 0.0
    %32 = vst [vmem:[#allocation3 + $0x8] sm:$0xff] 0.0
    %33 = vst [vmem:[#allocation4] sm:$0xff] 0.0
    %34 = vst [vmem:[#allocation4 + $0x8] sm:$0xff] 0.0
    %v35 = vld [vmem:[%s0] sm:$0xff]
    %v36 = vld [vmem:[%s0 + $0x8] sm:$0xff]
    %v37 = vld [vmem:[%s0 + $0x10] sm:$0xff]
    %v38 = vld [vmem:[%s0 + $0x18] sm:$0xff]
    %v39 = vld [vmem:[%s0 + $0x20] sm:$0xff]
    %v40 = vld [vmem:[%s0 + $0x28] sm:$0xff]
    %v41 = vld [vmem:[%s0 + $0x30] sm:$0xff]
    %v42 = vld [vmem:[%s0 + $0x38] sm:$0xff]
    %v43 = vpack.c.bf16 %v36, %v35
    %v44 = vpack.c.bf16 %v38, %v37
    %v45 = vpack.c.bf16 %v40, %v39
    %v46 = vpack.c.bf16 %v42, %v41
    %v47 = vld [vmem:[%s1] sm:$0xff]
    %v48 = vld [vmem:[%s1 + $0x8] sm:$0xff]
    %v49 = vld [vmem:[%s1 + $0x10] sm:$0xff]
    %v50 = vld [vmem:[%s1 + $0x18] sm:$0xff]
    %v51 = vld [vmem:[%s1 + $0x20] sm:$0xff]
    %v52 = vld [vmem:[%s1 + $0x28] sm:$0xff]
    %v53 = vld [vmem:[%s1 + $0x30] sm:$0xff]
    %v54 = vld [vmem:[%s1 + $0x38] sm:$0xff]
    %v55 = vld [vmem:[%s3] sm:$0xf]
    %v57 = vlaneseq
    %v58 = vshrl.u32 %v57, 7
    %v59 = vsub.s32 0, %v58
    %v60 = vrot.slane %v55, %v59
    %v61 = vlaneseq
    %v62 = vshrl.u32 %v61, 7
    %v63 = vsub.s32 1, %v62
    %v64 = vrot.slane %v55, %v63
    %v65 = vlaneseq
    %v66 = vshrl.u32 %v65, 7
    %v67 = vsub.s32 2, %v66
    %v68 = vrot.slane %v55, %v67
    %v69 = vlaneseq
    %v70 = vshrl.u32 %v69, 7
    %v71 = vsub.s32 3, %v70
    %v72 = vrot.slane %v55, %v71
    %v85 = vunpack.c.l.b16 %v47
    %v86 = vunpack.c.h.b16 %v47
    %v87 = vunpack.c.l.b16 %v48
    %v88 = vunpack.c.h.b16 %v48
    %v89 = vunpack.c.l.b16 %v49
    %v90 = vunpack.c.h.b16 %v49
    %v91 = vunpack.c.l.b16 %v50
    %v92 = vunpack.c.h.b16 %v50
    %v93 = vunpack.c.l.b16 %v51
    %v94 = vunpack.c.h.b16 %v51
    %v95 = vunpack.c.l.b16 %v52
    %v96 = vunpack.c.h.b16 %v52
    %v97 = vunpack.c.l.b16 %v53
    %v98 = vunpack.c.h.b16 %v53
    %v99 = vunpack.c.l.b16 %v54
    %v100 = vunpack.c.h.b16 %v54
    %v101 = vpack.c.b16 %v89, %v85
    %v102 = vpack.c.b16 %v90, %v86
    %v103 = vpack.c.b16 %v91, %v87
    %v104 = vpack.c.b16 %v92, %v88
    %v105 = vpack.c.b16 %v97, %v93
    %v106 = vpack.c.b16 %v98, %v94
    %v107 = vpack.c.b16 %v99, %v95
    %v108 = vpack.c.b16 %v100, %v96
    %vm117 = vcmask 261120
    %v119 = vsel %vm117, %v43, 0
    %v122 = vsel %vm117, %v44, 0
    %v125 = vsel %vm117, %v45, 0
    %v128 = vsel %vm117, %v46, 0
    %130 = vmatprep.subr.bf16.mxu0 0
    %131 = vmatpush1.bf16.msra.mxu0 0
    %132 = vmatprep.subr.bf16.mxu0 0
    %133 = vmatpush1.bf16.msra.mxu0 0
    %134 = vmatprep.subr.bf16.mxu0 0
    %135 = vmatpush1.bf16.msra.mxu0 0
    %136 = vmatprep.subr.bf16.mxu0 0
    %137 = vmatpush1.bf16.msra.mxu0 0
    %138 = vmatprep.subr.bf16.mxu0 0
    %139 = vmatpush1.bf16.msra.mxu0 0
    %140 = vmatprep.subr.bf16.mxu0 0
    %141 = vmatpush1.bf16.msra.mxu0 0
    %142 = vmatprep.subr.bf16.mxu0 %v106
    %143 = vmatpush1.bf16.msra.mxu0 %v105
    %144 = vmatprep.subr.bf16.mxu0 %v102
    %145 = vmatpush1.bf16.msra.mxu0 %v101
    %146 = vmatprep.subr.bf16.mxu0 0
    %147 = vmatpush2.bf16.msra.mxu0 0
    %148 = vmatprep.subr.bf16.mxu0 0
    %149 = vmatpush2.bf16.msra.mxu0 0
    %150 = vmatprep.subr.bf16.mxu0 0
    %151 = vmatpush2.bf16.msra.mxu0 0
    %152 = vmatprep.subr.bf16.mxu0 0
    %153 = vmatpush2.bf16.msra.mxu0 0
    %154 = vmatprep.subr.bf16.mxu0 0
    %155 = vmatpush2.bf16.msra.mxu0 0
    %156 = vmatprep.subr.bf16.mxu0 0
    %157 = vmatpush2.bf16.msra.mxu0 0
    %158 = vmatprep.subr.bf16.mxu0 0
    %159 = vmatpush2.bf16.msra.mxu0 0
    %160 = vmatprep.subr.bf16.mxu0 0
    %161 = vmatpush2.bf16.msra.mxu0 0
    %162 = vmatprep.mubr.bf16.mxu0 0
    %163 = vmatmul.mubr.bf16.gmra.mxu0 %v119
    %v164 = vpop.f32.mrf.mxu0
    %v165 = vadd.f32 %v60, %v164
    %v166 = vpop.f32.mrf.mxu0
    %v167 = vadd.f32 %v64, %v166
    %v168 = vpop.f32.mrf.mxu0
    %v169 = vadd.f32 %v60, %v168
    %v170 = vpop.f32.mrf.mxu0
    %v171 = vadd.f32 %v64, %v170
    %172 = vmatprep.mubr.bf16.mxu0 0
    %173 = vmatmul.mubr.bf16.gmra.mxu0 %v122
    %v174 = vpop.f32.mrf.mxu0
    %v175 = vadd.f32 %v60, %v174
    %v176 = vpop.f32.mrf.mxu0
    %v177 = vadd.f32 %v64, %v176
    %v178 = vpop.f32.mrf.mxu0
    %v179 = vadd.f32 %v60, %v178
    %v180 = vpop.f32.mrf.mxu0
    %v181 = vadd.f32 %v64, %v180
    %182 = vmatprep.mubr.bf16.mxu0 0
    %183 = vmatmul.mubr.bf16.gmra.mxu0 %v125
    %v184 = vpop.f32.mrf.mxu0
    %v185 = vadd.f32 %v60, %v184
    %v186 = vpop.f32.mrf.mxu0
    %v187 = vadd.f32 %v64, %v186
    %v188 = vpop.f32.mrf.mxu0
    %v189 = vadd.f32 %v60, %v188
    %v190 = vpop.f32.mrf.mxu0
    %v191 = vadd.f32 %v64, %v190
    %192 = vmatprep.mubr.bf16.mxu0 0
    %193 = vmatmul.mubr.bf16.gmra.mxu0 %v128
    %v194 = vpop.f32.mrf.mxu0
    %v195 = vadd.f32 %v60, %v194
    %v196 = vpop.f32.mrf.mxu0
    %v197 = vadd.f32 %v64, %v196
    %v198 = vpop.f32.mrf.mxu0
    %v199 = vadd.f32 %v60, %v198
    %v200 = vpop.f32.mrf.mxu0
    %v201 = vadd.f32 %v64, %v200
    %202 = vdwg.mxu0
    %203 = vmatprep.subr.bf16.mxu0 0
    %204 = vmatpush1.bf16.msra.mxu0 0
    %205 = vmatprep.subr.bf16.mxu0 0
    %206 = vmatpush1.bf16.msra.mxu0 0
    %207 = vmatprep.subr.bf16.mxu0 0
    %208 = vmatpush1.bf16.msra.mxu0 0
    %209 = vmatprep.subr.bf16.mxu0 0
    %210 = vmatpush1.bf16.msra.mxu0 0
    %211 = vmatprep.subr.bf16.mxu0 0
    %212 = vmatpush1.bf16.msra.mxu0 0
    %213 = vmatprep.subr.bf16.mxu0 0
    %214 = vmatpush1.bf16.msra.mxu0 0
    %215 = vmatprep.subr.bf16.mxu0 %v108
    %216 = vmatpush1.bf16.msra.mxu0 %v107
    %217 = vmatprep.subr.bf16.mxu0 %v104
    %218 = vmatpush1.bf16.msra.mxu0 %v103
    %219 = vmatprep.subr.bf16.mxu0 0
    %220 = vmatpush2.bf16.msra.mxu0 0
    %221 = vmatprep.subr.bf16.mxu0 0
    %222 = vmatpush2.bf16.msra.mxu0 0
    %223 = vmatprep.subr.bf16.mxu0 0
    %224 = vmatpush2.bf16.msra.mxu0 0
    %225 = vmatprep.subr.bf16.mxu0 0
    %226 = vmatpush2.bf16.msra.mxu0 0
    %227 = vmatprep.subr.bf16.mxu0 0
    %228 = vmatpush2.bf16.msra.mxu0 0
    %229 = vmatprep.subr.bf16.mxu0 0
    %230 = vmatpush2.bf16.msra.mxu0 0
    %231 = vmatprep.subr.bf16.mxu0 0
    %232 = vmatpush2.bf16.msra.mxu0 0
    %233 = vmatprep.subr.bf16.mxu0 0
    %234 = vmatpush2.bf16.msra.mxu0 0
    %235 = vmatprep.mubr.bf16.mxu0 0
    %236 = vmatmul.mubr.bf16.gmra.mxu0 %v119
    %v237 = vpop.f32.mrf.mxu0
    %v238 = vadd.f32 %v68, %v237
    %v239 = vpop.f32.mrf.mxu0
    %v240 = vadd.f32 %v72, %v239
    %v241 = vpop.f32.mrf.mxu0
    %v242 = vadd.f32 %v68, %v241
    %v243 = vpop.f32.mrf.mxu0
    %v244 = vadd.f32 %v72, %v243
    %245 = vmatprep.mubr.bf16.mxu0 0
    %246 = vmatmul.mubr.bf16.gmra.mxu0 %v122
    %v247 = vpop.f32.mrf.mxu0
    %v248 = vadd.f32 %v68, %v247
    %v249 = vpop.f32.mrf.mxu0
    %v250 = vadd.f32 %v72, %v249
    %v251 = vpop.f32.mrf.mxu0
    %v252 = vadd.f32 %v68, %v251
    %v253 = vpop.f32.mrf.mxu0
    %v254 = vadd.f32 %v72, %v253
    %255 = vmatprep.mubr.bf16.mxu0 0
    %256 = vmatmul.mubr.bf16.gmra.mxu0 %v125
    %v257 = vpop.f32.mrf.mxu0
    %v258 = vadd.f32 %v68, %v257
    %v259 = vpop.f32.mrf.mxu0
    %v260 = vadd.f32 %v72, %v259
    %v261 = vpop.f32.mrf.mxu0
    %v262 = vadd.f32 %v68, %v261
    %v263 = vpop.f32.mrf.mxu0
    %v264 = vadd.f32 %v72, %v263
    %265 = vmatprep.mubr.bf16.mxu0 0
    %266 = vmatmul.mubr.bf16.gmra.mxu0 %v128
    %v267 = vpop.f32.mrf.mxu0
    %v268 = vadd.f32 %v68, %v267
    %v269 = vpop.f32.mrf.mxu0
    %v270 = vadd.f32 %v72, %v269
    %v271 = vpop.f32.mrf.mxu0
    %v272 = vadd.f32 %v68, %v271
    %v273 = vpop.f32.mrf.mxu0
    %v274 = vadd.f32 %v72, %v273
    %275 = vdwg.mxu0
    %276 = vst [vmem:[#allocation2] sm:$0xff] %v165
    %277 = vst [vmem:[#allocation2 + $0x8] sm:$0xff] %v167
    %278 = vst [vmem:[#allocation2 + $0x10] sm:$0xff] %v238
    %279 = vst [vmem:[#allocation2 + $0x18] sm:$0xff] %v240
    %280 = vst [vmem:[#allocation2 + $0x20] sm:$0xff] %v169
    %281 = vst [vmem:[#allocation2 + $0x28] sm:$0xff] %v171
    %282 = vst [vmem:[#allocation2 + $0x30] sm:$0xff] %v242
    %283 = vst [vmem:[#allocation2 + $0x38] sm:$0xff] %v244
    %284 = vst [vmem:[#allocation2 + $0x40] sm:$0xff] %v175
    %285 = vst [vmem:[#allocation2 + $0x48] sm:$0xff] %v177
    %286 = vst [vmem:[#allocation2 + $0x50] sm:$0xff] %v248
    %287 = vst [vmem:[#allocation2 + $0x58] sm:$0xff] %v250
    %288 = vst [vmem:[#allocation2 + $0x60] sm:$0xff] %v179
    %289 = vst [vmem:[#allocation2 + $0x68] sm:$0xff] %v181
    %290 = vst [vmem:[#allocation2 + $0x70] sm:$0xff] %v252
    %291 = vst [vmem:[#allocation2 + $0x78] sm:$0xff] %v254
    %292 = vst [vmem:[#allocation2 + $0x80] sm:$0xff] %v185
    %293 = vst [vmem:[#allocation2 + $0x88] sm:$0xff] %v187
    %294 = vst [vmem:[#allocation2 + $0x90] sm:$0xff] %v258
    %295 = vst [vmem:[#allocation2 + $0x98] sm:$0xff] %v260
    %296 = vst [vmem:[#allocation2 + $0xa0] sm:$0xff] %v189
    %297 = vst [vmem:[#allocation2 + $0xa8] sm:$0xff] %v191
    %298 = vst [vmem:[#allocation2 + $0xb0] sm:$0xff] %v262
    %299 = vst [vmem:[#allocation2 + $0xb8] sm:$0xff] %v264
    %300 = vst [vmem:[#allocation2 + $0xc0] sm:$0xff] %v195
    %301 = vst [vmem:[#allocation2 + $0xc8] sm:$0xff] %v197
    %302 = vst [vmem:[#allocation2 + $0xd0] sm:$0xff] %v268
    %303 = vst [vmem:[#allocation2 + $0xd8] sm:$0xff] %v270
    %304 = vst [vmem:[#allocation2 + $0xe0] sm:$0xff] %v199
    %305 = vst [vmem:[#allocation2 + $0xe8] sm:$0xff] %v201
    %306 = vst [vmem:[#allocation2 + $0xf0] sm:$0xff] %v272
    %307 = vst [vmem:[#allocation2 + $0xf8] sm:$0xff] %v274
    %v308 = vld [vmem:[#allocation2] sm:$0xff]
    %v309 = vld [vmem:[#allocation2 + $0x8] sm:$0xff]
    %v310 = vld [vmem:[#allocation2 + $0x10] sm:$0xff]
    %v311 = vld [vmem:[#allocation2 + $0x18] sm:$0xff]
    %v312 = vld [vmem:[#allocation3] sm:$0xff]
    %v313 = vpack.c.bf16 %v312, %v312
    %v314 = vld [vmem:[%s2] sm:$0xff]
    %v315 = vld [vmem:[%s2 + $0x8] sm:$0xff]
    %v316 = vld [vmem:[%s2 + $0x10] sm:$0xff]
    %v317 = vld [vmem:[%s2 + $0x18] sm:$0xff]
    %v318 = vld [vmem:[%s2 + $0x20] sm:$0xff]
    %v319 = vld [vmem:[%s2 + $0x28] sm:$0xff]
    %v320 = vld [vmem:[%s2 + $0x30] sm:$0xff]
    %v321 = vld [vmem:[%s2 + $0x38] sm:$0xff]
    %v322 = vld [vmem:[%s2 + $0x40] sm:$0xff]
    %v323 = vld [vmem:[%s2 + $0x48] sm:$0xff]
    %v324 = vld [vmem:[%s2 + $0x50] sm:$0xff]
    %v325 = vld [vmem:[%s2 + $0x58] sm:$0xff]
    %v326 = vld [vmem:[%s2 + $0x60] sm:$0xff]
    %v327 = vld [vmem:[%s2 + $0x68] sm:$0xff]
    %v328 = vld [vmem:[%s2 + $0x70] sm:$0xff]
    %v329 = vld [vmem:[%s2 + $0x78] sm:$0xff]
    %v330 = vld [vmem:[%s2 + $0x80] sm:$0xff]
    %v331 = vld [vmem:[%s2 + $0x88] sm:$0xff]
    %v332 = vld [vmem:[%s2 + $0x90] sm:$0xff]
    %v333 = vld [vmem:[%s2 + $0x98] sm:$0xff]
    %v334 = vld [vmem:[%s2 + $0xa0] sm:$0xff]
    %v335 = vld [vmem:[%s2 + $0xa8] sm:$0xff]
    %v336 = vld [vmem:[%s2 + $0xb0] sm:$0xff]
    %v337 = vld [vmem:[%s2 + $0xb8] sm:$0xff]
    %v338 = vld [vmem:[%s2 + $0xc0] sm:$0xff]
    %v339 = vld [vmem:[%s2 + $0xc8] sm:$0xff]
    %v340 = vld [vmem:[%s2 + $0xd0] sm:$0xff]
    %v341 = vld [vmem:[%s2 + $0xd8] sm:$0xff]
    %v342 = vld [vmem:[%s2 + $0xe0] sm:$0xff]
    %v343 = vld [vmem:[%s2 + $0xe8] sm:$0xff]
    %v344 = vld [vmem:[%s2 + $0xf0] sm:$0xff]
    %v345 = vld [vmem:[%s2 + $0xf8] sm:$0xff]
    %v378 = vunpack.c.l.b16 %v314
    %v379 = vunpack.c.h.b16 %v314
    %v380 = vunpack.c.l.b16 %v315
    %v381 = vunpack.c.h.b16 %v315
    %v382 = vunpack.c.l.b16 %v316
    %v383 = vunpack.c.h.b16 %v316
    %v384 = vunpack.c.l.b16 %v317
    %v385 = vunpack.c.h.b16 %v317
    %v386 = vunpack.c.l.b16 %v318
    %v387 = vunpack.c.h.b16 %v318
    %v388 = vunpack.c.l.b16 %v319
    %v389 = vunpack.c.h.b16 %v319
    %v390 = vunpack.c.l.b16 %v320
    %v391 = vunpack.c.h.b16 %v320
    %v392 = vunpack.c.l.b16 %v321
    %v393 = vunpack.c.h.b16 %v321
    %v394 = vunpack.c.l.b16 %v322
    %v395 = vunpack.c.h.b16 %v322
    %v396 = vunpack.c.l.b16 %v323
    %v397 = vunpack.c.h.b16 %v323
    %v398 = vunpack.c.l.b16 %v324
    %v399 = vunpack.c.h.b16 %v324
    %v400 = vunpack.c.l.b16 %v325
    %v401 = vunpack.c.h.b16 %v325
    %v402 = vunpack.c.l.b16 %v326
    %v403 = vunpack.c.h.b16 %v326
    %v404 = vunpack.c.l.b16 %v327
    %v405 = vunpack.c.h.b16 %v327
    %v406 = vunpack.c.l.b16 %v328
    %v407 = vunpack.c.h.b16 %v328
    %v408 = vunpack.c.l.b16 %v329
    %v409 = vunpack.c.h.b16 %v329
    %v410 = vunpack.c.l.b16 %v330
    %v411 = vunpack.c.h.b16 %v330
    %v412 = vunpack.c.l.b16 %v331
    %v413 = vunpack.c.h.b16 %v331
    %v414 = vunpack.c.l.b16 %v332
    %v415 = vunpack.c.h.b16 %v332
    %v416 = vunpack.c.l.b16 %v333
    %v417 = vunpack.c.h.b16 %v333
    %v418 = vunpack.c.l.b16 %v334
    %v419 = vunpack.c.h.b16 %v334
    %v420 = vunpack.c.l.b16 %v335
    %v421 = vunpack.c.h.b16 %v335
    %v422 = vunpack.c.l.b16 %v336
    %v423 = vunpack.c.h.b16 %v336
    %v424 = vunpack.c.l.b16 %v337
    %v425 = vunpack.c.h.b16 %v337
    %v426 = vunpack.c.l.b16 %v338
    %v427 = vunpack.c.h.b16 %v338
    %v428 = vunpack.c.l.b16 %v339
    %v429 = vunpack.c.h.b16 %v339
    %v430 = vunpack.c.l.b16 %v340
    %v431 = vunpack.c.h.b16 %v340
    %v432 = vunpack.c.l.b16 %v341
    %v433 = vunpack.c.h.b16 %v341
    %v434 = vunpack.c.l.b16 %v342
    %v435 = vunpack.c.h.b16 %v342
    %v436 = vunpack.c.l.b16 %v343
    %v437 = vunpack.c.h.b16 %v343
    %v438 = vunpack.c.l.b16 %v344
    %v439 = vunpack.c.h.b16 %v344
    %v440 = vunpack.c.l.b16 %v345
    %v441 = vunpack.c.h.b16 %v345
    %v442 = vpack.c.b16 %v382, %v378
    %v443 = vpack.c.b16 %v383, %v379
    %v444 = vpack.c.b16 %v384, %v380
    %v445 = vpack.c.b16 %v385, %v381
    %v446 = vpack.c.b16 %v390, %v386
    %v447 = vpack.c.b16 %v391, %v387
    %v448 = vpack.c.b16 %v392, %v388
    %v449 = vpack.c.b16 %v393, %v389
    %v450 = vpack.c.b16 %v398, %v394
    %v451 = vpack.c.b16 %v399, %v395
    %v452 = vpack.c.b16 %v400, %v396
    %v453 = vpack.c.b16 %v401, %v397
    %v454 = vpack.c.b16 %v406, %v402
    %v455 = vpack.c.b16 %v407, %v403
    %v456 = vpack.c.b16 %v408, %v404
    %v457 = vpack.c.b16 %v409, %v405
    %v458 = vpack.c.b16 %v414, %v410
    %v459 = vpack.c.b16 %v415, %v411
    %v460 = vpack.c.b16 %v416, %v412
    %v461 = vpack.c.b16 %v417, %v413
    %v462 = vpack.c.b16 %v422, %v418
    %v463 = vpack.c.b16 %v423, %v419
    %v464 = vpack.c.b16 %v424, %v420
    %v465 = vpack.c.b16 %v425, %v421
    %v466 = vpack.c.b16 %v430, %v426
    %v467 = vpack.c.b16 %v431, %v427
    %v468 = vpack.c.b16 %v432, %v428
    %v469 = vpack.c.b16 %v433, %v429
    %v470 = vpack.c.b16 %v438, %v434
    %v471 = vpack.c.b16 %v439, %v435
    %v472 = vpack.c.b16 %v440, %v436
    %v473 = vpack.c.b16 %v441, %v437
    %506 = vmatprep.subr.bf16.mxu0 %v471
    %507 = vmatpush1.bf16.msra.mxu0 %v470
    %508 = vmatprep.subr.bf16.mxu0 %v467
    %509 = vmatpush1.bf16.msra.mxu0 %v466
    %510 = vmatprep.subr.bf16.mxu0 %v463
    %511 = vmatpush1.bf16.msra.mxu0 %v462
    %512 = vmatprep.subr.bf16.mxu0 %v459
    %513 = vmatpush1.bf16.msra.mxu0 %v458
    %514 = vmatprep.subr.bf16.mxu0 %v455
    %515 = vmatpush1.bf16.msra.mxu0 %v454
    %516 = vmatprep.subr.bf16.mxu0 %v451
    %517 = vmatpush1.bf16.msra.mxu0 %v450
    %518 = vmatprep.subr.bf16.mxu0 %v447
    %519 = vmatpush1.bf16.msra.mxu0 %v446
    %520 = vmatprep.subr.bf16.mxu0 %v443
    %521 = vmatpush1.bf16.msra.mxu0 %v442
    %522 = vmatprep.subr.bf16.mxu0 0
    %523 = vmatpush2.bf16.msra.mxu0 0
    %524 = vmatprep.subr.bf16.mxu0 0
    %525 = vmatpush2.bf16.msra.mxu0 0
    %526 = vmatprep.subr.bf16.mxu0 0
    %527 = vmatpush2.bf16.msra.mxu0 0
    %528 = vmatprep.subr.bf16.mxu0 0
    %529 = vmatpush2.bf16.msra.mxu0 0
    %530 = vmatprep.subr.bf16.mxu0 0
    %531 = vmatpush2.bf16.msra.mxu0 0
    %532 = vmatprep.subr.bf16.mxu0 0
    %533 = vmatpush2.bf16.msra.mxu0 0
    %534 = vmatprep.subr.bf16.mxu0 0
    %535 = vmatpush2.bf16.msra.mxu0 0
    %536 = vmatprep.subr.bf16.mxu0 0
    %537 = vmatpush2.bf16.msra.mxu0 0
    %538 = vmatprep.mubr.bf16.mxu0 0
    %539 = vmatmul.mubr.bf16.gmra.mxu0 %v313
    %v540 = vpop.f32.mrf.mxu0
    %v541 = vadd.f32 0.0, %v540
    %v542 = vpop.f32.mrf.mxu0
    %v543 = vadd.f32 0.0, %v542
    %v544 = vpop.f32.mrf.mxu0
    %v545 = vpop.f32.mrf.mxu0
    %546 = vdwg.mxu0
    %547 = vmatprep.subr.bf16.mxu0 %v473
    %548 = vmatpush1.bf16.msra.mxu0 %v472
    %549 = vmatprep.subr.bf16.mxu0 %v469
    %550 = vmatpush1.bf16.msra.mxu0 %v468
    %551 = vmatprep.subr.bf16.mxu0 %v465
    %552 = vmatpush1.bf16.msra.mxu0 %v464
    %553 = vmatprep.subr.bf16.mxu0 %v461
    %554 = vmatpush1.bf16.msra.mxu0 %v460
    %555 = vmatprep.subr.bf16.mxu0 %v457
    %556 = vmatpush1.bf16.msra.mxu0 %v456
    %557 = vmatprep.subr.bf16.mxu0 %v453
    %558 = vmatpush1.bf16.msra.mxu0 %v452
    %559 = vmatprep.subr.bf16.mxu0 %v449
    %560 = vmatpush1.bf16.msra.mxu0 %v448
    %561 = vmatprep.subr.bf16.mxu0 %v445
    %562 = vmatpush1.bf16.msra.mxu0 %v444
    %563 = vmatprep.subr.bf16.mxu0 0
    %564 = vmatpush2.bf16.msra.mxu0 0
    %565 = vmatprep.subr.bf16.mxu0 0
    %566 = vmatpush2.bf16.msra.mxu0 0
    %567 = vmatprep.subr.bf16.mxu0 0
    %568 = vmatpush2.bf16.msra.mxu0 0
    %569 = vmatprep.subr.bf16.mxu0 0
    %570 = vmatpush2.bf16.msra.mxu0 0
    %571 = vmatprep.subr.bf16.mxu0 0
    %572 = vmatpush2.bf16.msra.mxu0 0
    %573 = vmatprep.subr.bf16.mxu0 0
    %574 = vmatpush2.bf16.msra.mxu0 0
    %575 = vmatprep.subr.bf16.mxu0 0
    %576 = vmatpush2.bf16.msra.mxu0 0
    %577 = vmatprep.subr.bf16.mxu0 0
    %578 = vmatpush2.bf16.msra.mxu0 0
    %579 = vmatprep.mubr.bf16.mxu0 0
    %580 = vmatmul.mubr.bf16.gmra.mxu0 %v313
    %v581 = vpop.f32.mrf.mxu0
    %v582 = vadd.f32 0.0, %v581
    %v583 = vpop.f32.mrf.mxu0
    %v584 = vadd.f32 0.0, %v583
    %v585 = vpop.f32.mrf.mxu0
    %v586 = vpop.f32.mrf.mxu0
    %587 = vdwg.mxu0
    %v588 = vadd.f32 %v308, %v541
    %v589 = vadd.f32 %v309, %v543
    %v590 = vadd.f32 %v310, %v582
    %v591 = vadd.f32 %v311, %v584
    %v592 = vxor.u32 %v588, 2147483648
    %v593 = vxor.u32 %v589, 2147483648
    %v594 = vxor.u32 %v590, 2147483648
    %v595 = vmul.f32 %v592, 1.442695
    %v596 = vpow.pop %v595
    %v597 = vmul.f32 %v593, 1.442695
    %v598 = vpow.pop %v597
    %v599 = vmul.f32 %v594, 1.442695
    %v600 = vpow.pop %v599
    %v601 = vadd.f32 %v596, 1.0
    %v602 = vadd.f32 %v598, 1.0
    %v603 = vadd.f32 %v600, 1.0
    %v604 = vrcp.pop %v601
    %v605 = vmul.f32 1.0, %v604
    %v606 = vrcp.pop %v602
    %v607 = vmul.f32 1.0, %v606
    %v608 = vrcp.pop %v603
    %v609 = vmul.f32 1.0, %v608
    %v610 = vtanh.pop %v591
    %v611 = vld [vmem:[#allocation4] sm:$0xff]
    %v612 = vmul.f32 %v607, %v611
    %v613 = vmul.f32 %v605, %v610
    %v614 = vadd.f32 %v612, %v613
    %v615 = vtanh.pop %v614
    %v616 = vmul.f32 %v609, %v615
    %617 = vst [vmem:[#allocation4] sm:$0xff] %v614
    %618 = vst [vmem:[#allocation3] sm:$0xff] %v616
    %v619 = vld [vmem:[#allocation3] sm:$0xff]
    %v620 = vld [vmem:[#allocation3 + $0x8] sm:$0xff]
    %v621 = vpack.c.bf16 %v619, %v619
    %v622 = vpack.c.bf16 %v620, %v620
    %v623 = vld [vmem:[%s4] sm:$0xff]
    %v624 = vld [vmem:[%s4 + $0x8] sm:$0xff]
    %v625 = vld [vmem:[%s4 + $0x10] sm:$0xff]
    %v626 = vld [vmem:[%s4 + $0x18] sm:$0xff]
    %v627 = vld [vmem:[%s4 + $0x20] sm:$0xff]
    %v628 = vld [vmem:[%s4 + $0x28] sm:$0xff]
    %v629 = vld [vmem:[%s4 + $0x30] sm:$0xff]
    %v630 = vld [vmem:[%s4 + $0x38] sm:$0xff]
    %v631 = vld [vmem:[%s4 + $0x40] sm:$0xff]
    %v632 = vld [vmem:[%s4 + $0x48] sm:$0xff]
    %v633 = vld [vmem:[%s4 + $0x50] sm:$0xff]
    %v634 = vld [vmem:[%s4 + $0x58] sm:$0xff]
    %v635 = vld [vmem:[%s4 + $0x60] sm:$0xff]
    %v636 = vld [vmem:[%s4 + $0x68] sm:$0xff]
    %v637 = vld [vmem:[%s4 + $0x70] sm:$0xff]
    %v638 = vld [vmem:[%s4 + $0x78] sm:$0xff]
    %v639 = vld [vmem:[%s4 + $0x80] sm:$0xff]
    %v640 = vld [vmem:[%s4 + $0x88] sm:$0xff]
    %v641 = vld [vmem:[%s4 + $0x90] sm:$0xff]
    %v642 = vld [vmem:[%s4 + $0x98] sm:$0xff]
    %v643 = vld [vmem:[%s4 + $0xa0] sm:$0xff]
    %v644 = vld [vmem:[%s4 + $0xa8] sm:$0xff]
    %v645 = vld [vmem:[%s4 + $0xb0] sm:$0xff]
    %v646 = vld [vmem:[%s4 + $0xb8] sm:$0xff]
    %v647 = vld [vmem:[%s4 + $0xc0] sm:$0xff]
    %v648 = vld [vmem:[%s4 + $0xc8] sm:$0xff]
    %v649 = vld [vmem:[%s4 + $0xd0] sm:$0xff]
    %v650 = vld [vmem:[%s4 + $0xd8] sm:$0xff]
    %v651 = vld [vmem:[%s4 + $0xe0] sm:$0xff]
    %v652 = vld [vmem:[%s4 + $0xe8] sm:$0xff]
    %v653 = vld [vmem:[%s4 + $0xf0] sm:$0xff]
    %v654 = vld [vmem:[%s4 + $0xf8] sm:$0xff]
    %v655 = vld [vmem:[%s4 + $0x100] sm:$0xff]
    %v656 = vld [vmem:[%s4 + $0x108] sm:$0xff]
    %v657 = vld [vmem:[%s4 + $0x110] sm:$0xff]
    %v658 = vld [vmem:[%s4 + $0x118] sm:$0xff]
    %v659 = vld [vmem:[%s4 + $0x120] sm:$0xff]
    %v660 = vld [vmem:[%s4 + $0x128] sm:$0xff]
    %v661 = vld [vmem:[%s4 + $0x130] sm:$0xff]
    %v662 = vld [vmem:[%s4 + $0x138] sm:$0xff]
    %v663 = vld [vmem:[%s4 + $0x140] sm:$0xff]
    %v664 = vld [vmem:[%s4 + $0x148] sm:$0xff]
    %v665 = vld [vmem:[%s4 + $0x150] sm:$0xff]
    %v666 = vld [vmem:[%s4 + $0x158] sm:$0xff]
    %v667 = vld [vmem:[%s4 + $0x160] sm:$0xff]
    %v668 = vld [vmem:[%s4 + $0x168] sm:$0xff]
    %v669 = vld [vmem:[%s4 + $0x170] sm:$0xff]
    %v670 = vld [vmem:[%s4 + $0x178] sm:$0xff]
    %v671 = vld [vmem:[%s4 + $0x180] sm:$0xff]
    %v672 = vld [vmem:[%s4 + $0x188] sm:$0xff]
    %v673 = vld [vmem:[%s4 + $0x190] sm:$0xff]
    %v674 = vld [vmem:[%s4 + $0x198] sm:$0xff]
    %v675 = vld [vmem:[%s4 + $0x1a0] sm:$0xff]
    %v676 = vld [vmem:[%s4 + $0x1a8] sm:$0xff]
    %v677 = vld [vmem:[%s4 + $0x1b0] sm:$0xff]
    %v678 = vld [vmem:[%s4 + $0x1b8] sm:$0xff]
    %v679 = vld [vmem:[%s4 + $0x1c0] sm:$0xff]
    %v680 = vld [vmem:[%s4 + $0x1c8] sm:$0xff]
    %v681 = vld [vmem:[%s4 + $0x1d0] sm:$0xff]
    %v682 = vld [vmem:[%s4 + $0x1d8] sm:$0xff]
    %v683 = vld [vmem:[%s4 + $0x1e0] sm:$0xff]
    %v684 = vld [vmem:[%s4 + $0x1e8] sm:$0xff]
    %v685 = vld [vmem:[%s4 + $0x1f0] sm:$0xff]
    %v686 = vld [vmem:[%s4 + $0x1f8] sm:$0xff]
    %v687 = vld [vmem:[%s5] sm:$0xf]
    %v689 = vlaneseq
    %v690 = vshrl.u32 %v689, 7
    %v691 = vsub.s32 0, %v690
    %v692 = vrot.slane %v687, %v691
    %v693 = vlaneseq
    %v694 = vshrl.u32 %v693, 7
    %v695 = vsub.s32 1, %v694
    %v696 = vrot.slane %v687, %v695
    %v697 = vlaneseq
    %v698 = vshrl.u32 %v697, 7
    %v699 = vsub.s32 2, %v698
    %v700 = vrot.slane %v687, %v699
    %v701 = vlaneseq
    %v702 = vshrl.u32 %v701, 7
    %v703 = vsub.s32 3, %v702
    %v704 = vrot.slane %v687, %v703
    %v773 = vunpack.c.l.b16 %v623
    %v774 = vunpack.c.h.b16 %v623
    %v775 = vunpack.c.l.b16 %v624
    %v776 = vunpack.c.h.b16 %v624
    %v777 = vunpack.c.l.b16 %v625
    %v778 = vunpack.c.h.b16 %v625
    %v779 = vunpack.c.l.b16 %v626
    %v780 = vunpack.c.h.b16 %v626
    %v781 = vunpack.c.l.b16 %v627
    %v782 = vunpack.c.h.b16 %v627
    %v783 = vunpack.c.l.b16 %v628
    %v784 = vunpack.c.h.b16 %v628
    %v785 = vunpack.c.l.b16 %v629
    %v786 = vunpack.c.h.b16 %v629
    %v787 = vunpack.c.l.b16 %v630
    %v788 = vunpack.c.h.b16 %v630
    %v789 = vunpack.c.l.b16 %v631
    %v790 = vunpack.c.h.b16 %v631
    %v791 = vunpack.c.l.b16 %v632
    %v792 = vunpack.c.h.b16 %v632
    %v793 = vunpack.c.l.b16 %v633
    %v794 = vunpack.c.h.b16 %v633
    %v795 = vunpack.c.l.b16 %v634
    %v796 = vunpack.c.h.b16 %v634
    %v797 = vunpack.c.l.b16 %v635
    %v798 = vunpack.c.h.b16 %v635
    %v799 = vunpack.c.l.b16 %v636
    %v800 = vunpack.c.h.b16 %v636
    %v801 = vunpack.c.l.b16 %v637
    %v802 = vunpack.c.h.b16 %v637
    %v803 = vunpack.c.l.b16 %v638
    %v804 = vunpack.c.h.b16 %v638
    %v805 = vunpack.c.l.b16 %v639
    %v806 = vunpack.c.h.b16 %v639
    %v807 = vunpack.c.l.b16 %v640
    %v808 = vunpack.c.h.b16 %v640
    %v809 = vunpack.c.l.b16 %v641
    %v810 = vunpack.c.h.b16 %v641
    %v811 = vunpack.c.l.b16 %v642
    %v812 = vunpack.c.h.b16 %v642
    %v813 = vunpack.c.l.b16 %v643
    %v814 = vunpack.c.h.b16 %v643
    %v815 = vunpack.c.l.b16 %v644
    %v816 = vunpack.c.h.b16 %v644
    %v817 = vunpack.c.l.b16 %v645
    %v818 = vunpack.c.h.b16 %v645
    %v819 = vunpack.c.l.b16 %v646
    %v820 = vunpack.c.h.b16 %v646
    %v821 = vunpack.c.l.b16 %v647
    %v822 = vunpack.c.h.b16 %v647
    %v823 = vunpack.c.l.b16 %v648
    %v824 = vunpack.c.h.b16 %v648
    %v825 = vunpack.c.l.b16 %v649
    %v826 = vunpack.c.h.b16 %v649
    %v827 = vunpack.c.l.b16 %v650
    %v828 = vunpack.c.h.b16 %v650
    %v829 = vunpack.c.l.b16 %v651
    %v830 = vunpack.c.h.b16 %v651
    %v831 = vunpack.c.l.b16 %v652
    %v832 = vunpack.c.h.b16 %v652
    %v833 = vunpack.c.l.b16 %v653
    %v834 = vunpack.c.h.b16 %v653
    %v835 = vunpack.c.l.b16 %v654
    %v836 = vunpack.c.h.b16 %v654
    %v837 = vunpack.c.l.b16 %v655
    %v838 = vunpack.c.h.b16 %v655
    %v839 = vunpack.c.l.b16 %v656
    %v840 = vunpack.c.h.b16 %v656
    %v841 = vunpack.c.l.b16 %v657
    %v842 = vunpack.c.h.b16 %v657
    %v843 = vunpack.c.l.b16 %v658
    %v844 = vunpack.c.h.b16 %v658
    %v845 = vunpack.c.l.b16 %v659
    %v846 = vunpack.c.h.b16 %v659
    %v847 = vunpack.c.l.b16 %v660
    %v848 = vunpack.c.h.b16 %v660
    %v849 = vunpack.c.l.b16 %v661
    %v850 = vunpack.c.h.b16 %v661
    %v851 = vunpack.c.l.b16 %v662
    %v852 = vunpack.c.h.b16 %v662
    %v853 = vunpack.c.l.b16 %v663
    %v854 = vunpack.c.h.b16 %v663
    %v855 = vunpack.c.l.b16 %v664
    %v856 = vunpack.c.h.b16 %v664
    %v857 = vunpack.c.l.b16 %v665
    %v858 = vunpack.c.h.b16 %v665
    %v859 = vunpack.c.l.b16 %v666
    %v860 = vunpack.c.h.b16 %v666
    %v861 = vunpack.c.l.b16 %v667
    %v862 = vunpack.c.h.b16 %v667
    %v863 = vunpack.c.l.b16 %v668
    %v864 = vunpack.c.h.b16 %v668
    %v865 = vunpack.c.l.b16 %v669
    %v866 = vunpack.c.h.b16 %v669
    %v867 = vunpack.c.l.b16 %v670
    %v868 = vunpack.c.h.b16 %v670
    %v869 = vunpack.c.l.b16 %v671
    %v870 = vunpack.c.h.b16 %v671
    %v871 = vunpack.c.l.b16 %v672
    %v872 = vunpack.c.h.b16 %v672
    %v873 = vunpack.c.l.b16 %v673
    %v874 = vunpack.c.h.b16 %v673
    %v875 = vunpack.c.l.b16 %v674
    %v876 = vunpack.c.h.b16 %v674
    %v877 = vunpack.c.l.b16 %v675
    %v878 = vunpack.c.h.b16 %v675
    %v879 = vunpack.c.l.b16 %v676
    %v880 = vunpack.c.h.b16 %v676
    %v881 = vunpack.c.l.b16 %v677
    %v882 = vunpack.c.h.b16 %v677
    %v883 = vunpack.c.l.b16 %v678
    %v884 = vunpack.c.h.b16 %v678
    %v885 = vunpack.c.l.b16 %v679
    %v886 = vunpack.c.h.b16 %v679
    %v887 = vunpack.c.l.b16 %v680
    %v888 = vunpack.c.h.b16 %v680
    %v889 = vunpack.c.l.b16 %v681
    %v890 = vunpack.c.h.b16 %v681
    %v891 = vunpack.c.l.b16 %v682
    %v892 = vunpack.c.h.b16 %v682
    %v893 = vunpack.c.l.b16 %v683
    %v894 = vunpack.c.h.b16 %v683
    %v895 = vunpack.c.l.b16 %v684
    %v896 = vunpack.c.h.b16 %v684
    %v897 = vunpack.c.l.b16 %v685
    %v898 = vunpack.c.h.b16 %v685
    %v899 = vunpack.c.l.b16 %v686
    %v900 = vunpack.c.h.b16 %v686
    %v901 = vpack.c.b16 %v777, %v773
    %v902 = vpack.c.b16 %v778, %v774
    %v903 = vpack.c.b16 %v779, %v775
    %v904 = vpack.c.b16 %v780, %v776
    %v905 = vpack.c.b16 %v785, %v781
    %v906 = vpack.c.b16 %v786, %v782
    %v907 = vpack.c.b16 %v787, %v783
    %v908 = vpack.c.b16 %v788, %v784
    %v909 = vpack.c.b16 %v793, %v789
    %v910 = vpack.c.b16 %v794, %v790
    %v911 = vpack.c.b16 %v795, %v791
    %v912 = vpack.c.b16 %v796, %v792
    %v913 = vpack.c.b16 %v801, %v797
    %v914 = vpack.c.b16 %v802, %v798
    %v915 = vpack.c.b16 %v803, %v799
    %v916 = vpack.c.b16 %v804, %v800
    %v917 = vpack.c.b16 %v809, %v805
    %v918 = vpack.c.b16 %v810, %v806
    %v919 = vpack.c.b16 %v811, %v807
    %v920 = vpack.c.b16 %v812, %v808
    %v921 = vpack.c.b16 %v817, %v813
    %v922 = vpack.c.b16 %v818, %v814
    %v923 = vpack.c.b16 %v819, %v815
    %v924 = vpack.c.b16 %v820, %v816
    %v925 = vpack.c.b16 %v825, %v821
    %v926 = vpack.c.b16 %v826, %v822
    %v927 = vpack.c.b16 %v827, %v823
    %v928 = vpack.c.b16 %v828, %v824
    %v929 = vpack.c.b16 %v833, %v829
    %v930 = vpack.c.b16 %v834, %v830
    %v931 = vpack.c.b16 %v835, %v831
    %v932 = vpack.c.b16 %v836, %v832
    %v933 = vpack.c.b16 %v841, %v837
    %v934 = vpack.c.b16 %v842, %v838
    %v935 = vpack.c.b16 %v843, %v839
    %v936 = vpack.c.b16 %v844, %v840
    %v937 = vpack.c.b16 %v849, %v845
    %v938 = vpack.c.b16 %v850, %v846
    %v939 = vpack.c.b16 %v851, %v847
    %v940 = vpack.c.b16 %v852, %v848
    %v941 = vpack.c.b16 %v857, %v853
    %v942 = vpack.c.b16 %v858, %v854
    %v943 = vpack.c.b16 %v859, %v855
    %v944 = vpack.c.b16 %v860, %v856
    %v945 = vpack.c.b16 %v865, %v861
    %v946 = vpack.c.b16 %v866, %v862
    %v947 = vpack.c.b16 %v867, %v863
    %v948 = vpack.c.b16 %v868, %v864
    %v949 = vpack.c.b16 %v873, %v869
    %v950 = vpack.c.b16 %v874, %v870
    %v951 = vpack.c.b16 %v875, %v871
    %v952 = vpack.c.b16 %v876, %v872
    %v953 = vpack.c.b16 %v881, %v877
    %v954 = vpack.c.b16 %v882, %v878
    %v955 = vpack.c.b16 %v883, %v879
    %v956 = vpack.c.b16 %v884, %v880
    %v957 = vpack.c.b16 %v889, %v885
    %v958 = vpack.c.b16 %v890, %v886
    %v959 = vpack.c.b16 %v891, %v887
    %v960 = vpack.c.b16 %v892, %v888
    %v961 = vpack.c.b16 %v897, %v893
    %v962 = vpack.c.b16 %v898, %v894
    %v963 = vpack.c.b16 %v899, %v895
    %v964 = vpack.c.b16 %v900, %v896
    %1029 = vmatprep.subr.bf16.mxu0 %v930
    %1030 = vmatpush1.bf16.msra.mxu0 %v929
    %1031 = vmatprep.subr.bf16.mxu0 %v926
    %1032 = vmatpush1.bf16.msra.mxu0 %v925
    %1033 = vmatprep.subr.bf16.mxu0 %v922
    %1034 = vmatpush1.bf16.msra.mxu0 %v921
    %1035 = vmatprep.subr.bf16.mxu0 %v918
    %1036 = vmatpush1.bf16.msra.mxu0 %v917
    %1037 = vmatprep.subr.bf16.mxu0 %v914
    %1038 = vmatpush1.bf16.msra.mxu0 %v913
    %1039 = vmatprep.subr.bf16.mxu0 %v910
    %1040 = vmatpush1.bf16.msra.mxu0 %v909
    %1041 = vmatprep.subr.bf16.mxu0 %v906
    %1042 = vmatpush1.bf16.msra.mxu0 %v905
    %1043 = vmatprep.subr.bf16.mxu0 %v902
    %1044 = vmatpush1.bf16.msra.mxu0 %v901
    %1045 = vmatprep.subr.bf16.mxu0 %v962
    %1046 = vmatpush2.bf16.msra.mxu0 %v961
    %1047 = vmatprep.subr.bf16.mxu0 %v958
    %1048 = vmatpush2.bf16.msra.mxu0 %v957
    %1049 = vmatprep.subr.bf16.mxu0 %v954
    %1050 = vmatpush2.bf16.msra.mxu0 %v953
    %1051 = vmatprep.subr.bf16.mxu0 %v950
    %1052 = vmatpush2.bf16.msra.mxu0 %v949
    %1053 = vmatprep.subr.bf16.mxu0 %v946
    %1054 = vmatpush2.bf16.msra.mxu0 %v945
    %1055 = vmatprep.subr.bf16.mxu0 %v942
    %1056 = vmatpush2.bf16.msra.mxu0 %v941
    %1057 = vmatprep.subr.bf16.mxu0 %v938
    %1058 = vmatpush2.bf16.msra.mxu0 %v937
    %1059 = vmatprep.subr.bf16.mxu0 %v934
    %1060 = vmatpush2.bf16.msra.mxu0 %v933
    %1061 = vmatprep.mubr.bf16.mxu0 %v622
    %1062 = vmatmul.mubr.bf16.gmra.mxu0 %v621
    %v1063 = vpop.f32.mrf.mxu0
    %v1064 = vadd.f32 %v692, %v1063
    %v1065 = vpop.f32.mrf.mxu0
    %v1066 = vadd.f32 %v696, %v1065
    %v1067 = vpop.f32.mrf.mxu0
    %v1068 = vpop.f32.mrf.mxu0
    %1069 = vdwg.mxu0
    %1070 = vmatprep.subr.bf16.mxu0 %v932
    %1071 = vmatpush1.bf16.msra.mxu0 %v931
    %1072 = vmatprep.subr.bf16.mxu0 %v928
    %1073 = vmatpush1.bf16.msra.mxu0 %v927
    %1074 = vmatprep.subr.bf16.mxu0 %v924
    %1075 = vmatpush1.bf16.msra.mxu0 %v923
    %1076 = vmatprep.subr.bf16.mxu0 %v920
    %1077 = vmatpush1.bf16.msra.mxu0 %v919
    %1078 = vmatprep.subr.bf16.mxu0 %v916
    %1079 = vmatpush1.bf16.msra.mxu0 %v915
    %1080 = vmatprep.subr.bf16.mxu0 %v912
    %1081 = vmatpush1.bf16.msra.mxu0 %v911
    %1082 = vmatprep.subr.bf16.mxu0 %v908
    %1083 = vmatpush1.bf16.msra.mxu0 %v907
    %1084 = vmatprep.subr.bf16.mxu0 %v904
    %1085 = vmatpush1.bf16.msra.mxu0 %v903
    %1086 = vmatprep.subr.bf16.mxu0 %v964
    %1087 = vmatpush2.bf16.msra.mxu0 %v963
    %1088 = vmatprep.subr.bf16.mxu0 %v960
    %1089 = vmatpush2.bf16.msra.mxu0 %v959
    %1090 = vmatprep.subr.bf16.mxu0 %v956
    %1091 = vmatpush2.bf16.msra.mxu0 %v955
    %1092 = vmatprep.subr.bf16.mxu0 %v952
    %1093 = vmatpush2.bf16.msra.mxu0 %v951
    %1094 = vmatprep.subr.bf16.mxu0 %v948
    %1095 = vmatpush2.bf16.msra.mxu0 %v947
    %1096 = vmatprep.subr.bf16.mxu0 %v944
    %1097 = vmatpush2.bf16.msra.mxu0 %v943
    %1098 = vmatprep.subr.bf16.mxu0 %v940
    %1099 = vmatpush2.bf16.msra.mxu0 %v939
    %1100 = vmatprep.subr.bf16.mxu0 %v936
    %1101 = vmatpush2.bf16.msra.mxu0 %v935
    %1102 = vmatprep.mubr.bf16.mxu0 %v622
    %1103 = vmatmul.mubr.bf16.gmra.mxu0 %v621
    %v1104 = vpop.f32.mrf.mxu0
    %v1105 = vadd.f32 %v700, %v1104
    %v1106 = vpop.f32.mrf.mxu0
    %v1107 = vadd.f32 %v704, %v1106
    %v1108 = vpop.f32.mrf.mxu0
    %v1109 = vpop.f32.mrf.mxu0
    %1110 = vdwg.mxu0
    %v1111 = vxor.u32 %v1064, 2147483648
    %v1112 = vxor.u32 %v1066, 2147483648
    %v1113 = vxor.u32 %v1105, 2147483648
    %v1114 = vmul.f32 %v1111, 1.442695
    %v1115 = vpow.pop %v1114
    %v1116 = vmul.f32 %v1112, 1.442695
    %v1117 = vpow.pop %v1116
    %v1118 = vmul.f32 %v1113, 1.442695
    %v1119 = vpow.pop %v1118
    %v1120 = vadd.f32 %v1115, 1.0
    %v1121 = vadd.f32 %v1117, 1.0
    %v1122 = vadd.f32 %v1119, 1.0
    %v1123 = vrcp.pop %v1120
    %v1124 = vmul.f32 1.0, %v1123
    %v1125 = vrcp.pop %v1121
    %v1126 = vmul.f32 1.0, %v1125
    %v1127 = vrcp.pop %v1122
    %v1128 = vmul.f32 1.0, %v1127
    %v1129 = vtanh.pop %v1107
    %v1130 = vld [vmem:[#allocation4 + $0x8] sm:$0xff]
    %v1131 = vmul.f32 %v1126, %v1130
    %v1132 = vmul.f32 %v1124, %v1129
    %v1133 = vadd.f32 %v1131, %v1132
    %v1134 = vtanh.pop %v1133
    %v1135 = vmul.f32 %v1128, %v1134
    %1136 = vst [vmem:[#allocation4 + $0x8] sm:$0xff] %v1133
    %1137 = vst [vmem:[#allocation3 + $0x8] sm:$0xff] %v1135
    %v1138 = vld [vmem:[#allocation2 + $0x20] sm:$0xff]
    %v1139 = vld [vmem:[#allocation2 + $0x28] sm:$0xff]
    %v1140 = vld [vmem:[#allocation2 + $0x30] sm:$0xff]
    %v1141 = vld [vmem:[#allocation2 + $0x38] sm:$0xff]
    %v1142 = vld [vmem:[#allocation3] sm:$0xff]
    %v1143 = vpack.c.bf16 %v1142, %v1142
    %v1144 = vld [vmem:[%s2] sm:$0xff]
    %v1145 = vld [vmem:[%s2 + $0x8] sm:$0xff]
    %v1146 = vld [vmem:[%s2 + $0x10] sm:$0xff]
    %v1147 = vld [vmem:[%s2 + $0x18] sm:$0xff]
    %v1148 = vld [vmem:[%s2 + $0x20] sm:$0xff]
    %v1149 = vld [vmem:[%s2 + $0x28] sm:$0xff]
    %v1150 = vld [vmem:[%s2 + $0x30] sm:$0xff]
    %v1151 = vld [vmem:[%s2 + $0x38] sm:$0xff]
    %v1152 = vld [vmem:[%s2 + $0x40] sm:$0xff]
    %v1153 = vld [vmem:[%s2 + $0x48] sm:$0xff]
    %v1154 = vld [vmem:[%s2 + $0x50] sm:$0xff]
    %v1155 = vld [vmem:[%s2 + $0x58] sm:$0xff]
    %v1156 = vld [vmem:[%s2 + $0x60] sm:$0xff]
    %v1157 = vld [vmem:[%s2 + $0x68] sm:$0xff]
    %v1158 = vld [vmem:[%s2 + $0x70] sm:$0xff]
    %v1159 = vld [vmem:[%s2 + $0x78] sm:$0xff]
    %v1160 = vld [vmem:[%s2 + $0x80] sm:$0xff]
    %v1161 = vld [vmem:[%s2 + $0x88] sm:$0xff]
    %v1162 = vld [vmem:[%s2 + $0x90] sm:$0xff]
    %v1163 = vld [vmem:[%s2 + $0x98] sm:$0xff]
    %v1164 = vld [vmem:[%s2 + $0xa0] sm:$0xff]
    %v1165 = vld [vmem:[%s2 + $0xa8] sm:$0xff]
    %v1166 = vld [vmem:[%s2 + $0xb0] sm:$0xff]
    %v1167 = vld [vmem:[%s2 + $0xb8] sm:$0xff]
    %v1168 = vld [vmem:[%s2 + $0xc0] sm:$0xff]
    %v1169 = vld [vmem:[%s2 + $0xc8] sm:$0xff]
    %v1170 = vld [vmem:[%s2 + $0xd0] sm:$0xff]
    %v1171 = vld [vmem:[%s2 + $0xd8] sm:$0xff]
    %v1172 = vld [vmem:[%s2 + $0xe0] sm:$0xff]
    %v1173 = vld [vmem:[%s2 + $0xe8] sm:$0xff]
    %v1174 = vld [vmem:[%s2 + $0xf0] sm:$0xff]
    %v1175 = vld [vmem:[%s2 + $0xf8] sm:$0xff]
    %v1208 = vunpack.c.l.b16 %v1144
    %v1209 = vunpack.c.h.b16 %v1144
    %v1210 = vunpack.c.l.b16 %v1145
    %v1211 = vunpack.c.h.b16 %v1145
    %v1212 = vunpack.c.l.b16 %v1146
    %v1213 = vunpack.c.h.b16 %v1146
    %v1214 = vunpack.c.l.b16 %v1147
    %v1215 = vunpack.c.h.b16 %v1147
    %v1216 = vunpack.c.l.b16 %v1148
    %v1217 = vunpack.c.h.b16 %v1148
    %v1218 = vunpack.c.l.b16 %v1149
    %v1219 = vunpack.c.h.b16 %v1149
    %v1220 = vunpack.c.l.b16 %v1150
    %v1221 = vunpack.c.h.b16 %v1150
    %v1222 = vunpack.c.l.b16 %v1151
    %v1223 = vunpack.c.h.b16 %v1151
    %v1224 = vunpack.c.l.b16 %v1152
    %v1225 = vunpack.c.h.b16 %v1152
    %v1226 = vunpack.c.l.b16 %v1153
    %v1227 = vunpack.c.h.b16 %v1153
    %v1228 = vunpack.c.l.b16 %v1154
    %v1229 = vunpack.c.h.b16 %v1154
    %v1230 = vunpack.c.l.b16 %v1155
    %v1231 = vunpack.c.h.b16 %v1155
    %v1232 = vunpack.c.l.b16 %v1156
    %v1233 = vunpack.c.h.b16 %v1156
    %v1234 = vunpack.c.l.b16 %v1157
    %v1235 = vunpack.c.h.b16 %v1157
    %v1236 = vunpack.c.l.b16 %v1158
    %v1237 = vunpack.c.h.b16 %v1158
    %v1238 = vunpack.c.l.b16 %v1159
    %v1239 = vunpack.c.h.b16 %v1159
    %v1240 = vunpack.c.l.b16 %v1160
    %v1241 = vunpack.c.h.b16 %v1160
    %v1242 = vunpack.c.l.b16 %v1161
    %v1243 = vunpack.c.h.b16 %v1161
    %v1244 = vunpack.c.l.b16 %v1162
    %v1245 = vunpack.c.h.b16 %v1162
    %v1246 = vunpack.c.l.b16 %v1163
    %v1247 = vunpack.c.h.b16 %v1163
    %v1248 = vunpack.c.l.b16 %v1164
    %v1249 = vunpack.c.h.b16 %v1164
    %v1250 = vunpack.c.l.b16 %v1165
    %v1251 = vunpack.c.h.b16 %v1165
    %v1252 = vunpack.c.l.b16 %v1166
    %v1253 = vunpack.c.h.b16 %v1166
    %v1254 = vunpack.c.l.b16 %v1167
    %v1255 = vunpack.c.h.b16 %v1167
    %v1256 = vunpack.c.l.b16 %v1168
    %v1257 = vunpack.c.h.b16 %v1168
    %v1258 = vunpack.c.l.b16 %v1169
    %v1259 = vunpack.c.h.b16 %v1169
    %v1260 = vunpack.c.l.b16 %v1170
    %v1261 = vunpack.c.h.b16 %v1170
    %v1262 = vunpack.c.l.b16 %v1171
    %v1263 = vunpack.c.h.b16 %v1171
    %v1264 = vunpack.c.l.b16 %v1172
    %v1265 = vunpack.c.h.b16 %v1172
    %v1266 = vunpack.c.l.b16 %v1173
    %v1267 = vunpack.c.h.b16 %v1173
    %v1268 = vunpack.c.l.b16 %v1174
    %v1269 = vunpack.c.h.b16 %v1174
    %v1270 = vunpack.c.l.b16 %v1175
    %v1271 = vunpack.c.h.b16 %v1175
    %v1272 = vpack.c.b16 %v1212, %v1208
    %v1273 = vpack.c.b16 %v1213, %v1209
    %v1274 = vpack.c.b16 %v1214, %v1210
    %v1275 = vpack.c.b16 %v1215, %v1211
    %v1276 = vpack.c.b16 %v1220, %v1216
    %v1277 = vpack.c.b16 %v1221, %v1217
    %v1278 = vpack.c.b16 %v1222, %v1218
    %v1279 = vpack.c.b16 %v1223, %v1219
    %v1280 = vpack.c.b16 %v1228, %v1224
    %v1281 = vpack.c.b16 %v1229, %v1225
    %v1282 = vpack.c.b16 %v1230, %v1226
    %v1283 = vpack.c.b16 %v1231, %v1227
    %v1284 = vpack.c.b16 %v1236, %v1232
    %v1285 = vpack.c.b16 %v1237, %v1233
    %v1286 = vpack.c.b16 %v1238, %v1234
    %v1287 = vpack.c.b16 %v1239, %v1235
    %v1288 = vpack.c.b16 %v1244, %v1240
    %v1289 = vpack.c.b16 %v1245, %v1241
    %v1290 = vpack.c.b16 %v1246, %v1242
    %v1291 = vpack.c.b16 %v1247, %v1243
    %v1292 = vpack.c.b16 %v1252, %v1248
    %v1293 = vpack.c.b16 %v1253, %v1249
    %v1294 = vpack.c.b16 %v1254, %v1250
    %v1295 = vpack.c.b16 %v1255, %v1251
    %v1296 = vpack.c.b16 %v1260, %v1256
    %v1297 = vpack.c.b16 %v1261, %v1257
    %v1298 = vpack.c.b16 %v1262, %v1258
    %v1299 = vpack.c.b16 %v1263, %v1259
    %v1300 = vpack.c.b16 %v1268, %v1264
    %v1301 = vpack.c.b16 %v1269, %v1265
    %v1302 = vpack.c.b16 %v1270, %v1266
    %v1303 = vpack.c.b16 %v1271, %v1267
    %1336 = vmatprep.subr.bf16.mxu0 %v1301
    %1337 = vmatpush1.bf16.msra.mxu0 %v1300
    %1338 = vmatprep.subr.bf16.mxu0 %v1297
    %1339 = vmatpush1.bf16.msra.mxu0 %v1296
    %1340 = vmatprep.subr.bf16.mxu0 %v1293
    %1341 = vmatpush1.bf16.msra.mxu0 %v1292
    %1342 = vmatprep.subr.bf16.mxu0 %v1289
    %1343 = vmatpush1.bf16.msra.mxu0 %v1288
    %1344 = vmatprep.subr.bf16.mxu0 %v1285
    %1345 = vmatpush1.bf16.msra.mxu0 %v1284
    %1346 = vmatprep.subr.bf16.mxu0 %v1281
    %1347 = vmatpush1.bf16.msra.mxu0 %v1280
    %1348 = vmatprep.subr.bf16.mxu0 %v1277
    %1349 = vmatpush1.bf16.msra.mxu0 %v1276
    %1350 = vmatprep.subr.bf16.mxu0 %v1273
    %1351 = vmatpush1.bf16.msra.mxu0 %v1272
    %1352 = vmatprep.subr.bf16.mxu0 0
    %1353 = vmatpush2.bf16.msra.mxu0 0
    %1354 = vmatprep.subr.bf16.mxu0 0
    %1355 = vmatpush2.bf16.msra.mxu0 0
    %1356 = vmatprep.subr.bf16.mxu0 0
    %1357 = vmatpush2.bf16.msra.mxu0 0
    %1358 = vmatprep.subr.bf16.mxu0 0
    %1359 = vmatpush2.bf16.msra.mxu0 0
    %1360 = vmatprep.subr.bf16.mxu0 0
    %1361 = vmatpush2.bf16.msra.mxu0 0
    %1362 = vmatprep.subr.bf16.mxu0 0
    %1363 = vmatpush2.bf16.msra.mxu0 0
    %1364 = vmatprep.subr.bf16.mxu0 0
    %1365 = vmatpush2.bf16.msra.mxu0 0
    %1366 = vmatprep.subr.bf16.mxu0 0
    %1367 = vmatpush2.bf16.msra.mxu0 0
    %1368 = vmatprep.mubr.bf16.mxu0 0
    %1369 = vmatmul.mubr.bf16.gmra.mxu0 %v1143
    %v1370 = vpop.f32.mrf.mxu0
    %v1371 = vadd.f32 0.0, %v1370
    %v1372 = vpop.f32.mrf.mxu0
    %v1373 = vadd.f32 0.0, %v1372
    %v1374 = vpop.f32.mrf.mxu0
    %v1375 = vpop.f32.mrf.mxu0
    %1376 = vdwg.mxu0
    %1377 = vmatprep.subr.bf16.mxu0 %v1303
    %1378 = vmatpush1.bf16.msra.mxu0 %v1302
    %1379 = vmatprep.subr.bf16.mxu0 %v1299
    %1380 = vmatpush1.bf16.msra.mxu0 %v1298
    %1381 = vmatprep.subr.bf16.mxu0 %v1295
    %1382 = vmatpush1.bf16.msra.mxu0 %v1294
    %1383 = vmatprep.subr.bf16.mxu0 %v1291
    %1384 = vmatpush1.bf16.msra.mxu0 %v1290
    %1385 = vmatprep.subr.bf16.mxu0 %v1287
    %1386 = vmatpush1.bf16.msra.mxu0 %v1286
    %1387 = vmatprep.subr.bf16.mxu0 %v1283
    %1388 = vmatpush1.bf16.msra.mxu0 %v1282
    %1389 = vmatprep.subr.bf16.mxu0 %v1279
    %1390 = vmatpush1.bf16.msra.mxu0 %v1278
    %1391 = vmatprep.subr.bf16.mxu0 %v1275
    %1392 = vmatpush1.bf16.msra.mxu0 %v1274
    %1393 = vmatprep.subr.bf16.mxu0 0
    %1394 = vmatpush2.bf16.msra.mxu0 0
    %1395 = vmatprep.subr.bf16.mxu0 0
    %1396 = vmatpush2.bf16.msra.mxu0 0
    %1397 = vmatprep.subr.bf16.mxu0 0
    %1398 = vmatpush2.bf16.msra.mxu0 0
    %1399 = vmatprep.subr.bf16.mxu0 0
    %1400 = vmatpush2.bf16.msra.mxu0 0
    %1401 = vmatprep.subr.bf16.mxu0 0
    %1402 = vmatpush2.bf16.msra.mxu0 0
    %1403 = vmatprep.subr.bf16.mxu0 0
    %1404 = vmatpush2.bf16.msra.mxu0 0
    %1405 = vmatprep.subr.bf16.mxu0 0
    %1406 = vmatpush2.bf16.msra.mxu0 0
    %1407 = vmatprep.subr.bf16.mxu0 0
    %1408 = vmatpush2.bf16.msra.mxu0 0
    %1409 = vmatprep.mubr.bf16.mxu0 0
    %1410 = vmatmul.mubr.bf16.gmra.mxu0 %v1143
    %v1411 = vpop.f32.mrf.mxu0
    %v1412 = vadd.f32 0.0, %v1411
    %v1413 = vpop.f32.mrf.mxu0
    %v1414 = vadd.f32 0.0, %v1413
    %v1415 = vpop.f32.mrf.mxu0
    %v1416 = vpop.f32.mrf.mxu0
    %1417 = vdwg.mxu0
    %v1418 = vadd.f32 %v1138, %v1371
    %v1419 = vadd.f32 %v1139, %v1373
    %v1420 = vadd.f32 %v1140, %v1412
    %v1421 = vadd.f32 %v1141, %v1414
    %v1422 = vxor.u32 %v1418, 2147483648
    %v1423 = vxor.u32 %v1419, 2147483648
    %v1424 = vxor.u32 %v1420, 2147483648
    %v1425 = vmul.f32 %v1422, 1.442695
    %v1426 = vpow.pop %v1425
    %v1427 = vmul.f32 %v1423, 1.442695
    %v1428 = vpow.pop %v1427
    %v1429 = vmul.f32 %v1424, 1.442695
    %v1430 = vpow.pop %v1429
    %v1431 = vadd.f32 %v1426, 1.0
    %v1432 = vadd.f32 %v1428, 1.0
    %v1433 = vadd.f32 %v1430, 1.0
    %v1434 = vrcp.pop %v1431
    %v1435 = vmul.f32 1.0, %v1434
    %v1436 = vrcp.pop %v1432
    %v1437 = vmul.f32 1.0, %v1436
    %v1438 = vrcp.pop %v1433
    %v1439 = vmul.f32 1.0, %v1438
    %v1440 = vtanh.pop %v1421
    %v1441 = vld [vmem:[#allocation4] sm:$0xff]
    %v1442 = vmul.f32 %v1437, %v1441
    %v1443 = vmul.f32 %v1435, %v1440
    %v1444 = vadd.f32 %v1442, %v1443
    %v1445 = vtanh.pop %v1444
    %v1446 = vmul.f32 %v1439, %v1445
    %1447 = vst [vmem:[#allocation4] sm:$0xff] %v1444
    %1448 = vst [vmem:[#allocation3] sm:$0xff] %v1446
    %v1449 = vld [vmem:[#allocation3] sm:$0xff]
    %v1450 = vld [vmem:[#allocation3 + $0x8] sm:$0xff]
    %v1451 = vpack.c.bf16 %v1449, %v1449
    %v1452 = vpack.c.bf16 %v1450, %v1450
    %v1453 = vld [vmem:[%s4] sm:$0xff]
    %v1454 = vld [vmem:[%s4 + $0x8] sm:$0xff]
    %v1455 = vld [vmem:[%s4 + $0x10] sm:$0xff]
    %v1456 = vld [vmem:[%s4 + $0x18] sm:$0xff]
    %v1457 = vld [vmem:[%s4 + $0x20] sm:$0xff]
    %v1458 = vld [vmem:[%s4 + $0x28] sm:$0xff]
    %v1459 = vld [vmem:[%s4 + $0x30] sm:$0xff]
    %v1460 = vld [vmem:[%s4 + $0x38] sm:$0xff]
    %v1461 = vld [vmem:[%s4 + $0x40] sm:$0xff]
    %v1462 = vld [vmem:[%s4 + $0x48] sm:$0xff]
    %v1463 = vld [vmem:[%s4 + $0x50] sm:$0xff]
    %v1464 = vld [vmem:[%s4 + $0x58] sm:$0xff]
    %v1465 = vld [vmem:[%s4 + $0x60] sm:$0xff]
    %v1466 = vld [vmem:[%s4 + $0x68] sm:$0xff]
    %v1467 = vld [vmem:[%s4 + $0x70] sm:$0xff]
    %v1468 = vld [vmem:[%s4 + $0x78] sm:$0xff]
    %v1469 = vld [vmem:[%s4 + $0x80] sm:$0xff]
    %v1470 = vld [vmem:[%s4 + $0x88] sm:$0xff]
    %v1471 = vld [vmem:[%s4 + $0x90] sm:$0xff]
    %v1472 = vld [vmem:[%s4 + $0x98] sm:$0xff]
    %v1473 = vld [vmem:[%s4 + $0xa0] sm:$0xff]
    %v1474 = vld [vmem:[%s4 + $0xa8] sm:$0xff]
    %v1475 = vld [vmem:[%s4 + $0xb0] sm:$0xff]
    %v1476 = vld [vmem:[%s4 + $0xb8] sm:$0xff]
    %v1477 = vld [vmem:[%s4 + $0xc0] sm:$0xff]
    %v1478 = vld [vmem:[%s4 + $0xc8] sm:$0xff]
    %v1479 = vld [vmem:[%s4 + $0xd0] sm:$0xff]
    %v1480 = vld [vmem:[%s4 + $0xd8] sm:$0xff]
    %v1481 = vld [vmem:[%s4 + $0xe0] sm:$0xff]
    %v1482 = vld [vmem:[%s4 + $0xe8] sm:$0xff]
    %v1483 = vld [vmem:[%s4 + $0xf0] sm:$0xff]
    %v1484 = vld [vmem:[%s4 + $0xf8] sm:$0xff]
    %v1485 = vld [vmem:[%s4 + $0x100] sm:$0xff]
    %v1486 = vld [vmem:[%s4 + $0x108] sm:$0xff]
    %v1487 = vld [vmem:[%s4 + $0x110] sm:$0xff]
    %v1488 = vld [vmem:[%s4 + $0x118] sm:$0xff]
    %v1489 = vld [vmem:[%s4 + $0x120] sm:$0xff]
    %v1490 = vld [vmem:[%s4 + $0x128] sm:$0xff]
    %v1491 = vld [vmem:[%s4 + $0x130] sm:$0xff]
    %v1492 = vld [vmem:[%s4 + $0x138] sm:$0xff]
    %v1493 = vld [vmem:[%s4 + $0x140] sm:$0xff]
    %v1494 = vld [vmem:[%s4 + $0x148] sm:$0xff]
    %v1495 = vld [vmem:[%s4 + $0x150] sm:$0xff]
    %v1496 = vld [vmem:[%s4 + $0x158] sm:$0xff]
    %v1497 = vld [vmem:[%s4 + $0x160] sm:$0xff]
    %v1498 = vld [vmem:[%s4 + $0x168] sm:$0xff]
    %v1499 = vld [vmem:[%s4 + $0x170] sm:$0xff]
    %v1500 = vld [vmem:[%s4 + $0x178] sm:$0xff]
    %v1501 = vld [vmem:[%s4 + $0x180] sm:$0xff]
    %v1502 = vld [vmem:[%s4 + $0x188] sm:$0xff]
    %v1503 = vld [vmem:[%s4 + $0x190] sm:$0xff]
    %v1504 = vld [vmem:[%s4 + $0x198] sm:$0xff]
    %v1505 = vld [vmem:[%s4 + $0x1a0] sm:$0xff]
    %v1506 = vld [vmem:[%s4 + $0x1a8] sm:$0xff]
    %v1507 = vld [vmem:[%s4 + $0x1b0] sm:$0xff]
    %v1508 = vld [vmem:[%s4 + $0x1b8] sm:$0xff]
    %v1509 = vld [vmem:[%s4 + $0x1c0] sm:$0xff]
    %v1510 = vld [vmem:[%s4 + $0x1c8] sm:$0xff]
    %v1511 = vld [vmem:[%s4 + $0x1d0] sm:$0xff]
    %v1512 = vld [vmem:[%s4 + $0x1d8] sm:$0xff]
    %v1513 = vld [vmem:[%s4 + $0x1e0] sm:$0xff]
    %v1514 = vld [vmem:[%s4 + $0x1e8] sm:$0xff]
    %v1515 = vld [vmem:[%s4 + $0x1f0] sm:$0xff]
    %v1516 = vld [vmem:[%s4 + $0x1f8] sm:$0xff]
    %v1517 = vld [vmem:[%s5] sm:$0xf]
    %v1519 = vlaneseq
    %v1520 = vshrl.u32 %v1519, 7
    %v1521 = vsub.s32 0, %v1520
    %v1522 = vrot.slane %v1517, %v1521
    %v1523 = vlaneseq
    %v1524 = vshrl.u32 %v1523, 7
    %v1525 = vsub.s32 1, %v1524
    %v1526 = vrot.slane %v1517, %v1525
    %v1527 = vlaneseq
    %v1528 = vshrl.u32 %v1527, 7
    %v1529 = vsub.s32 2, %v1528
    %v1530 = vrot.slane %v1517, %v1529
    %v1531 = vlaneseq
    %v1532 = vshrl.u32 %v1531, 7
    %v1533 = vsub.s32 3, %v1532
    %v1534 = vrot.slane %v1517, %v1533
    %v1603 = vunpack.c.l.b16 %v1453
    %v1604 = vunpack.c.h.b16 %v1453
    %v1605 = vunpack.c.l.b16 %v1454
    %v1606 = vunpack.c.h.b16 %v1454
    %v1607 = vunpack.c.l.b16 %v1455
    %v1608 = vunpack.c.h.b16 %v1455
    %v1609 = vunpack.c.l.b16 %v1456
    %v1610 = vunpack.c.h.b16 %v1456
    %v1611 = vunpack.c.l.b16 %v1457
    %v1612 = vunpack.c.h.b16 %v1457
    %v1613 = vunpack.c.l.b16 %v1458
    %v1614 = vunpack.c.h.b16 %v1458
    %v1615 = vunpack.c.l.b16 %v1459
    %v1616 = vunpack.c.h.b16 %v1459
    %v1617 = vunpack.c.l.b16 %v1460
    %v1618 = vunpack.c.h.b16 %v1460
    %v1619 = vunpack.c.l.b16 %v1461
    %v1620 = vunpack.c.h.b16 %v1461
    %v1621 = vunpack.c.l.b16 %v1462
    %v1622 = vunpack.c.h.b16 %v1462
    %v1623 = vunpack.c.l.b16 %v1463
    %v1624 = vunpack.c.h.b16 %v1463
    %v1625 = vunpack.c.l.b16 %v1464
    %v1626 = vunpack.c.h.b16 %v1464
    %v1627 = vunpack.c.l.b16 %v1465
    %v1628 = vunpack.c.h.b16 %v1465
    %v1629 = vunpack.c.l.b16 %v1466
    %v1630 = vunpack.c.h.b16 %v1466
    %v1631 = vunpack.c.l.b16 %v1467
    %v1632 = vunpack.c.h.b16 %v1467
    %v1633 = vunpack.c.l.b16 %v1468
    %v1634 = vunpack.c.h.b16 %v1468
    %v1635 = vunpack.c.l.b16 %v1469
    %v1636 = vunpack.c.h.b16 %v1469
    %v1637 = vunpack.c.l.b16 %v1470
    %v1638 = vunpack.c.h.b16 %v1470
    %v1639 = vunpack.c.l.b16 %v1471
    %v1640 = vunpack.c.h.b16 %v1471
    %v1641 = vunpack.c.l.b16 %v1472
    %v1642 = vunpack.c.h.b16 %v1472
    %v1643 = vunpack.c.l.b16 %v1473
    %v1644 = vunpack.c.h.b16 %v1473
    %v1645 = vunpack.c.l.b16 %v1474
    %v1646 = vunpack.c.h.b16 %v1474
    %v1647 = vunpack.c.l.b16 %v1475
    %v1648 = vunpack.c.h.b16 %v1475
    %v1649 = vunpack.c.l.b16 %v1476
    %v1650 = vunpack.c.h.b16 %v1476
    %v1651 = vunpack.c.l.b16 %v1477
    %v1652 = vunpack.c.h.b16 %v1477
    %v1653 = vunpack.c.l.b16 %v1478
    %v1654 = vunpack.c.h.b16 %v1478
    %v1655 = vunpack.c.l.b16 %v1479
    %v1656 = vunpack.c.h.b16 %v1479
    %v1657 = vunpack.c.l.b16 %v1480
    %v1658 = vunpack.c.h.b16 %v1480
    %v1659 = vunpack.c.l.b16 %v1481
    %v1660 = vunpack.c.h.b16 %v1481
    %v1661 = vunpack.c.l.b16 %v1482
    %v1662 = vunpack.c.h.b16 %v1482
    %v1663 = vunpack.c.l.b16 %v1483
    %v1664 = vunpack.c.h.b16 %v1483
    %v1665 = vunpack.c.l.b16 %v1484
    %v1666 = vunpack.c.h.b16 %v1484
    %v1667 = vunpack.c.l.b16 %v1485
    %v1668 = vunpack.c.h.b16 %v1485
    %v1669 = vunpack.c.l.b16 %v1486
    %v1670 = vunpack.c.h.b16 %v1486
    %v1671 = vunpack.c.l.b16 %v1487
    %v1672 = vunpack.c.h.b16 %v1487
    %v1673 = vunpack.c.l.b16 %v1488
    %v1674 = vunpack.c.h.b16 %v1488
    %v1675 = vunpack.c.l.b16 %v1489
    %v1676 = vunpack.c.h.b16 %v1489
    %v1677 = vunpack.c.l.b16 %v1490
    %v1678 = vunpack.c.h.b16 %v1490
    %v1679 = vunpack.c.l.b16 %v1491
    %v1680 = vunpack.c.h.b16 %v1491
    %v1681 = vunpack.c.l.b16 %v1492
    %v1682 = vunpack.c.h.b16 %v1492
    %v1683 = vunpack.c.l.b16 %v1493
    %v1684 = vunpack.c.h.b16 %v1493
    %v1685 = vunpack.c.l.b16 %v1494
    %v1686 = vunpack.c.h.b16 %v1494
    %v1687 = vunpack.c.l.b16 %v1495
    %v1688 = vunpack.c.h.b16 %v1495
    %v1689 = vunpack.c.l.b16 %v1496
    %v1690 = vunpack.c.h.b16 %v1496
    %v1691 = vunpack.c.l.b16 %v1497
    %v1692 = vunpack.c.h.b16 %v1497
    %v1693 = vunpack.c.l.b16 %v1498
    %v1694 = vunpack.c.h.b16 %v1498
    %v1695 = vunpack.c.l.b16 %v1499
    %v1696 = vunpack.c.h.b16 %v1499
    %v1697 = vunpack.c.l.b16 %v1500
    %v1698 = vunpack.c.h.b16 %v1500
    %v1699 = vunpack.c.l.b16 %v1501
    %v1700 = vunpack.c.h.b16 %v1501
    %v1701 = vunpack.c.l.b16 %v1502
    %v1702 = vunpack.c.h.b16 %v1502
    %v1703 = vunpack.c.l.b16 %v1503
    %v1704 = vunpack.c.h.b16 %v1503
    %v1705 = vunpack.c.l.b16 %v1504
    %v1706 = vunpack.c.h.b16 %v1504
    %v1707 = vunpack.c.l.b16 %v1505
    %v1708 = vunpack.c.h.b16 %v1505
    %v1709 = vunpack.c.l.b16 %v1506
    %v1710 = vunpack.c.h.b16 %v1506
    %v1711 = vunpack.c.l.b16 %v1507
    %v1712 = vunpack.c.h.b16 %v1507
    %v1713 = vunpack.c.l.b16 %v1508
    %v1714 = vunpack.c.h.b16 %v1508
    %v1715 = vunpack.c.l.b16 %v1509
    %v1716 = vunpack.c.h.b16 %v1509
    %v1717 = vunpack.c.l.b16 %v1510
    %v1718 = vunpack.c.h.b16 %v1510
    %v1719 = vunpack.c.l.b16 %v1511
    %v1720 = vunpack.c.h.b16 %v1511
    %v1721 = vunpack.c.l.b16 %v1512
    %v1722 = vunpack.c.h.b16 %v1512
    %v1723 = vunpack.c.l.b16 %v1513
    %v1724 = vunpack.c.h.b16 %v1513
    %v1725 = vunpack.c.l.b16 %v1514
    %v1726 = vunpack.c.h.b16 %v1514
    %v1727 = vunpack.c.l.b16 %v1515
    %v1728 = vunpack.c.h.b16 %v1515
    %v1729 = vunpack.c.l.b16 %v1516
    %v1730 = vunpack.c.h.b16 %v1516
    %v1731 = vpack.c.b16 %v1607, %v1603
    %v1732 = vpack.c.b16 %v1608, %v1604
    %v1733 = vpack.c.b16 %v1609, %v1605
    %v1734 = vpack.c.b16 %v1610, %v1606
    %v1735 = vpack.c.b16 %v1615, %v1611
    %v1736 = vpack.c.b16 %v1616, %v1612
    %v1737 = vpack.c.b16 %v1617, %v1613
    %v1738 = vpack.c.b16 %v1618, %v1614
    %v1739 = vpack.c.b16 %v1623, %v1619
    %v1740 = vpack.c.b16 %v1624, %v1620
    %v1741 = vpack.c.b16 %v1625, %v1621
    %v1742 = vpack.c.b16 %v1626, %v1622
    %v1743 = vpack.c.b16 %v1631, %v1627
    %v1744 = vpack.c.b16 %v1632, %v1628
    %v1745 = vpack.c.b16 %v1633, %v1629
    %v1746 = vpack.c.b16 %v1634, %v1630
    %v1747 = vpack.c.b16 %v1639, %v1635
    %v1748 = vpack.c.b16 %v1640, %v1636
    %v1749 = vpack.c.b16 %v1641, %v1637
    %v1750 = vpack.c.b16 %v1642, %v1638
    %v1751 = vpack.c.b16 %v1647, %v1643
    %v1752 = vpack.c.b16 %v1648, %v1644
    %v1753 = vpack.c.b16 %v1649, %v1645
    %v1754 = vpack.c.b16 %v1650, %v1646
    %v1755 = vpack.c.b16 %v1655, %v1651
    %v1756 = vpack.c.b16 %v1656, %v1652
    %v1757 = vpack.c.b16 %v1657, %v1653
    %v1758 = vpack.c.b16 %v1658, %v1654
    %v1759 = vpack.c.b16 %v1663, %v1659
    %v1760 = vpack.c.b16 %v1664, %v1660
    %v1761 = vpack.c.b16 %v1665, %v1661
    %v1762 = vpack.c.b16 %v1666, %v1662
    %v1763 = vpack.c.b16 %v1671, %v1667
    %v1764 = vpack.c.b16 %v1672, %v1668
    %v1765 = vpack.c.b16 %v1673, %v1669
    %v1766 = vpack.c.b16 %v1674, %v1670
    %v1767 = vpack.c.b16 %v1679, %v1675
    %v1768 = vpack.c.b16 %v1680, %v1676
    %v1769 = vpack.c.b16 %v1681, %v1677
    %v1770 = vpack.c.b16 %v1682, %v1678
    %v1771 = vpack.c.b16 %v1687, %v1683
    %v1772 = vpack.c.b16 %v1688, %v1684
    %v1773 = vpack.c.b16 %v1689, %v1685
    %v1774 = vpack.c.b16 %v1690, %v1686
    %v1775 = vpack.c.b16 %v1695, %v1691
    %v1776 = vpack.c.b16 %v1696, %v1692
    %v1777 = vpack.c.b16 %v1697, %v1693
    %v1778 = vpack.c.b16 %v1698, %v1694
    %v1779 = vpack.c.b16 %v1703, %v1699
    %v1780 = vpack.c.b16 %v1704, %v1700
    %v1781 = vpack.c.b16 %v1705, %v1701
    %v1782 = vpack.c.b16 %v1706, %v1702
    %v1783 = vpack.c.b16 %v1711, %v1707
    %v1784 = vpack.c.b16 %v1712, %v1708
    %v1785 = vpack.c.b16 %v1713, %v1709
    %v1786 = vpack.c.b16 %v1714, %v1710
    %v1787 = vpack.c.b16 %v1719, %v1715
    %v1788 = vpack.c.b16 %v1720, %v1716
    %v1789 = vpack.c.b16 %v1721, %v1717
    %v1790 = vpack.c.b16 %v1722, %v1718
    %v1791 = vpack.c.b16 %v1727, %v1723
    %v1792 = vpack.c.b16 %v1728, %v1724
    %v1793 = vpack.c.b16 %v1729, %v1725
    %v1794 = vpack.c.b16 %v1730, %v1726
    %1859 = vmatprep.subr.bf16.mxu0 %v1760
    %1860 = vmatpush1.bf16.msra.mxu0 %v1759
    %1861 = vmatprep.subr.bf16.mxu0 %v1756
    %1862 = vmatpush1.bf16.msra.mxu0 %v1755
    %1863 = vmatprep.subr.bf16.mxu0 %v1752
    %1864 = vmatpush1.bf16.msra.mxu0 %v1751
    %1865 = vmatprep.subr.bf16.mxu0 %v1748
    %1866 = vmatpush1.bf16.msra.mxu0 %v1747
    %1867 = vmatprep.subr.bf16.mxu0 %v1744
    %1868 = vmatpush1.bf16.msra.mxu0 %v1743
    %1869 = vmatprep.subr.bf16.mxu0 %v1740
    %1870 = vmatpush1.bf16.msra.mxu0 %v1739
    %1871 = vmatprep.subr.bf16.mxu0 %v1736
    %1872 = vmatpush1.bf16.msra.mxu0 %v1735
    %1873 = vmatprep.subr.bf16.mxu0 %v1732
    %1874 = vmatpush1.bf16.msra.mxu0 %v1731
    %1875 = vmatprep.subr.bf16.mxu0 %v1792
    %1876 = vmatpush2.bf16.msra.mxu0 %v1791
    %1877 = vmatprep.subr.bf16.mxu0 %v1788
    %1878 = vmatpush2.bf16.msra.mxu0 %v1787
    %1879 = vmatprep.subr.bf16.mxu0 %v1784
    %1880 = vmatpush2.bf16.msra.mxu0 %v1783
    %1881 = vmatprep.subr.bf16.mxu0 %v1780
    %1882 = vmatpush2.bf16.msra.mxu0 %v1779
    %1883 = vmatprep.subr.bf16.mxu0 %v1776
    %1884 = vmatpush2.bf16.msra.mxu0 %v1775
    %1885 = vmatprep.subr.bf16.mxu0 %v1772
    %1886 = vmatpush2.bf16.msra.mxu0 %v1771
    %1887 = vmatprep.subr.bf16.mxu0 %v1768
    %1888 = vmatpush2.bf16.msra.mxu0 %v1767
    %1889 = vmatprep.subr.bf16.mxu0 %v1764
    %1890 = vmatpush2.bf16.msra.mxu0 %v1763
    %1891 = vmatprep.mubr.bf16.mxu0 %v1452
    %1892 = vmatmul.mubr.bf16.gmra.mxu0 %v1451
    %v1893 = vpop.f32.mrf.mxu0
    %v1894 = vadd.f32 %v1522, %v1893
    %v1895 = vpop.f32.mrf.mxu0
    %v1896 = vadd.f32 %v1526, %v1895
    %v1897 = vpop.f32.mrf.mxu0
    %v1898 = vpop.f32.mrf.mxu0
    %1899 = vdwg.mxu0
    %1900 = vmatprep.subr.bf16.mxu0 %v1762
    %1901 = vmatpush1.bf16.msra.mxu0 %v1761
    %1902 = vmatprep.subr.bf16.mxu0 %v1758
    %1903 = vmatpush1.bf16.msra.mxu0 %v1757
    %1904 = vmatprep.subr.bf16.mxu0 %v1754
    %1905 = vmatpush1.bf16.msra.mxu0 %v1753
    %1906 = vmatprep.subr.bf16.mxu0 %v1750
    %1907 = vmatpush1.bf16.msra.mxu0 %v1749
    %1908 = vmatprep.subr.bf16.mxu0 %v1746
    %1909 = vmatpush1.bf16.msra.mxu0 %v1745
    %1910 = vmatprep.subr.bf16.mxu0 %v1742
    %1911 = vmatpush1.bf16.msra.mxu0 %v1741
    %1912 = vmatprep.subr.bf16.mxu0 %v1738
    %1913 = vmatpush1.bf16.msra.mxu0 %v1737
    %1914 = vmatprep.subr.bf16.mxu0 %v1734
    %1915 = vmatpush1.bf16.msra.mxu0 %v1733
    %1916 = vmatprep.subr.bf16.mxu0 %v1794
    %1917 = vmatpush2.bf16.msra.mxu0 %v1793
    %1918 = vmatprep.subr.bf16.mxu0 %v1790
    %1919 = vmatpush2.bf16.msra.mxu0 %v1789
    %1920 = vmatprep.subr.bf16.mxu0 %v1786
    %1921 = vmatpush2.bf16.msra.mxu0 %v1785
    %1922 = vmatprep.subr.bf16.mxu0 %v1782
    %1923 = vmatpush2.bf16.msra.mxu0 %v1781
    %1924 = vmatprep.subr.bf16.mxu0 %v1778
    %1925 = vmatpush2.bf16.msra.mxu0 %v1777
    %1926 = vmatprep.subr.bf16.mxu0 %v1774
    %1927 = vmatpush2.bf16.msra.mxu0 %v1773
    %1928 = vmatprep.subr.bf16.mxu0 %v1770
    %1929 = vmatpush2.bf16.msra.mxu0 %v1769
    %1930 = vmatprep.subr.bf16.mxu0 %v1766
    %1931 = vmatpush2.bf16.msra.mxu0 %v1765
    %1932 = vmatprep.mubr.bf16.mxu0 %v1452
    %1933 = vmatmul.mubr.bf16.gmra.mxu0 %v1451
    %v1934 = vpop.f32.mrf.mxu0
    %v1935 = vadd.f32 %v1530, %v1934
    %v1936 = vpop.f32.mrf.mxu0
    %v1937 = vadd.f32 %v1534, %v1936
    %v1938 = vpop.f32.mrf.mxu0
    %v1939 = vpop.f32.mrf.mxu0
    %1940 = vdwg.mxu0
    %v1941 = vxor.u32 %v1894, 2147483648
    %v1942 = vxor.u32 %v1896, 2147483648
    %v1943 = vxor.u32 %v1935, 2147483648
    %v1944 = vmul.f32 %v1941, 1.442695
    %v1945 = vpow.pop %v1944
    %v1946 = vmul.f32 %v1942, 1.442695
    %v1947 = vpow.pop %v1946
    %v1948 = vmul.f32 %v1943, 1.442695
    %v1949 = vpow.pop %v1948
    %v1950 = vadd.f32 %v1945, 1.0
    %v1951 = vadd.f32 %v1947, 1.0
    %v1952 = vadd.f32 %v1949, 1.0
    %v1953 = vrcp.pop %v1950
    %v1954 = vmul.f32 1.0, %v1953
    %v1955 = vrcp.pop %v1951
    %v1956 = vmul.f32 1.0, %v1955
    %v1957 = vrcp.pop %v1952
    %v1958 = vmul.f32 1.0, %v1957
    %v1959 = vtanh.pop %v1937
    %v1960 = vld [vmem:[#allocation4 + $0x8] sm:$0xff]
    %v1961 = vmul.f32 %v1956, %v1960
    %v1962 = vmul.f32 %v1954, %v1959
    %v1963 = vadd.f32 %v1961, %v1962
    %v1964 = vtanh.pop %v1963
    %v1965 = vmul.f32 %v1958, %v1964
    %1966 = vst [vmem:[#allocation4 + $0x8] sm:$0xff] %v1963
    %1967 = vst [vmem:[#allocation3 + $0x8] sm:$0xff] %v1965
    %v1968 = vld [vmem:[#allocation2 + $0x40] sm:$0xff]
    %v1969 = vld [vmem:[#allocation2 + $0x48] sm:$0xff]
    %v1970 = vld [vmem:[#allocation2 + $0x50] sm:$0xff]
    %v1971 = vld [vmem:[#allocation2 + $0x58] sm:$0xff]
    %v1972 = vld [vmem:[#allocation3] sm:$0xff]
    %v1973 = vpack.c.bf16 %v1972, %v1972
    %v1974 = vld [vmem:[%s2] sm:$0xff]
    %v1975 = vld [vmem:[%s2 + $0x8] sm:$0xff]
    %v1976 = vld [vmem:[%s2 + $0x10] sm:$0xff]
    %v1977 = vld [vmem:[%s2 + $0x18] sm:$0xff]
    %v1978 = vld [vmem:[%s2 + $0x20] sm:$0xff]
    %v1979 = vld [vmem:[%s2 + $0x28] sm:$0xff]
    %v1980 = vld [vmem:[%s2 + $0x30] sm:$0xff]
    %v1981 = vld [vmem:[%s2 + $0x38] sm:$0xff]
    %v1982 = vld [vmem:[%s2 + $0x40] sm:$0xff]
    %v1983 = vld [vmem:[%s2 + $0x48] sm:$0xff]
    %v1984 = vld [vmem:[%s2 + $0x50] sm:$0xff]
    %v1985 = vld [vmem:[%s2 + $0x58] sm:$0xff]
    %v1986 = vld [vmem:[%s2 + $0x60] sm:$0xff]
    %v1987 = vld [vmem:[%s2 + $0x68] sm:$0xff]
    %v1988 = vld [vmem:[%s2 + $0x70] sm:$0xff]
    %v1989 = vld [vmem:[%s2 + $0x78] sm:$0xff]
    %v1990 = vld [vmem:[%s2 + $0x80] sm:$0xff]
    %v1991 = vld [vmem:[%s2 + $0x88] sm:$0xff]
    %v1992 = vld [vmem:[%s2 + $0x90] sm:$0xff]
    %v1993 = vld [vmem:[%s2 + $0x98] sm:$0xff]
    %v1994 = vld [vmem:[%s2 + $0xa0] sm:$0xff]
    %v1995 = vld [vmem:[%s2 + $0xa8] sm:$0xff]
    %v1996 = vld [vmem:[%s2 + $0xb0] sm:$0xff]
    %v1997 = vld [vmem:[%s2 + $0xb8] sm:$0xff]
    %v1998 = vld [vmem:[%s2 + $0xc0] sm:$0xff]
    %v1999 = vld [vmem:[%s2 + $0xc8] sm:$0xff]
    %v2000 = vld [vmem:[%s2 + $0xd0] sm:$0xff]
    %v2001 = vld [vmem:[%s2 + $0xd8] sm:$0xff]
    %v2002 = vld [vmem:[%s2 + $0xe0] sm:$0xff]
    %v2003 = vld [vmem:[%s2 + $0xe8] sm:$0xff]
    %v2004 = vld [vmem:[%s2 + $0xf0] sm:$0xff]
    %v2005 = vld [vmem:[%s2 + $0xf8] sm:$0xff]
    %v2038 = vunpack.c.l.b16 %v1974
    %v2039 = vunpack.c.h.b16 %v1974
    %v2040 = vunpack.c.l.b16 %v1975
    %v2041 = vunpack.c.h.b16 %v1975
    %v2042 = vunpack.c.l.b16 %v1976
    %v2043 = vunpack.c.h.b16 %v1976
    %v2044 = vunpack.c.l.b16 %v1977
    %v2045 = vunpack.c.h.b16 %v1977
    %v2046 = vunpack.c.l.b16 %v1978
    %v2047 = vunpack.c.h.b16 %v1978
    %v2048 = vunpack.c.l.b16 %v1979
    %v2049 = vunpack.c.h.b16 %v1979
    %v2050 = vunpack.c.l.b16 %v1980
    %v2051 = vunpack.c.h.b16 %v1980
    %v2052 = vunpack.c.l.b16 %v1981
    %v2053 = vunpack.c.h.b16 %v1981
    %v2054 = vunpack.c.l.b16 %v1982
    %v2055 = vunpack.c.h.b16 %v1982
    %v2056 = vunpack.c.l.b16 %v1983
    %v2057 = vunpack.c.h.b16 %v1983
    %v2058 = vunpack.c.l.b16 %v1984
    %v2059 = vunpack.c.h.b16 %v1984
    %v2060 = vunpack.c.l.b16 %v1985
    %v2061 = vunpack.c.h.b16 %v1985
    %v2062 = vunpack.c.l.b16 %v1986
    %v2063 = vunpack.c.h.b16 %v1986
    %v2064 = vunpack.c.l.b16 %v1987
    %v2065 = vunpack.c.h.b16 %v1987
    %v2066 = vunpack.c.l.b16 %v1988
    %v2067 = vunpack.c.h.b16 %v1988
    %v2068 = vunpack.c.l.b16 %v1989
    %v2069 = vunpack.c.h.b16 %v1989
    %v2070 = vunpack.c.l.b16 %v1990
    %v2071 = vunpack.c.h.b16 %v1990
    %v2072 = vunpack.c.l.b16 %v1991
    %v2073 = vunpack.c.h.b16 %v1991
    %v2074 = vunpack.c.l.b16 %v1992
    %v2075 = vunpack.c.h.b16 %v1992
    %v2076 = vunpack.c.l.b16 %v1993
    %v2077 = vunpack.c.h.b16 %v1993
    %v2078 = vunpack.c.l.b16 %v1994
    %v2079 = vunpack.c.h.b16 %v1994
    %v2080 = vunpack.c.l.b16 %v1995
    %v2081 = vunpack.c.h.b16 %v1995
    %v2082 = vunpack.c.l.b16 %v1996
    %v2083 = vunpack.c.h.b16 %v1996
    %v2084 = vunpack.c.l.b16 %v1997
    %v2085 = vunpack.c.h.b16 %v1997
    %v2086 = vunpack.c.l.b16 %v1998
    %v2087 = vunpack.c.h.b16 %v1998
    %v2088 = vunpack.c.l.b16 %v1999
    %v2089 = vunpack.c.h.b16 %v1999
    %v2090 = vunpack.c.l.b16 %v2000
    %v2091 = vunpack.c.h.b16 %v2000
    %v2092 = vunpack.c.l.b16 %v2001
    %v2093 = vunpack.c.h.b16 %v2001
    %v2094 = vunpack.c.l.b16 %v2002
    %v2095 = vunpack.c.h.b16 %v2002
    %v2096 = vunpack.c.l.b16 %v2003
    %v2097 = vunpack.c.h.b16 %v2003
    %v2098 = vunpack.c.l.b16 %v2004
    %v2099 = vunpack.c.h.b16 %v2004
    %v2100 = vunpack.c.l.b16 %v2005
    %v2101 = vunpack.c.h.b16 %v2005
    %v2102 = vpack.c.b16 %v2042, %v2038
    %v2103 = vpack.c.b16 %v2043, %v2039
    %v2104 = vpack.c.b16 %v2044, %v2040
    %v2105 = vpack.c.b16 %v2045, %v2041
    %v2106 = vpack.c.b16 %v2050, %v2046
    %v2107 = vpack.c.b16 %v2051, %v2047
    %v2108 = vpack.c.b16 %v2052, %v2048
    %v2109 = vpack.c.b16 %v2053, %v2049
    %v2110 = vpack.c.b16 %v2058, %v2054
    %v2111 = vpack.c.b16 %v2059, %v2055
    %v2112 = vpack.c.b16 %v2060, %v2056
    %v2113 = vpack.c.b16 %v2061, %v2057
    %v2114 = vpack.c.b16 %v2066, %v2062
    %v2115 = vpack.c.b16 %v2067, %v2063
    %v2116 = vpack.c.b16 %v2068, %v2064
    %v2117 = vpack.c.b16 %v2069, %v2065
    %v2118 = vpack.c.b16 %v2074, %v2070
    %v2119 = vpack.c.b16 %v2075, %v2071
    %v2120 = vpack.c.b16 %v2076, %v2072
    %v2121 = vpack.c.b16 %v2077, %v2073
    %v2122 = vpack.c.b16 %v2082, %v2078
    %v2123 = vpack.c.b16 %v2083, %v2079
    %v2124 = vpack.c.b16 %v2084, %v2080
    %v2125 = vpack.c.b16 %v2085, %v2081
    %v2126 = vpack.c.b16 %v2090, %v2086
    %v2127 = vpack.c.b16 %v2091, %v2087
    %v2128 = vpack.c.b16 %v2092, %v2088
    %v2129 = vpack.c.b16 %v2093, %v2089
    %v2130 = vpack.c.b16 %v2098, %v2094
    %v2131 = vpack.c.b16 %v2099, %v2095
    %v2132 = vpack.c.b16 %v2100, %v2096
    %v2133 = vpack.c.b16 %v2101, %v2097
    %2166 = vmatprep.subr.bf16.mxu0 %v2131
    %2167 = vmatpush1.bf16.msra.mxu0 %v2130
    %2168 = vmatprep.subr.bf16.mxu0 %v2127
    %2169 = vmatpush1.bf16.msra.mxu0 %v2126
    %2170 = vmatprep.subr.bf16.mxu0 %v2123
    %2171 = vmatpush1.bf16.msra.mxu0 %v2122
    %2172 = vmatprep.subr.bf16.mxu0 %v2119
    %2173 = vmatpush1.bf16.msra.mxu0 %v2118
    %2174 = vmatprep.subr.bf16.mxu0 %v2115
    %2175 = vmatpush1.bf16.msra.mxu0 %v2114
    %2176 = vmatprep.subr.bf16.mxu0 %v2111
    %2177 = vmatpush1.bf16.msra.mxu0 %v2110
    %2178 = vmatprep.subr.bf16.mxu0 %v2107
    %2179 = vmatpush1.bf16.msra.mxu0 %v2106
    %2180 = vmatprep.subr.bf16.mxu0 %v2103
    %2181 = vmatpush1.bf16.msra.mxu0 %v2102
    %2182 = vmatprep.subr.bf16.mxu0 0
    %2183 = vmatpush2.bf16.msra.mxu0 0
    %2184 = vmatprep.subr.bf16.mxu0 0
    %2185 = vmatpush2.bf16.msra.mxu0 0
    %2186 = vmatprep.subr.bf16.mxu0 0
    %2187 = vmatpush2.bf16.msra.mxu0 0
    %2188 = vmatprep.subr.bf16.mxu0 0
    %2189 = vmatpush2.bf16.msra.mxu0 0
    %2190 = vmatprep.subr.bf16.mxu0 0
    %2191 = vmatpush2.bf16.msra.mxu0 0
    %2192 = vmatprep.subr.bf16.mxu0 0
    %2193 = vmatpush2.bf16.msra.mxu0 0
    %2194 = vmatprep.subr.bf16.mxu0 0
    %2195 = vmatpush2.bf16.msra.mxu0 0
    %2196 = vmatprep.subr.bf16.mxu0 0
    %2197 = vmatpush2.bf16.msra.mxu0 0
    %2198 = vmatprep.mubr.bf16.mxu0 0
    %2199 = vmatmul.mubr.bf16.gmra.mxu0 %v1973
    %v2200 = vpop.f32.mrf.mxu0
    %v2201 = vadd.f32 0.0, %v2200
    %v2202 = vpop.f32.mrf.mxu0
    %v2203 = vadd.f32 0.0, %v2202
    %v2204 = vpop.f32.mrf.mxu0
    %v2205 = vpop.f32.mrf.mxu0
    %2206 = vdwg.mxu0
    %2207 = vmatprep.subr.bf16.mxu0 %v2133
    %2208 = vmatpush1.bf16.msra.mxu0 %v2132
    %2209 = vmatprep.subr.bf16.mxu0 %v2129
    %2210 = vmatpush1.bf16.msra.mxu0 %v2128
    %2211 = vmatprep.subr.bf16.mxu0 %v2125
    %2212 = vmatpush1.bf16.msra.mxu0 %v2124
    %2213 = vmatprep.subr.bf16.mxu0 %v2121
    %2214 = vmatpush1.bf16.msra.mxu0 %v2120
    %2215 = vmatprep.subr.bf16.mxu0 %v2117
    %2216 = vmatpush1.bf16.msra.mxu0 %v2116
    %2217 = vmatprep.subr.bf16.mxu0 %v2113
    %2218 = vmatpush1.bf16.msra.mxu0 %v2112
    %2219 = vmatprep.subr.bf16.mxu0 %v2109
    %2220 = vmatpush1.bf16.msra.mxu0 %v2108
    %2221 = vmatprep.subr.bf16.mxu0 %v2105
    %2222 = vmatpush1.bf16.msra.mxu0 %v2104
    %2223 = vmatprep.subr.bf16.mxu0 0
    %2224 = vmatpush2.bf16.msra.mxu0 0
    %2225 = vmatprep.subr.bf16.mxu0 0
    %2226 = vmatpush2.bf16.msra.mxu0 0
    %2227 = vmatprep.subr.bf16.mxu0 0
    %2228 = vmatpush2.bf16.msra.mxu0 0
    %2229 = vmatprep.subr.bf16.mxu0 0
    %2230 = vmatpush2.bf16.msra.mxu0 0
    %2231 = vmatprep.subr.bf16.mxu0 0
    %2232 = vmatpush2.bf16.msra.mxu0 0
    %2233 = vmatprep.subr.bf16.mxu0 0
    %2234 = vmatpush2.bf16.msra.mxu0 0
    %2235 = vmatprep.subr.bf16.mxu0 0
    %2236 = vmatpush2.bf16.msra.mxu0 0
    %2237 = vmatprep.subr.bf16.mxu0 0
    %2238 = vmatpush2.bf16.msra.mxu0 0
    %2239 = vmatprep.mubr.bf16.mxu0 0
    %2240 = vmatmul.mubr.bf16.gmra.mxu0 %v1973
    %v2241 = vpop.f32.mrf.mxu0
    %v2242 = vadd.f32 0.0, %v2241
    %v2243 = vpop.f32.mrf.mxu0
    %v2244 = vadd.f32 0.0, %v2243
    %v2245 = vpop.f32.mrf.mxu0
    %v2246 = vpop.f32.mrf.mxu0
    %2247 = vdwg.mxu0
    %v2248 = vadd.f32 %v1968, %v2201
    %v2249 = vadd.f32 %v1969, %v2203
    %v2250 = vadd.f32 %v1970, %v2242
    %v2251 = vadd.f32 %v1971, %v2244
    %v2252 = vxor.u32 %v2248, 2147483648
    %v2253 = vxor.u32 %v2249, 2147483648
    %v2254 = vxor.u32 %v2250, 2147483648
    %v2255 = vmul.f32 %v2252, 1.442695
    %v2256 = vpow.pop %v2255
    %v2257 = vmul.f32 %v2253, 1.442695
    %v2258 = vpow.pop %v2257
    %v2259 = vmul.f32 %v2254, 1.442695
    %v2260 = vpow.pop %v2259
    %v2261 = vadd.f32 %v2256, 1.0
    %v2262 = vadd.f32 %v2258, 1.0
    %v2263 = vadd.f32 %v2260, 1.0
    %v2264 = vrcp.pop %v2261
    %v2265 = vmul.f32 1.0, %v2264
    %v2266 = vrcp.pop %v2262
    %v2267 = vmul.f32 1.0, %v2266
    %v2268 = vrcp.pop %v2263
    %v2269 = vmul.f32 1.0, %v2268
    %v2270 = vtanh.pop %v2251
    %v2271 = vld [vmem:[#allocation4] sm:$0xff]
    %v2272 = vmul.f32 %v2267, %v2271
    %v2273 = vmul.f32 %v2265, %v2270
    %v2274 = vadd.f32 %v2272, %v2273
    %v2275 = vtanh.pop %v2274
    %v2276 = vmul.f32 %v2269, %v2275
    %2277 = vst [vmem:[#allocation4] sm:$0xff] %v2274
    %2278 = vst [vmem:[#allocation3] sm:$0xff] %v2276
    %v2279 = vld [vmem:[#allocation3] sm:$0xff]
    %v2280 = vld [vmem:[#allocation3 + $0x8] sm:$0xff]
    %v2281 = vpack.c.bf16 %v2279, %v2279
    %v2282 = vpack.c.bf16 %v2280, %v2280
    %v2283 = vld [vmem:[%s4] sm:$0xff]
    %v2284 = vld [vmem:[%s4 + $0x8] sm:$0xff]
    %v2285 = vld [vmem:[%s4 + $0x10] sm:$0xff]
    %v2286 = vld [vmem:[%s4 + $0x18] sm:$0xff]
    %v2287 = vld [vmem:[%s4 + $0x20] sm:$0xff]
    %v2288 = vld [vmem:[%s4 + $0x28] sm:$0xff]
    %v2289 = vld [vmem:[%s4 + $0x30] sm:$0xff]
    %v2290 = vld [vmem:[%s4 + $0x38] sm:$0xff]
    %v2291 = vld [vmem:[%s4 + $0x40] sm:$0xff]
    %v2292 = vld [vmem:[%s4 + $0x48] sm:$0xff]
    %v2293 = vld [vmem:[%s4 + $0x50] sm:$0xff]
    %v2294 = vld [vmem:[%s4 + $0x58] sm:$0xff]
    %v2295 = vld [vmem:[%s4 + $0x60] sm:$0xff]
    %v2296 = vld [vmem:[%s4 + $0x68] sm:$0xff]
    %v2297 = vld [vmem:[%s4 + $0x70] sm:$0xff]
    %v2298 = vld [vmem:[%s4 + $0x78] sm:$0xff]
    %v2299 = vld [vmem:[%s4 + $0x80] sm:$0xff]
    %v2300 = vld [vmem:[%s4 + $0x88] sm:$0xff]
    %v2301 = vld [vmem:[%s4 + $0x90] sm:$0xff]
    %v2302 = vld [vmem:[%s4 + $0x98] sm:$0xff]
    %v2303 = vld [vmem:[%s4 + $0xa0] sm:$0xff]
    %v2304 = vld [vmem:[%s4 + $0xa8] sm:$0xff]
    %v2305 = vld [vmem:[%s4 + $0xb0] sm:$0xff]
    %v2306 = vld [vmem:[%s4 + $0xb8] sm:$0xff]
    %v2307 = vld [vmem:[%s4 + $0xc0] sm:$0xff]
    %v2308 = vld [vmem:[%s4 + $0xc8] sm:$0xff]
    %v2309 = vld [vmem:[%s4 + $0xd0] sm:$0xff]
    %v2310 = vld [vmem:[%s4 + $0xd8] sm:$0xff]
    %v2311 = vld [vmem:[%s4 + $0xe0] sm:$0xff]
    %v2312 = vld [vmem:[%s4 + $0xe8] sm:$0xff]
    %v2313 = vld [vmem:[%s4 + $0xf0] sm:$0xff]
    %v2314 = vld [vmem:[%s4 + $0xf8] sm:$0xff]
    %v2315 = vld [vmem:[%s4 + $0x100] sm:$0xff]
    %v2316 = vld [vmem:[%s4 + $0x108] sm:$0xff]
    %v2317 = vld [vmem:[%s4 + $0x110] sm:$0xff]
    %v2318 = vld [vmem:[%s4 + $0x118] sm:$0xff]
    %v2319 = vld [vmem:[%s4 + $0x120] sm:$0xff]
    %v2320 = vld [vmem:[%s4 + $0x128] sm:$0xff]
    %v2321 = vld [vmem:[%s4 + $0x130] sm:$0xff]
    %v2322 = vld [vmem:[%s4 + $0x138] sm:$0xff]
    %v2323 = vld [vmem:[%s4 + $0x140] sm:$0xff]
    %v2324 = vld [vmem:[%s4 + $0x148] sm:$0xff]
    %v2325 = vld [vmem:[%s4 + $0x150] sm:$0xff]
    %v2326 = vld [vmem:[%s4 + $0x158] sm:$0xff]
    %v2327 = vld [vmem:[%s4 + $0x160] sm:$0xff]
    %v2328 = vld [vmem:[%s4 + $0x168] sm:$0xff]
    %v2329 = vld [vmem:[%s4 + $0x170] sm:$0xff]
    %v2330 = vld [vmem:[%s4 + $0x178] sm:$0xff]
    %v2331 = vld [vmem:[%s4 + $0x180] sm:$0xff]
    %v2332 = vld [vmem:[%s4 + $0x188] sm:$0xff]
    %v2333 = vld [vmem:[%s4 + $0x190] sm:$0xff]
    %v2334 = vld [vmem:[%s4 + $0x198] sm:$0xff]
    %v2335 = vld [vmem:[%s4 + $0x1a0] sm:$0xff]
    %v2336 = vld [vmem:[%s4 + $0x1a8] sm:$0xff]
    %v2337 = vld [vmem:[%s4 + $0x1b0] sm:$0xff]
    %v2338 = vld [vmem:[%s4 + $0x1b8] sm:$0xff]
    %v2339 = vld [vmem:[%s4 + $0x1c0] sm:$0xff]
    %v2340 = vld [vmem:[%s4 + $0x1c8] sm:$0xff]
    %v2341 = vld [vmem:[%s4 + $0x1d0] sm:$0xff]
    %v2342 = vld [vmem:[%s4 + $0x1d8] sm:$0xff]
    %v2343 = vld [vmem:[%s4 + $0x1e0] sm:$0xff]
    %v2344 = vld [vmem:[%s4 + $0x1e8] sm:$0xff]
    %v2345 = vld [vmem:[%s4 + $0x1f0] sm:$0xff]
    %v2346 = vld [vmem:[%s4 + $0x1f8] sm:$0xff]
    %v2347 = vld [vmem:[%s5] sm:$0xf]
    %v2349 = vlaneseq
    %v2350 = vshrl.u32 %v2349, 7
    %v2351 = vsub.s32 0, %v2350
    %v2352 = vrot.slane %v2347, %v2351
    %v2353 = vlaneseq
    %v2354 = vshrl.u32 %v2353, 7
    %v2355 = vsub.s32 1, %v2354
    %v2356 = vrot.slane %v2347, %v2355
    %v2357 = vlaneseq
    %v2358 = vshrl.u32 %v2357, 7
    %v2359 = vsub.s32 2, %v2358
    %v2360 = vrot.slane %v2347, %v2359
    %v2361 = vlaneseq
    %v2362 = vshrl.u32 %v2361, 7
    %v2363 = vsub.s32 3, %v2362
    %v2364 = vrot.slane %v2347, %v2363
    %v2433 = vunpack.c.l.b16 %v2283
    %v2434 = vunpack.c.h.b16 %v2283
    %v2435 = vunpack.c.l.b16 %v2284
    %v2436 = vunpack.c.h.b16 %v2284
    %v2437 = vunpack.c.l.b16 %v2285
    %v2438 = vunpack.c.h.b16 %v2285
    %v2439 = vunpack.c.l.b16 %v2286
    %v2440 = vunpack.c.h.b16 %v2286
    %v2441 = vunpack.c.l.b16 %v2287
    %v2442 = vunpack.c.h.b16 %v2287
    %v2443 = vunpack.c.l.b16 %v2288
    %v2444 = vunpack.c.h.b16 %v2288
    %v2445 = vunpack.c.l.b16 %v2289
    %v2446 = vunpack.c.h.b16 %v2289
    %v2447 = vunpack.c.l.b16 %v2290
    %v2448 = vunpack.c.h.b16 %v2290
    %v2449 = vunpack.c.l.b16 %v2291
    %v2450 = vunpack.c.h.b16 %v2291
    %v2451 = vunpack.c.l.b16 %v2292
    %v2452 = vunpack.c.h.b16 %v2292
    %v2453 = vunpack.c.l.b16 %v2293
    %v2454 = vunpack.c.h.b16 %v2293
    %v2455 = vunpack.c.l.b16 %v2294
    %v2456 = vunpack.c.h.b16 %v2294
    %v2457 = vunpack.c.l.b16 %v2295
    %v2458 = vunpack.c.h.b16 %v2295
    %v2459 = vunpack.c.l.b16 %v2296
    %v2460 = vunpack.c.h.b16 %v2296
    %v2461 = vunpack.c.l.b16 %v2297
    %v2462 = vunpack.c.h.b16 %v2297
    %v2463 = vunpack.c.l.b16 %v2298
    %v2464 = vunpack.c.h.b16 %v2298
    %v2465 = vunpack.c.l.b16 %v2299
    %v2466 = vunpack.c.h.b16 %v2299
    %v2467 = vunpack.c.l.b16 %v2300
    %v2468 = vunpack.c.h.b16 %v2300
    %v2469 = vunpack.c.l.b16 %v2301
    %v2470 = vunpack.c.h.b16 %v2301
    %v2471 = vunpack.c.l.b16 %v2302
    %v2472 = vunpack.c.h.b16 %v2302
    %v2473 = vunpack.c.l.b16 %v2303
    %v2474 = vunpack.c.h.b16 %v2303
    %v2475 = vunpack.c.l.b16 %v2304
    %v2476 = vunpack.c.h.b16 %v2304
    %v2477 = vunpack.c.l.b16 %v2305
    %v2478 = vunpack.c.h.b16 %v2305
    %v2479 = vunpack.c.l.b16 %v2306
    %v2480 = vunpack.c.h.b16 %v2306
    %v2481 = vunpack.c.l.b16 %v2307
    %v2482 = vunpack.c.h.b16 %v2307
    %v2483 = vunpack.c.l.b16 %v2308
    %v2484 = vunpack.c.h.b16 %v2308
    %v2485 = vunpack.c.l.b16 %v2309
    %v2486 = vunpack.c.h.b16 %v2309
    %v2487 = vunpack.c.l.b16 %v2310
    %v2488 = vunpack.c.h.b16 %v2310
    %v2489 = vunpack.c.l.b16 %v2311
    %v2490 = vunpack.c.h.b16 %v2311
    %v2491 = vunpack.c.l.b16 %v2312
    %v2492 = vunpack.c.h.b16 %v2312
    %v2493 = vunpack.c.l.b16 %v2313
    %v2494 = vunpack.c.h.b16 %v2313
    %v2495 = vunpack.c.l.b16 %v2314
    %v2496 = vunpack.c.h.b16 %v2314
    %v2497 = vunpack.c.l.b16 %v2315
    %v2498 = vunpack.c.h.b16 %v2315
    %v2499 = vunpack.c.l.b16 %v2316
    %v2500 = vunpack.c.h.b16 %v2316
    %v2501 = vunpack.c.l.b16 %v2317
    %v2502 = vunpack.c.h.b16 %v2317
    %v2503 = vunpack.c.l.b16 %v2318
    %v2504 = vunpack.c.h.b16 %v2318
    %v2505 = vunpack.c.l.b16 %v2319
    %v2506 = vunpack.c.h.b16 %v2319
    %v2507 = vunpack.c.l.b16 %v2320
    %v2508 = vunpack.c.h.b16 %v2320
    %v2509 = vunpack.c.l.b16 %v2321
    %v2510 = vunpack.c.h.b16 %v2321
    %v2511 = vunpack.c.l.b16 %v2322
    %v2512 = vunpack.c.h.b16 %v2322
    %v2513 = vunpack.c.l.b16 %v2323
    %v2514 = vunpack.c.h.b16 %v2323
    %v2515 = vunpack.c.l.b16 %v2324
    %v2516 = vunpack.c.h.b16 %v2324
    %v2517 = vunpack.c.l.b16 %v2325
    %v2518 = vunpack.c.h.b16 %v2325
    %v2519 = vunpack.c.l.b16 %v2326
    %v2520 = vunpack.c.h.b16 %v2326
    %v2521 = vunpack.c.l.b16 %v2327
    %v2522 = vunpack.c.h.b16 %v2327
    %v2523 = vunpack.c.l.b16 %v2328
    %v2524 = vunpack.c.h.b16 %v2328
    %v2525 = vunpack.c.l.b16 %v2329
    %v2526 = vunpack.c.h.b16 %v2329
    %v2527 = vunpack.c.l.b16 %v2330
    %v2528 = vunpack.c.h.b16 %v2330
    %v2529 = vunpack.c.l.b16 %v2331
    %v2530 = vunpack.c.h.b16 %v2331
    %v2531 = vunpack.c.l.b16 %v2332
    %v2532 = vunpack.c.h.b16 %v2332
    %v2533 = vunpack.c.l.b16 %v2333
    %v2534 = vunpack.c.h.b16 %v2333
    %v2535 = vunpack.c.l.b16 %v2334
    %v2536 = vunpack.c.h.b16 %v2334
    %v2537 = vunpack.c.l.b16 %v2335
    %v2538 = vunpack.c.h.b16 %v2335
    %v2539 = vunpack.c.l.b16 %v2336
    %v2540 = vunpack.c.h.b16 %v2336
    %v2541 = vunpack.c.l.b16 %v2337
    %v2542 = vunpack.c.h.b16 %v2337
    %v2543 = vunpack.c.l.b16 %v2338
    %v2544 = vunpack.c.h.b16 %v2338
    %v2545 = vunpack.c.l.b16 %v2339
    %v2546 = vunpack.c.h.b16 %v2339
    %v2547 = vunpack.c.l.b16 %v2340
    %v2548 = vunpack.c.h.b16 %v2340
    %v2549 = vunpack.c.l.b16 %v2341
    %v2550 = vunpack.c.h.b16 %v2341
    %v2551 = vunpack.c.l.b16 %v2342
    %v2552 = vunpack.c.h.b16 %v2342
    %v2553 = vunpack.c.l.b16 %v2343
    %v2554 = vunpack.c.h.b16 %v2343
    %v2555 = vunpack.c.l.b16 %v2344
    %v2556 = vunpack.c.h.b16 %v2344
    %v2557 = vunpack.c.l.b16 %v2345
    %v2558 = vunpack.c.h.b16 %v2345
    %v2559 = vunpack.c.l.b16 %v2346
    %v2560 = vunpack.c.h.b16 %v2346
    %v2561 = vpack.c.b16 %v2437, %v2433
    %v2562 = vpack.c.b16 %v2438, %v2434
    %v2563 = vpack.c.b16 %v2439, %v2435
    %v2564 = vpack.c.b16 %v2440, %v2436
    %v2565 = vpack.c.b16 %v2445, %v2441
    %v2566 = vpack.c.b16 %v2446, %v2442
    %v2567 = vpack.c.b16 %v2447, %v2443
    %v2568 = vpack.c.b16 %v2448, %v2444
    %v2569 = vpack.c.b16 %v2453, %v2449
    %v2570 = vpack.c.b16 %v2454, %v2450
    %v2571 = vpack.c.b16 %v2455, %v2451
    %v2572 = vpack.c.b16 %v2456, %v2452
    %v2573 = vpack.c.b16 %v2461, %v2457
    %v2574 = vpack.c.b16 %v2462, %v2458
    %v2575 = vpack.c.b16 %v2463, %v2459
    %v2576 = vpack.c.b16 %v2464, %v2460
    %v2577 = vpack.c.b16 %v2469, %v2465
    %v2578 = vpack.c.b16 %v2470, %v2466
    %v2579 = vpack.c.b16 %v2471, %v2467
    %v2580 = vpack.c.b16 %v2472, %v2468
    %v2581 = vpack.c.b16 %v2477, %v2473
    %v2582 = vpack.c.b16 %v2478, %v2474
    %v2583 = vpack.c.b16 %v2479, %v2475
    %v2584 = vpack.c.b16 %v2480, %v2476
    %v2585 = vpack.c.b16 %v2485, %v2481
    %v2586 = vpack.c.b16 %v2486, %v2482
    %v2587 = vpack.c.b16 %v2487, %v2483
    %v2588 = vpack.c.b16 %v2488, %v2484
    %v2589 = vpack.c.b16 %v2493, %v2489
    %v2590 = vpack.c.b16 %v2494, %v2490
    %v2591 = vpack.c.b16 %v2495, %v2491
    %v2592 = vpack.c.b16 %v2496, %v2492
    %v2593 = vpack.c.b16 %v2501, %v2497
    %v2594 = vpack.c.b16 %v2502, %v2498
    %v2595 = vpack.c.b16 %v2503, %v2499
    %v2596 = vpack.c.b16 %v2504, %v2500
    %v2597 = vpack.c.b16 %v2509, %v2505
    %v2598 = vpack.c.b16 %v2510, %v2506
    %v2599 = vpack.c.b16 %v2511, %v2507
    %v2600 = vpack.c.b16 %v2512, %v2508
    %v2601 = vpack.c.b16 %v2517, %v2513
    %v2602 = vpack.c.b16 %v2518, %v2514
    %v2603 = vpack.c.b16 %v2519, %v2515
    %v2604 = vpack.c.b16 %v2520, %v2516
    %v2605 = vpack.c.b16 %v2525, %v2521
    %v2606 = vpack.c.b16 %v2526, %v2522
    %v2607 = vpack.c.b16 %v2527, %v2523
    %v2608 = vpack.c.b16 %v2528, %v2524
    %v2609 = vpack.c.b16 %v2533, %v2529
    %v2610 = vpack.c.b16 %v2534, %v2530
    %v2611 = vpack.c.b16 %v2535, %v2531
    %v2612 = vpack.c.b16 %v2536, %v2532
    %v2613 = vpack.c.b16 %v2541, %v2537
    %v2614 = vpack.c.b16 %v2542, %v2538
    %v2615 = vpack.c.b16 %v2543, %v2539
    %v2616 = vpack.c.b16 %v2544, %v2540
    %v2617 = vpack.c.b16 %v2549, %v2545
    %v2618 = vpack.c.b16 %v2550, %v2546
    %v2619 = vpack.c.b16 %v2551, %v2547
    %v2620 = vpack.c.b16 %v2552, %v2548
    %v2621 = vpack.c.b16 %v2557, %v2553
    %v2622 = vpack.c.b16 %v2558, %v2554
    %v2623 = vpack.c.b16 %v2559, %v2555
    %v2624 = vpack.c.b16 %v2560, %v2556
    %2689 = vmatprep.subr.bf16.mxu0 %v2590
    %2690 = vmatpush1.bf16.msra.mxu0 %v2589
    %2691 = vmatprep.subr.bf16.mxu0 %v2586
    %2692 = vmatpush1.bf16.msra.mxu0 %v2585
    %2693 = vmatprep.subr.bf16.mxu0 %v2582
    %2694 = vmatpush1.bf16.msra.mxu0 %v2581
    %2695 = vmatprep.subr.bf16.mxu0 %v2578
    %2696 = vmatpush1.bf16.msra.mxu0 %v2577
    %2697 = vmatprep.subr.bf16.mxu0 %v2574
    %2698 = vmatpush1.bf16.msra.mxu0 %v2573
    %2699 = vmatprep.subr.bf16.mxu0 %v2570
    %2700 = vmatpush1.bf16.msra.mxu0 %v2569
    %2701 = vmatprep.subr.bf16.mxu0 %v2566
    %2702 = vmatpush1.bf16.msra.mxu0 %v2565
    %2703 = vmatprep.subr.bf16.mxu0 %v2562
    %2704 = vmatpush1.bf16.msra.mxu0 %v2561
    %2705 = vmatprep.subr.bf16.mxu0 %v2622
    %2706 = vmatpush2.bf16.msra.mxu0 %v2621
    %2707 = vmatprep.subr.bf16.mxu0 %v2618
    %2708 = vmatpush2.bf16.msra.mxu0 %v2617
    %2709 = vmatprep.subr.bf16.mxu0 %v2614
    %2710 = vmatpush2.bf16.msra.mxu0 %v2613
    %2711 = vmatprep.subr.bf16.mxu0 %v2610
    %2712 = vmatpush2.bf16.msra.mxu0 %v2609
    %2713 = vmatprep.subr.bf16.mxu0 %v2606
    %2714 = vmatpush2.bf16.msra.mxu0 %v2605
    %2715 = vmatprep.subr.bf16.mxu0 %v2602
    %2716 = vmatpush2.bf16.msra.mxu0 %v2601
    %2717 = vmatprep.subr.bf16.mxu0 %v2598
    %2718 = vmatpush2.bf16.msra.mxu0 %v2597
    %2719 = vmatprep.subr.bf16.mxu0 %v2594
    %2720 = vmatpush2.bf16.msra.mxu0 %v2593
    %2721 = vmatprep.mubr.bf16.mxu0 %v2282
    %2722 = vmatmul.mubr.bf16.gmra.mxu0 %v2281
    %v2723 = vpop.f32.mrf.mxu0
    %v2724 = vadd.f32 %v2352, %v2723
    %v2725 = vpop.f32.mrf.mxu0
    %v2726 = vadd.f32 %v2356, %v2725
    %v2727 = vpop.f32.mrf.mxu0
    %v2728 = vpop.f32.mrf.mxu0
    %2729 = vdwg.mxu0
    %2730 = vmatprep.subr.bf16.mxu0 %v2592
    %2731 = vmatpush1.bf16.msra.mxu0 %v2591
    %2732 = vmatprep.subr.bf16.mxu0 %v2588
    %2733 = vmatpush1.bf16.msra.mxu0 %v2587
    %2734 = vmatprep.subr.bf16.mxu0 %v2584
    %2735 = vmatpush1.bf16.msra.mxu0 %v2583
    %2736 = vmatprep.subr.bf16.mxu0 %v2580
    %2737 = vmatpush1.bf16.msra.mxu0 %v2579
    %2738 = vmatprep.subr.bf16.mxu0 %v2576
    %2739 = vmatpush1.bf16.msra.mxu0 %v2575
    %2740 = vmatprep.subr.bf16.mxu0 %v2572
    %2741 = vmatpush1.bf16.msra.mxu0 %v2571
    %2742 = vmatprep.subr.bf16.mxu0 %v2568
    %2743 = vmatpush1.bf16.msra.mxu0 %v2567
    %2744 = vmatprep.subr.bf16.mxu0 %v2564
    %2745 = vmatpush1.bf16.msra.mxu0 %v2563
    %2746 = vmatprep.subr.bf16.mxu0 %v2624
    %2747 = vmatpush2.bf16.msra.mxu0 %v2623
    %2748 = vmatprep.subr.bf16.mxu0 %v2620
    %2749 = vmatpush2.bf16.msra.mxu0 %v2619
    %2750 = vmatprep.subr.bf16.mxu0 %v2616
    %2751 = vmatpush2.bf16.msra.mxu0 %v2615
    %2752 = vmatprep.subr.bf16.mxu0 %v2612
    %2753 = vmatpush2.bf16.msra.mxu0 %v2611
    %2754 = vmatprep.subr.bf16.mxu0 %v2608
    %2755 = vmatpush2.bf16.msra.mxu0 %v2607
    %2756 = vmatprep.subr.bf16.mxu0 %v2604
    %2757 = vmatpush2.bf16.msra.mxu0 %v2603
    %2758 = vmatprep.subr.bf16.mxu0 %v2600
    %2759 = vmatpush2.bf16.msra.mxu0 %v2599
    %2760 = vmatprep.subr.bf16.mxu0 %v2596
    %2761 = vmatpush2.bf16.msra.mxu0 %v2595
    %2762 = vmatprep.mubr.bf16.mxu0 %v2282
    %2763 = vmatmul.mubr.bf16.gmra.mxu0 %v2281
    %v2764 = vpop.f32.mrf.mxu0
    %v2765 = vadd.f32 %v2360, %v2764
    %v2766 = vpop.f32.mrf.mxu0
    %v2767 = vadd.f32 %v2364, %v2766
    %v2768 = vpop.f32.mrf.mxu0
    %v2769 = vpop.f32.mrf.mxu0
    %2770 = vdwg.mxu0
    %v2771 = vxor.u32 %v2724, 2147483648
    %v2772 = vxor.u32 %v2726, 2147483648
    %v2773 = vxor.u32 %v2765, 2147483648
    %v2774 = vmul.f32 %v2771, 1.442695
    %v2775 = vpow.pop %v2774
    %v2776 = vmul.f32 %v2772, 1.442695
    %v2777 = vpow.pop %v2776
    %v2778 = vmul.f32 %v2773, 1.442695
    %v2779 = vpow.pop %v2778
    %v2780 = vadd.f32 %v2775, 1.0
    %v2781 = vadd.f32 %v2777, 1.0
    %v2782 = vadd.f32 %v2779, 1.0
    %v2783 = vrcp.pop %v2780
    %v2784 = vmul.f32 1.0, %v2783
    %v2785 = vrcp.pop %v2781
    %v2786 = vmul.f32 1.0, %v2785
    %v2787 = vrcp.pop %v2782
    %v2788 = vmul.f32 1.0, %v2787
    %v2789 = vtanh.pop %v2767
    %v2790 = vld [vmem:[#allocation4 + $0x8] sm:$0xff]
    %v2791 = vmul.f32 %v2786, %v2790
    %v2792 = vmul.f32 %v2784, %v2789
    %v2793 = vadd.f32 %v2791, %v2792
    %v2794 = vtanh.pop %v2793
    %v2795 = vmul.f32 %v2788, %v2794
    %2796 = vst [vmem:[#allocation4 + $0x8] sm:$0xff] %v2793
    %2797 = vst [vmem:[#allocation3 + $0x8] sm:$0xff] %v2795
    %v2798 = vld [vmem:[#allocation2 + $0x60] sm:$0xff]
    %v2799 = vld [vmem:[#allocation2 + $0x68] sm:$0xff]
    %v2800 = vld [vmem:[#allocation2 + $0x70] sm:$0xff]
    %v2801 = vld [vmem:[#allocation2 + $0x78] sm:$0xff]
    %v2802 = vld [vmem:[#allocation3] sm:$0xff]
    %v2803 = vpack.c.bf16 %v2802, %v2802
    %v2804 = vld [vmem:[%s2] sm:$0xff]
    %v2805 = vld [vmem:[%s2 + $0x8] sm:$0xff]
    %v2806 = vld [vmem:[%s2 + $0x10] sm:$0xff]
    %v2807 = vld [vmem:[%s2 + $0x18] sm:$0xff]
    %v2808 = vld [vmem:[%s2 + $0x20] sm:$0xff]
    %v2809 = vld [vmem:[%s2 + $0x28] sm:$0xff]
    %v2810 = vld [vmem:[%s2 + $0x30] sm:$0xff]
    %v2811 = vld [vmem:[%s2 + $0x38] sm:$0xff]
    %v2812 = vld [vmem:[%s2 + $0x40] sm:$0xff]
    %v2813 = vld [vmem:[%s2 + $0x48] sm:$0xff]
    %v2814 = vld [vmem:[%s2 + $0x50] sm:$0xff]
    %v2815 = vld [vmem:[%s2 + $0x58] sm:$0xff]
    %v2816 = vld [vmem:[%s2 + $0x60] sm:$0xff]
    %v2817 = vld [vmem:[%s2 + $0x68] sm:$0xff]
    %v2818 = vld [vmem:[%s2 + $0x70] sm:$0xff]
    %v2819 = vld [vmem:[%s2 + $0x78] sm:$0xff]
    %v2820 = vld [vmem:[%s2 + $0x80] sm:$0xff]
    %v2821 = vld [vmem:[%s2 + $0x88] sm:$0xff]
    %v2822 = vld [vmem:[%s2 + $0x90] sm:$0xff]
    %v2823 = vld [vmem:[%s2 + $0x98] sm:$0xff]
    %v2824 = vld [vmem:[%s2 + $0xa0] sm:$0xff]
    %v2825 = vld [vmem:[%s2 + $0xa8] sm:$0xff]
    %v2826 = vld [vmem:[%s2 + $0xb0] sm:$0xff]
    %v2827 = vld [vmem:[%s2 + $0xb8] sm:$0xff]
    %v2828 = vld [vmem:[%s2 + $0xc0] sm:$0xff]
    %v2829 = vld [vmem:[%s2 + $0xc8] sm:$0xff]
    %v2830 = vld [vmem:[%s2 + $0xd0] sm:$0xff]
    %v2831 = vld [vmem:[%s2 + $0xd8] sm:$0xff]
    %v2832 = vld [vmem:[%s2 + $0xe0] sm:$0xff]
    %v2833 = vld [vmem:[%s2 + $0xe8] sm:$0xff]
    %v2834 = vld [vmem:[%s2 + $0xf0] sm:$0xff]
    %v2835 = vld [vmem:[%s2 + $0xf8] sm:$0xff]
    %v2868 = vunpack.c.l.b16 %v2804
    %v2869 = vunpack.c.h.b16 %v2804
    %v2870 = vunpack.c.l.b16 %v2805
    %v2871 = vunpack.c.h.b16 %v2805
    %v2872 = vunpack.c.l.b16 %v2806
    %v2873 = vunpack.c.h.b16 %v2806
    %v2874 = vunpack.c.l.b16 %v2807
    %v2875 = vunpack.c.h.b16 %v2807
    %v2876 = vunpack.c.l.b16 %v2808
    %v2877 = vunpack.c.h.b16 %v2808
    %v2878 = vunpack.c.l.b16 %v2809
    %v2879 = vunpack.c.h.b16 %v2809
    %v2880 = vunpack.c.l.b16 %v2810
    %v2881 = vunpack.c.h.b16 %v2810
    %v2882 = vunpack.c.l.b16 %v2811
    %v2883 = vunpack.c.h.b16 %v2811
    %v2884 = vunpack.c.l.b16 %v2812
    %v2885 = vunpack.c.h.b16 %v2812
    %v2886 = vunpack.c.l.b16 %v2813
    %v2887 = vunpack.c.h.b16 %v2813
    %v2888 = vunpack.c.l.b16 %v2814
    %v2889 = vunpack.c.h.b16 %v2814
    %v2890 = vunpack.c.l.b16 %v2815
    %v2891 = vunpack.c.h.b16 %v2815
    %v2892 = vunpack.c.l.b16 %v2816
    %v2893 = vunpack.c.h.b16 %v2816
    %v2894 = vunpack.c.l.b16 %v2817
    %v2895 = vunpack.c.h.b16 %v2817
    %v2896 = vunpack.c.l.b16 %v2818
    %v2897 = vunpack.c.h.b16 %v2818
    %v2898 = vunpack.c.l.b16 %v2819
    %v2899 = vunpack.c.h.b16 %v2819
    %v2900 = vunpack.c.l.b16 %v2820
    %v2901 = vunpack.c.h.b16 %v2820
    %v2902 = vunpack.c.l.b16 %v2821
    %v2903 = vunpack.c.h.b16 %v2821
    %v2904 = vunpack.c.l.b16 %v2822
    %v2905 = vunpack.c.h.b16 %v2822
    %v2906 = vunpack.c.l.b16 %v2823
    %v2907 = vunpack.c.h.b16 %v2823
    %v2908 = vunpack.c.l.b16 %v2824
    %v2909 = vunpack.c.h.b16 %v2824
    %v2910 = vunpack.c.l.b16 %v2825
    %v2911 = vunpack.c.h.b16 %v2825
    %v2912 = vunpack.c.l.b16 %v2826
    %v2913 = vunpack.c.h.b16 %v2826
    %v2914 = vunpack.c.l.b16 %v2827
    %v2915 = vunpack.c.h.b16 %v2827
    %v2916 = vunpack.c.l.b16 %v2828
    %v2917 = vunpack.c.h.b16 %v2828
    %v2918 = vunpack.c.l.b16 %v2829
    %v2919 = vunpack.c.h.b16 %v2829
    %v2920 = vunpack.c.l.b16 %v2830
    %v2921 = vunpack.c.h.b16 %v2830
    %v2922 = vunpack.c.l.b16 %v2831
    %v2923 = vunpack.c.h.b16 %v2831
    %v2924 = vunpack.c.l.b16 %v2832
    %v2925 = vunpack.c.h.b16 %v2832
    %v2926 = vunpack.c.l.b16 %v2833
    %v2927 = vunpack.c.h.b16 %v2833
    %v2928 = vunpack.c.l.b16 %v2834
    %v2929 = vunpack.c.h.b16 %v2834
    %v2930 = vunpack.c.l.b16 %v2835
    %v2931 = vunpack.c.h.b16 %v2835
    %v2932 = vpack.c.b16 %v2872, %v2868
    %v2933 = vpack.c.b16 %v2873, %v2869
    %v2934 = vpack.c.b16 %v2874, %v2870
    %v2935 = vpack.c.b16 %v2875, %v2871
    %v2936 = vpack.c.b16 %v2880, %v2876
    %v2937 = vpack.c.b16 %v2881, %v2877
    %v2938 = vpack.c.b16 %v2882, %v2878
    %v2939 = vpack.c.b16 %v2883, %v2879
    %v2940 = vpack.c.b16 %v2888, %v2884
    %v2941 = vpack.c.b16 %v2889, %v2885
    %v2942 = vpack.c.b16 %v2890, %v2886
    %v2943 = vpack.c.b16 %v2891, %v2887
    %v2944 = vpack.c.b16 %v2896, %v2892
    %v2945 = vpack.c.b16 %v2897, %v2893
    %v2946 = vpack.c.b16 %v2898, %v2894
    %v2947 = vpack.c.b16 %v2899, %v2895
    %v2948 = vpack.c.b16 %v2904, %v2900
    %v2949 = vpack.c.b16 %v2905, %v2901
    %v2950 = vpack.c.b16 %v2906, %v2902
    %v2951 = vpack.c.b16 %v2907, %v2903
    %v2952 = vpack.c.b16 %v2912, %v2908
    %v2953 = vpack.c.b16 %v2913, %v2909
    %v2954 = vpack.c.b16 %v2914, %v2910
    %v2955 = vpack.c.b16 %v2915, %v2911
    %v2956 = vpack.c.b16 %v2920, %v2916
    %v2957 = vpack.c.b16 %v2921, %v2917
    %v2958 = vpack.c.b16 %v2922, %v2918
    %v2959 = vpack.c.b16 %v2923, %v2919
    %v2960 = vpack.c.b16 %v2928, %v2924
    %v2961 = vpack.c.b16 %v2929, %v2925
    %v2962 = vpack.c.b16 %v2930, %v2926
    %v2963 = vpack.c.b16 %v2931, %v2927
    %2996 = vmatprep.subr.bf16.mxu0 %v2961
    %2997 = vmatpush1.bf16.msra.mxu0 %v2960
    %2998 = vmatprep.subr.bf16.mxu0 %v2957
    %2999 = vmatpush1.bf16.msra.mxu0 %v2956
    %3000 = vmatprep.subr.bf16.mxu0 %v2953
    %3001 = vmatpush1.bf16.msra.mxu0 %v2952
    %3002 = vmatprep.subr.bf16.mxu0 %v2949
    %3003 = vmatpush1.bf16.msra.mxu0 %v2948
    %3004 = vmatprep.subr.bf16.mxu0 %v2945
    %3005 = vmatpush1.bf16.msra.mxu0 %v2944
    %3006 = vmatprep.subr.bf16.mxu0 %v2941
    %3007 = vmatpush1.bf16.msra.mxu0 %v2940
    %3008 = vmatprep.subr.bf16.mxu0 %v2937
    %3009 = vmatpush1.bf16.msra.mxu0 %v2936
    %3010 = vmatprep.subr.bf16.mxu0 %v2933
    %3011 = vmatpush1.bf16.msra.mxu0 %v2932
    %3012 = vmatprep.subr.bf16.mxu0 0
    %3013 = vmatpush2.bf16.msra.mxu0 0
    %3014 = vmatprep.subr.bf16.mxu0 0
    %3015 = vmatpush2.bf16.msra.mxu0 0
    %3016 = vmatprep.subr.bf16.mxu0 0
    %3017 = vmatpush2.bf16.msra.mxu0 0
    %3018 = vmatprep.subr.bf16.mxu0 0
    %3019 = vmatpush2.bf16.msra.mxu0 0
    %3020 = vmatprep.subr.bf16.mxu0 0
    %3021 = vmatpush2.bf16.msra.mxu0 0
    %3022 = vmatprep.subr.bf16.mxu0 0
    %3023 = vmatpush2.bf16.msra.mxu0 0
    %3024 = vmatprep.subr.bf16.mxu0 0
    %3025 = vmatpush2.bf16.msra.mxu0 0
    %3026 = vmatprep.subr.bf16.mxu0 0
    %3027 = vmatpush2.bf16.msra.mxu0 0
    %3028 = vmatprep.mubr.bf16.mxu0 0
    %3029 = vmatmul.mubr.bf16.gmra.mxu0 %v2803
    %v3030 = vpop.f32.mrf.mxu0
    %v3031 = vadd.f32 0.0, %v3030
    %v3032 = vpop.f32.mrf.mxu0
    %v3033 = vadd.f32 0.0, %v3032
    %v3034 = vpop.f32.mrf.mxu0
    %v3035 = vpop.f32.mrf.mxu0
    %3036 = vdwg.mxu0
    %3037 = vmatprep.subr.bf16.mxu0 %v2963
    %3038 = vmatpush1.bf16.msra.mxu0 %v2962
    %3039 = vmatprep.subr.bf16.mxu0 %v2959
    %3040 = vmatpush1.bf16.msra.mxu0 %v2958
    %3041 = vmatprep.subr.bf16.mxu0 %v2955
    %3042 = vmatpush1.bf16.msra.mxu0 %v2954
    %3043 = vmatprep.subr.bf16.mxu0 %v2951
    %3044 = vmatpush1.bf16.msra.mxu0 %v2950
    %3045 = vmatprep.subr.bf16.mxu0 %v2947
    %3046 = vmatpush1.bf16.msra.mxu0 %v2946
    %3047 = vmatprep.subr.bf16.mxu0 %v2943
    %3048 = vmatpush1.bf16.msra.mxu0 %v2942
    %3049 = vmatprep.subr.bf16.mxu0 %v2939
    %3050 = vmatpush1.bf16.msra.mxu0 %v2938
    %3051 = vmatprep.subr.bf16.mxu0 %v2935
    %3052 = vmatpush1.bf16.msra.mxu0 %v2934
    %3053 = vmatprep.subr.bf16.mxu0 0
    %3054 = vmatpush2.bf16.msra.mxu0 0
    %3055 = vmatprep.subr.bf16.mxu0 0
    %3056 = vmatpush2.bf16.msra.mxu0 0
    %3057 = vmatprep.subr.bf16.mxu0 0
    %3058 = vmatpush2.bf16.msra.mxu0 0
    %3059 = vmatprep.subr.bf16.mxu0 0
    %3060 = vmatpush2.bf16.msra.mxu0 0
    %3061 = vmatprep.subr.bf16.mxu0 0
    %3062 = vmatpush2.bf16.msra.mxu0 0
    %3063 = vmatprep.subr.bf16.mxu0 0
    %3064 = vmatpush2.bf16.msra.mxu0 0
    %3065 = vmatprep.subr.bf16.mxu0 0
    %3066 = vmatpush2.bf16.msra.mxu0 0
    %3067 = vmatprep.subr.bf16.mxu0 0
    %3068 = vmatpush2.bf16.msra.mxu0 0
    %3069 = vmatprep.mubr.bf16.mxu0 0
    %3070 = vmatmul.mubr.bf16.gmra.mxu0 %v2803
    %v3071 = vpop.f32.mrf.mxu0
    %v3072 = vadd.f32 0.0, %v3071
    %v3073 = vpop.f32.mrf.mxu0
    %v3074 = vadd.f32 0.0, %v3073
    %v3075 = vpop.f32.mrf.mxu0
    %v3076 = vpop.f32.mrf.mxu0
    %3077 = vdwg.mxu0
    %v3078 = vadd.f32 %v2798, %v3031
    %v3079 = vadd.f32 %v2799, %v3033
    %v3080 = vadd.f32 %v2800, %v3072
    %v3081 = vadd.f32 %v2801, %v3074
    %v3082 = vxor.u32 %v3078, 2147483648
    %v3083 = vxor.u32 %v3079, 2147483648
    %v3084 = vxor.u32 %v3080, 2147483648
    %v3085 = vmul.f32 %v3082, 1.442695
    %v3086 = vpow.pop %v3085
    %v3087 = vmul.f32 %v3083, 1.442695
    %v3088 = vpow.pop %v3087
    %v3089 = vmul.f32 %v3084, 1.442695
    %v3090 = vpow.pop %v3089
    %v3091 = vadd.f32 %v3086, 1.0
    %v3092 = vadd.f32 %v3088, 1.0
    %v3093 = vadd.f32 %v3090, 1.0
    %v3094 = vrcp.pop %v3091
    %v3095 = vmul.f32 1.0, %v3094
    %v3096 = vrcp.pop %v3092
    %v3097 = vmul.f32 1.0, %v3096
    %v3098 = vrcp.pop %v3093
    %v3099 = vmul.f32 1.0, %v3098
    %v3100 = vtanh.pop %v3081
    %v3101 = vld [vmem:[#allocation4] sm:$0xff]
    %v3102 = vmul.f32 %v3097, %v3101
    %v3103 = vmul.f32 %v3095, %v3100
    %v3104 = vadd.f32 %v3102, %v3103
    %v3105 = vtanh.pop %v3104
    %v3106 = vmul.f32 %v3099, %v3105
    %3107 = vst [vmem:[#allocation4] sm:$0xff] %v3104
    %3108 = vst [vmem:[#allocation3] sm:$0xff] %v3106
    %v3109 = vld [vmem:[#allocation3] sm:$0xff]
    %v3110 = vld [vmem:[#allocation3 + $0x8] sm:$0xff]
    %v3111 = vpack.c.bf16 %v3109, %v3109
    %v3112 = vpack.c.bf16 %v3110, %v3110
    %v3113 = vld [vmem:[%s4] sm:$0xff]
    %v3114 = vld [vmem:[%s4 + $0x8] sm:$0xff]
    %v3115 = vld [vmem:[%s4 + $0x10] sm:$0xff]
    %v3116 = vld [vmem:[%s4 + $0x18] sm:$0xff]
    %v3117 = vld [vmem:[%s4 + $0x20] sm:$0xff]
    %v3118 = vld [vmem:[%s4 + $0x28] sm:$0xff]
    %v3119 = vld [vmem:[%s4 + $0x30] sm:$0xff]
    %v3120 = vld [vmem:[%s4 + $0x38] sm:$0xff]
    %v3121 = vld [vmem:[%s4 + $0x40] sm:$0xff]
    %v3122 = vld [vmem:[%s4 + $0x48] sm:$0xff]
    %v3123 = vld [vmem:[%s4 + $0x50] sm:$0xff]
    %v3124 = vld [vmem:[%s4 + $0x58] sm:$0xff]
    %v3125 = vld [vmem:[%s4 + $0x60] sm:$0xff]
    %v3126 = vld [vmem:[%s4 + $0x68] sm:$0xff]
    %v3127 = vld [vmem:[%s4 + $0x70] sm:$0xff]
    %v3128 = vld [vmem:[%s4 + $0x78] sm:$0xff]
    %v3129 = vld [vmem:[%s4 + $0x80] sm:$0xff]
    %v3130 = vld [vmem:[%s4 + $0x88] sm:$0xff]
    %v3131 = vld [vmem:[%s4 + $0x90] sm:$0xff]
    %v3132 = vld [vmem:[%s4 + $0x98] sm:$0xff]
    %v3133 = vld [vmem:[%s4 + $0xa0] sm:$0xff]
    %v3134 = vld [vmem:[%s4 + $0xa8] sm:$0xff]
    %v3135 = vld [vmem:[%s4 + $0xb0] sm:$0xff]
    %v3136 = vld [vmem:[%s4 + $0xb8] sm:$0xff]
    %v3137 = vld [vmem:[%s4 + $0xc0] sm:$0xff]
    %v3138 = vld [vmem:[%s4 + $0xc8] sm:$0xff]
    %v3139 = vld [vmem:[%s4 + $0xd0] sm:$0xff]
    %v3140 = vld [vmem:[%s4 + $0xd8] sm:$0xff]
    %v3141 = vld [vmem:[%s4 + $0xe0] sm:$0xff]
    %v3142 = vld [vmem:[%s4 + $0xe8] sm:$0xff]
    %v3143 = vld [vmem:[%s4 + $0xf0] sm:$0xff]
    %v3144 = vld [vmem:[%s4 + $0xf8] sm:$0xff]
    %v3145 = vld [vmem:[%s4 + $0x100] sm:$0xff]
    %v3146 = vld [vmem:[%s4 + $0x108] sm:$0xff]
    %v3147 = vld [vmem:[%s4 + $0x110] sm:$0xff]
    %v3148 = vld [vmem:[%s4 + $0x118] sm:$0xff]
    %v3149 = vld [vmem:[%s4 + $0x120] sm:$0xff]
    %v3150 = vld [vmem:[%s4 + $0x128] sm:$0xff]
    %v3151 = vld [vmem:[%s4 + $0x130] sm:$0xff]
    %v3152 = vld [vmem:[%s4 + $0x138] sm:$0xff]
    %v3153 = vld [vmem:[%s4 + $0x140] sm:$0xff]
    %v3154 = vld [vmem:[%s4 + $0x148] sm:$0xff]
    %v3155 = vld [vmem:[%s4 + $0x150] sm:$0xff]
    %v3156 = vld [vmem:[%s4 + $0x158] sm:$0xff]
    %v3157 = vld [vmem:[%s4 + $0x160] sm:$0xff]
    %v3158 = vld [vmem:[%s4 + $0x168] sm:$0xff]
    %v3159 = vld [vmem:[%s4 + $0x170] sm:$0xff]
    %v3160 = vld [vmem:[%s4 + $0x178] sm:$0xff]
    %v3161 = vld [vmem:[%s4 + $0x180] sm:$0xff]
    %v3162 = vld [vmem:[%s4 + $0x188] sm:$0xff]
    %v3163 = vld [vmem:[%s4 + $0x190] sm:$0xff]
    %v3164 = vld [vmem:[%s4 + $0x198] sm:$0xff]
    %v3165 = vld [vmem:[%s4 + $0x1a0] sm:$0xff]
    %v3166 = vld [vmem:[%s4 + $0x1a8] sm:$0xff]
    %v3167 = vld [vmem:[%s4 + $0x1b0] sm:$0xff]
    %v3168 = vld [vmem:[%s4 + $0x1b8] sm:$0xff]
    %v3169 = vld [vmem:[%s4 + $0x1c0] sm:$0xff]
    %v3170 = vld [vmem:[%s4 + $0x1c8] sm:$0xff]
    %v3171 = vld [vmem:[%s4 + $0x1d0] sm:$0xff]
    %v3172 = vld [vmem:[%s4 + $0x1d8] sm:$0xff]
    %v3173 = vld [vmem:[%s4 + $0x1e0] sm:$0xff]
    %v3174 = vld [vmem:[%s4 + $0x1e8] sm:$0xff]
    %v3175 = vld [vmem:[%s4 + $0x1f0] sm:$0xff]
    %v3176 = vld [vmem:[%s4 + $0x1f8] sm:$0xff]
    %v3177 = vld [vmem:[%s5] sm:$0xf]
    %v3179 = vlaneseq
    %v3180 = vshrl.u32 %v3179, 7
    %v3181 = vsub.s32 0, %v3180
    %v3182 = vrot.slane %v3177, %v3181
    %v3183 = vlaneseq
    %v3184 = vshrl.u32 %v3183, 7
    %v3185 = vsub.s32 1, %v3184
    %v3186 = vrot.slane %v3177, %v3185
    %v3187 = vlaneseq
    %v3188 = vshrl.u32 %v3187, 7
    %v3189 = vsub.s32 2, %v3188
    %v3190 = vrot.slane %v3177, %v3189
    %v3191 = vlaneseq
    %v3192 = vshrl.u32 %v3191, 7
    %v3193 = vsub.s32 3, %v3192
    %v3194 = vrot.slane %v3177, %v3193
    %v3263 = vunpack.c.l.b16 %v3113
    %v3264 = vunpack.c.h.b16 %v3113
    %v3265 = vunpack.c.l.b16 %v3114
    %v3266 = vunpack.c.h.b16 %v3114
    %v3267 = vunpack.c.l.b16 %v3115
    %v3268 = vunpack.c.h.b16 %v3115
    %v3269 = vunpack.c.l.b16 %v3116
    %v3270 = vunpack.c.h.b16 %v3116
    %v3271 = vunpack.c.l.b16 %v3117
    %v3272 = vunpack.c.h.b16 %v3117
    %v3273 = vunpack.c.l.b16 %v3118
    %v3274 = vunpack.c.h.b16 %v3118
    %v3275 = vunpack.c.l.b16 %v3119
    %v3276 = vunpack.c.h.b16 %v3119
    %v3277 = vunpack.c.l.b16 %v3120
    %v3278 = vunpack.c.h.b16 %v3120
    %v3279 = vunpack.c.l.b16 %v3121
    %v3280 = vunpack.c.h.b16 %v3121
    %v3281 = vunpack.c.l.b16 %v3122
    %v3282 = vunpack.c.h.b16 %v3122
    %v3283 = vunpack.c.l.b16 %v3123
    %v3284 = vunpack.c.h.b16 %v3123
    %v3285 = vunpack.c.l.b16 %v3124
    %v3286 = vunpack.c.h.b16 %v3124
    %v3287 = vunpack.c.l.b16 %v3125
    %v3288 = vunpack.c.h.b16 %v3125
    %v3289 = vunpack.c.l.b16 %v3126
    %v3290 = vunpack.c.h.b16 %v3126
    %v3291 = vunpack.c.l.b16 %v3127
    %v3292 = vunpack.c.h.b16 %v3127
    %v3293 = vunpack.c.l.b16 %v3128
    %v3294 = vunpack.c.h.b16 %v3128
    %v3295 = vunpack.c.l.b16 %v3129
    %v3296 = vunpack.c.h.b16 %v3129
    %v3297 = vunpack.c.l.b16 %v3130
    %v3298 = vunpack.c.h.b16 %v3130
    %v3299 = vunpack.c.l.b16 %v3131
    %v3300 = vunpack.c.h.b16 %v3131
    %v3301 = vunpack.c.l.b16 %v3132
    %v3302 = vunpack.c.h.b16 %v3132
    %v3303 = vunpack.c.l.b16 %v3133
    %v3304 = vunpack.c.h.b16 %v3133
    %v3305 = vunpack.c.l.b16 %v3134
    %v3306 = vunpack.c.h.b16 %v3134
    %v3307 = vunpack.c.l.b16 %v3135
    %v3308 = vunpack.c.h.b16 %v3135
    %v3309 = vunpack.c.l.b16 %v3136
    %v3310 = vunpack.c.h.b16 %v3136
    %v3311 = vunpack.c.l.b16 %v3137
    %v3312 = vunpack.c.h.b16 %v3137
    %v3313 = vunpack.c.l.b16 %v3138
    %v3314 = vunpack.c.h.b16 %v3138
    %v3315 = vunpack.c.l.b16 %v3139
    %v3316 = vunpack.c.h.b16 %v3139
    %v3317 = vunpack.c.l.b16 %v3140
    %v3318 = vunpack.c.h.b16 %v3140
    %v3319 = vunpack.c.l.b16 %v3141
    %v3320 = vunpack.c.h.b16 %v3141
    %v3321 = vunpack.c.l.b16 %v3142
    %v3322 = vunpack.c.h.b16 %v3142
    %v3323 = vunpack.c.l.b16 %v3143
    %v3324 = vunpack.c.h.b16 %v3143
    %v3325 = vunpack.c.l.b16 %v3144
    %v3326 = vunpack.c.h.b16 %v3144
    %v3327 = vunpack.c.l.b16 %v3145
    %v3328 = vunpack.c.h.b16 %v3145
    %v3329 = vunpack.c.l.b16 %v3146
    %v3330 = vunpack.c.h.b16 %v3146
    %v3331 = vunpack.c.l.b16 %v3147
    %v3332 = vunpack.c.h.b16 %v3147
    %v3333 = vunpack.c.l.b16 %v3148
    %v3334 = vunpack.c.h.b16 %v3148
    %v3335 = vunpack.c.l.b16 %v3149
    %v3336 = vunpack.c.h.b16 %v3149
    %v3337 = vunpack.c.l.b16 %v3150
    %v3338 = vunpack.c.h.b16 %v3150
    %v3339 = vunpack.c.l.b16 %v3151
    %v3340 = vunpack.c.h.b16 %v3151
    %v3341 = vunpack.c.l.b16 %v3152
    %v3342 = vunpack.c.h.b16 %v3152
    %v3343 = vunpack.c.l.b16 %v3153
    %v3344 = vunpack.c.h.b16 %v3153
    %v3345 = vunpack.c.l.b16 %v3154
    %v3346 = vunpack.c.h.b16 %v3154
    %v3347 = vunpack.c.l.b16 %v3155
    %v3348 = vunpack.c.h.b16 %v3155
    %v3349 = vunpack.c.l.b16 %v3156
    %v3350 = vunpack.c.h.b16 %v3156
    %v3351 = vunpack.c.l.b16 %v3157
    %v3352 = vunpack.c.h.b16 %v3157
    %v3353 = vunpack.c.l.b16 %v3158
    %v3354 = vunpack.c.h.b16 %v3158
    %v3355 = vunpack.c.l.b16 %v3159
    %v3356 = vunpack.c.h.b16 %v3159
    %v3357 = vunpack.c.l.b16 %v3160
    %v3358 = vunpack.c.h.b16 %v3160
    %v3359 = vunpack.c.l.b16 %v3161
    %v3360 = vunpack.c.h.b16 %v3161
    %v3361 = vunpack.c.l.b16 %v3162
    %v3362 = vunpack.c.h.b16 %v3162
    %v3363 = vunpack.c.l.b16 %v3163
    %v3364 = vunpack.c.h.b16 %v3163
    %v3365 = vunpack.c.l.b16 %v3164
    %v3366 = vunpack.c.h.b16 %v3164
    %v3367 = vunpack.c.l.b16 %v3165
    %v3368 = vunpack.c.h.b16 %v3165
    %v3369 = vunpack.c.l.b16 %v3166
    %v3370 = vunpack.c.h.b16 %v3166
    %v3371 = vunpack.c.l.b16 %v3167
    %v3372 = vunpack.c.h.b16 %v3167
    %v3373 = vunpack.c.l.b16 %v3168
    %v3374 = vunpack.c.h.b16 %v3168
    %v3375 = vunpack.c.l.b16 %v3169
    %v3376 = vunpack.c.h.b16 %v3169
    %v3377 = vunpack.c.l.b16 %v3170
    %v3378 = vunpack.c.h.b16 %v3170
    %v3379 = vunpack.c.l.b16 %v3171
    %v3380 = vunpack.c.h.b16 %v3171
    %v3381 = vunpack.c.l.b16 %v3172
    %v3382 = vunpack.c.h.b16 %v3172
    %v3383 = vunpack.c.l.b16 %v3173
    %v3384 = vunpack.c.h.b16 %v3173
    %v3385 = vunpack.c.l.b16 %v3174
    %v3386 = vunpack.c.h.b16 %v3174
    %v3387 = vunpack.c.l.b16 %v3175
    %v3388 = vunpack.c.h.b16 %v3175
    %v3389 = vunpack.c.l.b16 %v3176
    %v3390 = vunpack.c.h.b16 %v3176
    %v3391 = vpack.c.b16 %v3267, %v3263
    %v3392 = vpack.c.b16 %v3268, %v3264
    %v3393 = vpack.c.b16 %v3269, %v3265
    %v3394 = vpack.c.b16 %v3270, %v3266
    %v3395 = vpack.c.b16 %v3275, %v3271
    %v3396 = vpack.c.b16 %v3276, %v3272
    %v3397 = vpack.c.b16 %v3277, %v3273
    %v3398 = vpack.c.b16 %v3278, %v3274
    %v3399 = vpack.c.b16 %v3283, %v3279
    %v3400 = vpack.c.b16 %v3284, %v3280
    %v3401 = vpack.c.b16 %v3285, %v3281
    %v3402 = vpack.c.b16 %v3286, %v3282
    %v3403 = vpack.c.b16 %v3291, %v3287
    %v3404 = vpack.c.b16 %v3292, %v3288
    %v3405 = vpack.c.b16 %v3293, %v3289
    %v3406 = vpack.c.b16 %v3294, %v3290
    %v3407 = vpack.c.b16 %v3299, %v3295
    %v3408 = vpack.c.b16 %v3300, %v3296
    %v3409 = vpack.c.b16 %v3301, %v3297
    %v3410 = vpack.c.b16 %v3302, %v3298
    %v3411 = vpack.c.b16 %v3307, %v3303
    %v3412 = vpack.c.b16 %v3308, %v3304
    %v3413 = vpack.c.b16 %v3309, %v3305
    %v3414 = vpack.c.b16 %v3310, %v3306
    %v3415 = vpack.c.b16 %v3315, %v3311
    %v3416 = vpack.c.b16 %v3316, %v3312
    %v3417 = vpack.c.b16 %v3317, %v3313
    %v3418 = vpack.c.b16 %v3318, %v3314
    %v3419 = vpack.c.b16 %v3323, %v3319
    %v3420 = vpack.c.b16 %v3324, %v3320
    %v3421 = vpack.c.b16 %v3325, %v3321
    %v3422 = vpack.c.b16 %v3326, %v3322
    %v3423 = vpack.c.b16 %v3331, %v3327
    %v3424 = vpack.c.b16 %v3332, %v3328
    %v3425 = vpack.c.b16 %v3333, %v3329
    %v3426 = vpack.c.b16 %v3334, %v3330
    %v3427 = vpack.c.b16 %v3339, %v3335
    %v3428 = vpack.c.b16 %v3340, %v3336
    %v3429 = vpack.c.b16 %v3341, %v3337
    %v3430 = vpack.c.b16 %v3342, %v3338
    %v3431 = vpack.c.b16 %v3347, %v3343
    %v3432 = vpack.c.b16 %v3348, %v3344
    %v3433 = vpack.c.b16 %v3349, %v3345
    %v3434 = vpack.c.b16 %v3350, %v3346
    %v3435 = vpack.c.b16 %v3355, %v3351
    %v3436 = vpack.c.b16 %v3356, %v3352
    %v3437 = vpack.c.b16 %v3357, %v3353
    %v3438 = vpack.c.b16 %v3358, %v3354
    %v3439 = vpack.c.b16 %v3363, %v3359
    %v3440 = vpack.c.b16 %v3364, %v3360
    %v3441 = vpack.c.b16 %v3365, %v3361
    %v3442 = vpack.c.b16 %v3366, %v3362
    %v3443 = vpack.c.b16 %v3371, %v3367
    %v3444 = vpack.c.b16 %v3372, %v3368
    %v3445 = vpack.c.b16 %v3373, %v3369
    %v3446 = vpack.c.b16 %v3374, %v3370
    %v3447 = vpack.c.b16 %v3379, %v3375
    %v3448 = vpack.c.b16 %v3380, %v3376
    %v3449 = vpack.c.b16 %v3381, %v3377
    %v3450 = vpack.c.b16 %v3382, %v3378
    %v3451 = vpack.c.b16 %v3387, %v3383
    %v3452 = vpack.c.b16 %v3388, %v3384
    %v3453 = vpack.c.b16 %v3389, %v3385
    %v3454 = vpack.c.b16 %v3390, %v3386
    %3519 = vmatprep.subr.bf16.mxu0 %v3420
    %3520 = vmatpush1.bf16.msra.mxu0 %v3419
    %3521 = vmatprep.subr.bf16.mxu0 %v3416
    %3522 = vmatpush1.bf16.msra.mxu0 %v3415
    %3523 = vmatprep.subr.bf16.mxu0 %v3412
    %3524 = vmatpush1.bf16.msra.mxu0 %v3411
    %3525 = vmatprep.subr.bf16.mxu0 %v3408
    %3526 = vmatpush1.bf16.msra.mxu0 %v3407
    %3527 = vmatprep.subr.bf16.mxu0 %v3404
    %3528 = vmatpush1.bf16.msra.mxu0 %v3403
    %3529 = vmatprep.subr.bf16.mxu0 %v3400
    %3530 = vmatpush1.bf16.msra.mxu0 %v3399
    %3531 = vmatprep.subr.bf16.mxu0 %v3396
    %3532 = vmatpush1.bf16.msra.mxu0 %v3395
    %3533 = vmatprep.subr.bf16.mxu0 %v3392
    %3534 = vmatpush1.bf16.msra.mxu0 %v3391
    %3535 = vmatprep.subr.bf16.mxu0 %v3452
    %3536 = vmatpush2.bf16.msra.mxu0 %v3451
    %3537 = vmatprep.subr.bf16.mxu0 %v3448
    %3538 = vmatpush2.bf16.msra.mxu0 %v3447
    %3539 = vmatprep.subr.bf16.mxu0 %v3444
    %3540 = vmatpush2.bf16.msra.mxu0 %v3443
    %3541 = vmatprep.subr.bf16.mxu0 %v3440
    %3542 = vmatpush2.bf16.msra.mxu0 %v3439
    %3543 = vmatprep.subr.bf16.mxu0 %v3436
    %3544 = vmatpush2.bf16.msra.mxu0 %v3435
    %3545 = vmatprep.subr.bf16.mxu0 %v3432
    %3546 = vmatpush2.bf16.msra.mxu0 %v3431
    %3547 = vmatprep.subr.bf16.mxu0 %v3428
    %3548 = vmatpush2.bf16.msra.mxu0 %v3427
    %3549 = vmatprep.subr.bf16.mxu0 %v3424
    %3550 = vmatpush2.bf16.msra.mxu0 %v3423
    %3551 = vmatprep.mubr.bf16.mxu0 %v3112
    %3552 = vmatmul.mubr.bf16.gmra.mxu0 %v3111
    %v3553 = vpop.f32.mrf.mxu0
    %v3554 = vadd.f32 %v3182, %v3553
    %v3555 = vpop.f32.mrf.mxu0
    %v3556 = vadd.f32 %v3186, %v3555
    %v3557 = vpop.f32.mrf.mxu0
    %v3558 = vpop.f32.mrf.mxu0
    %3559 = vdwg.mxu0
    %3560 = vmatprep.subr.bf16.mxu0 %v3422
    %3561 = vmatpush1.bf16.msra.mxu0 %v3421
    %3562 = vmatprep.subr.bf16.mxu0 %v3418
    %3563 = vmatpush1.bf16.msra.mxu0 %v3417
    %3564 = vmatprep.subr.bf16.mxu0 %v3414
    %3565 = vmatpush1.bf16.msra.mxu0 %v3413
    %3566 = vmatprep.subr.bf16.mxu0 %v3410
    %3567 = vmatpush1.bf16.msra.mxu0 %v3409
    %3568 = vmatprep.subr.bf16.mxu0 %v3406
    %3569 = vmatpush1.bf16.msra.mxu0 %v3405
    %3570 = vmatprep.subr.bf16.mxu0 %v3402
    %3571 = vmatpush1.bf16.msra.mxu0 %v3401
    %3572 = vmatprep.subr.bf16.mxu0 %v3398
    %3573 = vmatpush1.bf16.msra.mxu0 %v3397
    %3574 = vmatprep.subr.bf16.mxu0 %v3394
    %3575 = vmatpush1.bf16.msra.mxu0 %v3393
    %3576 = vmatprep.subr.bf16.mxu0 %v3454
    %3577 = vmatpush2.bf16.msra.mxu0 %v3453
    %3578 = vmatprep.subr.bf16.mxu0 %v3450
    %3579 = vmatpush2.bf16.msra.mxu0 %v3449
    %3580 = vmatprep.subr.bf16.mxu0 %v3446
    %3581 = vmatpush2.bf16.msra.mxu0 %v3445
    %3582 = vmatprep.subr.bf16.mxu0 %v3442
    %3583 = vmatpush2.bf16.msra.mxu0 %v3441
    %3584 = vmatprep.subr.bf16.mxu0 %v3438
    %3585 = vmatpush2.bf16.msra.mxu0 %v3437
    %3586 = vmatprep.subr.bf16.mxu0 %v3434
    %3587 = vmatpush2.bf16.msra.mxu0 %v3433
    %3588 = vmatprep.subr.bf16.mxu0 %v3430
    %3589 = vmatpush2.bf16.msra.mxu0 %v3429
    %3590 = vmatprep.subr.bf16.mxu0 %v3426
    %3591 = vmatpush2.bf16.msra.mxu0 %v3425
    %3592 = vmatprep.mubr.bf16.mxu0 %v3112
    %3593 = vmatmul.mubr.bf16.gmra.mxu0 %v3111
    %v3594 = vpop.f32.mrf.mxu0
    %v3595 = vadd.f32 %v3190, %v3594
    %v3596 = vpop.f32.mrf.mxu0
    %v3597 = vadd.f32 %v3194, %v3596
    %v3598 = vpop.f32.mrf.mxu0
    %v3599 = vpop.f32.mrf.mxu0
    %3600 = vdwg.mxu0
    %v3601 = vxor.u32 %v3554, 2147483648
    %v3602 = vxor.u32 %v3556, 2147483648
    %v3603 = vxor.u32 %v3595, 2147483648
    %v3604 = vmul.f32 %v3601, 1.442695
    %v3605 = vpow.pop %v3604
    %v3606 = vmul.f32 %v3602, 1.442695
    %v3607 = vpow.pop %v3606
    %v3608 = vmul.f32 %v3603, 1.442695
    %v3609 = vpow.pop %v3608
    %v3610 = vadd.f32 %v3605, 1.0
    %v3611 = vadd.f32 %v3607, 1.0
    %v3612 = vadd.f32 %v3609, 1.0
    %v3613 = vrcp.pop %v3610
    %v3614 = vmul.f32 1.0, %v3613
    %v3615 = vrcp.pop %v3611
    %v3616 = vmul.f32 1.0, %v3615
    %v3617 = vrcp.pop %v3612
    %v3618 = vmul.f32 1.0, %v3617
    %v3619 = vtanh.pop %v3597
    %v3620 = vld [vmem:[#allocation4 + $0x8] sm:$0xff]
    %v3621 = vmul.f32 %v3616, %v3620
    %v3622 = vmul.f32 %v3614, %v3619
    %v3623 = vadd.f32 %v3621, %v3622
    %v3624 = vtanh.pop %v3623
    %v3625 = vmul.f32 %v3618, %v3624
    %3626 = vst [vmem:[#allocation4 + $0x8] sm:$0xff] %v3623
    %3627 = vst [vmem:[#allocation3 + $0x8] sm:$0xff] %v3625
    %v3628 = vld [vmem:[#allocation2 + $0x80] sm:$0xff]
    %v3629 = vld [vmem:[#allocation2 + $0x88] sm:$0xff]
    %v3630 = vld [vmem:[#allocation2 + $0x90] sm:$0xff]
    %v3631 = vld [vmem:[#allocation2 + $0x98] sm:$0xff]
    %v3632 = vld [vmem:[#allocation3] sm:$0xff]
    %v3633 = vpack.c.bf16 %v3632, %v3632
    %v3634 = vld [vmem:[%s2] sm:$0xff]
    %v3635 = vld [vmem:[%s2 + $0x8] sm:$0xff]
    %v3636 = vld [vmem:[%s2 + $0x10] sm:$0xff]
    %v3637 = vld [vmem:[%s2 + $0x18] sm:$0xff]
    %v3638 = vld [vmem:[%s2 + $0x20] sm:$0xff]
    %v3639 = vld [vmem:[%s2 + $0x28] sm:$0xff]
    %v3640 = vld [vmem:[%s2 + $0x30] sm:$0xff]
    %v3641 = vld [vmem:[%s2 + $0x38] sm:$0xff]
    %v3642 = vld [vmem:[%s2 + $0x40] sm:$0xff]
    %v3643 = vld [vmem:[%s2 + $0x48] sm:$0xff]
    %v3644 = vld [vmem:[%s2 + $0x50] sm:$0xff]
    %v3645 = vld [vmem:[%s2 + $0x58] sm:$0xff]
    %v3646 = vld [vmem:[%s2 + $0x60] sm:$0xff]
    %v3647 = vld [vmem:[%s2 + $0x68] sm:$0xff]
    %v3648 = vld [vmem:[%s2 + $0x70] sm:$0xff]
    %v3649 = vld [vmem:[%s2 + $0x78] sm:$0xff]
    %v3650 = vld [vmem:[%s2 + $0x80] sm:$0xff]
    %v3651 = vld [vmem:[%s2 + $0x88] sm:$0xff]
    %v3652 = vld [vmem:[%s2 + $0x90] sm:$0xff]
    %v3653 = vld [vmem:[%s2 + $0x98] sm:$0xff]
    %v3654 = vld [vmem:[%s2 + $0xa0] sm:$0xff]
    %v3655 = vld [vmem:[%s2 + $0xa8] sm:$0xff]
    %v3656 = vld [vmem:[%s2 + $0xb0] sm:$0xff]
    %v3657 = vld [vmem:[%s2 + $0xb8] sm:$0xff]
    %v3658 = vld [vmem:[%s2 + $0xc0] sm:$0xff]
    %v3659 = vld [vmem:[%s2 + $0xc8] sm:$0xff]
    %v3660 = vld [vmem:[%s2 + $0xd0] sm:$0xff]
    %v3661 = vld [vmem:[%s2 + $0xd8] sm:$0xff]
    %v3662 = vld [vmem:[%s2 + $0xe0] sm:$0xff]
    %v3663 = vld [vmem:[%s2 + $0xe8] sm:$0xff]
    %v3664 = vld [vmem:[%s2 + $0xf0] sm:$0xff]
    %v3665 = vld [vmem:[%s2 + $0xf8] sm:$0xff]
    %v3698 = vunpack.c.l.b16 %v3634
    %v3699 = vunpack.c.h.b16 %v3634
    %v3700 = vunpack.c.l.b16 %v3635
    %v3701 = vunpack.c.h.b16 %v3635
    %v3702 = vunpack.c.l.b16 %v3636
    %v3703 = vunpack.c.h.b16 %v3636
    %v3704 = vunpack.c.l.b16 %v3637
    %v3705 = vunpack.c.h.b16 %v3637
    %v3706 = vunpack.c.l.b16 %v3638
    %v3707 = vunpack.c.h.b16 %v3638
    %v3708 = vunpack.c.l.b16 %v3639
    %v3709 = vunpack.c.h.b16 %v3639
    %v3710 = vunpack.c.l.b16 %v3640
    %v3711 = vunpack.c.h.b16 %v3640
    %v3712 = vunpack.c.l.b16 %v3641
    %v3713 = vunpack.c.h.b16 %v3641
    %v3714 = vunpack.c.l.b16 %v3642
    %v3715 = vunpack.c.h.b16 %v3642
    %v3716 = vunpack.c.l.b16 %v3643
    %v3717 = vunpack.c.h.b16 %v3643
    %v3718 = vunpack.c.l.b16 %v3644
    %v3719 = vunpack.c.h.b16 %v3644
    %v3720 = vunpack.c.l.b16 %v3645
    %v3721 = vunpack.c.h.b16 %v3645
    %v3722 = vunpack.c.l.b16 %v3646
    %v3723 = vunpack.c.h.b16 %v3646
    %v3724 = vunpack.c.l.b16 %v3647
    %v3725 = vunpack.c.h.b16 %v3647
    %v3726 = vunpack.c.l.b16 %v3648
    %v3727 = vunpack.c.h.b16 %v3648
    %v3728 = vunpack.c.l.b16 %v3649
    %v3729 = vunpack.c.h.b16 %v3649
    %v3730 = vunpack.c.l.b16 %v3650
    %v3731 = vunpack.c.h.b16 %v3650
    %v3732 = vunpack.c.l.b16 %v3651
    %v3733 = vunpack.c.h.b16 %v3651
    %v3734 = vunpack.c.l.b16 %v3652
    %v3735 = vunpack.c.h.b16 %v3652
    %v3736 = vunpack.c.l.b16 %v3653
    %v3737 = vunpack.c.h.b16 %v3653
    %v3738 = vunpack.c.l.b16 %v3654
    %v3739 = vunpack.c.h.b16 %v3654
    %v3740 = vunpack.c.l.b16 %v3655
    %v3741 = vunpack.c.h.b16 %v3655
    %v3742 = vunpack.c.l.b16 %v3656
    %v3743 = vunpack.c.h.b16 %v3656
    %v3744 = vunpack.c.l.b16 %v3657
    %v3745 = vunpack.c.h.b16 %v3657
    %v3746 = vunpack.c.l.b16 %v3658
    %v3747 = vunpack.c.h.b16 %v3658
    %v3748 = vunpack.c.l.b16 %v3659
    %v3749 = vunpack.c.h.b16 %v3659
    %v3750 = vunpack.c.l.b16 %v3660
    %v3751 = vunpack.c.h.b16 %v3660
    %v3752 = vunpack.c.l.b16 %v3661
    %v3753 = vunpack.c.h.b16 %v3661
    %v3754 = vunpack.c.l.b16 %v3662
    %v3755 = vunpack.c.h.b16 %v3662
    %v3756 = vunpack.c.l.b16 %v3663
    %v3757 = vunpack.c.h.b16 %v3663
    %v3758 = vunpack.c.l.b16 %v3664
    %v3759 = vunpack.c.h.b16 %v3664
    %v3760 = vunpack.c.l.b16 %v3665
    %v3761 = vunpack.c.h.b16 %v3665
    %v3762 = vpack.c.b16 %v3702, %v3698
    %v3763 = vpack.c.b16 %v3703, %v3699
    %v3764 = vpack.c.b16 %v3704, %v3700
    %v3765 = vpack.c.b16 %v3705, %v3701
    %v3766 = vpack.c.b16 %v3710, %v3706
    %v3767 = vpack.c.b16 %v3711, %v3707
    %v3768 = vpack.c.b16 %v3712, %v3708
    %v3769 = vpack.c.b16 %v3713, %v3709
    %v3770 = vpack.c.b16 %v3718, %v3714
    %v3771 = vpack.c.b16 %v3719, %v3715
    %v3772 = vpack.c.b16 %v3720, %v3716
    %v3773 = vpack.c.b16 %v3721, %v3717
    %v3774 = vpack.c.b16 %v3726, %v3722
    %v3775 = vpack.c.b16 %v3727, %v3723
    %v3776 = vpack.c.b16 %v3728, %v3724
    %v3777 = vpack.c.b16 %v3729, %v3725
    %v3778 = vpack.c.b16 %v3734, %v3730
    %v3779 = vpack.c.b16 %v3735, %v3731
    %v3780 = vpack.c.b16 %v3736, %v3732
    %v3781 = vpack.c.b16 %v3737, %v3733
    %v3782 = vpack.c.b16 %v3742, %v3738
    %v3783 = vpack.c.b16 %v3743, %v3739
    %v3784 = vpack.c.b16 %v3744, %v3740
    %v3785 = vpack.c.b16 %v3745, %v3741
    %v3786 = vpack.c.b16 %v3750, %v3746
    %v3787 = vpack.c.b16 %v3751, %v3747
    %v3788 = vpack.c.b16 %v3752, %v3748
    %v3789 = vpack.c.b16 %v3753, %v3749
    %v3790 = vpack.c.b16 %v3758, %v3754
    %v3791 = vpack.c.b16 %v3759, %v3755
    %v3792 = vpack.c.b16 %v3760, %v3756
    %v3793 = vpack.c.b16 %v3761, %v3757
    %3826 = vmatprep.subr.bf16.mxu0 %v3791
    %3827 = vmatpush1.bf16.msra.mxu0 %v3790
    %3828 = vmatprep.subr.bf16.mxu0 %v3787
    %3829 = vmatpush1.bf16.msra.mxu0 %v3786
    %3830 = vmatprep.subr.bf16.mxu0 %v3783
    %3831 = vmatpush1.bf16.msra.mxu0 %v3782
    %3832 = vmatprep.subr.bf16.mxu0 %v3779
    %3833 = vmatpush1.bf16.msra.mxu0 %v3778
    %3834 = vmatprep.subr.bf16.mxu0 %v3775
    %3835 = vmatpush1.bf16.msra.mxu0 %v3774
    %3836 = vmatprep.subr.bf16.mxu0 %v3771
    %3837 = vmatpush1.bf16.msra.mxu0 %v3770
    %3838 = vmatprep.subr.bf16.mxu0 %v3767
    %3839 = vmatpush1.bf16.msra.mxu0 %v3766
    %3840 = vmatprep.subr.bf16.mxu0 %v3763
    %3841 = vmatpush1.bf16.msra.mxu0 %v3762
    %3842 = vmatprep.subr.bf16.mxu0 0
    %3843 = vmatpush2.bf16.msra.mxu0 0
    %3844 = vmatprep.subr.bf16.mxu0 0
    %3845 = vmatpush2.bf16.msra.mxu0 0
    %3846 = vmatprep.subr.bf16.mxu0 0
    %3847 = vmatpush2.bf16.msra.mxu0 0
    %3848 = vmatprep.subr.bf16.mxu0 0
    %3849 = vmatpush2.bf16.msra.mxu0 0
    %3850 = vmatprep.subr.bf16.mxu0 0
    %3851 = vmatpush2.bf16.msra.mxu0 0
    %3852 = vmatprep.subr.bf16.mxu0 0
    %3853 = vmatpush2.bf16.msra.mxu0 0
    %3854 = vmatprep.subr.bf16.mxu0 0
    %3855 = vmatpush2.bf16.msra.mxu0 0
    %3856 = vmatprep.subr.bf16.mxu0 0
    %3857 = vmatpush2.bf16.msra.mxu0 0
    %3858 = vmatprep.mubr.bf16.mxu0 0
    %3859 = vmatmul.mubr.bf16.gmra.mxu0 %v3633
    %v3860 = vpop.f32.mrf.mxu0
    %v3861 = vadd.f32 0.0, %v3860
    %v3862 = vpop.f32.mrf.mxu0
    %v3863 = vadd.f32 0.0, %v3862
    %v3864 = vpop.f32.mrf.mxu0
    %v3865 = vpop.f32.mrf.mxu0
    %3866 = vdwg.mxu0
    %3867 = vmatprep.subr.bf16.mxu0 %v3793
    %3868 = vmatpush1.bf16.msra.mxu0 %v3792
    %3869 = vmatprep.subr.bf16.mxu0 %v3789
    %3870 = vmatpush1.bf16.msra.mxu0 %v3788
    %3871 = vmatprep.subr.bf16.mxu0 %v3785
    %3872 = vmatpush1.bf16.msra.mxu0 %v3784
    %3873 = vmatprep.subr.bf16.mxu0 %v3781
    %3874 = vmatpush1.bf16.msra.mxu0 %v3780
    %3875 = vmatprep.subr.bf16.mxu0 %v3777
    %3876 = vmatpush1.bf16.msra.mxu0 %v3776
    %3877 = vmatprep.subr.bf16.mxu0 %v3773
    %3878 = vmatpush1.bf16.msra.mxu0 %v3772
    %3879 = vmatprep.subr.bf16.mxu0 %v3769
    %3880 = vmatpush1.bf16.msra.mxu0 %v3768
    %3881 = vmatprep.subr.bf16.mxu0 %v3765
    %3882 = vmatpush1.bf16.msra.mxu0 %v3764
    %3883 = vmatprep.subr.bf16.mxu0 0
    %3884 = vmatpush2.bf16.msra.mxu0 0
    %3885 = vmatprep.subr.bf16.mxu0 0
    %3886 = vmatpush2.bf16.msra.mxu0 0
    %3887 = vmatprep.subr.bf16.mxu0 0
    %3888 = vmatpush2.bf16.msra.mxu0 0
    %3889 = vmatprep.subr.bf16.mxu0 0
    %3890 = vmatpush2.bf16.msra.mxu0 0
    %3891 = vmatprep.subr.bf16.mxu0 0
    %3892 = vmatpush2.bf16.msra.mxu0 0
    %3893 = vmatprep.subr.bf16.mxu0 0
    %3894 = vmatpush2.bf16.msra.mxu0 0
    %3895 = vmatprep.subr.bf16.mxu0 0
    %3896 = vmatpush2.bf16.msra.mxu0 0
    %3897 = vmatprep.subr.bf16.mxu0 0
    %3898 = vmatpush2.bf16.msra.mxu0 0
    %3899 = vmatprep.mubr.bf16.mxu0 0
    %3900 = vmatmul.mubr.bf16.gmra.mxu0 %v3633
    %v3901 = vpop.f32.mrf.mxu0
    %v3902 = vadd.f32 0.0, %v3901
    %v3903 = vpop.f32.mrf.mxu0
    %v3904 = vadd.f32 0.0, %v3903
    %v3905 = vpop.f32.mrf.mxu0
    %v3906 = vpop.f32.mrf.mxu0
    %3907 = vdwg.mxu0
    %v3908 = vadd.f32 %v3628, %v3861
    %v3909 = vadd.f32 %v3629, %v3863
    %v3910 = vadd.f32 %v3630, %v3902
    %v3911 = vadd.f32 %v3631, %v3904
    %v3912 = vxor.u32 %v3908, 2147483648
    %v3913 = vxor.u32 %v3909, 2147483648
    %v3914 = vxor.u32 %v3910, 2147483648
    %v3915 = vmul.f32 %v3912, 1.442695
    %v3916 = vpow.pop %v3915
    %v3917 = vmul.f32 %v3913, 1.442695
    %v3918 = vpow.pop %v3917
    %v3919 = vmul.f32 %v3914, 1.442695
    %v3920 = vpow.pop %v3919
    %v3921 = vadd.f32 %v3916, 1.0
    %v3922 = vadd.f32 %v3918, 1.0
    %v3923 = vadd.f32 %v3920, 1.0
    %v3924 = vrcp.pop %v3921
    %v3925 = vmul.f32 1.0, %v3924
    %v3926 = vrcp.pop %v3922
    %v3927 = vmul.f32 1.0, %v3926
    %v3928 = vrcp.pop %v3923
    %v3929 = vmul.f32 1.0, %v3928
    %v3930 = vtanh.pop %v3911
    %v3931 = vld [vmem:[#allocation4] sm:$0xff]
    %v3932 = vmul.f32 %v3927, %v3931
    %v3933 = vmul.f32 %v3925, %v3930
    %v3934 = vadd.f32 %v3932, %v3933
    %v3935 = vtanh.pop %v3934
    %v3936 = vmul.f32 %v3929, %v3935
    %3937 = vst [vmem:[#allocation4] sm:$0xff] %v3934
    %3938 = vst [vmem:[#allocation3] sm:$0xff] %v3936
    %v3939 = vld [vmem:[#allocation3] sm:$0xff]
    %v3940 = vld [vmem:[#allocation3 + $0x8] sm:$0xff]
    %v3941 = vpack.c.bf16 %v3939, %v3939
    %v3942 = vpack.c.bf16 %v3940, %v3940
    %v3943 = vld [vmem:[%s4] sm:$0xff]
    %v3944 = vld [vmem:[%s4 + $0x8] sm:$0xff]
    %v3945 = vld [vmem:[%s4 + $0x10] sm:$0xff]
    %v3946 = vld [vmem:[%s4 + $0x18] sm:$0xff]
    %v3947 = vld [vmem:[%s4 + $0x20] sm:$0xff]
    %v3948 = vld [vmem:[%s4 + $0x28] sm:$0xff]
    %v3949 = vld [vmem:[%s4 + $0x30] sm:$0xff]
    %v3950 = vld [vmem:[%s4 + $0x38] sm:$0xff]
    %v3951 = vld [vmem:[%s4 + $0x40] sm:$0xff]
    %v3952 = vld [vmem:[%s4 + $0x48] sm:$0xff]
    %v3953 = vld [vmem:[%s4 + $0x50] sm:$0xff]
    %v3954 = vld [vmem:[%s4 + $0x58] sm:$0xff]
    %v3955 = vld [vmem:[%s4 + $0x60] sm:$0xff]
    %v3956 = vld [vmem:[%s4 + $0x68] sm:$0xff]
    %v3957 = vld [vmem:[%s4 + $0x70] sm:$0xff]
    %v3958 = vld [vmem:[%s4 + $0x78] sm:$0xff]
    %v3959 = vld [vmem:[%s4 + $0x80] sm:$0xff]
    %v3960 = vld [vmem:[%s4 + $0x88] sm:$0xff]
    %v3961 = vld [vmem:[%s4 + $0x90] sm:$0xff]
    %v3962 = vld [vmem:[%s4 + $0x98] sm:$0xff]
    %v3963 = vld [vmem:[%s4 + $0xa0] sm:$0xff]
    %v3964 = vld [vmem:[%s4 + $0xa8] sm:$0xff]
    %v3965 = vld [vmem:[%s4 + $0xb0] sm:$0xff]
    %v3966 = vld [vmem:[%s4 + $0xb8] sm:$0xff]
    %v3967 = vld [vmem:[%s4 + $0xc0] sm:$0xff]
    %v3968 = vld [vmem:[%s4 + $0xc8] sm:$0xff]
    %v3969 = vld [vmem:[%s4 + $0xd0] sm:$0xff]
    %v3970 = vld [vmem:[%s4 + $0xd8] sm:$0xff]
    %v3971 = vld [vmem:[%s4 + $0xe0] sm:$0xff]
    %v3972 = vld [vmem:[%s4 + $0xe8] sm:$0xff]
    %v3973 = vld [vmem:[%s4 + $0xf0] sm:$0xff]
    %v3974 = vld [vmem:[%s4 + $0xf8] sm:$0xff]
    %v3975 = vld [vmem:[%s4 + $0x100] sm:$0xff]
    %v3976 = vld [vmem:[%s4 + $0x108] sm:$0xff]
    %v3977 = vld [vmem:[%s4 + $0x110] sm:$0xff]
    %v3978 = vld [vmem:[%s4 + $0x118] sm:$0xff]
    %v3979 = vld [vmem:[%s4 + $0x120] sm:$0xff]
    %v3980 = vld [vmem:[%s4 + $0x128] sm:$0xff]
    %v3981 = vld [vmem:[%s4 + $0x130] sm:$0xff]
    %v3982 = vld [vmem:[%s4 + $0x138] sm:$0xff]
    %v3983 = vld [vmem:[%s4 + $0x140] sm:$0xff]
    %v3984 = vld [vmem:[%s4 + $0x148] sm:$0xff]
    %v3985 = vld [vmem:[%s4 + $0x150] sm:$0xff]
    %v3986 = vld [vmem:[%s4 + $0x158] sm:$0xff]
    %v3987 = vld [vmem:[%s4 + $0x160] sm:$0xff]
    %v3988 = vld [vmem:[%s4 + $0x168] sm:$0xff]
    %v3989 = vld [vmem:[%s4 + $0x170] sm:$0xff]
    %v3990 = vld [vmem:[%s4 + $0x178] sm:$0xff]
    %v3991 = vld [vmem:[%s4 + $0x180] sm:$0xff]
    %v3992 = vld [vmem:[%s4 + $0x188] sm:$0xff]
    %v3993 = vld [vmem:[%s4 + $0x190] sm:$0xff]
    %v3994 = vld [vmem:[%s4 + $0x198] sm:$0xff]
    %v3995 = vld [vmem:[%s4 + $0x1a0] sm:$0xff]
    %v3996 = vld [vmem:[%s4 + $0x1a8] sm:$0xff]
    %v3997 = vld [vmem:[%s4 + $0x1b0] sm:$0xff]
    %v3998 = vld [vmem:[%s4 + $0x1b8] sm:$0xff]
    %v3999 = vld [vmem:[%s4 + $0x1c0] sm:$0xff]
    %v4000 = vld [vmem:[%s4 + $0x1c8] sm:$0xff]
    %v4001 = vld [vmem:[%s4 + $0x1d0] sm:$0xff]
    %v4002 = vld [vmem:[%s4 + $0x1d8] sm:$0xff]
    %v4003 = vld [vmem:[%s4 + $0x1e0] sm:$0xff]
    %v4004 = vld [vmem:[%s4 + $0x1e8] sm:$0xff]
    %v4005 = vld [vmem:[%s4 + $0x1f0] sm:$0xff]
    %v4006 = vld [vmem:[%s4 + $0x1f8] sm:$0xff]
    %v4007 = vld [vmem:[%s5] sm:$0xf]
    %v4009 = vlaneseq
    %v4010 = vshrl.u32 %v4009, 7
    %v4011 = vsub.s32 0, %v4010
    %v4012 = vrot.slane %v4007, %v4011
    %v4013 = vlaneseq
    %v4014 = vshrl.u32 %v4013, 7
    %v4015 = vsub.s32 1, %v4014
    %v4016 = vrot.slane %v4007, %v4015
    %v4017 = vlaneseq
    %v4018 = vshrl.u32 %v4017, 7
    %v4019 = vsub.s32 2, %v4018
    %v4020 = vrot.slane %v4007, %v4019
    %v4021 = vlaneseq
    %v4022 = vshrl.u32 %v4021, 7
    %v4023 = vsub.s32 3, %v4022
    %v4024 = vrot.slane %v4007, %v4023
    %v4093 = vunpack.c.l.b16 %v3943
    %v4094 = vunpack.c.h.b16 %v3943
    %v4095 = vunpack.c.l.b16 %v3944
    %v4096 = vunpack.c.h.b16 %v3944
    %v4097 = vunpack.c.l.b16 %v3945
    %v4098 = vunpack.c.h.b16 %v3945
    %v4099 = vunpack.c.l.b16 %v3946
    %v4100 = vunpack.c.h.b16 %v3946
    %v4101 = vunpack.c.l.b16 %v3947
    %v4102 = vunpack.c.h.b16 %v3947
    %v4103 = vunpack.c.l.b16 %v3948
    %v4104 = vunpack.c.h.b16 %v3948
    %v4105 = vunpack.c.l.b16 %v3949
    %v4106 = vunpack.c.h.b16 %v3949
    %v4107 = vunpack.c.l.b16 %v3950
    %v4108 = vunpack.c.h.b16 %v3950
    %v4109 = vunpack.c.l.b16 %v3951
    %v4110 = vunpack.c.h.b16 %v3951
    %v4111 = vunpack.c.l.b16 %v3952
    %v4112 = vunpack.c.h.b16 %v3952
    %v4113 = vunpack.c.l.b16 %v3953
    %v4114 = vunpack.c.h.b16 %v3953
    %v4115 = vunpack.c.l.b16 %v3954
    %v4116 = vunpack.c.h.b16 %v3954
    %v4117 = vunpack.c.l.b16 %v3955
    %v4118 = vunpack.c.h.b16 %v3955
    %v4119 = vunpack.c.l.b16 %v3956
    %v4120 = vunpack.c.h.b16 %v3956
    %v4121 = vunpack.c.l.b16 %v3957
    %v4122 = vunpack.c.h.b16 %v3957
    %v4123 = vunpack.c.l.b16 %v3958
    %v4124 = vunpack.c.h.b16 %v3958
    %v4125 = vunpack.c.l.b16 %v3959
    %v4126 = vunpack.c.h.b16 %v3959
    %v4127 = vunpack.c.l.b16 %v3960
    %v4128 = vunpack.c.h.b16 %v3960
    %v4129 = vunpack.c.l.b16 %v3961
    %v4130 = vunpack.c.h.b16 %v3961
    %v4131 = vunpack.c.l.b16 %v3962
    %v4132 = vunpack.c.h.b16 %v3962
    %v4133 = vunpack.c.l.b16 %v3963
    %v4134 = vunpack.c.h.b16 %v3963
    %v4135 = vunpack.c.l.b16 %v3964
    %v4136 = vunpack.c.h.b16 %v3964
    %v4137 = vunpack.c.l.b16 %v3965
    %v4138 = vunpack.c.h.b16 %v3965
    %v4139 = vunpack.c.l.b16 %v3966
    %v4140 = vunpack.c.h.b16 %v3966
    %v4141 = vunpack.c.l.b16 %v3967
    %v4142 = vunpack.c.h.b16 %v3967
    %v4143 = vunpack.c.l.b16 %v3968
    %v4144 = vunpack.c.h.b16 %v3968
    %v4145 = vunpack.c.l.b16 %v3969
    %v4146 = vunpack.c.h.b16 %v3969
    %v4147 = vunpack.c.l.b16 %v3970
    %v4148 = vunpack.c.h.b16 %v3970
    %v4149 = vunpack.c.l.b16 %v3971
    %v4150 = vunpack.c.h.b16 %v3971
    %v4151 = vunpack.c.l.b16 %v3972
    %v4152 = vunpack.c.h.b16 %v3972
    %v4153 = vunpack.c.l.b16 %v3973
    %v4154 = vunpack.c.h.b16 %v3973
    %v4155 = vunpack.c.l.b16 %v3974
    %v4156 = vunpack.c.h.b16 %v3974
    %v4157 = vunpack.c.l.b16 %v3975
    %v4158 = vunpack.c.h.b16 %v3975
    %v4159 = vunpack.c.l.b16 %v3976
    %v4160 = vunpack.c.h.b16 %v3976
    %v4161 = vunpack.c.l.b16 %v3977
    %v4162 = vunpack.c.h.b16 %v3977
    %v4163 = vunpack.c.l.b16 %v3978
    %v4164 = vunpack.c.h.b16 %v3978
    %v4165 = vunpack.c.l.b16 %v3979
    %v4166 = vunpack.c.h.b16 %v3979
    %v4167 = vunpack.c.l.b16 %v3980
    %v4168 = vunpack.c.h.b16 %v3980
    %v4169 = vunpack.c.l.b16 %v3981
    %v4170 = vunpack.c.h.b16 %v3981
    %v4171 = vunpack.c.l.b16 %v3982
    %v4172 = vunpack.c.h.b16 %v3982
    %v4173 = vunpack.c.l.b16 %v3983
    %v4174 = vunpack.c.h.b16 %v3983
    %v4175 = vunpack.c.l.b16 %v3984
    %v4176 = vunpack.c.h.b16 %v3984
    %v4177 = vunpack.c.l.b16 %v3985
    %v4178 = vunpack.c.h.b16 %v3985
    %v4179 = vunpack.c.l.b16 %v3986
    %v4180 = vunpack.c.h.b16 %v3986
    %v4181 = vunpack.c.l.b16 %v3987
    %v4182 = vunpack.c.h.b16 %v3987
    %v4183 = vunpack.c.l.b16 %v3988
    %v4184 = vunpack.c.h.b16 %v3988
    %v4185 = vunpack.c.l.b16 %v3989
    %v4186 = vunpack.c.h.b16 %v3989
    %v4187 = vunpack.c.l.b16 %v3990
    %v4188 = vunpack.c.h.b16 %v3990
    %v4189 = vunpack.c.l.b16 %v3991
    %v4190 = vunpack.c.h.b16 %v3991
    %v4191 = vunpack.c.l.b16 %v3992
    %v4192 = vunpack.c.h.b16 %v3992
    %v4193 = vunpack.c.l.b16 %v3993
    %v4194 = vunpack.c.h.b16 %v3993
    %v4195 = vunpack.c.l.b16 %v3994
    %v4196 = vunpack.c.h.b16 %v3994
    %v4197 = vunpack.c.l.b16 %v3995
    %v4198 = vunpack.c.h.b16 %v3995
    %v4199 = vunpack.c.l.b16 %v3996
    %v4200 = vunpack.c.h.b16 %v3996
    %v4201 = vunpack.c.l.b16 %v3997
    %v4202 = vunpack.c.h.b16 %v3997
    %v4203 = vunpack.c.l.b16 %v3998
    %v4204 = vunpack.c.h.b16 %v3998
    %v4205 = vunpack.c.l.b16 %v3999
    %v4206 = vunpack.c.h.b16 %v3999
    %v4207 = vunpack.c.l.b16 %v4000
    %v4208 = vunpack.c.h.b16 %v4000
    %v4209 = vunpack.c.l.b16 %v4001
    %v4210 = vunpack.c.h.b16 %v4001
    %v4211 = vunpack.c.l.b16 %v4002
    %v4212 = vunpack.c.h.b16 %v4002
    %v4213 = vunpack.c.l.b16 %v4003
    %v4214 = vunpack.c.h.b16 %v4003
    %v4215 = vunpack.c.l.b16 %v4004
    %v4216 = vunpack.c.h.b16 %v4004
    %v4217 = vunpack.c.l.b16 %v4005
    %v4218 = vunpack.c.h.b16 %v4005
    %v4219 = vunpack.c.l.b16 %v4006
    %v4220 = vunpack.c.h.b16 %v4006
    %v4221 = vpack.c.b16 %v4097, %v4093
    %v4222 = vpack.c.b16 %v4098, %v4094
    %v4223 = vpack.c.b16 %v4099, %v4095
    %v4224 = vpack.c.b16 %v4100, %v4096
    %v4225 = vpack.c.b16 %v4105, %v4101
    %v4226 = vpack.c.b16 %v4106, %v4102
    %v4227 = vpack.c.b16 %v4107, %v4103
    %v4228 = vpack.c.b16 %v4108, %v4104
    %v4229 = vpack.c.b16 %v4113, %v4109
    %v4230 = vpack.c.b16 %v4114, %v4110
    %v4231 = vpack.c.b16 %v4115, %v4111
    %v4232 = vpack.c.b16 %v4116, %v4112
    %v4233 = vpack.c.b16 %v4121, %v4117
    %v4234 = vpack.c.b16 %v4122, %v4118
    %v4235 = vpack.c.b16 %v4123, %v4119
    %v4236 = vpack.c.b16 %v4124, %v4120
    %v4237 = vpack.c.b16 %v4129, %v4125
    %v4238 = vpack.c.b16 %v4130, %v4126
    %v4239 = vpack.c.b16 %v4131, %v4127
    %v4240 = vpack.c.b16 %v4132, %v4128
    %v4241 = vpack.c.b16 %v4137, %v4133
    %v4242 = vpack.c.b16 %v4138, %v4134
    %v4243 = vpack.c.b16 %v4139, %v4135
    %v4244 = vpack.c.b16 %v4140, %v4136
    %v4245 = vpack.c.b16 %v4145, %v4141
    %v4246 = vpack.c.b16 %v4146, %v4142
    %v4247 = vpack.c.b16 %v4147, %v4143
    %v4248 = vpack.c.b16 %v4148, %v4144
    %v4249 = vpack.c.b16 %v4153, %v4149
    %v4250 = vpack.c.b16 %v4154, %v4150
    %v4251 = vpack.c.b16 %v4155, %v4151
    %v4252 = vpack.c.b16 %v4156, %v4152
    %v4253 = vpack.c.b16 %v4161, %v4157
    %v4254 = vpack.c.b16 %v4162, %v4158
    %v4255 = vpack.c.b16 %v4163, %v4159
    %v4256 = vpack.c.b16 %v4164, %v4160
    %v4257 = vpack.c.b16 %v4169, %v4165
    %v4258 = vpack.c.b16 %v4170, %v4166
    %v4259 = vpack.c.b16 %v4171, %v4167
    %v4260 = vpack.c.b16 %v4172, %v4168
    %v4261 = vpack.c.b16 %v4177, %v4173
    %v4262 = vpack.c.b16 %v4178, %v4174
    %v4263 = vpack.c.b16 %v4179, %v4175
    %v4264 = vpack.c.b16 %v4180, %v4176
    %v4265 = vpack.c.b16 %v4185, %v4181
    %v4266 = vpack.c.b16 %v4186, %v4182
    %v4267 = vpack.c.b16 %v4187, %v4183
    %v4268 = vpack.c.b16 %v4188, %v4184
    %v4269 = vpack.c.b16 %v4193, %v4189
    %v4270 = vpack.c.b16 %v4194, %v4190
    %v4271 = vpack.c.b16 %v4195, %v4191
    %v4272 = vpack.c.b16 %v4196, %v4192
    %v4273 = vpack.c.b16 %v4201, %v4197
    %v4274 = vpack.c.b16 %v4202, %v4198
    %v4275 = vpack.c.b16 %v4203, %v4199
    %v4276 = vpack.c.b16 %v4204, %v4200
    %v4277 = vpack.c.b16 %v4209, %v4205
    %v4278 = vpack.c.b16 %v4210, %v4206
    %v4279 = vpack.c.b16 %v4211, %v4207
    %v4280 = vpack.c.b16 %v4212, %v4208
    %v4281 = vpack.c.b16 %v4217, %v4213
    %v4282 = vpack.c.b16 %v4218, %v4214
    %v4283 = vpack.c.b16 %v4219, %v4215
    %v4284 = vpack.c.b16 %v4220, %v4216
    %4349 = vmatprep.subr.bf16.mxu0 %v4250
    %4350 = vmatpush1.bf16.msra.mxu0 %v4249
    %4351 = vmatprep.subr.bf16.mxu0 %v4246
    %4352 = vmatpush1.bf16.msra.mxu0 %v4245
    %4353 = vmatprep.subr.bf16.mxu0 %v4242
    %4354 = vmatpush1.bf16.msra.mxu0 %v4241
    %4355 = vmatprep.subr.bf16.mxu0 %v4238
    %4356 = vmatpush1.bf16.msra.mxu0 %v4237
    %4357 = vmatprep.subr.bf16.mxu0 %v4234
    %4358 = vmatpush1.bf16.msra.mxu0 %v4233
    %4359 = vmatprep.subr.bf16.mxu0 %v4230
    %4360 = vmatpush1.bf16.msra.mxu0 %v4229
    %4361 = vmatprep.subr.bf16.mxu0 %v4226
    %4362 = vmatpush1.bf16.msra.mxu0 %v4225
    %4363 = vmatprep.subr.bf16.mxu0 %v4222
    %4364 = vmatpush1.bf16.msra.mxu0 %v4221
    %4365 = vmatprep.subr.bf16.mxu0 %v4282
    %4366 = vmatpush2.bf16.msra.mxu0 %v4281
    %4367 = vmatprep.subr.bf16.mxu0 %v4278
    %4368 = vmatpush2.bf16.msra.mxu0 %v4277
    %4369 = vmatprep.subr.bf16.mxu0 %v4274
    %4370 = vmatpush2.bf16.msra.mxu0 %v4273
    %4371 = vmatprep.subr.bf16.mxu0 %v4270
    %4372 = vmatpush2.bf16.msra.mxu0 %v4269
    %4373 = vmatprep.subr.bf16.mxu0 %v4266
    %4374 = vmatpush2.bf16.msra.mxu0 %v4265
    %4375 = vmatprep.subr.bf16.mxu0 %v4262
    %4376 = vmatpush2.bf16.msra.mxu0 %v4261
    %4377 = vmatprep.subr.bf16.mxu0 %v4258
    %4378 = vmatpush2.bf16.msra.mxu0 %v4257
    %4379 = vmatprep.subr.bf16.mxu0 %v4254
    %4380 = vmatpush2.bf16.msra.mxu0 %v4253
    %4381 = vmatprep.mubr.bf16.mxu0 %v3942
    %4382 = vmatmul.mubr.bf16.gmra.mxu0 %v3941
    %v4383 = vpop.f32.mrf.mxu0
    %v4384 = vadd.f32 %v4012, %v4383
    %v4385 = vpop.f32.mrf.mxu0
    %v4386 = vadd.f32 %v4016, %v4385
    %v4387 = vpop.f32.mrf.mxu0
    %v4388 = vpop.f32.mrf.mxu0
    %4389 = vdwg.mxu0
    %4390 = vmatprep.subr.bf16.mxu0 %v4252
    %4391 = vmatpush1.bf16.msra.mxu0 %v4251
    %4392 = vmatprep.subr.bf16.mxu0 %v4248
    %4393 = vmatpush1.bf16.msra.mxu0 %v4247
    %4394 = vmatprep.subr.bf16.mxu0 %v4244
    %4395 = vmatpush1.bf16.msra.mxu0 %v4243
    %4396 = vmatprep.subr.bf16.mxu0 %v4240
    %4397 = vmatpush1.bf16.msra.mxu0 %v4239
    %4398 = vmatprep.subr.bf16.mxu0 %v4236
    %4399 = vmatpush1.bf16.msra.mxu0 %v4235
    %4400 = vmatprep.subr.bf16.mxu0 %v4232
    %4401 = vmatpush1.bf16.msra.mxu0 %v4231
    %4402 = vmatprep.subr.bf16.mxu0 %v4228
    %4403 = vmatpush1.bf16.msra.mxu0 %v4227
    %4404 = vmatprep.subr.bf16.mxu0 %v4224
    %4405 = vmatpush1.bf16.msra.mxu0 %v4223
    %4406 = vmatprep.subr.bf16.mxu0 %v4284
    %4407 = vmatpush2.bf16.msra.mxu0 %v4283
    %4408 = vmatprep.subr.bf16.mxu0 %v4280
    %4409 = vmatpush2.bf16.msra.mxu0 %v4279
    %4410 = vmatprep.subr.bf16.mxu0 %v4276
    %4411 = vmatpush2.bf16.msra.mxu0 %v4275
    %4412 = vmatprep.subr.bf16.mxu0 %v4272
    %4413 = vmatpush2.bf16.msra.mxu0 %v4271
    %4414 = vmatprep.subr.bf16.mxu0 %v4268
    %4415 = vmatpush2.bf16.msra.mxu0 %v4267
    %4416 = vmatprep.subr.bf16.mxu0 %v4264
    %4417 = vmatpush2.bf16.msra.mxu0 %v4263
    %4418 = vmatprep.subr.bf16.mxu0 %v4260
    %4419 = vmatpush2.bf16.msra.mxu0 %v4259
    %4420 = vmatprep.subr.bf16.mxu0 %v4256
    %4421 = vmatpush2.bf16.msra.mxu0 %v4255
    %4422 = vmatprep.mubr.bf16.mxu0 %v3942
    %4423 = vmatmul.mubr.bf16.gmra.mxu0 %v3941
    %v4424 = vpop.f32.mrf.mxu0
    %v4425 = vadd.f32 %v4020, %v4424
    %v4426 = vpop.f32.mrf.mxu0
    %v4427 = vadd.f32 %v4024, %v4426
    %v4428 = vpop.f32.mrf.mxu0
    %v4429 = vpop.f32.mrf.mxu0
    %4430 = vdwg.mxu0
    %v4431 = vxor.u32 %v4384, 2147483648
    %v4432 = vxor.u32 %v4386, 2147483648
    %v4433 = vxor.u32 %v4425, 2147483648
    %v4434 = vmul.f32 %v4431, 1.442695
    %v4435 = vpow.pop %v4434
    %v4436 = vmul.f32 %v4432, 1.442695
    %v4437 = vpow.pop %v4436
    %v4438 = vmul.f32 %v4433, 1.442695
    %v4439 = vpow.pop %v4438
    %v4440 = vadd.f32 %v4435, 1.0
    %v4441 = vadd.f32 %v4437, 1.0
    %v4442 = vadd.f32 %v4439, 1.0
    %v4443 = vrcp.pop %v4440
    %v4444 = vmul.f32 1.0, %v4443
    %v4445 = vrcp.pop %v4441
    %v4446 = vmul.f32 1.0, %v4445
    %v4447 = vrcp.pop %v4442
    %v4448 = vmul.f32 1.0, %v4447
    %v4449 = vtanh.pop %v4427
    %v4450 = vld [vmem:[#allocation4 + $0x8] sm:$0xff]
    %v4451 = vmul.f32 %v4446, %v4450
    %v4452 = vmul.f32 %v4444, %v4449
    %v4453 = vadd.f32 %v4451, %v4452
    %v4454 = vtanh.pop %v4453
    %v4455 = vmul.f32 %v4448, %v4454
    %4456 = vst [vmem:[#allocation4 + $0x8] sm:$0xff] %v4453
    %4457 = vst [vmem:[#allocation3 + $0x8] sm:$0xff] %v4455
    %v4458 = vld [vmem:[#allocation2 + $0xa0] sm:$0xff]
    %v4459 = vld [vmem:[#allocation2 + $0xa8] sm:$0xff]
    %v4460 = vld [vmem:[#allocation2 + $0xb0] sm:$0xff]
    %v4461 = vld [vmem:[#allocation2 + $0xb8] sm:$0xff]
    %v4462 = vld [vmem:[#allocation3] sm:$0xff]
    %v4463 = vpack.c.bf16 %v4462, %v4462
    %v4464 = vld [vmem:[%s2] sm:$0xff]
    %v4465 = vld [vmem:[%s2 + $0x8] sm:$0xff]
    %v4466 = vld [vmem:[%s2 + $0x10] sm:$0xff]
    %v4467 = vld [vmem:[%s2 + $0x18] sm:$0xff]
    %v4468 = vld [vmem:[%s2 + $0x20] sm:$0xff]
    %v4469 = vld [vmem:[%s2 + $0x28] sm:$0xff]
    %v4470 = vld [vmem:[%s2 + $0x30] sm:$0xff]
    %v4471 = vld [vmem:[%s2 + $0x38] sm:$0xff]
    %v4472 = vld [vmem:[%s2 + $0x40] sm:$0xff]
    %v4473 = vld [vmem:[%s2 + $0x48] sm:$0xff]
    %v4474 = vld [vmem:[%s2 + $0x50] sm:$0xff]
    %v4475 = vld [vmem:[%s2 + $0x58] sm:$0xff]
    %v4476 = vld [vmem:[%s2 + $0x60] sm:$0xff]
    %v4477 = vld [vmem:[%s2 + $0x68] sm:$0xff]
    %v4478 = vld [vmem:[%s2 + $0x70] sm:$0xff]
    %v4479 = vld [vmem:[%s2 + $0x78] sm:$0xff]
    %v4480 = vld [vmem:[%s2 + $0x80] sm:$0xff]
    %v4481 = vld [vmem:[%s2 + $0x88] sm:$0xff]
    %v4482 = vld [vmem:[%s2 + $0x90] sm:$0xff]
    %v4483 = vld [vmem:[%s2 + $0x98] sm:$0xff]
    %v4484 = vld [vmem:[%s2 + $0xa0] sm:$0xff]
    %v4485 = vld [vmem:[%s2 + $0xa8] sm:$0xff]
    %v4486 = vld [vmem:[%s2 + $0xb0] sm:$0xff]
    %v4487 = vld [vmem:[%s2 + $0xb8] sm:$0xff]
    %v4488 = vld [vmem:[%s2 + $0xc0] sm:$0xff]
    %v4489 = vld [vmem:[%s2 + $0xc8] sm:$0xff]
    %v4490 = vld [vmem:[%s2 + $0xd0] sm:$0xff]
    %v4491 = vld [vmem:[%s2 + $0xd8] sm:$0xff]
    %v4492 = vld [vmem:[%s2 + $0xe0] sm:$0xff]
    %v4493 = vld [vmem:[%s2 + $0xe8] sm:$0xff]
    %v4494 = vld [vmem:[%s2 + $0xf0] sm:$0xff]
    %v4495 = vld [vmem:[%s2 + $0xf8] sm:$0xff]
    %v4528 = vunpack.c.l.b16 %v4464
    %v4529 = vunpack.c.h.b16 %v4464
    %v4530 = vunpack.c.l.b16 %v4465
    %v4531 = vunpack.c.h.b16 %v4465
    %v4532 = vunpack.c.l.b16 %v4466
    %v4533 = vunpack.c.h.b16 %v4466
    %v4534 = vunpack.c.l.b16 %v4467
    %v4535 = vunpack.c.h.b16 %v4467
    %v4536 = vunpack.c.l.b16 %v4468
    %v4537 = vunpack.c.h.b16 %v4468
    %v4538 = vunpack.c.l.b16 %v4469
    %v4539 = vunpack.c.h.b16 %v4469
    %v4540 = vunpack.c.l.b16 %v4470
    %v4541 = vunpack.c.h.b16 %v4470
    %v4542 = vunpack.c.l.b16 %v4471
    %v4543 = vunpack.c.h.b16 %v4471
    %v4544 = vunpack.c.l.b16 %v4472
    %v4545 = vunpack.c.h.b16 %v4472
    %v4546 = vunpack.c.l.b16 %v4473
    %v4547 = vunpack.c.h.b16 %v4473
    %v4548 = vunpack.c.l.b16 %v4474
    %v4549 = vunpack.c.h.b16 %v4474
    %v4550 = vunpack.c.l.b16 %v4475
    %v4551 = vunpack.c.h.b16 %v4475
    %v4552 = vunpack.c.l.b16 %v4476
    %v4553 = vunpack.c.h.b16 %v4476
    %v4554 = vunpack.c.l.b16 %v4477
    %v4555 = vunpack.c.h.b16 %v4477
    %v4556 = vunpack.c.l.b16 %v4478
    %v4557 = vunpack.c.h.b16 %v4478
    %v4558 = vunpack.c.l.b16 %v4479
    %v4559 = vunpack.c.h.b16 %v4479
    %v4560 = vunpack.c.l.b16 %v4480
    %v4561 = vunpack.c.h.b16 %v4480
    %v4562 = vunpack.c.l.b16 %v4481
    %v4563 = vunpack.c.h.b16 %v4481
    %v4564 = vunpack.c.l.b16 %v4482
    %v4565 = vunpack.c.h.b16 %v4482
    %v4566 = vunpack.c.l.b16 %v4483
    %v4567 = vunpack.c.h.b16 %v4483
    %v4568 = vunpack.c.l.b16 %v4484
    %v4569 = vunpack.c.h.b16 %v4484
    %v4570 = vunpack.c.l.b16 %v4485
    %v4571 = vunpack.c.h.b16 %v4485
    %v4572 = vunpack.c.l.b16 %v4486
    %v4573 = vunpack.c.h.b16 %v4486
    %v4574 = vunpack.c.l.b16 %v4487
    %v4575 = vunpack.c.h.b16 %v4487
    %v4576 = vunpack.c.l.b16 %v4488
    %v4577 = vunpack.c.h.b16 %v4488
    %v4578 = vunpack.c.l.b16 %v4489
    %v4579 = vunpack.c.h.b16 %v4489
    %v4580 = vunpack.c.l.b16 %v4490
    %v4581 = vunpack.c.h.b16 %v4490
    %v4582 = vunpack.c.l.b16 %v4491
    %v4583 = vunpack.c.h.b16 %v4491
    %v4584 = vunpack.c.l.b16 %v4492
    %v4585 = vunpack.c.h.b16 %v4492
    %v4586 = vunpack.c.l.b16 %v4493
    %v4587 = vunpack.c.h.b16 %v4493
    %v4588 = vunpack.c.l.b16 %v4494
    %v4589 = vunpack.c.h.b16 %v4494
    %v4590 = vunpack.c.l.b16 %v4495
    %v4591 = vunpack.c.h.b16 %v4495
    %v4592 = vpack.c.b16 %v4532, %v4528
    %v4593 = vpack.c.b16 %v4533, %v4529
    %v4594 = vpack.c.b16 %v4534, %v4530
    %v4595 = vpack.c.b16 %v4535, %v4531
    %v4596 = vpack.c.b16 %v4540, %v4536
    %v4597 = vpack.c.b16 %v4541, %v4537
    %v4598 = vpack.c.b16 %v4542, %v4538
    %v4599 = vpack.c.b16 %v4543, %v4539
    %v4600 = vpack.c.b16 %v4548, %v4544
    %v4601 = vpack.c.b16 %v4549, %v4545
    %v4602 = vpack.c.b16 %v4550, %v4546
    %v4603 = vpack.c.b16 %v4551, %v4547
    %v4604 = vpack.c.b16 %v4556, %v4552
    %v4605 = vpack.c.b16 %v4557, %v4553
    %v4606 = vpack.c.b16 %v4558, %v4554
    %v4607 = vpack.c.b16 %v4559, %v4555
    %v4608 = vpack.c.b16 %v4564, %v4560
    %v4609 = vpack.c.b16 %v4565, %v4561
    %v4610 = vpack.c.b16 %v4566, %v4562
    %v4611 = vpack.c.b16 %v4567, %v4563
    %v4612 = vpack.c.b16 %v4572, %v4568
    %v4613 = vpack.c.b16 %v4573, %v4569
    %v4614 = vpack.c.b16 %v4574, %v4570
    %v4615 = vpack.c.b16 %v4575, %v4571
    %v4616 = vpack.c.b16 %v4580, %v4576
    %v4617 = vpack.c.b16 %v4581, %v4577
    %v4618 = vpack.c.b16 %v4582, %v4578
    %v4619 = vpack.c.b16 %v4583, %v4579
    %v4620 = vpack.c.b16 %v4588, %v4584
    %v4621 = vpack.c.b16 %v4589, %v4585
    %v4622 = vpack.c.b16 %v4590, %v4586
    %v4623 = vpack.c.b16 %v4591, %v4587
    %4656 = vmatprep.subr.bf16.mxu0 %v4621
    %4657 = vmatpush1.bf16.msra.mxu0 %v4620
    %4658 = vmatprep.subr.bf16.mxu0 %v4617
    %4659 = vmatpush1.bf16.msra.mxu0 %v4616
    %4660 = vmatprep.subr.bf16.mxu0 %v4613
    %4661 = vmatpush1.bf16.msra.mxu0 %v4612
    %4662 = vmatprep.subr.bf16.mxu0 %v4609
    %4663 = vmatpush1.bf16.msra.mxu0 %v4608
    %4664 = vmatprep.subr.bf16.mxu0 %v4605
    %4665 = vmatpush1.bf16.msra.mxu0 %v4604
    %4666 = vmatprep.subr.bf16.mxu0 %v4601
    %4667 = vmatpush1.bf16.msra.mxu0 %v4600
    %4668 = vmatprep.subr.bf16.mxu0 %v4597
    %4669 = vmatpush1.bf16.msra.mxu0 %v4596
    %4670 = vmatprep.subr.bf16.mxu0 %v4593
    %4671 = vmatpush1.bf16.msra.mxu0 %v4592
    %4672 = vmatprep.subr.bf16.mxu0 0
    %4673 = vmatpush2.bf16.msra.mxu0 0
    %4674 = vmatprep.subr.bf16.mxu0 0
    %4675 = vmatpush2.bf16.msra.mxu0 0
    %4676 = vmatprep.subr.bf16.mxu0 0
    %4677 = vmatpush2.bf16.msra.mxu0 0
    %4678 = vmatprep.subr.bf16.mxu0 0
    %4679 = vmatpush2.bf16.msra.mxu0 0
    %4680 = vmatprep.subr.bf16.mxu0 0
    %4681 = vmatpush2.bf16.msra.mxu0 0
    %4682 = vmatprep.subr.bf16.mxu0 0
    %4683 = vmatpush2.bf16.msra.mxu0 0
    %4684 = vmatprep.subr.bf16.mxu0 0
    %4685 = vmatpush2.bf16.msra.mxu0 0
    %4686 = vmatprep.subr.bf16.mxu0 0
    %4687 = vmatpush2.bf16.msra.mxu0 0
    %4688 = vmatprep.mubr.bf16.mxu0 0
    %4689 = vmatmul.mubr.bf16.gmra.mxu0 %v4463
    %v4690 = vpop.f32.mrf.mxu0
    %v4691 = vadd.f32 0.0, %v4690
    %v4692 = vpop.f32.mrf.mxu0
    %v4693 = vadd.f32 0.0, %v4692
    %v4694 = vpop.f32.mrf.mxu0
    %v4695 = vpop.f32.mrf.mxu0
    %4696 = vdwg.mxu0
    %4697 = vmatprep.subr.bf16.mxu0 %v4623
    %4698 = vmatpush1.bf16.msra.mxu0 %v4622
    %4699 = vmatprep.subr.bf16.mxu0 %v4619
    %4700 = vmatpush1.bf16.msra.mxu0 %v4618
    %4701 = vmatprep.subr.bf16.mxu0 %v4615
    %4702 = vmatpush1.bf16.msra.mxu0 %v4614
    %4703 = vmatprep.subr.bf16.mxu0 %v4611
    %4704 = vmatpush1.bf16.msra.mxu0 %v4610
    %4705 = vmatprep.subr.bf16.mxu0 %v4607
    %4706 = vmatpush1.bf16.msra.mxu0 %v4606
    %4707 = vmatprep.subr.bf16.mxu0 %v4603
    %4708 = vmatpush1.bf16.msra.mxu0 %v4602
    %4709 = vmatprep.subr.bf16.mxu0 %v4599
    %4710 = vmatpush1.bf16.msra.mxu0 %v4598
    %4711 = vmatprep.subr.bf16.mxu0 %v4595
    %4712 = vmatpush1.bf16.msra.mxu0 %v4594
    %4713 = vmatprep.subr.bf16.mxu0 0
    %4714 = vmatpush2.bf16.msra.mxu0 0
    %4715 = vmatprep.subr.bf16.mxu0 0
    %4716 = vmatpush2.bf16.msra.mxu0 0
    %4717 = vmatprep.subr.bf16.mxu0 0
    %4718 = vmatpush2.bf16.msra.mxu0 0
    %4719 = vmatprep.subr.bf16.mxu0 0
    %4720 = vmatpush2.bf16.msra.mxu0 0
    %4721 = vmatprep.subr.bf16.mxu0 0
    %4722 = vmatpush2.bf16.msra.mxu0 0
    %4723 = vmatprep.subr.bf16.mxu0 0
    %4724 = vmatpush2.bf16.msra.mxu0 0
    %4725 = vmatprep.subr.bf16.mxu0 0
    %4726 = vmatpush2.bf16.msra.mxu0 0
    %4727 = vmatprep.subr.bf16.mxu0 0
    %4728 = vmatpush2.bf16.msra.mxu0 0
    %4729 = vmatprep.mubr.bf16.mxu0 0
    %4730 = vmatmul.mubr.bf16.gmra.mxu0 %v4463
    %v4731 = vpop.f32.mrf.mxu0
    %v4732 = vadd.f32 0.0, %v4731
    %v4733 = vpop.f32.mrf.mxu0
    %v4734 = vadd.f32 0.0, %v4733
    %v4735 = vpop.f32.mrf.mxu0
    %v4736 = vpop.f32.mrf.mxu0
    %4737 = vdwg.mxu0
    %v4738 = vadd.f32 %v4458, %v4691
    %v4739 = vadd.f32 %v4459, %v4693
    %v4740 = vadd.f32 %v4460, %v4732
    %v4741 = vadd.f32 %v4461, %v4734
    %v4742 = vxor.u32 %v4738, 2147483648
    %v4743 = vxor.u32 %v4739, 2147483648
    %v4744 = vxor.u32 %v4740, 2147483648
    %v4745 = vmul.f32 %v4742, 1.442695
    %v4746 = vpow.pop %v4745
    %v4747 = vmul.f32 %v4743, 1.442695
    %v4748 = vpow.pop %v4747
    %v4749 = vmul.f32 %v4744, 1.442695
    %v4750 = vpow.pop %v4749
    %v4751 = vadd.f32 %v4746, 1.0
    %v4752 = vadd.f32 %v4748, 1.0
    %v4753 = vadd.f32 %v4750, 1.0
    %v4754 = vrcp.pop %v4751
    %v4755 = vmul.f32 1.0, %v4754
    %v4756 = vrcp.pop %v4752
    %v4757 = vmul.f32 1.0, %v4756
    %v4758 = vrcp.pop %v4753
    %v4759 = vmul.f32 1.0, %v4758
    %v4760 = vtanh.pop %v4741
    %v4761 = vld [vmem:[#allocation4] sm:$0xff]
    %v4762 = vmul.f32 %v4757, %v4761
    %v4763 = vmul.f32 %v4755, %v4760
    %v4764 = vadd.f32 %v4762, %v4763
    %v4765 = vtanh.pop %v4764
    %v4766 = vmul.f32 %v4759, %v4765
    %4767 = vst [vmem:[#allocation4] sm:$0xff] %v4764
    %4768 = vst [vmem:[#allocation3] sm:$0xff] %v4766
    %v4769 = vld [vmem:[#allocation3] sm:$0xff]
    %v4770 = vld [vmem:[#allocation3 + $0x8] sm:$0xff]
    %v4771 = vpack.c.bf16 %v4769, %v4769
    %v4772 = vpack.c.bf16 %v4770, %v4770
    %v4773 = vld [vmem:[%s4] sm:$0xff]
    %v4774 = vld [vmem:[%s4 + $0x8] sm:$0xff]
    %v4775 = vld [vmem:[%s4 + $0x10] sm:$0xff]
    %v4776 = vld [vmem:[%s4 + $0x18] sm:$0xff]
    %v4777 = vld [vmem:[%s4 + $0x20] sm:$0xff]
    %v4778 = vld [vmem:[%s4 + $0x28] sm:$0xff]
    %v4779 = vld [vmem:[%s4 + $0x30] sm:$0xff]
    %v4780 = vld [vmem:[%s4 + $0x38] sm:$0xff]
    %v4781 = vld [vmem:[%s4 + $0x40] sm:$0xff]
    %v4782 = vld [vmem:[%s4 + $0x48] sm:$0xff]
    %v4783 = vld [vmem:[%s4 + $0x50] sm:$0xff]
    %v4784 = vld [vmem:[%s4 + $0x58] sm:$0xff]
    %v4785 = vld [vmem:[%s4 + $0x60] sm:$0xff]
    %v4786 = vld [vmem:[%s4 + $0x68] sm:$0xff]
    %v4787 = vld [vmem:[%s4 + $0x70] sm:$0xff]
    %v4788 = vld [vmem:[%s4 + $0x78] sm:$0xff]
    %v4789 = vld [vmem:[%s4 + $0x80] sm:$0xff]
    %v4790 = vld [vmem:[%s4 + $0x88] sm:$0xff]
    %v4791 = vld [vmem:[%s4 + $0x90] sm:$0xff]
    %v4792 = vld [vmem:[%s4 + $0x98] sm:$0xff]
    %v4793 = vld [vmem:[%s4 + $0xa0] sm:$0xff]
    %v4794 = vld [vmem:[%s4 + $0xa8] sm:$0xff]
    %v4795 = vld [vmem:[%s4 + $0xb0] sm:$0xff]
    %v4796 = vld [vmem:[%s4 + $0xb8] sm:$0xff]
    %v4797 = vld [vmem:[%s4 + $0xc0] sm:$0xff]
    %v4798 = vld [vmem:[%s4 + $0xc8] sm:$0xff]
    %v4799 = vld [vmem:[%s4 + $0xd0] sm:$0xff]
    %v4800 = vld [vmem:[%s4 + $0xd8] sm:$0xff]
    %v4801 = vld [vmem:[%s4 + $0xe0] sm:$0xff]
    %v4802 = vld [vmem:[%s4 + $0xe8] sm:$0xff]
    %v4803 = vld [vmem:[%s4 + $0xf0] sm:$0xff]
    %v4804 = vld [vmem:[%s4 + $0xf8] sm:$0xff]
    %v4805 = vld [vmem:[%s4 + $0x100] sm:$0xff]
    %v4806 = vld [vmem:[%s4 + $0x108] sm:$0xff]
    %v4807 = vld [vmem:[%s4 + $0x110] sm:$0xff]
    %v4808 = vld [vmem:[%s4 + $0x118] sm:$0xff]
    %v4809 = vld [vmem:[%s4 + $0x120] sm:$0xff]
    %v4810 = vld [vmem:[%s4 + $0x128] sm:$0xff]
    %v4811 = vld [vmem:[%s4 + $0x130] sm:$0xff]
    %v4812 = vld [vmem:[%s4 + $0x138] sm:$0xff]
    %v4813 = vld [vmem:[%s4 + $0x140] sm:$0xff]
    %v4814 = vld [vmem:[%s4 + $0x148] sm:$0xff]
    %v4815 = vld [vmem:[%s4 + $0x150] sm:$0xff]
    %v4816 = vld [vmem:[%s4 + $0x158] sm:$0xff]
    %v4817 = vld [vmem:[%s4 + $0x160] sm:$0xff]
    %v4818 = vld [vmem:[%s4 + $0x168] sm:$0xff]
    %v4819 = vld [vmem:[%s4 + $0x170] sm:$0xff]
    %v4820 = vld [vmem:[%s4 + $0x178] sm:$0xff]
    %v4821 = vld [vmem:[%s4 + $0x180] sm:$0xff]
    %v4822 = vld [vmem:[%s4 + $0x188] sm:$0xff]
    %v4823 = vld [vmem:[%s4 + $0x190] sm:$0xff]
    %v4824 = vld [vmem:[%s4 + $0x198] sm:$0xff]
    %v4825 = vld [vmem:[%s4 + $0x1a0] sm:$0xff]
    %v4826 = vld [vmem:[%s4 + $0x1a8] sm:$0xff]
    %v4827 = vld [vmem:[%s4 + $0x1b0] sm:$0xff]
    %v4828 = vld [vmem:[%s4 + $0x1b8] sm:$0xff]
    %v4829 = vld [vmem:[%s4 + $0x1c0] sm:$0xff]
    %v4830 = vld [vmem:[%s4 + $0x1c8] sm:$0xff]
    %v4831 = vld [vmem:[%s4 + $0x1d0] sm:$0xff]
    %v4832 = vld [vmem:[%s4 + $0x1d8] sm:$0xff]
    %v4833 = vld [vmem:[%s4 + $0x1e0] sm:$0xff]
    %v4834 = vld [vmem:[%s4 + $0x1e8] sm:$0xff]
    %v4835 = vld [vmem:[%s4 + $0x1f0] sm:$0xff]
    %v4836 = vld [vmem:[%s4 + $0x1f8] sm:$0xff]
    %v4837 = vld [vmem:[%s5] sm:$0xf]
    %v4839 = vlaneseq
    %v4840 = vshrl.u32 %v4839, 7
    %v4841 = vsub.s32 0, %v4840
    %v4842 = vrot.slane %v4837, %v4841
    %v4843 = vlaneseq
    %v4844 = vshrl.u32 %v4843, 7
    %v4845 = vsub.s32 1, %v4844
    %v4846 = vrot.slane %v4837, %v4845
    %v4847 = vlaneseq
    %v4848 = vshrl.u32 %v4847, 7
    %v4849 = vsub.s32 2, %v4848
    %v4850 = vrot.slane %v4837, %v4849
    %v4851 = vlaneseq
    %v4852 = vshrl.u32 %v4851, 7
    %v4853 = vsub.s32 3, %v4852
    %v4854 = vrot.slane %v4837, %v4853
    %v4923 = vunpack.c.l.b16 %v4773
    %v4924 = vunpack.c.h.b16 %v4773
    %v4925 = vunpack.c.l.b16 %v4774
    %v4926 = vunpack.c.h.b16 %v4774
    %v4927 = vunpack.c.l.b16 %v4775
    %v4928 = vunpack.c.h.b16 %v4775
    %v4929 = vunpack.c.l.b16 %v4776
    %v4930 = vunpack.c.h.b16 %v4776
    %v4931 = vunpack.c.l.b16 %v4777
    %v4932 = vunpack.c.h.b16 %v4777
    %v4933 = vunpack.c.l.b16 %v4778
    %v4934 = vunpack.c.h.b16 %v4778
    %v4935 = vunpack.c.l.b16 %v4779
    %v4936 = vunpack.c.h.b16 %v4779
    %v4937 = vunpack.c.l.b16 %v4780
    %v4938 = vunpack.c.h.b16 %v4780
    %v4939 = vunpack.c.l.b16 %v4781
    %v4940 = vunpack.c.h.b16 %v4781
    %v4941 = vunpack.c.l.b16 %v4782
    %v4942 = vunpack.c.h.b16 %v4782
    %v4943 = vunpack.c.l.b16 %v4783
    %v4944 = vunpack.c.h.b16 %v4783
    %v4945 = vunpack.c.l.b16 %v4784
    %v4946 = vunpack.c.h.b16 %v4784
    %v4947 = vunpack.c.l.b16 %v4785
    %v4948 = vunpack.c.h.b16 %v4785
    %v4949 = vunpack.c.l.b16 %v4786
    %v4950 = vunpack.c.h.b16 %v4786
    %v4951 = vunpack.c.l.b16 %v4787
    %v4952 = vunpack.c.h.b16 %v4787
    %v4953 = vunpack.c.l.b16 %v4788
    %v4954 = vunpack.c.h.b16 %v4788
    %v4955 = vunpack.c.l.b16 %v4789
    %v4956 = vunpack.c.h.b16 %v4789
    %v4957 = vunpack.c.l.b16 %v4790
    %v4958 = vunpack.c.h.b16 %v4790
    %v4959 = vunpack.c.l.b16 %v4791
    %v4960 = vunpack.c.h.b16 %v4791
    %v4961 = vunpack.c.l.b16 %v4792
    %v4962 = vunpack.c.h.b16 %v4792
    %v4963 = vunpack.c.l.b16 %v4793
    %v4964 = vunpack.c.h.b16 %v4793
    %v4965 = vunpack.c.l.b16 %v4794
    %v4966 = vunpack.c.h.b16 %v4794
    %v4967 = vunpack.c.l.b16 %v4795
    %v4968 = vunpack.c.h.b16 %v4795
    %v4969 = vunpack.c.l.b16 %v4796
    %v4970 = vunpack.c.h.b16 %v4796
    %v4971 = vunpack.c.l.b16 %v4797
    %v4972 = vunpack.c.h.b16 %v4797
    %v4973 = vunpack.c.l.b16 %v4798
    %v4974 = vunpack.c.h.b16 %v4798
    %v4975 = vunpack.c.l.b16 %v4799
    %v4976 = vunpack.c.h.b16 %v4799
    %v4977 = vunpack.c.l.b16 %v4800
    %v4978 = vunpack.c.h.b16 %v4800
    %v4979 = vunpack.c.l.b16 %v4801
    %v4980 = vunpack.c.h.b16 %v4801
    %v4981 = vunpack.c.l.b16 %v4802
    %v4982 = vunpack.c.h.b16 %v4802
    %v4983 = vunpack.c.l.b16 %v4803
    %v4984 = vunpack.c.h.b16 %v4803
    %v4985 = vunpack.c.l.b16 %v4804
    %v4986 = vunpack.c.h.b16 %v4804
    %v4987 = vunpack.c.l.b16 %v4805
    %v4988 = vunpack.c.h.b16 %v4805
    %v4989 = vunpack.c.l.b16 %v4806
    %v4990 = vunpack.c.h.b16 %v4806
    %v4991 = vunpack.c.l.b16 %v4807
    %v4992 = vunpack.c.h.b16 %v4807
    %v4993 = vunpack.c.l.b16 %v4808
    %v4994 = vunpack.c.h.b16 %v4808
    %v4995 = vunpack.c.l.b16 %v4809
    %v4996 = vunpack.c.h.b16 %v4809
    %v4997 = vunpack.c.l.b16 %v4810
    %v4998 = vunpack.c.h.b16 %v4810
    %v4999 = vunpack.c.l.b16 %v4811
    %v5000 = vunpack.c.h.b16 %v4811
    %v5001 = vunpack.c.l.b16 %v4812
    %v5002 = vunpack.c.h.b16 %v4812
    %v5003 = vunpack.c.l.b16 %v4813
    %v5004 = vunpack.c.h.b16 %v4813
    %v5005 = vunpack.c.l.b16 %v4814
    %v5006 = vunpack.c.h.b16 %v4814
    %v5007 = vunpack.c.l.b16 %v4815
    %v5008 = vunpack.c.h.b16 %v4815
    %v5009 = vunpack.c.l.b16 %v4816
    %v5010 = vunpack.c.h.b16 %v4816
    %v5011 = vunpack.c.l.b16 %v4817
    %v5012 = vunpack.c.h.b16 %v4817
    %v5013 = vunpack.c.l.b16 %v4818
    %v5014 = vunpack.c.h.b16 %v4818
    %v5015 = vunpack.c.l.b16 %v4819
    %v5016 = vunpack.c.h.b16 %v4819
    %v5017 = vunpack.c.l.b16 %v4820
    %v5018 = vunpack.c.h.b16 %v4820
    %v5019 = vunpack.c.l.b16 %v4821
    %v5020 = vunpack.c.h.b16 %v4821
    %v5021 = vunpack.c.l.b16 %v4822
    %v5022 = vunpack.c.h.b16 %v4822
    %v5023 = vunpack.c.l.b16 %v4823
    %v5024 = vunpack.c.h.b16 %v4823
    %v5025 = vunpack.c.l.b16 %v4824
    %v5026 = vunpack.c.h.b16 %v4824
    %v5027 = vunpack.c.l.b16 %v4825
    %v5028 = vunpack.c.h.b16 %v4825
    %v5029 = vunpack.c.l.b16 %v4826
    %v5030 = vunpack.c.h.b16 %v4826
    %v5031 = vunpack.c.l.b16 %v4827
    %v5032 = vunpack.c.h.b16 %v4827
    %v5033 = vunpack.c.l.b16 %v4828
    %v5034 = vunpack.c.h.b16 %v4828
    %v5035 = vunpack.c.l.b16 %v4829
    %v5036 = vunpack.c.h.b16 %v4829
    %v5037 = vunpack.c.l.b16 %v4830
    %v5038 = vunpack.c.h.b16 %v4830
    %v5039 = vunpack.c.l.b16 %v4831
    %v5040 = vunpack.c.h.b16 %v4831
    %v5041 = vunpack.c.l.b16 %v4832
    %v5042 = vunpack.c.h.b16 %v4832
    %v5043 = vunpack.c.l.b16 %v4833
    %v5044 = vunpack.c.h.b16 %v4833
    %v5045 = vunpack.c.l.b16 %v4834
    %v5046 = vunpack.c.h.b16 %v4834
    %v5047 = vunpack.c.l.b16 %v4835
    %v5048 = vunpack.c.h.b16 %v4835
    %v5049 = vunpack.c.l.b16 %v4836
    %v5050 = vunpack.c.h.b16 %v4836
    %v5051 = vpack.c.b16 %v4927, %v4923
    %v5052 = vpack.c.b16 %v4928, %v4924
    %v5053 = vpack.c.b16 %v4929, %v4925
    %v5054 = vpack.c.b16 %v4930, %v4926
    %v5055 = vpack.c.b16 %v4935, %v4931
    %v5056 = vpack.c.b16 %v4936, %v4932
    %v5057 = vpack.c.b16 %v4937, %v4933
    %v5058 = vpack.c.b16 %v4938, %v4934
    %v5059 = vpack.c.b16 %v4943, %v4939
    %v5060 = vpack.c.b16 %v4944, %v4940
    %v5061 = vpack.c.b16 %v4945, %v4941
    %v5062 = vpack.c.b16 %v4946, %v4942
    %v5063 = vpack.c.b16 %v4951, %v4947
    %v5064 = vpack.c.b16 %v4952, %v4948
    %v5065 = vpack.c.b16 %v4953, %v4949
    %v5066 = vpack.c.b16 %v4954, %v4950
    %v5067 = vpack.c.b16 %v4959, %v4955
    %v5068 = vpack.c.b16 %v4960, %v4956
    %v5069 = vpack.c.b16 %v4961, %v4957
    %v5070 = vpack.c.b16 %v4962, %v4958
    %v5071 = vpack.c.b16 %v4967, %v4963
    %v5072 = vpack.c.b16 %v4968, %v4964
    %v5073 = vpack.c.b16 %v4969, %v4965
    %v5074 = vpack.c.b16 %v4970, %v4966
    %v5075 = vpack.c.b16 %v4975, %v4971
    %v5076 = vpack.c.b16 %v4976, %v4972
    %v5077 = vpack.c.b16 %v4977, %v4973
    %v5078 = vpack.c.b16 %v4978, %v4974
    %v5079 = vpack.c.b16 %v4983, %v4979
    %v5080 = vpack.c.b16 %v4984, %v4980
    %v5081 = vpack.c.b16 %v4985, %v4981
    %v5082 = vpack.c.b16 %v4986, %v4982
    %v5083 = vpack.c.b16 %v4991, %v4987
    %v5084 = vpack.c.b16 %v4992, %v4988
    %v5085 = vpack.c.b16 %v4993, %v4989
    %v5086 = vpack.c.b16 %v4994, %v4990
    %v5087 = vpack.c.b16 %v4999, %v4995
    %v5088 = vpack.c.b16 %v5000, %v4996
    %v5089 = vpack.c.b16 %v5001, %v4997
    %v5090 = vpack.c.b16 %v5002, %v4998
    %v5091 = vpack.c.b16 %v5007, %v5003
    %v5092 = vpack.c.b16 %v5008, %v5004
    %v5093 = vpack.c.b16 %v5009, %v5005
    %v5094 = vpack.c.b16 %v5010, %v5006
    %v5095 = vpack.c.b16 %v5015, %v5011
    %v5096 = vpack.c.b16 %v5016, %v5012
    %v5097 = vpack.c.b16 %v5017, %v5013
    %v5098 = vpack.c.b16 %v5018, %v5014
    %v5099 = vpack.c.b16 %v5023, %v5019
    %v5100 = vpack.c.b16 %v5024, %v5020
    %v5101 = vpack.c.b16 %v5025, %v5021
    %v5102 = vpack.c.b16 %v5026, %v5022
    %v5103 = vpack.c.b16 %v5031, %v5027
    %v5104 = vpack.c.b16 %v5032, %v5028
    %v5105 = vpack.c.b16 %v5033, %v5029
    %v5106 = vpack.c.b16 %v5034, %v5030
    %v5107 = vpack.c.b16 %v5039, %v5035
    %v5108 = vpack.c.b16 %v5040, %v5036
    %v5109 = vpack.c.b16 %v5041, %v5037
    %v5110 = vpack.c.b16 %v5042, %v5038
    %v5111 = vpack.c.b16 %v5047, %v5043
    %v5112 = vpack.c.b16 %v5048, %v5044
    %v5113 = vpack.c.b16 %v5049, %v5045
    %v5114 = vpack.c.b16 %v5050, %v5046
    %5179 = vmatprep.subr.bf16.mxu0 %v5080
    %5180 = vmatpush1.bf16.msra.mxu0 %v5079
    %5181 = vmatprep.subr.bf16.mxu0 %v5076
    %5182 = vmatpush1.bf16.msra.mxu0 %v5075
    %5183 = vmatprep.subr.bf16.mxu0 %v5072
    %5184 = vmatpush1.bf16.msra.mxu0 %v5071
    %5185 = vmatprep.subr.bf16.mxu0 %v5068
    %5186 = vmatpush1.bf16.msra.mxu0 %v5067
    %5187 = vmatprep.subr.bf16.mxu0 %v5064
    %5188 = vmatpush1.bf16.msra.mxu0 %v5063
    %5189 = vmatprep.subr.bf16.mxu0 %v5060
    %5190 = vmatpush1.bf16.msra.mxu0 %v5059
    %5191 = vmatprep.subr.bf16.mxu0 %v5056
    %5192 = vmatpush1.bf16.msra.mxu0 %v5055
    %5193 = vmatprep.subr.bf16.mxu0 %v5052
    %5194 = vmatpush1.bf16.msra.mxu0 %v5051
    %5195 = vmatprep.subr.bf16.mxu0 %v5112
    %5196 = vmatpush2.bf16.msra.mxu0 %v5111
    %5197 = vmatprep.subr.bf16.mxu0 %v5108
    %5198 = vmatpush2.bf16.msra.mxu0 %v5107
    %5199 = vmatprep.subr.bf16.mxu0 %v5104
    %5200 = vmatpush2.bf16.msra.mxu0 %v5103
    %5201 = vmatprep.subr.bf16.mxu0 %v5100
    %5202 = vmatpush2.bf16.msra.mxu0 %v5099
    %5203 = vmatprep.subr.bf16.mxu0 %v5096
    %5204 = vmatpush2.bf16.msra.mxu0 %v5095
    %5205 = vmatprep.subr.bf16.mxu0 %v5092
    %5206 = vmatpush2.bf16.msra.mxu0 %v5091
    %5207 = vmatprep.subr.bf16.mxu0 %v5088
    %5208 = vmatpush2.bf16.msra.mxu0 %v5087
    %5209 = vmatprep.subr.bf16.mxu0 %v5084
    %5210 = vmatpush2.bf16.msra.mxu0 %v5083
    %5211 = vmatprep.mubr.bf16.mxu0 %v4772
    %5212 = vmatmul.mubr.bf16.gmra.mxu0 %v4771
    %v5213 = vpop.f32.mrf.mxu0
    %v5214 = vadd.f32 %v4842, %v5213
    %v5215 = vpop.f32.mrf.mxu0
    %v5216 = vadd.f32 %v4846, %v5215
    %v5217 = vpop.f32.mrf.mxu0
    %v5218 = vpop.f32.mrf.mxu0
    %5219 = vdwg.mxu0
    %5220 = vmatprep.subr.bf16.mxu0 %v5082
    %5221 = vmatpush1.bf16.msra.mxu0 %v5081
    %5222 = vmatprep.subr.bf16.mxu0 %v5078
    %5223 = vmatpush1.bf16.msra.mxu0 %v5077
    %5224 = vmatprep.subr.bf16.mxu0 %v5074
    %5225 = vmatpush1.bf16.msra.mxu0 %v5073
    %5226 = vmatprep.subr.bf16.mxu0 %v5070
    %5227 = vmatpush1.bf16.msra.mxu0 %v5069
    %5228 = vmatprep.subr.bf16.mxu0 %v5066
    %5229 = vmatpush1.bf16.msra.mxu0 %v5065
    %5230 = vmatprep.subr.bf16.mxu0 %v5062
    %5231 = vmatpush1.bf16.msra.mxu0 %v5061
    %5232 = vmatprep.subr.bf16.mxu0 %v5058
    %5233 = vmatpush1.bf16.msra.mxu0 %v5057
    %5234 = vmatprep.subr.bf16.mxu0 %v5054
    %5235 = vmatpush1.bf16.msra.mxu0 %v5053
    %5236 = vmatprep.subr.bf16.mxu0 %v5114
    %5237 = vmatpush2.bf16.msra.mxu0 %v5113
    %5238 = vmatprep.subr.bf16.mxu0 %v5110
    %5239 = vmatpush2.bf16.msra.mxu0 %v5109
    %5240 = vmatprep.subr.bf16.mxu0 %v5106
    %5241 = vmatpush2.bf16.msra.mxu0 %v5105
    %5242 = vmatprep.subr.bf16.mxu0 %v5102
    %5243 = vmatpush2.bf16.msra.mxu0 %v5101
    %5244 = vmatprep.subr.bf16.mxu0 %v5098
    %5245 = vmatpush2.bf16.msra.mxu0 %v5097
    %5246 = vmatprep.subr.bf16.mxu0 %v5094
    %5247 = vmatpush2.bf16.msra.mxu0 %v5093
    %5248 = vmatprep.subr.bf16.mxu0 %v5090
    %5249 = vmatpush2.bf16.msra.mxu0 %v5089
    %5250 = vmatprep.subr.bf16.mxu0 %v5086
    %5251 = vmatpush2.bf16.msra.mxu0 %v5085
    %5252 = vmatprep.mubr.bf16.mxu0 %v4772
    %5253 = vmatmul.mubr.bf16.gmra.mxu0 %v4771
    %v5254 = vpop.f32.mrf.mxu0
    %v5255 = vadd.f32 %v4850, %v5254
    %v5256 = vpop.f32.mrf.mxu0
    %v5257 = vadd.f32 %v4854, %v5256
    %v5258 = vpop.f32.mrf.mxu0
    %v5259 = vpop.f32.mrf.mxu0
    %5260 = vdwg.mxu0
    %v5261 = vxor.u32 %v5214, 2147483648
    %v5262 = vxor.u32 %v5216, 2147483648
    %v5263 = vxor.u32 %v5255, 2147483648
    %v5264 = vmul.f32 %v5261, 1.442695
    %v5265 = vpow.pop %v5264
    %v5266 = vmul.f32 %v5262, 1.442695
    %v5267 = vpow.pop %v5266
    %v5268 = vmul.f32 %v5263, 1.442695
    %v5269 = vpow.pop %v5268
    %v5270 = vadd.f32 %v5265, 1.0
    %v5271 = vadd.f32 %v5267, 1.0
    %v5272 = vadd.f32 %v5269, 1.0
    %v5273 = vrcp.pop %v5270
    %v5274 = vmul.f32 1.0, %v5273
    %v5275 = vrcp.pop %v5271
    %v5276 = vmul.f32 1.0, %v5275
    %v5277 = vrcp.pop %v5272
    %v5278 = vmul.f32 1.0, %v5277
    %v5279 = vtanh.pop %v5257
    %v5280 = vld [vmem:[#allocation4 + $0x8] sm:$0xff]
    %v5281 = vmul.f32 %v5276, %v5280
    %v5282 = vmul.f32 %v5274, %v5279
    %v5283 = vadd.f32 %v5281, %v5282
    %v5284 = vtanh.pop %v5283
    %v5285 = vmul.f32 %v5278, %v5284
    %5286 = vst [vmem:[#allocation4 + $0x8] sm:$0xff] %v5283
    %5287 = vst [vmem:[#allocation3 + $0x8] sm:$0xff] %v5285
    %v5288 = vld [vmem:[#allocation2 + $0xc0] sm:$0xff]
    %v5289 = vld [vmem:[#allocation2 + $0xc8] sm:$0xff]
    %v5290 = vld [vmem:[#allocation2 + $0xd0] sm:$0xff]
    %v5291 = vld [vmem:[#allocation2 + $0xd8] sm:$0xff]
    %v5292 = vld [vmem:[#allocation3] sm:$0xff]
    %v5293 = vpack.c.bf16 %v5292, %v5292
    %v5294 = vld [vmem:[%s2] sm:$0xff]
    %v5295 = vld [vmem:[%s2 + $0x8] sm:$0xff]
    %v5296 = vld [vmem:[%s2 + $0x10] sm:$0xff]
    %v5297 = vld [vmem:[%s2 + $0x18] sm:$0xff]
    %v5298 = vld [vmem:[%s2 + $0x20] sm:$0xff]
    %v5299 = vld [vmem:[%s2 + $0x28] sm:$0xff]
    %v5300 = vld [vmem:[%s2 + $0x30] sm:$0xff]
    %v5301 = vld [vmem:[%s2 + $0x38] sm:$0xff]
    %v5302 = vld [vmem:[%s2 + $0x40] sm:$0xff]
    %v5303 = vld [vmem:[%s2 + $0x48] sm:$0xff]
    %v5304 = vld [vmem:[%s2 + $0x50] sm:$0xff]
    %v5305 = vld [vmem:[%s2 + $0x58] sm:$0xff]
    %v5306 = vld [vmem:[%s2 + $0x60] sm:$0xff]
    %v5307 = vld [vmem:[%s2 + $0x68] sm:$0xff]
    %v5308 = vld [vmem:[%s2 + $0x70] sm:$0xff]
    %v5309 = vld [vmem:[%s2 + $0x78] sm:$0xff]
    %v5310 = vld [vmem:[%s2 + $0x80] sm:$0xff]
    %v5311 = vld [vmem:[%s2 + $0x88] sm:$0xff]
    %v5312 = vld [vmem:[%s2 + $0x90] sm:$0xff]
    %v5313 = vld [vmem:[%s2 + $0x98] sm:$0xff]
    %v5314 = vld [vmem:[%s2 + $0xa0] sm:$0xff]
    %v5315 = vld [vmem:[%s2 + $0xa8] sm:$0xff]
    %v5316 = vld [vmem:[%s2 + $0xb0] sm:$0xff]
    %v5317 = vld [vmem:[%s2 + $0xb8] sm:$0xff]
    %v5318 = vld [vmem:[%s2 + $0xc0] sm:$0xff]
    %v5319 = vld [vmem:[%s2 + $0xc8] sm:$0xff]
    %v5320 = vld [vmem:[%s2 + $0xd0] sm:$0xff]
    %v5321 = vld [vmem:[%s2 + $0xd8] sm:$0xff]
    %v5322 = vld [vmem:[%s2 + $0xe0] sm:$0xff]
    %v5323 = vld [vmem:[%s2 + $0xe8] sm:$0xff]
    %v5324 = vld [vmem:[%s2 + $0xf0] sm:$0xff]
    %v5325 = vld [vmem:[%s2 + $0xf8] sm:$0xff]
    %v5358 = vunpack.c.l.b16 %v5294
    %v5359 = vunpack.c.h.b16 %v5294
    %v5360 = vunpack.c.l.b16 %v5295
    %v5361 = vunpack.c.h.b16 %v5295
    %v5362 = vunpack.c.l.b16 %v5296
    %v5363 = vunpack.c.h.b16 %v5296
    %v5364 = vunpack.c.l.b16 %v5297
    %v5365 = vunpack.c.h.b16 %v5297
    %v5366 = vunpack.c.l.b16 %v5298
    %v5367 = vunpack.c.h.b16 %v5298
    %v5368 = vunpack.c.l.b16 %v5299
    %v5369 = vunpack.c.h.b16 %v5299
    %v5370 = vunpack.c.l.b16 %v5300
    %v5371 = vunpack.c.h.b16 %v5300
    %v5372 = vunpack.c.l.b16 %v5301
    %v5373 = vunpack.c.h.b16 %v5301
    %v5374 = vunpack.c.l.b16 %v5302
    %v5375 = vunpack.c.h.b16 %v5302
    %v5376 = vunpack.c.l.b16 %v5303
    %v5377 = vunpack.c.h.b16 %v5303
    %v5378 = vunpack.c.l.b16 %v5304
    %v5379 = vunpack.c.h.b16 %v5304
    %v5380 = vunpack.c.l.b16 %v5305
    %v5381 = vunpack.c.h.b16 %v5305
    %v5382 = vunpack.c.l.b16 %v5306
    %v5383 = vunpack.c.h.b16 %v5306
    %v5384 = vunpack.c.l.b16 %v5307
    %v5385 = vunpack.c.h.b16 %v5307
    %v5386 = vunpack.c.l.b16 %v5308
    %v5387 = vunpack.c.h.b16 %v5308
    %v5388 = vunpack.c.l.b16 %v5309
    %v5389 = vunpack.c.h.b16 %v5309
    %v5390 = vunpack.c.l.b16 %v5310
    %v5391 = vunpack.c.h.b16 %v5310
    %v5392 = vunpack.c.l.b16 %v5311
    %v5393 = vunpack.c.h.b16 %v5311
    %v5394 = vunpack.c.l.b16 %v5312
    %v5395 = vunpack.c.h.b16 %v5312
    %v5396 = vunpack.c.l.b16 %v5313
    %v5397 = vunpack.c.h.b16 %v5313
    %v5398 = vunpack.c.l.b16 %v5314
    %v5399 = vunpack.c.h.b16 %v5314
    %v5400 = vunpack.c.l.b16 %v5315
    %v5401 = vunpack.c.h.b16 %v5315
    %v5402 = vunpack.c.l.b16 %v5316
    %v5403 = vunpack.c.h.b16 %v5316
    %v5404 = vunpack.c.l.b16 %v5317
    %v5405 = vunpack.c.h.b16 %v5317
    %v5406 = vunpack.c.l.b16 %v5318
    %v5407 = vunpack.c.h.b16 %v5318
    %v5408 = vunpack.c.l.b16 %v5319
    %v5409 = vunpack.c.h.b16 %v5319
    %v5410 = vunpack.c.l.b16 %v5320
    %v5411 = vunpack.c.h.b16 %v5320
    %v5412 = vunpack.c.l.b16 %v5321
    %v5413 = vunpack.c.h.b16 %v5321
    %v5414 = vunpack.c.l.b16 %v5322
    %v5415 = vunpack.c.h.b16 %v5322
    %v5416 = vunpack.c.l.b16 %v5323
    %v5417 = vunpack.c.h.b16 %v5323
    %v5418 = vunpack.c.l.b16 %v5324
    %v5419 = vunpack.c.h.b16 %v5324
    %v5420 = vunpack.c.l.b16 %v5325
    %v5421 = vunpack.c.h.b16 %v5325
    %v5422 = vpack.c.b16 %v5362, %v5358
    %v5423 = vpack.c.b16 %v5363, %v5359
    %v5424 = vpack.c.b16 %v5364, %v5360
    %v5425 = vpack.c.b16 %v5365, %v5361
    %v5426 = vpack.c.b16 %v5370, %v5366
    %v5427 = vpack.c.b16 %v5371, %v5367
    %v5428 = vpack.c.b16 %v5372, %v5368
    %v5429 = vpack.c.b16 %v5373, %v5369
    %v5430 = vpack.c.b16 %v5378, %v5374
    %v5431 = vpack.c.b16 %v5379, %v5375
    %v5432 = vpack.c.b16 %v5380, %v5376
    %v5433 = vpack.c.b16 %v5381, %v5377
    %v5434 = vpack.c.b16 %v5386, %v5382
    %v5435 = vpack.c.b16 %v5387, %v5383
    %v5436 = vpack.c.b16 %v5388, %v5384
    %v5437 = vpack.c.b16 %v5389, %v5385
    %v5438 = vpack.c.b16 %v5394, %v5390
    %v5439 = vpack.c.b16 %v5395, %v5391
    %v5440 = vpack.c.b16 %v5396, %v5392
    %v5441 = vpack.c.b16 %v5397, %v5393
    %v5442 = vpack.c.b16 %v5402, %v5398
    %v5443 = vpack.c.b16 %v5403, %v5399
    %v5444 = vpack.c.b16 %v5404, %v5400
    %v5445 = vpack.c.b16 %v5405, %v5401
    %v5446 = vpack.c.b16 %v5410, %v5406
    %v5447 = vpack.c.b16 %v5411, %v5407
    %v5448 = vpack.c.b16 %v5412, %v5408
    %v5449 = vpack.c.b16 %v5413, %v5409
    %v5450 = vpack.c.b16 %v5418, %v5414
    %v5451 = vpack.c.b16 %v5419, %v5415
    %v5452 = vpack.c.b16 %v5420, %v5416
    %v5453 = vpack.c.b16 %v5421, %v5417
    %5486 = vmatprep.subr.bf16.mxu0 %v5451
    %5487 = vmatpush1.bf16.msra.mxu0 %v5450
    %5488 = vmatprep.subr.bf16.mxu0 %v5447
    %5489 = vmatpush1.bf16.msra.mxu0 %v5446
    %5490 = vmatprep.subr.bf16.mxu0 %v5443
    %5491 = vmatpush1.bf16.msra.mxu0 %v5442
    %5492 = vmatprep.subr.bf16.mxu0 %v5439
    %5493 = vmatpush1.bf16.msra.mxu0 %v5438
    %5494 = vmatprep.subr.bf16.mxu0 %v5435
    %5495 = vmatpush1.bf16.msra.mxu0 %v5434
    %5496 = vmatprep.subr.bf16.mxu0 %v5431
    %5497 = vmatpush1.bf16.msra.mxu0 %v5430
    %5498 = vmatprep.subr.bf16.mxu0 %v5427
    %5499 = vmatpush1.bf16.msra.mxu0 %v5426
    %5500 = vmatprep.subr.bf16.mxu0 %v5423
    %5501 = vmatpush1.bf16.msra.mxu0 %v5422
    %5502 = vmatprep.subr.bf16.mxu0 0
    %5503 = vmatpush2.bf16.msra.mxu0 0
    %5504 = vmatprep.subr.bf16.mxu0 0
    %5505 = vmatpush2.bf16.msra.mxu0 0
    %5506 = vmatprep.subr.bf16.mxu0 0
    %5507 = vmatpush2.bf16.msra.mxu0 0
    %5508 = vmatprep.subr.bf16.mxu0 0
    %5509 = vmatpush2.bf16.msra.mxu0 0
    %5510 = vmatprep.subr.bf16.mxu0 0
    %5511 = vmatpush2.bf16.msra.mxu0 0
    %5512 = vmatprep.subr.bf16.mxu0 0
    %5513 = vmatpush2.bf16.msra.mxu0 0
    %5514 = vmatprep.subr.bf16.mxu0 0
    %5515 = vmatpush2.bf16.msra.mxu0 0
    %5516 = vmatprep.subr.bf16.mxu0 0
    %5517 = vmatpush2.bf16.msra.mxu0 0
    %5518 = vmatprep.mubr.bf16.mxu0 0
    %5519 = vmatmul.mubr.bf16.gmra.mxu0 %v5293
    %v5520 = vpop.f32.mrf.mxu0
    %v5521 = vadd.f32 0.0, %v5520
    %v5522 = vpop.f32.mrf.mxu0
    %v5523 = vadd.f32 0.0, %v5522
    %v5524 = vpop.f32.mrf.mxu0
    %v5525 = vpop.f32.mrf.mxu0
    %5526 = vdwg.mxu0
    %5527 = vmatprep.subr.bf16.mxu0 %v5453
    %5528 = vmatpush1.bf16.msra.mxu0 %v5452
    %5529 = vmatprep.subr.bf16.mxu0 %v5449
    %5530 = vmatpush1.bf16.msra.mxu0 %v5448
    %5531 = vmatprep.subr.bf16.mxu0 %v5445
    %5532 = vmatpush1.bf16.msra.mxu0 %v5444
    %5533 = vmatprep.subr.bf16.mxu0 %v5441
    %5534 = vmatpush1.bf16.msra.mxu0 %v5440
    %5535 = vmatprep.subr.bf16.mxu0 %v5437
    %5536 = vmatpush1.bf16.msra.mxu0 %v5436
    %5537 = vmatprep.subr.bf16.mxu0 %v5433
    %5538 = vmatpush1.bf16.msra.mxu0 %v5432
    %5539 = vmatprep.subr.bf16.mxu0 %v5429
    %5540 = vmatpush1.bf16.msra.mxu0 %v5428
    %5541 = vmatprep.subr.bf16.mxu0 %v5425
    %5542 = vmatpush1.bf16.msra.mxu0 %v5424
    %5543 = vmatprep.subr.bf16.mxu0 0
    %5544 = vmatpush2.bf16.msra.mxu0 0
    %5545 = vmatprep.subr.bf16.mxu0 0
    %5546 = vmatpush2.bf16.msra.mxu0 0
    %5547 = vmatprep.subr.bf16.mxu0 0
    %5548 = vmatpush2.bf16.msra.mxu0 0
    %5549 = vmatprep.subr.bf16.mxu0 0
    %5550 = vmatpush2.bf16.msra.mxu0 0
    %5551 = vmatprep.subr.bf16.mxu0 0
    %5552 = vmatpush2.bf16.msra.mxu0 0
    %5553 = vmatprep.subr.bf16.mxu0 0
    %5554 = vmatpush2.bf16.msra.mxu0 0
    %5555 = vmatprep.subr.bf16.mxu0 0
    %5556 = vmatpush2.bf16.msra.mxu0 0
    %5557 = vmatprep.subr.bf16.mxu0 0
    %5558 = vmatpush2.bf16.msra.mxu0 0
    %5559 = vmatprep.mubr.bf16.mxu0 0
    %5560 = vmatmul.mubr.bf16.gmra.mxu0 %v5293
    %v5561 = vpop.f32.mrf.mxu0
    %v5562 = vadd.f32 0.0, %v5561
    %v5563 = vpop.f32.mrf.mxu0
    %v5564 = vadd.f32 0.0, %v5563
    %v5565 = vpop.f32.mrf.mxu0
    %v5566 = vpop.f32.mrf.mxu0
    %5567 = vdwg.mxu0
    %v5568 = vadd.f32 %v5288, %v5521
    %v5569 = vadd.f32 %v5289, %v5523
    %v5570 = vadd.f32 %v5290, %v5562
    %v5571 = vadd.f32 %v5291, %v5564
    %v5572 = vxor.u32 %v5568, 2147483648
    %v5573 = vxor.u32 %v5569, 2147483648
    %v5574 = vxor.u32 %v5570, 2147483648
    %v5575 = vmul.f32 %v5572, 1.442695
    %v5576 = vpow.pop %v5575
    %v5577 = vmul.f32 %v5573, 1.442695
    %v5578 = vpow.pop %v5577
    %v5579 = vmul.f32 %v5574, 1.442695
    %v5580 = vpow.pop %v5579
    %v5581 = vadd.f32 %v5576, 1.0
    %v5582 = vadd.f32 %v5578, 1.0
    %v5583 = vadd.f32 %v5580, 1.0
    %v5584 = vrcp.pop %v5581
    %v5585 = vmul.f32 1.0, %v5584
    %v5586 = vrcp.pop %v5582
    %v5587 = vmul.f32 1.0, %v5586
    %v5588 = vrcp.pop %v5583
    %v5589 = vmul.f32 1.0, %v5588
    %v5590 = vtanh.pop %v5571
    %v5591 = vld [vmem:[#allocation4] sm:$0xff]
    %v5592 = vmul.f32 %v5587, %v5591
    %v5593 = vmul.f32 %v5585, %v5590
    %v5594 = vadd.f32 %v5592, %v5593
    %v5595 = vtanh.pop %v5594
    %v5596 = vmul.f32 %v5589, %v5595
    %5597 = vst [vmem:[#allocation4] sm:$0xff] %v5594
    %5598 = vst [vmem:[#allocation3] sm:$0xff] %v5596
    %v5599 = vld [vmem:[#allocation3] sm:$0xff]
    %v5600 = vld [vmem:[#allocation3 + $0x8] sm:$0xff]
    %v5601 = vpack.c.bf16 %v5599, %v5599
    %v5602 = vpack.c.bf16 %v5600, %v5600
    %v5603 = vld [vmem:[%s4] sm:$0xff]
    %v5604 = vld [vmem:[%s4 + $0x8] sm:$0xff]
    %v5605 = vld [vmem:[%s4 + $0x10] sm:$0xff]
    %v5606 = vld [vmem:[%s4 + $0x18] sm:$0xff]
    %v5607 = vld [vmem:[%s4 + $0x20] sm:$0xff]
    %v5608 = vld [vmem:[%s4 + $0x28] sm:$0xff]
    %v5609 = vld [vmem:[%s4 + $0x30] sm:$0xff]
    %v5610 = vld [vmem:[%s4 + $0x38] sm:$0xff]
    %v5611 = vld [vmem:[%s4 + $0x40] sm:$0xff]
    %v5612 = vld [vmem:[%s4 + $0x48] sm:$0xff]
    %v5613 = vld [vmem:[%s4 + $0x50] sm:$0xff]
    %v5614 = vld [vmem:[%s4 + $0x58] sm:$0xff]
    %v5615 = vld [vmem:[%s4 + $0x60] sm:$0xff]
    %v5616 = vld [vmem:[%s4 + $0x68] sm:$0xff]
    %v5617 = vld [vmem:[%s4 + $0x70] sm:$0xff]
    %v5618 = vld [vmem:[%s4 + $0x78] sm:$0xff]
    %v5619 = vld [vmem:[%s4 + $0x80] sm:$0xff]
    %v5620 = vld [vmem:[%s4 + $0x88] sm:$0xff]
    %v5621 = vld [vmem:[%s4 + $0x90] sm:$0xff]
    %v5622 = vld [vmem:[%s4 + $0x98] sm:$0xff]
    %v5623 = vld [vmem:[%s4 + $0xa0] sm:$0xff]
    %v5624 = vld [vmem:[%s4 + $0xa8] sm:$0xff]
    %v5625 = vld [vmem:[%s4 + $0xb0] sm:$0xff]
    %v5626 = vld [vmem:[%s4 + $0xb8] sm:$0xff]
    %v5627 = vld [vmem:[%s4 + $0xc0] sm:$0xff]
    %v5628 = vld [vmem:[%s4 + $0xc8] sm:$0xff]
    %v5629 = vld [vmem:[%s4 + $0xd0] sm:$0xff]
    %v5630 = vld [vmem:[%s4 + $0xd8] sm:$0xff]
    %v5631 = vld [vmem:[%s4 + $0xe0] sm:$0xff]
    %v5632 = vld [vmem:[%s4 + $0xe8] sm:$0xff]
    %v5633 = vld [vmem:[%s4 + $0xf0] sm:$0xff]
    %v5634 = vld [vmem:[%s4 + $0xf8] sm:$0xff]
    %v5635 = vld [vmem:[%s4 + $0x100] sm:$0xff]
    %v5636 = vld [vmem:[%s4 + $0x108] sm:$0xff]
    %v5637 = vld [vmem:[%s4 + $0x110] sm:$0xff]
    %v5638 = vld [vmem:[%s4 + $0x118] sm:$0xff]
    %v5639 = vld [vmem:[%s4 + $0x120] sm:$0xff]
    %v5640 = vld [vmem:[%s4 + $0x128] sm:$0xff]
    %v5641 = vld [vmem:[%s4 + $0x130] sm:$0xff]
    %v5642 = vld [vmem:[%s4 + $0x138] sm:$0xff]
    %v5643 = vld [vmem:[%s4 + $0x140] sm:$0xff]
    %v5644 = vld [vmem:[%s4 + $0x148] sm:$0xff]
    %v5645 = vld [vmem:[%s4 + $0x150] sm:$0xff]
    %v5646 = vld [vmem:[%s4 + $0x158] sm:$0xff]
    %v5647 = vld [vmem:[%s4 + $0x160] sm:$0xff]
    %v5648 = vld [vmem:[%s4 + $0x168] sm:$0xff]
    %v5649 = vld [vmem:[%s4 + $0x170] sm:$0xff]
    %v5650 = vld [vmem:[%s4 + $0x178] sm:$0xff]
    %v5651 = vld [vmem:[%s4 + $0x180] sm:$0xff]
    %v5652 = vld [vmem:[%s4 + $0x188] sm:$0xff]
    %v5653 = vld [vmem:[%s4 + $0x190] sm:$0xff]
    %v5654 = vld [vmem:[%s4 + $0x198] sm:$0xff]
    %v5655 = vld [vmem:[%s4 + $0x1a0] sm:$0xff]
    %v5656 = vld [vmem:[%s4 + $0x1a8] sm:$0xff]
    %v5657 = vld [vmem:[%s4 + $0x1b0] sm:$0xff]
    %v5658 = vld [vmem:[%s4 + $0x1b8] sm:$0xff]
    %v5659 = vld [vmem:[%s4 + $0x1c0] sm:$0xff]
    %v5660 = vld [vmem:[%s4 + $0x1c8] sm:$0xff]
    %v5661 = vld [vmem:[%s4 + $0x1d0] sm:$0xff]
    %v5662 = vld [vmem:[%s4 + $0x1d8] sm:$0xff]
    %v5663 = vld [vmem:[%s4 + $0x1e0] sm:$0xff]
    %v5664 = vld [vmem:[%s4 + $0x1e8] sm:$0xff]
    %v5665 = vld [vmem:[%s4 + $0x1f0] sm:$0xff]
    %v5666 = vld [vmem:[%s4 + $0x1f8] sm:$0xff]
    %v5667 = vld [vmem:[%s5] sm:$0xf]
    %v5669 = vlaneseq
    %v5670 = vshrl.u32 %v5669, 7
    %v5671 = vsub.s32 0, %v5670
    %v5672 = vrot.slane %v5667, %v5671
    %v5673 = vlaneseq
    %v5674 = vshrl.u32 %v5673, 7
    %v5675 = vsub.s32 1, %v5674
    %v5676 = vrot.slane %v5667, %v5675
    %v5677 = vlaneseq
    %v5678 = vshrl.u32 %v5677, 7
    %v5679 = vsub.s32 2, %v5678
    %v5680 = vrot.slane %v5667, %v5679
    %v5681 = vlaneseq
    %v5682 = vshrl.u32 %v5681, 7
    %v5683 = vsub.s32 3, %v5682
    %v5684 = vrot.slane %v5667, %v5683
    %v5753 = vunpack.c.l.b16 %v5603
    %v5754 = vunpack.c.h.b16 %v5603
    %v5755 = vunpack.c.l.b16 %v5604
    %v5756 = vunpack.c.h.b16 %v5604
    %v5757 = vunpack.c.l.b16 %v5605
    %v5758 = vunpack.c.h.b16 %v5605
    %v5759 = vunpack.c.l.b16 %v5606
    %v5760 = vunpack.c.h.b16 %v5606
    %v5761 = vunpack.c.l.b16 %v5607
    %v5762 = vunpack.c.h.b16 %v5607
    %v5763 = vunpack.c.l.b16 %v5608
    %v5764 = vunpack.c.h.b16 %v5608
    %v5765 = vunpack.c.l.b16 %v5609
    %v5766 = vunpack.c.h.b16 %v5609
    %v5767 = vunpack.c.l.b16 %v5610
    %v5768 = vunpack.c.h.b16 %v5610
    %v5769 = vunpack.c.l.b16 %v5611
    %v5770 = vunpack.c.h.b16 %v5611
    %v5771 = vunpack.c.l.b16 %v5612
    %v5772 = vunpack.c.h.b16 %v5612
    %v5773 = vunpack.c.l.b16 %v5613
    %v5774 = vunpack.c.h.b16 %v5613
    %v5775 = vunpack.c.l.b16 %v5614
    %v5776 = vunpack.c.h.b16 %v5614
    %v5777 = vunpack.c.l.b16 %v5615
    %v5778 = vunpack.c.h.b16 %v5615
    %v5779 = vunpack.c.l.b16 %v5616
    %v5780 = vunpack.c.h.b16 %v5616
    %v5781 = vunpack.c.l.b16 %v5617
    %v5782 = vunpack.c.h.b16 %v5617
    %v5783 = vunpack.c.l.b16 %v5618
    %v5784 = vunpack.c.h.b16 %v5618
    %v5785 = vunpack.c.l.b16 %v5619
    %v5786 = vunpack.c.h.b16 %v5619
    %v5787 = vunpack.c.l.b16 %v5620
    %v5788 = vunpack.c.h.b16 %v5620
    %v5789 = vunpack.c.l.b16 %v5621
    %v5790 = vunpack.c.h.b16 %v5621
    %v5791 = vunpack.c.l.b16 %v5622
    %v5792 = vunpack.c.h.b16 %v5622
    %v5793 = vunpack.c.l.b16 %v5623
    %v5794 = vunpack.c.h.b16 %v5623
    %v5795 = vunpack.c.l.b16 %v5624
    %v5796 = vunpack.c.h.b16 %v5624
    %v5797 = vunpack.c.l.b16 %v5625
    %v5798 = vunpack.c.h.b16 %v5625
    %v5799 = vunpack.c.l.b16 %v5626
    %v5800 = vunpack.c.h.b16 %v5626
    %v5801 = vunpack.c.l.b16 %v5627
    %v5802 = vunpack.c.h.b16 %v5627
    %v5803 = vunpack.c.l.b16 %v5628
    %v5804 = vunpack.c.h.b16 %v5628
    %v5805 = vunpack.c.l.b16 %v5629
    %v5806 = vunpack.c.h.b16 %v5629
    %v5807 = vunpack.c.l.b16 %v5630
    %v5808 = vunpack.c.h.b16 %v5630
    %v5809 = vunpack.c.l.b16 %v5631
    %v5810 = vunpack.c.h.b16 %v5631
    %v5811 = vunpack.c.l.b16 %v5632
    %v5812 = vunpack.c.h.b16 %v5632
    %v5813 = vunpack.c.l.b16 %v5633
    %v5814 = vunpack.c.h.b16 %v5633
    %v5815 = vunpack.c.l.b16 %v5634
    %v5816 = vunpack.c.h.b16 %v5634
    %v5817 = vunpack.c.l.b16 %v5635
    %v5818 = vunpack.c.h.b16 %v5635
    %v5819 = vunpack.c.l.b16 %v5636
    %v5820 = vunpack.c.h.b16 %v5636
    %v5821 = vunpack.c.l.b16 %v5637
    %v5822 = vunpack.c.h.b16 %v5637
    %v5823 = vunpack.c.l.b16 %v5638
    %v5824 = vunpack.c.h.b16 %v5638
    %v5825 = vunpack.c.l.b16 %v5639
    %v5826 = vunpack.c.h.b16 %v5639
    %v5827 = vunpack.c.l.b16 %v5640
    %v5828 = vunpack.c.h.b16 %v5640
    %v5829 = vunpack.c.l.b16 %v5641
    %v5830 = vunpack.c.h.b16 %v5641
    %v5831 = vunpack.c.l.b16 %v5642
    %v5832 = vunpack.c.h.b16 %v5642
    %v5833 = vunpack.c.l.b16 %v5643
    %v5834 = vunpack.c.h.b16 %v5643
    %v5835 = vunpack.c.l.b16 %v5644
    %v5836 = vunpack.c.h.b16 %v5644
    %v5837 = vunpack.c.l.b16 %v5645
    %v5838 = vunpack.c.h.b16 %v5645
    %v5839 = vunpack.c.l.b16 %v5646
    %v5840 = vunpack.c.h.b16 %v5646
    %v5841 = vunpack.c.l.b16 %v5647
    %v5842 = vunpack.c.h.b16 %v5647
    %v5843 = vunpack.c.l.b16 %v5648
    %v5844 = vunpack.c.h.b16 %v5648
    %v5845 = vunpack.c.l.b16 %v5649
    %v5846 = vunpack.c.h.b16 %v5649
    %v5847 = vunpack.c.l.b16 %v5650
    %v5848 = vunpack.c.h.b16 %v5650
    %v5849 = vunpack.c.l.b16 %v5651
    %v5850 = vunpack.c.h.b16 %v5651
    %v5851 = vunpack.c.l.b16 %v5652
    %v5852 = vunpack.c.h.b16 %v5652
    %v5853 = vunpack.c.l.b16 %v5653
    %v5854 = vunpack.c.h.b16 %v5653
    %v5855 = vunpack.c.l.b16 %v5654
    %v5856 = vunpack.c.h.b16 %v5654
    %v5857 = vunpack.c.l.b16 %v5655
    %v5858 = vunpack.c.h.b16 %v5655
    %v5859 = vunpack.c.l.b16 %v5656
    %v5860 = vunpack.c.h.b16 %v5656
    %v5861 = vunpack.c.l.b16 %v5657
    %v5862 = vunpack.c.h.b16 %v5657
    %v5863 = vunpack.c.l.b16 %v5658
    %v5864 = vunpack.c.h.b16 %v5658
    %v5865 = vunpack.c.l.b16 %v5659
    %v5866 = vunpack.c.h.b16 %v5659
    %v5867 = vunpack.c.l.b16 %v5660
    %v5868 = vunpack.c.h.b16 %v5660
    %v5869 = vunpack.c.l.b16 %v5661
    %v5870 = vunpack.c.h.b16 %v5661
    %v5871 = vunpack.c.l.b16 %v5662
    %v5872 = vunpack.c.h.b16 %v5662
    %v5873 = vunpack.c.l.b16 %v5663
    %v5874 = vunpack.c.h.b16 %v5663
    %v5875 = vunpack.c.l.b16 %v5664
    %v5876 = vunpack.c.h.b16 %v5664
    %v5877 = vunpack.c.l.b16 %v5665
    %v5878 = vunpack.c.h.b16 %v5665
    %v5879 = vunpack.c.l.b16 %v5666
    %v5880 = vunpack.c.h.b16 %v5666
    %v5881 = vpack.c.b16 %v5757, %v5753
    %v5882 = vpack.c.b16 %v5758, %v5754
    %v5883 = vpack.c.b16 %v5759, %v5755
    %v5884 = vpack.c.b16 %v5760, %v5756
    %v5885 = vpack.c.b16 %v5765, %v5761
    %v5886 = vpack.c.b16 %v5766, %v5762
    %v5887 = vpack.c.b16 %v5767, %v5763
    %v5888 = vpack.c.b16 %v5768, %v5764
    %v5889 = vpack.c.b16 %v5773, %v5769
    %v5890 = vpack.c.b16 %v5774, %v5770
    %v5891 = vpack.c.b16 %v5775, %v5771
    %v5892 = vpack.c.b16 %v5776, %v5772
    %v5893 = vpack.c.b16 %v5781, %v5777
    %v5894 = vpack.c.b16 %v5782, %v5778
    %v5895 = vpack.c.b16 %v5783, %v5779
    %v5896 = vpack.c.b16 %v5784, %v5780
    %v5897 = vpack.c.b16 %v5789, %v5785
    %v5898 = vpack.c.b16 %v5790, %v5786
    %v5899 = vpack.c.b16 %v5791, %v5787
    %v5900 = vpack.c.b16 %v5792, %v5788
    %v5901 = vpack.c.b16 %v5797, %v5793
    %v5902 = vpack.c.b16 %v5798, %v5794
    %v5903 = vpack.c.b16 %v5799, %v5795
    %v5904 = vpack.c.b16 %v5800, %v5796
    %v5905 = vpack.c.b16 %v5805, %v5801
    %v5906 = vpack.c.b16 %v5806, %v5802
    %v5907 = vpack.c.b16 %v5807, %v5803
    %v5908 = vpack.c.b16 %v5808, %v5804
    %v5909 = vpack.c.b16 %v5813, %v5809
    %v5910 = vpack.c.b16 %v5814, %v5810
    %v5911 = vpack.c.b16 %v5815, %v5811
    %v5912 = vpack.c.b16 %v5816, %v5812
    %v5913 = vpack.c.b16 %v5821, %v5817
    %v5914 = vpack.c.b16 %v5822, %v5818
    %v5915 = vpack.c.b16 %v5823, %v5819
    %v5916 = vpack.c.b16 %v5824, %v5820
    %v5917 = vpack.c.b16 %v5829, %v5825
    %v5918 = vpack.c.b16 %v5830, %v5826
    %v5919 = vpack.c.b16 %v5831, %v5827
    %v5920 = vpack.c.b16 %v5832, %v5828
    %v5921 = vpack.c.b16 %v5837, %v5833
    %v5922 = vpack.c.b16 %v5838, %v5834
    %v5923 = vpack.c.b16 %v5839, %v5835
    %v5924 = vpack.c.b16 %v5840, %v5836
    %v5925 = vpack.c.b16 %v5845, %v5841
    %v5926 = vpack.c.b16 %v5846, %v5842
    %v5927 = vpack.c.b16 %v5847, %v5843
    %v5928 = vpack.c.b16 %v5848, %v5844
    %v5929 = vpack.c.b16 %v5853, %v5849
    %v5930 = vpack.c.b16 %v5854, %v5850
    %v5931 = vpack.c.b16 %v5855, %v5851
    %v5932 = vpack.c.b16 %v5856, %v5852
    %v5933 = vpack.c.b16 %v5861, %v5857
    %v5934 = vpack.c.b16 %v5862, %v5858
    %v5935 = vpack.c.b16 %v5863, %v5859
    %v5936 = vpack.c.b16 %v5864, %v5860
    %v5937 = vpack.c.b16 %v5869, %v5865
    %v5938 = vpack.c.b16 %v5870, %v5866
    %v5939 = vpack.c.b16 %v5871, %v5867
    %v5940 = vpack.c.b16 %v5872, %v5868
    %v5941 = vpack.c.b16 %v5877, %v5873
    %v5942 = vpack.c.b16 %v5878, %v5874
    %v5943 = vpack.c.b16 %v5879, %v5875
    %v5944 = vpack.c.b16 %v5880, %v5876
    %6009 = vmatprep.subr.bf16.mxu0 %v5910
    %6010 = vmatpush1.bf16.msra.mxu0 %v5909
    %6011 = vmatprep.subr.bf16.mxu0 %v5906
    %6012 = vmatpush1.bf16.msra.mxu0 %v5905
    %6013 = vmatprep.subr.bf16.mxu0 %v5902
    %6014 = vmatpush1.bf16.msra.mxu0 %v5901
    %6015 = vmatprep.subr.bf16.mxu0 %v5898
    %6016 = vmatpush1.bf16.msra.mxu0 %v5897
    %6017 = vmatprep.subr.bf16.mxu0 %v5894
    %6018 = vmatpush1.bf16.msra.mxu0 %v5893
    %6019 = vmatprep.subr.bf16.mxu0 %v5890
    %6020 = vmatpush1.bf16.msra.mxu0 %v5889
    %6021 = vmatprep.subr.bf16.mxu0 %v5886
    %6022 = vmatpush1.bf16.msra.mxu0 %v5885
    %6023 = vmatprep.subr.bf16.mxu0 %v5882
    %6024 = vmatpush1.bf16.msra.mxu0 %v5881
    %6025 = vmatprep.subr.bf16.mxu0 %v5942
    %6026 = vmatpush2.bf16.msra.mxu0 %v5941
    %6027 = vmatprep.subr.bf16.mxu0 %v5938
    %6028 = vmatpush2.bf16.msra.mxu0 %v5937
    %6029 = vmatprep.subr.bf16.mxu0 %v5934
    %6030 = vmatpush2.bf16.msra.mxu0 %v5933
    %6031 = vmatprep.subr.bf16.mxu0 %v5930
    %6032 = vmatpush2.bf16.msra.mxu0 %v5929
    %6033 = vmatprep.subr.bf16.mxu0 %v5926
    %6034 = vmatpush2.bf16.msra.mxu0 %v5925
    %6035 = vmatprep.subr.bf16.mxu0 %v5922
    %6036 = vmatpush2.bf16.msra.mxu0 %v5921
    %6037 = vmatprep.subr.bf16.mxu0 %v5918
    %6038 = vmatpush2.bf16.msra.mxu0 %v5917
    %6039 = vmatprep.subr.bf16.mxu0 %v5914
    %6040 = vmatpush2.bf16.msra.mxu0 %v5913
    %6041 = vmatprep.mubr.bf16.mxu0 %v5602
    %6042 = vmatmul.mubr.bf16.gmra.mxu0 %v5601
    %v6043 = vpop.f32.mrf.mxu0
    %v6044 = vadd.f32 %v5672, %v6043
    %v6045 = vpop.f32.mrf.mxu0
    %v6046 = vadd.f32 %v5676, %v6045
    %v6047 = vpop.f32.mrf.mxu0
    %v6048 = vpop.f32.mrf.mxu0
    %6049 = vdwg.mxu0
    %6050 = vmatprep.subr.bf16.mxu0 %v5912
    %6051 = vmatpush1.bf16.msra.mxu0 %v5911
    %6052 = vmatprep.subr.bf16.mxu0 %v5908
    %6053 = vmatpush1.bf16.msra.mxu0 %v5907
    %6054 = vmatprep.subr.bf16.mxu0 %v5904
    %6055 = vmatpush1.bf16.msra.mxu0 %v5903
    %6056 = vmatprep.subr.bf16.mxu0 %v5900
    %6057 = vmatpush1.bf16.msra.mxu0 %v5899
    %6058 = vmatprep.subr.bf16.mxu0 %v5896
    %6059 = vmatpush1.bf16.msra.mxu0 %v5895
    %6060 = vmatprep.subr.bf16.mxu0 %v5892
    %6061 = vmatpush1.bf16.msra.mxu0 %v5891
    %6062 = vmatprep.subr.bf16.mxu0 %v5888
    %6063 = vmatpush1.bf16.msra.mxu0 %v5887
    %6064 = vmatprep.subr.bf16.mxu0 %v5884
    %6065 = vmatpush1.bf16.msra.mxu0 %v5883
    %6066 = vmatprep.subr.bf16.mxu0 %v5944
    %6067 = vmatpush2.bf16.msra.mxu0 %v5943
    %6068 = vmatprep.subr.bf16.mxu0 %v5940
    %6069 = vmatpush2.bf16.msra.mxu0 %v5939
    %6070 = vmatprep.subr.bf16.mxu0 %v5936
    %6071 = vmatpush2.bf16.msra.mxu0 %v5935
    %6072 = vmatprep.subr.bf16.mxu0 %v5932
    %6073 = vmatpush2.bf16.msra.mxu0 %v5931
    %6074 = vmatprep.subr.bf16.mxu0 %v5928
    %6075 = vmatpush2.bf16.msra.mxu0 %v5927
    %6076 = vmatprep.subr.bf16.mxu0 %v5924
    %6077 = vmatpush2.bf16.msra.mxu0 %v5923
    %6078 = vmatprep.subr.bf16.mxu0 %v5920
    %6079 = vmatpush2.bf16.msra.mxu0 %v5919
    %6080 = vmatprep.subr.bf16.mxu0 %v5916
    %6081 = vmatpush2.bf16.msra.mxu0 %v5915
    %6082 = vmatprep.mubr.bf16.mxu0 %v5602
    %6083 = vmatmul.mubr.bf16.gmra.mxu0 %v5601
    %v6084 = vpop.f32.mrf.mxu0
    %v6085 = vadd.f32 %v5680, %v6084
    %v6086 = vpop.f32.mrf.mxu0
    %v6087 = vadd.f32 %v5684, %v6086
    %v6088 = vpop.f32.mrf.mxu0
    %v6089 = vpop.f32.mrf.mxu0
    %6090 = vdwg.mxu0
    %v6091 = vxor.u32 %v6044, 2147483648
    %v6092 = vxor.u32 %v6046, 2147483648
    %v6093 = vxor.u32 %v6085, 2147483648
    %v6094 = vmul.f32 %v6091, 1.442695
    %v6095 = vpow.pop %v6094
    %v6096 = vmul.f32 %v6092, 1.442695
    %v6097 = vpow.pop %v6096
    %v6098 = vmul.f32 %v6093, 1.442695
    %v6099 = vpow.pop %v6098
    %v6100 = vadd.f32 %v6095, 1.0
    %v6101 = vadd.f32 %v6097, 1.0
    %v6102 = vadd.f32 %v6099, 1.0
    %v6103 = vrcp.pop %v6100
    %v6104 = vmul.f32 1.0, %v6103
    %v6105 = vrcp.pop %v6101
    %v6106 = vmul.f32 1.0, %v6105
    %v6107 = vrcp.pop %v6102
    %v6108 = vmul.f32 1.0, %v6107
    %v6109 = vtanh.pop %v6087
    %v6110 = vld [vmem:[#allocation4 + $0x8] sm:$0xff]
    %v6111 = vmul.f32 %v6106, %v6110
    %v6112 = vmul.f32 %v6104, %v6109
    %v6113 = vadd.f32 %v6111, %v6112
    %v6114 = vtanh.pop %v6113
    %v6115 = vmul.f32 %v6108, %v6114
    %6116 = vst [vmem:[#allocation4 + $0x8] sm:$0xff] %v6113
    %6117 = vst [vmem:[#allocation3 + $0x8] sm:$0xff] %v6115
    %v6118 = vld [vmem:[#allocation2 + $0xe0] sm:$0xff]
    %v6119 = vld [vmem:[#allocation2 + $0xe8] sm:$0xff]
    %v6120 = vld [vmem:[#allocation2 + $0xf0] sm:$0xff]
    %v6121 = vld [vmem:[#allocation2 + $0xf8] sm:$0xff]
    %v6122 = vld [vmem:[#allocation3] sm:$0xff]
    %v6123 = vpack.c.bf16 %v6122, %v6122
    %v6124 = vld [vmem:[%s2] sm:$0xff]
    %v6125 = vld [vmem:[%s2 + $0x8] sm:$0xff]
    %v6126 = vld [vmem:[%s2 + $0x10] sm:$0xff]
    %v6127 = vld [vmem:[%s2 + $0x18] sm:$0xff]
    %v6128 = vld [vmem:[%s2 + $0x20] sm:$0xff]
    %v6129 = vld [vmem:[%s2 + $0x28] sm:$0xff]
    %v6130 = vld [vmem:[%s2 + $0x30] sm:$0xff]
    %v6131 = vld [vmem:[%s2 + $0x38] sm:$0xff]
    %v6132 = vld [vmem:[%s2 + $0x40] sm:$0xff]
    %v6133 = vld [vmem:[%s2 + $0x48] sm:$0xff]
    %v6134 = vld [vmem:[%s2 + $0x50] sm:$0xff]
    %v6135 = vld [vmem:[%s2 + $0x58] sm:$0xff]
    %v6136 = vld [vmem:[%s2 + $0x60] sm:$0xff]
    %v6137 = vld [vmem:[%s2 + $0x68] sm:$0xff]
    %v6138 = vld [vmem:[%s2 + $0x70] sm:$0xff]
    %v6139 = vld [vmem:[%s2 + $0x78] sm:$0xff]
    %v6140 = vld [vmem:[%s2 + $0x80] sm:$0xff]
    %v6141 = vld [vmem:[%s2 + $0x88] sm:$0xff]
    %v6142 = vld [vmem:[%s2 + $0x90] sm:$0xff]
    %v6143 = vld [vmem:[%s2 + $0x98] sm:$0xff]
    %v6144 = vld [vmem:[%s2 + $0xa0] sm:$0xff]
    %v6145 = vld [vmem:[%s2 + $0xa8] sm:$0xff]
    %v6146 = vld [vmem:[%s2 + $0xb0] sm:$0xff]
    %v6147 = vld [vmem:[%s2 + $0xb8] sm:$0xff]
    %v6148 = vld [vmem:[%s2 + $0xc0] sm:$0xff]
    %v6149 = vld [vmem:[%s2 + $0xc8] sm:$0xff]
    %v6150 = vld [vmem:[%s2 + $0xd0] sm:$0xff]
    %v6151 = vld [vmem:[%s2 + $0xd8] sm:$0xff]
    %v6152 = vld [vmem:[%s2 + $0xe0] sm:$0xff]
    %v6153 = vld [vmem:[%s2 + $0xe8] sm:$0xff]
    %v6154 = vld [vmem:[%s2 + $0xf0] sm:$0xff]
    %v6155 = vld [vmem:[%s2 + $0xf8] sm:$0xff]
    %v6188 = vunpack.c.l.b16 %v6124
    %v6189 = vunpack.c.h.b16 %v6124
    %v6190 = vunpack.c.l.b16 %v6125
    %v6191 = vunpack.c.h.b16 %v6125
    %v6192 = vunpack.c.l.b16 %v6126
    %v6193 = vunpack.c.h.b16 %v6126
    %v6194 = vunpack.c.l.b16 %v6127
    %v6195 = vunpack.c.h.b16 %v6127
    %v6196 = vunpack.c.l.b16 %v6128
    %v6197 = vunpack.c.h.b16 %v6128
    %v6198 = vunpack.c.l.b16 %v6129
    %v6199 = vunpack.c.h.b16 %v6129
    %v6200 = vunpack.c.l.b16 %v6130
    %v6201 = vunpack.c.h.b16 %v6130
    %v6202 = vunpack.c.l.b16 %v6131
    %v6203 = vunpack.c.h.b16 %v6131
    %v6204 = vunpack.c.l.b16 %v6132
    %v6205 = vunpack.c.h.b16 %v6132
    %v6206 = vunpack.c.l.b16 %v6133
    %v6207 = vunpack.c.h.b16 %v6133
    %v6208 = vunpack.c.l.b16 %v6134
    %v6209 = vunpack.c.h.b16 %v6134
    %v6210 = vunpack.c.l.b16 %v6135
    %v6211 = vunpack.c.h.b16 %v6135
    %v6212 = vunpack.c.l.b16 %v6136
    %v6213 = vunpack.c.h.b16 %v6136
    %v6214 = vunpack.c.l.b16 %v6137
    %v6215 = vunpack.c.h.b16 %v6137
    %v6216 = vunpack.c.l.b16 %v6138
    %v6217 = vunpack.c.h.b16 %v6138
    %v6218 = vunpack.c.l.b16 %v6139
    %v6219 = vunpack.c.h.b16 %v6139
    %v6220 = vunpack.c.l.b16 %v6140
    %v6221 = vunpack.c.h.b16 %v6140
    %v6222 = vunpack.c.l.b16 %v6141
    %v6223 = vunpack.c.h.b16 %v6141
    %v6224 = vunpack.c.l.b16 %v6142
    %v6225 = vunpack.c.h.b16 %v6142
    %v6226 = vunpack.c.l.b16 %v6143
    %v6227 = vunpack.c.h.b16 %v6143
    %v6228 = vunpack.c.l.b16 %v6144
    %v6229 = vunpack.c.h.b16 %v6144
    %v6230 = vunpack.c.l.b16 %v6145
    %v6231 = vunpack.c.h.b16 %v6145
    %v6232 = vunpack.c.l.b16 %v6146
    %v6233 = vunpack.c.h.b16 %v6146
    %v6234 = vunpack.c.l.b16 %v6147
    %v6235 = vunpack.c.h.b16 %v6147
    %v6236 = vunpack.c.l.b16 %v6148
    %v6237 = vunpack.c.h.b16 %v6148
    %v6238 = vunpack.c.l.b16 %v6149
    %v6239 = vunpack.c.h.b16 %v6149
    %v6240 = vunpack.c.l.b16 %v6150
    %v6241 = vunpack.c.h.b16 %v6150
    %v6242 = vunpack.c.l.b16 %v6151
    %v6243 = vunpack.c.h.b16 %v6151
    %v6244 = vunpack.c.l.b16 %v6152
    %v6245 = vunpack.c.h.b16 %v6152
    %v6246 = vunpack.c.l.b16 %v6153
    %v6247 = vunpack.c.h.b16 %v6153
    %v6248 = vunpack.c.l.b16 %v6154
    %v6249 = vunpack.c.h.b16 %v6154
    %v6250 = vunpack.c.l.b16 %v6155
    %v6251 = vunpack.c.h.b16 %v6155
    %v6252 = vpack.c.b16 %v6192, %v6188
    %v6253 = vpack.c.b16 %v6193, %v6189
    %v6254 = vpack.c.b16 %v6194, %v6190
    %v6255 = vpack.c.b16 %v6195, %v6191
    %v6256 = vpack.c.b16 %v6200, %v6196
    %v6257 = vpack.c.b16 %v6201, %v6197
    %v6258 = vpack.c.b16 %v6202, %v6198
    %v6259 = vpack.c.b16 %v6203, %v6199
    %v6260 = vpack.c.b16 %v6208, %v6204
    %v6261 = vpack.c.b16 %v6209, %v6205
    %v6262 = vpack.c.b16 %v6210, %v6206
    %v6263 = vpack.c.b16 %v6211, %v6207
    %v6264 = vpack.c.b16 %v6216, %v6212
    %v6265 = vpack.c.b16 %v6217, %v6213
    %v6266 = vpack.c.b16 %v6218, %v6214
    %v6267 = vpack.c.b16 %v6219, %v6215
    %v6268 = vpack.c.b16 %v6224, %v6220
    %v6269 = vpack.c.b16 %v6225, %v6221
    %v6270 = vpack.c.b16 %v6226, %v6222
    %v6271 = vpack.c.b16 %v6227, %v6223
    %v6272 = vpack.c.b16 %v6232, %v6228
    %v6273 = vpack.c.b16 %v6233, %v6229
    %v6274 = vpack.c.b16 %v6234, %v6230
    %v6275 = vpack.c.b16 %v6235, %v6231
    %v6276 = vpack.c.b16 %v6240, %v6236
    %v6277 = vpack.c.b16 %v6241, %v6237
    %v6278 = vpack.c.b16 %v6242, %v6238
    %v6279 = vpack.c.b16 %v6243, %v6239
    %v6280 = vpack.c.b16 %v6248, %v6244
    %v6281 = vpack.c.b16 %v6249, %v6245
    %v6282 = vpack.c.b16 %v6250, %v6246
    %v6283 = vpack.c.b16 %v6251, %v6247
    %6316 = vmatprep.subr.bf16.mxu0 %v6281
    %6317 = vmatpush1.bf16.msra.mxu0 %v6280
    %6318 = vmatprep.subr.bf16.mxu0 %v6277
    %6319 = vmatpush1.bf16.msra.mxu0 %v6276
    %6320 = vmatprep.subr.bf16.mxu0 %v6273
    %6321 = vmatpush1.bf16.msra.mxu0 %v6272
    %6322 = vmatprep.subr.bf16.mxu0 %v6269
    %6323 = vmatpush1.bf16.msra.mxu0 %v6268
    %6324 = vmatprep.subr.bf16.mxu0 %v6265
    %6325 = vmatpush1.bf16.msra.mxu0 %v6264
    %6326 = vmatprep.subr.bf16.mxu0 %v6261
    %6327 = vmatpush1.bf16.msra.mxu0 %v6260
    %6328 = vmatprep.subr.bf16.mxu0 %v6257
    %6329 = vmatpush1.bf16.msra.mxu0 %v6256
    %6330 = vmatprep.subr.bf16.mxu0 %v6253
    %6331 = vmatpush1.bf16.msra.mxu0 %v6252
    %6332 = vmatprep.subr.bf16.mxu0 0
    %6333 = vmatpush2.bf16.msra.mxu0 0
    %6334 = vmatprep.subr.bf16.mxu0 0
    %6335 = vmatpush2.bf16.msra.mxu0 0
    %6336 = vmatprep.subr.bf16.mxu0 0
    %6337 = vmatpush2.bf16.msra.mxu0 0
    %6338 = vmatprep.subr.bf16.mxu0 0
    %6339 = vmatpush2.bf16.msra.mxu0 0
    %6340 = vmatprep.subr.bf16.mxu0 0
    %6341 = vmatpush2.bf16.msra.mxu0 0
    %6342 = vmatprep.subr.bf16.mxu0 0
    %6343 = vmatpush2.bf16.msra.mxu0 0
    %6344 = vmatprep.subr.bf16.mxu0 0
    %6345 = vmatpush2.bf16.msra.mxu0 0
    %6346 = vmatprep.subr.bf16.mxu0 0
    %6347 = vmatpush2.bf16.msra.mxu0 0
    %6348 = vmatprep.mubr.bf16.mxu0 0
    %6349 = vmatmul.mubr.bf16.gmra.mxu0 %v6123
    %v6350 = vpop.f32.mrf.mxu0
    %v6351 = vadd.f32 0.0, %v6350
    %v6352 = vpop.f32.mrf.mxu0
    %v6353 = vadd.f32 0.0, %v6352
    %v6354 = vpop.f32.mrf.mxu0
    %v6355 = vpop.f32.mrf.mxu0
    %6356 = vdwg.mxu0
    %6357 = vmatprep.subr.bf16.mxu0 %v6283
    %6358 = vmatpush1.bf16.msra.mxu0 %v6282
    %6359 = vmatprep.subr.bf16.mxu0 %v6279
    %6360 = vmatpush1.bf16.msra.mxu0 %v6278
    %6361 = vmatprep.subr.bf16.mxu0 %v6275
    %6362 = vmatpush1.bf16.msra.mxu0 %v6274
    %6363 = vmatprep.subr.bf16.mxu0 %v6271
    %6364 = vmatpush1.bf16.msra.mxu0 %v6270
    %6365 = vmatprep.subr.bf16.mxu0 %v6267
    %6366 = vmatpush1.bf16.msra.mxu0 %v6266
    %6367 = vmatprep.subr.bf16.mxu0 %v6263
    %6368 = vmatpush1.bf16.msra.mxu0 %v6262
    %6369 = vmatprep.subr.bf16.mxu0 %v6259
    %6370 = vmatpush1.bf16.msra.mxu0 %v6258
    %6371 = vmatprep.subr.bf16.mxu0 %v6255
    %6372 = vmatpush1.bf16.msra.mxu0 %v6254
    %6373 = vmatprep.subr.bf16.mxu0 0
    %6374 = vmatpush2.bf16.msra.mxu0 0
    %6375 = vmatprep.subr.bf16.mxu0 0
    %6376 = vmatpush2.bf16.msra.mxu0 0
    %6377 = vmatprep.subr.bf16.mxu0 0
    %6378 = vmatpush2.bf16.msra.mxu0 0
    %6379 = vmatprep.subr.bf16.mxu0 0
    %6380 = vmatpush2.bf16.msra.mxu0 0
    %6381 = vmatprep.subr.bf16.mxu0 0
    %6382 = vmatpush2.bf16.msra.mxu0 0
    %6383 = vmatprep.subr.bf16.mxu0 0
    %6384 = vmatpush2.bf16.msra.mxu0 0
    %6385 = vmatprep.subr.bf16.mxu0 0
    %6386 = vmatpush2.bf16.msra.mxu0 0
    %6387 = vmatprep.subr.bf16.mxu0 0
    %6388 = vmatpush2.bf16.msra.mxu0 0
    %6389 = vmatprep.mubr.bf16.mxu0 0
    %6390 = vmatmul.mubr.bf16.gmra.mxu0 %v6123
    %v6391 = vpop.f32.mrf.mxu0
    %v6392 = vadd.f32 0.0, %v6391
    %v6393 = vpop.f32.mrf.mxu0
    %v6394 = vadd.f32 0.0, %v6393
    %v6395 = vpop.f32.mrf.mxu0
    %v6396 = vpop.f32.mrf.mxu0
    %6397 = vdwg.mxu0
    %v6398 = vadd.f32 %v6118, %v6351
    %v6399 = vadd.f32 %v6119, %v6353
    %v6400 = vadd.f32 %v6120, %v6392
    %v6401 = vadd.f32 %v6121, %v6394
    %v6402 = vxor.u32 %v6398, 2147483648
    %v6403 = vxor.u32 %v6399, 2147483648
    %v6404 = vxor.u32 %v6400, 2147483648
    %v6405 = vmul.f32 %v6402, 1.442695
    %v6406 = vpow.pop %v6405
    %v6407 = vmul.f32 %v6403, 1.442695
    %v6408 = vpow.pop %v6407
    %v6409 = vmul.f32 %v6404, 1.442695
    %v6410 = vpow.pop %v6409
    %v6411 = vadd.f32 %v6406, 1.0
    %v6412 = vadd.f32 %v6408, 1.0
    %v6413 = vadd.f32 %v6410, 1.0
    %v6414 = vrcp.pop %v6411
    %v6415 = vmul.f32 1.0, %v6414
    %v6416 = vrcp.pop %v6412
    %v6417 = vmul.f32 1.0, %v6416
    %v6418 = vrcp.pop %v6413
    %v6419 = vmul.f32 1.0, %v6418
    %v6420 = vtanh.pop %v6401
    %v6421 = vld [vmem:[#allocation4] sm:$0xff]
    %v6422 = vmul.f32 %v6417, %v6421
    %v6423 = vmul.f32 %v6415, %v6420
    %v6424 = vadd.f32 %v6422, %v6423
    %v6425 = vtanh.pop %v6424
    %v6426 = vmul.f32 %v6419, %v6425
    %6427 = vst [vmem:[#allocation4] sm:$0xff] %v6424
    %6428 = vst [vmem:[#allocation3] sm:$0xff] %v6426
    %v6429 = vld [vmem:[#allocation3] sm:$0xff]
    %v6430 = vld [vmem:[#allocation3 + $0x8] sm:$0xff]
    %v6431 = vpack.c.bf16 %v6429, %v6429
    %v6432 = vpack.c.bf16 %v6430, %v6430
    %v6433 = vld [vmem:[%s4] sm:$0xff]
    %v6434 = vld [vmem:[%s4 + $0x8] sm:$0xff]
    %v6435 = vld [vmem:[%s4 + $0x10] sm:$0xff]
    %v6436 = vld [vmem:[%s4 + $0x18] sm:$0xff]
    %v6437 = vld [vmem:[%s4 + $0x20] sm:$0xff]
    %v6438 = vld [vmem:[%s4 + $0x28] sm:$0xff]
    %v6439 = vld [vmem:[%s4 + $0x30] sm:$0xff]
    %v6440 = vld [vmem:[%s4 + $0x38] sm:$0xff]
    %v6441 = vld [vmem:[%s4 + $0x40] sm:$0xff]
    %v6442 = vld [vmem:[%s4 + $0x48] sm:$0xff]
    %v6443 = vld [vmem:[%s4 + $0x50] sm:$0xff]
    %v6444 = vld [vmem:[%s4 + $0x58] sm:$0xff]
    %v6445 = vld [vmem:[%s4 + $0x60] sm:$0xff]
    %v6446 = vld [vmem:[%s4 + $0x68] sm:$0xff]
    %v6447 = vld [vmem:[%s4 + $0x70] sm:$0xff]
    %v6448 = vld [vmem:[%s4 + $0x78] sm:$0xff]
    %v6449 = vld [vmem:[%s4 + $0x80] sm:$0xff]
    %v6450 = vld [vmem:[%s4 + $0x88] sm:$0xff]
    %v6451 = vld [vmem:[%s4 + $0x90] sm:$0xff]
    %v6452 = vld [vmem:[%s4 + $0x98] sm:$0xff]
    %v6453 = vld [vmem:[%s4 + $0xa0] sm:$0xff]
    %v6454 = vld [vmem:[%s4 + $0xa8] sm:$0xff]
    %v6455 = vld [vmem:[%s4 + $0xb0] sm:$0xff]
    %v6456 = vld [vmem:[%s4 + $0xb8] sm:$0xff]
    %v6457 = vld [vmem:[%s4 + $0xc0] sm:$0xff]
    %v6458 = vld [vmem:[%s4 + $0xc8] sm:$0xff]
    %v6459 = vld [vmem:[%s4 + $0xd0] sm:$0xff]
    %v6460 = vld [vmem:[%s4 + $0xd8] sm:$0xff]
    %v6461 = vld [vmem:[%s4 + $0xe0] sm:$0xff]
    %v6462 = vld [vmem:[%s4 + $0xe8] sm:$0xff]
    %v6463 = vld [vmem:[%s4 + $0xf0] sm:$0xff]
    %v6464 = vld [vmem:[%s4 + $0xf8] sm:$0xff]
    %v6465 = vld [vmem:[%s4 + $0x100] sm:$0xff]
    %v6466 = vld [vmem:[%s4 + $0x108] sm:$0xff]
    %v6467 = vld [vmem:[%s4 + $0x110] sm:$0xff]
    %v6468 = vld [vmem:[%s4 + $0x118] sm:$0xff]
    %v6469 = vld [vmem:[%s4 + $0x120] sm:$0xff]
    %v6470 = vld [vmem:[%s4 + $0x128] sm:$0xff]
    %v6471 = vld [vmem:[%s4 + $0x130] sm:$0xff]
    %v6472 = vld [vmem:[%s4 + $0x138] sm:$0xff]
    %v6473 = vld [vmem:[%s4 + $0x140] sm:$0xff]
    %v6474 = vld [vmem:[%s4 + $0x148] sm:$0xff]
    %v6475 = vld [vmem:[%s4 + $0x150] sm:$0xff]
    %v6476 = vld [vmem:[%s4 + $0x158] sm:$0xff]
    %v6477 = vld [vmem:[%s4 + $0x160] sm:$0xff]
    %v6478 = vld [vmem:[%s4 + $0x168] sm:$0xff]
    %v6479 = vld [vmem:[%s4 + $0x170] sm:$0xff]
    %v6480 = vld [vmem:[%s4 + $0x178] sm:$0xff]
    %v6481 = vld [vmem:[%s4 + $0x180] sm:$0xff]
    %v6482 = vld [vmem:[%s4 + $0x188] sm:$0xff]
    %v6483 = vld [vmem:[%s4 + $0x190] sm:$0xff]
    %v6484 = vld [vmem:[%s4 + $0x198] sm:$0xff]
    %v6485 = vld [vmem:[%s4 + $0x1a0] sm:$0xff]
    %v6486 = vld [vmem:[%s4 + $0x1a8] sm:$0xff]
    %v6487 = vld [vmem:[%s4 + $0x1b0] sm:$0xff]
    %v6488 = vld [vmem:[%s4 + $0x1b8] sm:$0xff]
    %v6489 = vld [vmem:[%s4 + $0x1c0] sm:$0xff]
    %v6490 = vld [vmem:[%s4 + $0x1c8] sm:$0xff]
    %v6491 = vld [vmem:[%s4 + $0x1d0] sm:$0xff]
    %v6492 = vld [vmem:[%s4 + $0x1d8] sm:$0xff]
    %v6493 = vld [vmem:[%s4 + $0x1e0] sm:$0xff]
    %v6494 = vld [vmem:[%s4 + $0x1e8] sm:$0xff]
    %v6495 = vld [vmem:[%s4 + $0x1f0] sm:$0xff]
    %v6496 = vld [vmem:[%s4 + $0x1f8] sm:$0xff]
    %v6497 = vld [vmem:[%s5] sm:$0xf]
    %v6499 = vlaneseq
    %v6500 = vshrl.u32 %v6499, 7
    %v6501 = vsub.s32 0, %v6500
    %v6502 = vrot.slane %v6497, %v6501
    %v6503 = vlaneseq
    %v6504 = vshrl.u32 %v6503, 7
    %v6505 = vsub.s32 1, %v6504
    %v6506 = vrot.slane %v6497, %v6505
    %v6507 = vlaneseq
    %v6508 = vshrl.u32 %v6507, 7
    %v6509 = vsub.s32 2, %v6508
    %v6510 = vrot.slane %v6497, %v6509
    %v6511 = vlaneseq
    %v6512 = vshrl.u32 %v6511, 7
    %v6513 = vsub.s32 3, %v6512
    %v6514 = vrot.slane %v6497, %v6513
    %v6583 = vunpack.c.l.b16 %v6433
    %v6584 = vunpack.c.h.b16 %v6433
    %v6585 = vunpack.c.l.b16 %v6434
    %v6586 = vunpack.c.h.b16 %v6434
    %v6587 = vunpack.c.l.b16 %v6435
    %v6588 = vunpack.c.h.b16 %v6435
    %v6589 = vunpack.c.l.b16 %v6436
    %v6590 = vunpack.c.h.b16 %v6436
    %v6591 = vunpack.c.l.b16 %v6437
    %v6592 = vunpack.c.h.b16 %v6437
    %v6593 = vunpack.c.l.b16 %v6438
    %v6594 = vunpack.c.h.b16 %v6438
    %v6595 = vunpack.c.l.b16 %v6439
    %v6596 = vunpack.c.h.b16 %v6439
    %v6597 = vunpack.c.l.b16 %v6440
    %v6598 = vunpack.c.h.b16 %v6440
    %v6599 = vunpack.c.l.b16 %v6441
    %v6600 = vunpack.c.h.b16 %v6441
    %v6601 = vunpack.c.l.b16 %v6442
    %v6602 = vunpack.c.h.b16 %v6442
    %v6603 = vunpack.c.l.b16 %v6443
    %v6604 = vunpack.c.h.b16 %v6443
    %v6605 = vunpack.c.l.b16 %v6444
    %v6606 = vunpack.c.h.b16 %v6444
    %v6607 = vunpack.c.l.b16 %v6445
    %v6608 = vunpack.c.h.b16 %v6445
    %v6609 = vunpack.c.l.b16 %v6446
    %v6610 = vunpack.c.h.b16 %v6446
    %v6611 = vunpack.c.l.b16 %v6447
    %v6612 = vunpack.c.h.b16 %v6447
    %v6613 = vunpack.c.l.b16 %v6448
    %v6614 = vunpack.c.h.b16 %v6448
    %v6615 = vunpack.c.l.b16 %v6449
    %v6616 = vunpack.c.h.b16 %v6449
    %v6617 = vunpack.c.l.b16 %v6450
    %v6618 = vunpack.c.h.b16 %v6450
    %v6619 = vunpack.c.l.b16 %v6451
    %v6620 = vunpack.c.h.b16 %v6451
    %v6621 = vunpack.c.l.b16 %v6452
    %v6622 = vunpack.c.h.b16 %v6452
    %v6623 = vunpack.c.l.b16 %v6453
    %v6624 = vunpack.c.h.b16 %v6453
    %v6625 = vunpack.c.l.b16 %v6454
    %v6626 = vunpack.c.h.b16 %v6454
    %v6627 = vunpack.c.l.b16 %v6455
    %v6628 = vunpack.c.h.b16 %v6455
    %v6629 = vunpack.c.l.b16 %v6456
    %v6630 = vunpack.c.h.b16 %v6456
    %v6631 = vunpack.c.l.b16 %v6457
    %v6632 = vunpack.c.h.b16 %v6457
    %v6633 = vunpack.c.l.b16 %v6458
    %v6634 = vunpack.c.h.b16 %v6458
    %v6635 = vunpack.c.l.b16 %v6459
    %v6636 = vunpack.c.h.b16 %v6459
    %v6637 = vunpack.c.l.b16 %v6460
    %v6638 = vunpack.c.h.b16 %v6460
    %v6639 = vunpack.c.l.b16 %v6461
    %v6640 = vunpack.c.h.b16 %v6461
    %v6641 = vunpack.c.l.b16 %v6462
    %v6642 = vunpack.c.h.b16 %v6462
    %v6643 = vunpack.c.l.b16 %v6463
    %v6644 = vunpack.c.h.b16 %v6463
    %v6645 = vunpack.c.l.b16 %v6464
    %v6646 = vunpack.c.h.b16 %v6464
    %v6647 = vunpack.c.l.b16 %v6465
    %v6648 = vunpack.c.h.b16 %v6465
    %v6649 = vunpack.c.l.b16 %v6466
    %v6650 = vunpack.c.h.b16 %v6466
    %v6651 = vunpack.c.l.b16 %v6467
    %v6652 = vunpack.c.h.b16 %v6467
    %v6653 = vunpack.c.l.b16 %v6468
    %v6654 = vunpack.c.h.b16 %v6468
    %v6655 = vunpack.c.l.b16 %v6469
    %v6656 = vunpack.c.h.b16 %v6469
    %v6657 = vunpack.c.l.b16 %v6470
    %v6658 = vunpack.c.h.b16 %v6470
    %v6659 = vunpack.c.l.b16 %v6471
    %v6660 = vunpack.c.h.b16 %v6471
    %v6661 = vunpack.c.l.b16 %v6472
    %v6662 = vunpack.c.h.b16 %v6472
    %v6663 = vunpack.c.l.b16 %v6473
    %v6664 = vunpack.c.h.b16 %v6473
    %v6665 = vunpack.c.l.b16 %v6474
    %v6666 = vunpack.c.h.b16 %v6474
    %v6667 = vunpack.c.l.b16 %v6475
    %v6668 = vunpack.c.h.b16 %v6475
    %v6669 = vunpack.c.l.b16 %v6476
    %v6670 = vunpack.c.h.b16 %v6476
    %v6671 = vunpack.c.l.b16 %v6477
    %v6672 = vunpack.c.h.b16 %v6477
    %v6673 = vunpack.c.l.b16 %v6478
    %v6674 = vunpack.c.h.b16 %v6478
    %v6675 = vunpack.c.l.b16 %v6479
    %v6676 = vunpack.c.h.b16 %v6479
    %v6677 = vunpack.c.l.b16 %v6480
    %v6678 = vunpack.c.h.b16 %v6480
    %v6679 = vunpack.c.l.b16 %v6481
    %v6680 = vunpack.c.h.b16 %v6481
    %v6681 = vunpack.c.l.b16 %v6482
    %v6682 = vunpack.c.h.b16 %v6482
    %v6683 = vunpack.c.l.b16 %v6483
    %v6684 = vunpack.c.h.b16 %v6483
    %v6685 = vunpack.c.l.b16 %v6484
    %v6686 = vunpack.c.h.b16 %v6484
    %v6687 = vunpack.c.l.b16 %v6485
    %v6688 = vunpack.c.h.b16 %v6485
    %v6689 = vunpack.c.l.b16 %v6486
    %v6690 = vunpack.c.h.b16 %v6486
    %v6691 = vunpack.c.l.b16 %v6487
    %v6692 = vunpack.c.h.b16 %v6487
    %v6693 = vunpack.c.l.b16 %v6488
    %v6694 = vunpack.c.h.b16 %v6488
    %v6695 = vunpack.c.l.b16 %v6489
    %v6696 = vunpack.c.h.b16 %v6489
    %v6697 = vunpack.c.l.b16 %v6490
    %v6698 = vunpack.c.h.b16 %v6490
    %v6699 = vunpack.c.l.b16 %v6491
    %v6700 = vunpack.c.h.b16 %v6491
    %v6701 = vunpack.c.l.b16 %v6492
    %v6702 = vunpack.c.h.b16 %v6492
    %v6703 = vunpack.c.l.b16 %v6493
    %v6704 = vunpack.c.h.b16 %v6493
    %v6705 = vunpack.c.l.b16 %v6494
    %v6706 = vunpack.c.h.b16 %v6494
    %v6707 = vunpack.c.l.b16 %v6495
    %v6708 = vunpack.c.h.b16 %v6495
    %v6709 = vunpack.c.l.b16 %v6496
    %v6710 = vunpack.c.h.b16 %v6496
    %v6711 = vpack.c.b16 %v6587, %v6583
    %v6712 = vpack.c.b16 %v6588, %v6584
    %v6713 = vpack.c.b16 %v6589, %v6585
    %v6714 = vpack.c.b16 %v6590, %v6586
    %v6715 = vpack.c.b16 %v6595, %v6591
    %v6716 = vpack.c.b16 %v6596, %v6592
    %v6717 = vpack.c.b16 %v6597, %v6593
    %v6718 = vpack.c.b16 %v6598, %v6594
    %v6719 = vpack.c.b16 %v6603, %v6599
    %v6720 = vpack.c.b16 %v6604, %v6600
    %v6721 = vpack.c.b16 %v6605, %v6601
    %v6722 = vpack.c.b16 %v6606, %v6602
    %v6723 = vpack.c.b16 %v6611, %v6607
    %v6724 = vpack.c.b16 %v6612, %v6608
    %v6725 = vpack.c.b16 %v6613, %v6609
    %v6726 = vpack.c.b16 %v6614, %v6610
    %v6727 = vpack.c.b16 %v6619, %v6615
    %v6728 = vpack.c.b16 %v6620, %v6616
    %v6729 = vpack.c.b16 %v6621, %v6617
    %v6730 = vpack.c.b16 %v6622, %v6618
    %v6731 = vpack.c.b16 %v6627, %v6623
    %v6732 = vpack.c.b16 %v6628, %v6624
    %v6733 = vpack.c.b16 %v6629, %v6625
    %v6734 = vpack.c.b16 %v6630, %v6626
    %v6735 = vpack.c.b16 %v6635, %v6631
    %v6736 = vpack.c.b16 %v6636, %v6632
    %v6737 = vpack.c.b16 %v6637, %v6633
    %v6738 = vpack.c.b16 %v6638, %v6634
    %v6739 = vpack.c.b16 %v6643, %v6639
    %v6740 = vpack.c.b16 %v6644, %v6640
    %v6741 = vpack.c.b16 %v6645, %v6641
    %v6742 = vpack.c.b16 %v6646, %v6642
    %v6743 = vpack.c.b16 %v6651, %v6647
    %v6744 = vpack.c.b16 %v6652, %v6648
    %v6745 = vpack.c.b16 %v6653, %v6649
    %v6746 = vpack.c.b16 %v6654, %v6650
    %v6747 = vpack.c.b16 %v6659, %v6655
    %v6748 = vpack.c.b16 %v6660, %v6656
    %v6749 = vpack.c.b16 %v6661, %v6657
    %v6750 = vpack.c.b16 %v6662, %v6658
    %v6751 = vpack.c.b16 %v6667, %v6663
    %v6752 = vpack.c.b16 %v6668, %v6664
    %v6753 = vpack.c.b16 %v6669, %v6665
    %v6754 = vpack.c.b16 %v6670, %v6666
    %v6755 = vpack.c.b16 %v6675, %v6671
    %v6756 = vpack.c.b16 %v6676, %v6672
    %v6757 = vpack.c.b16 %v6677, %v6673
    %v6758 = vpack.c.b16 %v6678, %v6674
    %v6759 = vpack.c.b16 %v6683, %v6679
    %v6760 = vpack.c.b16 %v6684, %v6680
    %v6761 = vpack.c.b16 %v6685, %v6681
    %v6762 = vpack.c.b16 %v6686, %v6682
    %v6763 = vpack.c.b16 %v6691, %v6687
    %v6764 = vpack.c.b16 %v6692, %v6688
    %v6765 = vpack.c.b16 %v6693, %v6689
    %v6766 = vpack.c.b16 %v6694, %v6690
    %v6767 = vpack.c.b16 %v6699, %v6695
    %v6768 = vpack.c.b16 %v6700, %v6696
    %v6769 = vpack.c.b16 %v6701, %v6697
    %v6770 = vpack.c.b16 %v6702, %v6698
    %v6771 = vpack.c.b16 %v6707, %v6703
    %v6772 = vpack.c.b16 %v6708, %v6704
    %v6773 = vpack.c.b16 %v6709, %v6705
    %v6774 = vpack.c.b16 %v6710, %v6706
    %6839 = vmatprep.subr.bf16.mxu0 %v6740
    %6840 = vmatpush1.bf16.msra.mxu0 %v6739
    %6841 = vmatprep.subr.bf16.mxu0 %v6736
    %6842 = vmatpush1.bf16.msra.mxu0 %v6735
    %6843 = vmatprep.subr.bf16.mxu0 %v6732
    %6844 = vmatpush1.bf16.msra.mxu0 %v6731
    %6845 = vmatprep.subr.bf16.mxu0 %v6728
    %6846 = vmatpush1.bf16.msra.mxu0 %v6727
    %6847 = vmatprep.subr.bf16.mxu0 %v6724
    %6848 = vmatpush1.bf16.msra.mxu0 %v6723
    %6849 = vmatprep.subr.bf16.mxu0 %v6720
    %6850 = vmatpush1.bf16.msra.mxu0 %v6719
    %6851 = vmatprep.subr.bf16.mxu0 %v6716
    %6852 = vmatpush1.bf16.msra.mxu0 %v6715
    %6853 = vmatprep.subr.bf16.mxu0 %v6712
    %6854 = vmatpush1.bf16.msra.mxu0 %v6711
    %6855 = vmatprep.subr.bf16.mxu0 %v6772
    %6856 = vmatpush2.bf16.msra.mxu0 %v6771
    %6857 = vmatprep.subr.bf16.mxu0 %v6768
    %6858 = vmatpush2.bf16.msra.mxu0 %v6767
    %6859 = vmatprep.subr.bf16.mxu0 %v6764
    %6860 = vmatpush2.bf16.msra.mxu0 %v6763
    %6861 = vmatprep.subr.bf16.mxu0 %v6760
    %6862 = vmatpush2.bf16.msra.mxu0 %v6759
    %6863 = vmatprep.subr.bf16.mxu0 %v6756
    %6864 = vmatpush2.bf16.msra.mxu0 %v6755
    %6865 = vmatprep.subr.bf16.mxu0 %v6752
    %6866 = vmatpush2.bf16.msra.mxu0 %v6751
    %6867 = vmatprep.subr.bf16.mxu0 %v6748
    %6868 = vmatpush2.bf16.msra.mxu0 %v6747
    %6869 = vmatprep.subr.bf16.mxu0 %v6744
    %6870 = vmatpush2.bf16.msra.mxu0 %v6743
    %6871 = vmatprep.mubr.bf16.mxu0 %v6432
    %6872 = vmatmul.mubr.bf16.gmra.mxu0 %v6431
    %v6873 = vpop.f32.mrf.mxu0
    %v6874 = vadd.f32 %v6502, %v6873
    %v6875 = vpop.f32.mrf.mxu0
    %v6876 = vadd.f32 %v6506, %v6875
    %v6877 = vpop.f32.mrf.mxu0
    %v6878 = vpop.f32.mrf.mxu0
    %6879 = vdwg.mxu0
    %6880 = vmatprep.subr.bf16.mxu0 %v6742
    %6881 = vmatpush1.bf16.msra.mxu0 %v6741
    %6882 = vmatprep.subr.bf16.mxu0 %v6738
    %6883 = vmatpush1.bf16.msra.mxu0 %v6737
    %6884 = vmatprep.subr.bf16.mxu0 %v6734
    %6885 = vmatpush1.bf16.msra.mxu0 %v6733
    %6886 = vmatprep.subr.bf16.mxu0 %v6730
    %6887 = vmatpush1.bf16.msra.mxu0 %v6729
    %6888 = vmatprep.subr.bf16.mxu0 %v6726
    %6889 = vmatpush1.bf16.msra.mxu0 %v6725
    %6890 = vmatprep.subr.bf16.mxu0 %v6722
    %6891 = vmatpush1.bf16.msra.mxu0 %v6721
    %6892 = vmatprep.subr.bf16.mxu0 %v6718
    %6893 = vmatpush1.bf16.msra.mxu0 %v6717
    %6894 = vmatprep.subr.bf16.mxu0 %v6714
    %6895 = vmatpush1.bf16.msra.mxu0 %v6713
    %6896 = vmatprep.subr.bf16.mxu0 %v6774
    %6897 = vmatpush2.bf16.msra.mxu0 %v6773
    %6898 = vmatprep.subr.bf16.mxu0 %v6770
    %6899 = vmatpush2.bf16.msra.mxu0 %v6769
    %6900 = vmatprep.subr.bf16.mxu0 %v6766
    %6901 = vmatpush2.bf16.msra.mxu0 %v6765
    %6902 = vmatprep.subr.bf16.mxu0 %v6762
    %6903 = vmatpush2.bf16.msra.mxu0 %v6761
    %6904 = vmatprep.subr.bf16.mxu0 %v6758
    %6905 = vmatpush2.bf16.msra.mxu0 %v6757
    %6906 = vmatprep.subr.bf16.mxu0 %v6754
    %6907 = vmatpush2.bf16.msra.mxu0 %v6753
    %6908 = vmatprep.subr.bf16.mxu0 %v6750
    %6909 = vmatpush2.bf16.msra.mxu0 %v6749
    %6910 = vmatprep.subr.bf16.mxu0 %v6746
    %6911 = vmatpush2.bf16.msra.mxu0 %v6745
    %6912 = vmatprep.mubr.bf16.mxu0 %v6432
    %6913 = vmatmul.mubr.bf16.gmra.mxu0 %v6431
    %v6914 = vpop.f32.mrf.mxu0
    %v6915 = vadd.f32 %v6510, %v6914
    %v6916 = vpop.f32.mrf.mxu0
    %v6917 = vadd.f32 %v6514, %v6916
    %v6918 = vpop.f32.mrf.mxu0
    %v6919 = vpop.f32.mrf.mxu0
    %6920 = vdwg.mxu0
    %v6921 = vxor.u32 %v6874, 2147483648
    %v6922 = vxor.u32 %v6876, 2147483648
    %v6923 = vxor.u32 %v6915, 2147483648
    %v6924 = vmul.f32 %v6921, 1.442695
    %v6925 = vpow.pop %v6924
    %v6926 = vmul.f32 %v6922, 1.442695
    %v6927 = vpow.pop %v6926
    %v6928 = vmul.f32 %v6923, 1.442695
    %v6929 = vpow.pop %v6928
    %v6930 = vadd.f32 %v6925, 1.0
    %v6931 = vadd.f32 %v6927, 1.0
    %v6932 = vadd.f32 %v6929, 1.0
    %v6933 = vrcp.pop %v6930
    %v6934 = vmul.f32 1.0, %v6933
    %v6935 = vrcp.pop %v6931
    %v6936 = vmul.f32 1.0, %v6935
    %v6937 = vrcp.pop %v6932
    %v6938 = vmul.f32 1.0, %v6937
    %v6939 = vtanh.pop %v6917
    %v6940 = vld [vmem:[#allocation4 + $0x8] sm:$0xff]
    %v6941 = vmul.f32 %v6936, %v6940
    %v6942 = vmul.f32 %v6934, %v6939
    %v6943 = vadd.f32 %v6941, %v6942
    %v6944 = vtanh.pop %v6943
    %v6945 = vmul.f32 %v6938, %v6944
    %6946 = vst [vmem:[#allocation4 + $0x8] sm:$0xff] %v6943
    %6947 = vst [vmem:[#allocation3 + $0x8] sm:$0xff] %v6945
    %v6948 = vld [vmem:[#allocation3 + $0x8] sm:$0xff]
    %v6949 = vpack.c.bf16 %v6948, %v6948
    %v6950 = vld [vmem:[%s6] sm:$0xf]
    %v6951 = vld [vmem:[%s6 + $0x4] sm:$0xf]
    %v6952 = vld [vmem:[%s6 + $0x8] sm:$0xf]
    %v6953 = vld [vmem:[%s6 + $0xc] sm:$0xf]
    %v6954 = vld [vmem:[%s6 + $0x10] sm:$0xf]
    %v6955 = vld [vmem:[%s6 + $0x14] sm:$0xf]
    %v6956 = vld [vmem:[%s6 + $0x18] sm:$0xf]
    %v6957 = vld [vmem:[%s6 + $0x1c] sm:$0xf]
    %v6958 = vld [vmem:[%s6 + $0x20] sm:$0xf]
    %v6959 = vld [vmem:[%s6 + $0x24] sm:$0xf]
    %v6960 = vld [vmem:[%s6 + $0x28] sm:$0xf]
    %v6961 = vld [vmem:[%s6 + $0x2c] sm:$0xf]
    %v6962 = vld [vmem:[%s6 + $0x30] sm:$0xf]
    %v6963 = vld [vmem:[%s6 + $0x34] sm:$0xf]
    %v6964 = vld [vmem:[%s6 + $0x38] sm:$0xf]
    %v6965 = vld [vmem:[%s6 + $0x3c] sm:$0xf]
    %v6966 = vld [vmem:[%s7] sm:$0x1]
    %v6968 = vlaneseq
    %v6969 = vshrl.u32 %v6968, 7
    %v6970 = vsub.s32 0, %v6969
    %v6971 = vrot.slane %v6966, %v6970
    %v6989 = vunpack.c.l.b16 %v6950
    %v6990 = vunpack.c.l.b16 %v6951
    %v6991 = vunpack.c.l.b16 %v6952
    %v6992 = vunpack.c.l.b16 %v6953
    %v6993 = vunpack.c.l.b16 %v6954
    %v6994 = vunpack.c.l.b16 %v6955
    %v6995 = vunpack.c.l.b16 %v6956
    %v6996 = vunpack.c.l.b16 %v6957
    %v6997 = vunpack.c.l.b16 %v6958
    %v6998 = vunpack.c.l.b16 %v6959
    %v6999 = vunpack.c.l.b16 %v6960
    %v7000 = vunpack.c.l.b16 %v6961
    %v7001 = vunpack.c.l.b16 %v6962
    %v7002 = vunpack.c.l.b16 %v6963
    %v7003 = vunpack.c.l.b16 %v6964
    %v7004 = vunpack.c.l.b16 %v6965
    %v7005 = vpack.c.b16 %v6990, %v6989
    %v7006 = vpack.c.b16 %v6992, %v6991
    %v7007 = vpack.c.b16 %v6994, %v6993
    %v7008 = vpack.c.b16 %v6996, %v6995
    %v7009 = vpack.c.b16 %v6998, %v6997
    %v7010 = vpack.c.b16 %v7000, %v6999
    %v7011 = vpack.c.b16 %v7002, %v7001
    %v7012 = vpack.c.b16 %v7004, %v7003
    %7021 = vmatprep.subr.bf16.mxu0 0
    %7022 = vmatpush1.bf16.msra.mxu0 %v7012
    %7023 = vmatprep.subr.bf16.mxu0 0
    %7024 = vmatpush1.bf16.msra.mxu0 %v7011
    %7025 = vmatprep.subr.bf16.mxu0 0
    %7026 = vmatpush1.bf16.msra.mxu0 %v7010
    %7027 = vmatprep.subr.bf16.mxu0 0
    %7028 = vmatpush1.bf16.msra.mxu0 %v7009
    %7029 = vmatprep.subr.bf16.mxu0 0
    %7030 = vmatpush1.bf16.msra.mxu0 %v7008
    %7031 = vmatprep.subr.bf16.mxu0 0
    %7032 = vmatpush1.bf16.msra.mxu0 %v7007
    %7033 = vmatprep.subr.bf16.mxu0 0
    %7034 = vmatpush1.bf16.msra.mxu0 %v7006
    %7035 = vmatprep.subr.bf16.mxu0 0
    %7036 = vmatpush1.bf16.msra.mxu0 %v7005
    %7037 = vmatprep.subr.bf16.mxu0 0
    %7038 = vmatpush2.bf16.msra.mxu0 0
    %7039 = vmatprep.subr.bf16.mxu0 0
    %7040 = vmatpush2.bf16.msra.mxu0 0
    %7041 = vmatprep.subr.bf16.mxu0 0
    %7042 = vmatpush2.bf16.msra.mxu0 0
    %7043 = vmatprep.subr.bf16.mxu0 0
    %7044 = vmatpush2.bf16.msra.mxu0 0
    %7045 = vmatprep.subr.bf16.mxu0 0
    %7046 = vmatpush2.bf16.msra.mxu0 0
    %7047 = vmatprep.subr.bf16.mxu0 0
    %7048 = vmatpush2.bf16.msra.mxu0 0
    %7049 = vmatprep.subr.bf16.mxu0 0
    %7050 = vmatpush2.bf16.msra.mxu0 0
    %7051 = vmatprep.subr.bf16.mxu0 0
    %7052 = vmatpush2.bf16.msra.mxu0 0
    %7053 = vmatprep.mubr.bf16.mxu0 0
    %7054 = vmatmul.mubr.bf16.gmra.mxu0 %v6949
    %v7055 = vpop.f32.mrf.mxu0
    %v7056 = vadd.f32 %v6971, %v7055
    %v7057 = vpop.f32.mrf.mxu0
    %v7058 = vpop.f32.mrf.mxu0
    %v7059 = vpop.f32.mrf.mxu0
    %7060 = vdwg.mxu0
    %7061 = vst [vmem:[#allocation5] sm:$0xff] %v7056
    // Predicated region
    $region34: #{rnn_model_gen_forward.1} parent=1 // pred_check
      _
    $region35: #{rnn_model_gen_forward.1} parent=1 // pred_check_branch
      %7063 = sbr.rel (0) target = $region37
    $region36: #{rnn_model_gen_forward.1} parent=1 // pred_region
      %s7065 = ssub.s32 128, 128
      %7066 = vsyncadd [#allocation6], %s7065
      %s7068 = sshll.u32 [#allocation5], 4
      %s7069 = int_to_ptr.vmem [resolvable:$true] %s7068
      %7071 = dma.vmem_to_hbm [thread:$0]  %s7069, 128, %s8, [#allocation6]
    $region37: #{rnn_model_gen_forward.1} parent=1 // pred_fallthru
      _
    // Predicated region
    $region38: #{rnn_model_gen_forward.1} parent=1 // pred_check
      _
    $region39: #{rnn_model_gen_forward.1} parent=1 // pred_check_branch
      %7073 = sbr.rel (0) target = $region41
    $region40: #{rnn_model_gen_forward.1} parent=1 // pred_region
      %7074 = dma.done [#allocation6], 128
    $region41: #{rnn_model_gen_forward.1} parent=1 // pred_fallthru
      _
    %7075 = vsyncpa [#allocation6], 1

</llo_original>
